<compile_context>
chip_gen: v5e
topology: v5e:2x2
jax: 0.10.0
libtpu: 0.0.40
codegen_flags: <defaults>
</compile_context>

<pallas_src>
import functools

import jax
import jax.numpy as jnp
import numpy as np
from jax.experimental import pallas as pl
from jax.experimental.pallas import tpu as pltpu

LANE = 128
SUBLANE = 8

_VMEM = pl.BlockSpec(memory_space=pltpu.MemorySpace.VMEM)


def _rup(n, m):
    return ((n + m - 1) // m) * m


def _pad2d(x, rows, cols):
    return jnp.pad(x, ((0, rows - x.shape[0]), (0, cols - x.shape[1])))


@functools.lru_cache(maxsize=None)
def _tpu_vmem_bytes():
    try:
        info = pltpu.get_tpu_info()
        return int(getattr(info, "vmem_capacity_bytes", 128 << 20))
    except Exception:  # pragma: no cover - conservative fallback
        return 128 << 20


def _default_tile_m():
    # v7x: 64 MiB VMEM per TensorCore -> cap row tiles at 512.
    # v5e/v6e: 128 MiB VMEM -> 1024-row tiles reach ~85% of HBM roofline.
    return 512 if _tpu_vmem_bytes() <= (64 << 20) else 1024


# ----------------------------------------------------------------------------
# Pallas kernels
# ----------------------------------------------------------------------------
def _matmul_kernel(x_ref, w_ref, b_ref, o_ref, *, act):
    # y = x @ W + b, W pre-transposed (in, out).  Bias/ReLU in f32, cast on
    # store (bf16 store is lane-dense since N is a multiple of 128).
    y = jnp.dot(x_ref[...], w_ref[...], preferred_element_type=jnp.float32)
    y = y + b_ref[...]
    if act == "relu":
        y = jnp.maximum(y, 0.0)
    o_ref[...] = y.astype(o_ref.dtype)


def matmul_bias_act(x, w, b, act="none", out_dtype=jnp.float32, tile_m=None):
    """Gridded (M-tiled) matmul + bias (+ReLU).  w is (K, N) bf16, x bf16."""
    M, K = x.shape
    N = w.shape[1]
    if tile_m is None:
        tile_m = _default_tile_m()
    tile_m = min(tile_m, _rup(M, SUBLANE))
    Mp = _rup(M, tile_m)
    if Mp != M:
        x = jnp.pad(x, ((0, Mp - M), (0, 0)))

    x_bytes = jnp.dtype(x.dtype).itemsize
    o_bytes = jnp.dtype(out_dtype).itemsize
    # Double-buffered footprint estimate (+50% slack), clamped to the chip.
    need = (2 * tile_m * K * x_bytes + 2 * K * N * 2 + 2 * N * 4
            + 2 * tile_m * N * o_bytes)
    vmem_limit = int(min(_tpu_vmem_bytes() * 3 // 4,
                         max(need * 3 // 2, 32 << 20)))

    out = pl.pallas_call(
        functools.partial(_matmul_kernel, act=act),
        out_shape=jax.ShapeDtypeStruct((Mp, N), out_dtype),
        grid_spec=pltpu.PrefetchScalarGridSpec(
            num_scalar_prefetch=0,
            grid=(Mp // tile_m,),
            in_specs=[pl.BlockSpec((tile_m, K), lambda i: (i, 0)),
                      pl.BlockSpec((K, N), lambda i: (0, 0)),
                      pl.BlockSpec((1, N), lambda i: (0, 0))],
            out_specs=pl.BlockSpec((tile_m, N), lambda i: (i, 0))),
        # "parallel" M axis: shards across v7x's 2 TensorCores (no-op v5e/v6e).
        compiler_params=pltpu.CompilerParams(
            dimension_semantics=("parallel",),
            vmem_limit_bytes=vmem_limit),
    )(x, w, b)
    return out[:M] if Mp != M else out


def _fused_tail_kernel(xf_ref, c1w_ref, c1b_ref, c2w_ref, c2b_ref,
                       fiw_ref, fib_ref,
                       q_ref, wih_ref, whh_ref, bg_ref,
                       wqh_ref, wqc_ref, bq_ref,
                       w1_ref, b1_ref, w2_ref, b2_ref,
                       o_ref, xg_ref):
    """ImgEncoder tail + QstEncoder + VQA answer head in one kernel."""
    # ---- ImgEncoder tail: fc(relu) -> fc(relu) -> fc -> L2 normalize ----
    x = xf_ref[...].astype(c1w_ref.dtype)
    h = jnp.maximum(jnp.dot(x, c1w_ref[...],
                            preferred_element_type=jnp.float32) + c1b_ref[...],
                    0.0)
    h = jnp.maximum(jnp.dot(h.astype(c2w_ref.dtype), c2w_ref[...],
                            preferred_element_type=jnp.float32) + c2b_ref[...],
                    0.0)
    y = (jnp.dot(h.astype(fiw_ref.dtype), fiw_ref[...],
                 preferred_element_type=jnp.float32) + fib_ref[...])
    # rsqrt hits the EUP slot (cheap); eps removes the /0 hazard.  Padded
    # feature lanes are exactly 0 so they do not perturb the norm.
    inv_norm = jax.lax.rsqrt(jnp.sum(y * y, axis=1, keepdims=True) + 1e-12)
    img = y * inv_norm

    # ---- QstEncoder: tanh(word embeddings), LSTM input projection hoisted
    #      out of the recurrent loop as one lane-dense matmul over all T. ----
    T, B, _ = q_ref.shape
    H = whh_ref.shape[0]
    x_all = jnp.tanh(q_ref[...]).reshape(T * B, -1).astype(wih_ref.dtype)
    xg = (jnp.dot(x_all, wih_ref[...], preferred_element_type=jnp.float32)
          + bg_ref[...])
    xg_ref[...] = xg.reshape(T, B, 4 * H)

    whh = whh_ref[...]

    def step(t, carry):
        h_t, c_t = carry
        gates = xg_ref[t] + jnp.dot(h_t.astype(whh.dtype), whh,
                                    preferred_element_type=jnp.float32)
        # PyTorch gate order i, f, g, o.  H is lane-padded to 128, so every
        # gate slice is a whole 128-lane tile (no cross-lane extraction).
        i_g = jax.nn.sigmoid(gates[:, 0 * H:1 * H])
        f_g = jax.nn.sigmoid(gates[:, 1 * H:2 * H])
        g_g = jnp.tanh(gates[:, 2 * H:3 * H])
        o_g = jax.nn.sigmoid(gates[:, 3 * H:4 * H])
        c_t = f_g * c_t + i_g * g_g
        h_t = o_g * jnp.tanh(c_t)
        return h_t, c_t

    h_t, c_t = jax.lax.fori_loop(
        0, T, step,
        (jnp.zeros((B, H), jnp.float32), jnp.zeros((B, H), jnp.float32)),
        unroll=True)

    # QstEncoder head: fc(tanh(cat(h, c))) written as two dots (no concat).
    qst = (jnp.dot(jnp.tanh(h_t).astype(wqh_ref.dtype), wqh_ref[...],
                   preferred_element_type=jnp.float32)
           + jnp.dot(jnp.tanh(c_t).astype(wqc_ref.dtype), wqc_ref[...],
                     preferred_element_type=jnp.float32)
           + bq_ref[...])

    # ---- VqaModel head: mul -> tanh -> [dropout=id] -> fc1 -> tanh ->
    #      [dropout=id] -> fc2 ----
    combined = jnp.tanh(img * qst)
    z = jnp.dot(combined.astype(w1_ref.dtype), w1_ref[...],
                preferred_element_type=jnp.float32) + b1_ref[...]
    z = jnp.tanh(z)
    z = jnp.dot(z.astype(w2_ref.dtype), w2_ref[...],
                preferred_element_type=jnp.float32) + b2_ref[...]
    o_ref[...] = z.astype(o_ref.dtype)


def fused_tail(x_flat, q_seq, p):
    T, B, _ = q_seq.shape
    H = p["lstm_whh"].shape[0]
    A = p["fc2_w"].shape[1]
    return pl.pallas_call(
        _fused_tail_kernel,
        out_shape=jax.ShapeDtypeStruct((B, A), jnp.float32),
        in_specs=[_VMEM] * 18,
        out_specs=_VMEM,
        scratch_shapes=[pltpu.VMEM((T, B, 4 * H), jnp.float32)],
    )(x_flat,
      p["cls1_w"], p["cls1_b"], p["cls2_w"], p["cls2_b"],
      p["img_fc_w"], p["img_fc_b"],
      q_seq, p["lstm_wih"], p["lstm_whh"], p["lstm_b"],
      p["qst_fc_wh"], p["qst_fc_wc"], p["qst_fc_b"],
      p["fc1_w"], p["fc1_b"], p["fc2_w"], p["fc2_b"])


# ----------------------------------------------------------------------------
# JAX glue: conv-as-matmul (im2col, NHWC, bf16), maxpool, embedding lookup
# ----------------------------------------------------------------------------
def conv3x3_relu(x, w, b):
    """x: (B, H, W, Cin) bf16; w: (9*Cin, Cout) bf16 (rows ordered ky, kx, cin);
    b: (1, Cout) f32.  Padding=1, stride=1, fused ReLU, bf16 output.  The
    matmul runs in the gridded Pallas kernel."""
    B, H, W, C = x.shape
    xp = jnp.pad(x, ((0, 0), (1, 1), (1, 1), (0, 0)))          # bf16 already
    cols = [xp[:, ky:ky + H, kx:kx + W, :] for ky in range(3) for kx in range(3)]
    patches = jnp.concatenate(cols, axis=-1).reshape(B * H * W, 9 * C)
    y = matmul_bias_act(patches, w, b, act="relu", out_dtype=jnp.bfloat16)
    return y.reshape(B, H, W, w.shape[1])


def maxpool2(x):
    # bf16 in / bf16 out -> half the HBM bytes of this XLA pass.
    B, H, W, C = x.shape
    return x.reshape(B, H // 2, 2, W // 2, 2, C).max(axis=(2, 4))


# ----------------------------------------------------------------------------
# Parameters: logical (PyTorch-style) init + host-side layout preparation
# ----------------------------------------------------------------------------
def _uni(key, shape, fan_in):
    s = 1.0 / np.sqrt(fan_in)
    return jax.random.uniform(key, shape, jnp.float32, -s, s)


def init_params(key, *, embed_size, qst_vocab_size, ans_vocab_size,
                word_embed_size, hidden_size, in_features,
                c1=128, c2=128, img_hw=16):
    ks = iter(jax.random.split(key, 32))
    flat = c2 * (img_hw // 4) ** 2
    H = hidden_size
    p = {}
    # --- image backbone stand-in (lane-aligned channel widths) ---
    p["conv1_w"] = _uni(next(ks), (c1, 3, 3, 3), 3 * 9)
    p["conv1_b"] = _uni(next(ks), (1, c1), 3 * 9)
    p["conv2_w"] = _uni(next(ks), (c2, c1, 3, 3), c1 * 9)
    p["conv2_b"] = _uni(next(ks), (1, c2), c1 * 9)
    p["cls1_w"] = _uni(next(ks), (in_features, flat), flat)
    p["cls1_b"] = _uni(next(ks), (in_features,), flat)
    p["cls2_w"] = _uni(next(ks), (in_features, in_features), in_features)
    p["cls2_b"] = _uni(next(ks), (in_features,), in_features)
    # --- ImgEncoder.fc ---
    p["img_fc_w"] = _uni(next(ks), (embed_size, in_features), in_features)
    p["img_fc_b"] = _uni(next(ks), (embed_size,), in_features)
    # --- QstEncoder ---
    p["embed"] = jax.random.normal(next(ks), (qst_vocab_size, word_embed_size),
                                   jnp.float32)
    p["lstm_wih"] = _uni(next(ks), (4 * H, word_embed_size), H)
    p["lstm_whh"] = _uni(next(ks), (4 * H, H), H)
    p["lstm_b"] = _uni(next(ks), (4 * H,), H) + _uni(next(ks), (4 * H,), H)
    p["qst_fc_w"] = _uni(next(ks), (embed_size, 2 * H), 2 * H)   # num_layers=1
    p["qst_fc_b"] = _uni(next(ks), (embed_size,), 2 * H)
    # --- VqaModel answer head ---
    p["fc1_w"] = _uni(next(ks), (ans_vocab_size, embed_size), embed_size)
    p["fc1_b"] = _uni(next(ks), (ans_vocab_size,), embed_size)
    p["fc2_w"] = _uni(next(ks), (ans_vocab_size, ans_vocab_size), ans_vocab_size)
    p["fc2_b"] = _uni(next(ks), (ans_vocab_size,), ans_vocab_size)
    return p


def prepare_params(p, *, embed_size, word_embed_size, hidden_size,
                   ans_vocab_size):
    """Host-side layout transform: transpose every weight to (in, out),
    zero-pad feature dims to 128-lane multiples (per gate for the LSTM) and
    cast matmul weights to bf16.  Padded lanes stay exactly 0 everywhere."""
    E = _rup(embed_size, LANE)
    I = _rup(word_embed_size, LANE)
    H = _rup(hidden_size, LANE)
    A = _rup(ans_vocab_size, LANE)
    Hl = hidden_size

    def lin(w, b, in_p, out_p):
        return (_pad2d(w.T, in_p, out_p).astype(jnp.bfloat16),
                _pad2d(b.reshape(1, -1), 1, out_p))

    q = {}
    # conv: (Cout, Cin, 3, 3) -> (9*Cin, Cout), rows ordered [ky, kx, cin]
    # TODO(synk): conv1's K=27 is lane-sparse; fold into a direct-conv kernel
    #             (or pad to 32) when the conv path moves fully in-kernel.
    for name in ("conv1", "conv2"):
        w = p[name + "_w"]
        q[name + "_w"] = (w.transpose(2, 3, 1, 0)
                          .reshape(-1, w.shape[0]).astype(jnp.bfloat16))
        q[name + "_b"] = p[name + "_b"]
    # classifier stand-in (already lane-aligned) + ImgEncoder.fc
    q["cls1_w"], q["cls1_b"] = lin(p["cls1_w"], p["cls1_b"],
                                   p["cls1_w"].shape[1], p["cls1_w"].shape[0])
    q["cls2_w"], q["cls2_b"] = lin(p["cls2_w"], p["cls2_b"],
                                   p["cls2_w"].shape[1], p["cls2_w"].shape[0])
    q["img_fc_w"], q["img_fc_b"] = lin(p["img_fc_w"], p["img_fc_b"],
                                       p["img_fc_w"].shape[1], E)
    # embedding: pad word-embed lanes (gather stays in XLA glue)
    q["embed"] = _pad2d(p["embed"], p["embed"].shape[0], I)

    # LSTM: pad each of the 4 gate blocks (PyTorch order i, f, g, o) to H.
    # NOTE: padded gate weights/biases MUST stay zero and initial h/c zero for
    # the padded-lane invariant (sigmoid(0)=0.5 times a zero cell is zero).
    def pad_gate_w(w, in_l, in_p):
        blocks = [jnp.pad(w[k * Hl:(k + 1) * Hl],
                          ((0, H - Hl), (0, in_p - in_l))) for k in range(4)]
        return jnp.concatenate(blocks, axis=0).T.astype(jnp.bfloat16)

    q["lstm_wih"] = pad_gate_w(p["lstm_wih"], word_embed_size, I)   # (I, 4H)
    q["lstm_whh"] = pad_gate_w(p["lstm_whh"], hidden_size, H)       # (H, 4H)
    b = p["lstm_b"]
    q["lstm_b"] = jnp.concatenate(
        [jnp.pad(b[k * Hl:(k + 1) * Hl], (0, H - Hl)) for k in range(4)]
    ).reshape(1, 4 * H)
    # QstEncoder.fc applied to cat(h, c): split into two (H, E) halves.
    wq = p["qst_fc_w"]
    q["qst_fc_wh"] = _pad2d(wq[:, :Hl].T, H, E).astype(jnp.bfloat16)
    q["qst_fc_wc"] = _pad2d(wq[:, Hl:].T, H, E).astype(jnp.bfloat16)
    q["qst_fc_b"] = _pad2d(p["qst_fc_b"].reshape(1, -1), 1, E)
    # answer head
    q["fc1_w"], q["fc1_b"] = lin(p["fc1_w"], p["fc1_b"], E, A)
    q["fc2_w"], q["fc2_b"] = lin(p["fc2_w"], p["fc2_b"], A, A)
    return q


# ----------------------------------------------------------------------------
# VqaModel forward
# ----------------------------------------------------------------------------
def vqa_forward(params, img, qst, *, ans_vocab_size):
    p = params
    B = img.shape[0]
    BP = _rup(max(B, SUBLANE), SUBLANE)
    # Pad the batch to a sublane multiple once, up front; slice at the end.
    img = jnp.pad(img, ((0, BP - B), (0, 0), (0, 0), (0, 0)))
    qst = jnp.pad(qst, ((0, BP - B), (0, 0)))

    # ---- ImgEncoder: frozen conv backbone (stand-in), bf16 activations ----
    # Cast ONCE before im2col so the 9x-expanded patch buffer is bf16.
    x = jnp.transpose(img, (0, 2, 3, 1)).astype(jnp.bfloat16)  # NCHW -> NHWC
    x = conv3x3_relu(x, p["conv1_w"], p["conv1_b"])
    x = maxpool2(x)
    x = conv3x3_relu(x, p["conv2_w"], p["conv2_b"])
    x = maxpool2(x)
    x_flat = x.reshape(BP, -1)                                  # bf16

    # ---- QstEncoder word embeddings (gather stays in XLA glue) ----
    q = jnp.take(p["embed"], qst, axis=0)                       # (BP, T, I)
    q = jnp.transpose(q, (1, 0, 2))                             # (T, BP, I)

    # ---- One fused kernel: img tail + LSTM/qst head + answer head ----
    logits = fused_tail(x_flat, q, p)
    return logits[:B, :ans_vocab_size]


# ----------------------------------------------------------------------------
if __name__ == "__main__":
    embed_size = 32
    qst_vocab_size = 50
    ans_vocab_size = 10
    word_embed_size = 32
    hidden_size = 32       # num_layers = 1
    in_features = 128      # stand-in for VGG19 classifier width (lane-aligned)
    B, IMG_HW, T = 2, 16, 8

    key = jax.random.PRNGKey(0)
    k_param, k_img, k_qst = jax.random.split(key, 3)

    logical = init_params(k_param, embed_size=embed_size,
                          qst_vocab_size=qst_vocab_size,
                          ans_vocab_size=ans_vocab_size,
                          word_embed_size=word_embed_size,
                          hidden_size=hidden_size,
                          in_features=in_features, img_hw=IMG_HW)
    params = prepare_params(logical, embed_size=embed_size,
                            word_embed_size=word_embed_size,
                            hidden_size=hidden_size,
                            ans_vocab_size=ans_vocab_size)

    img = jax.random.normal(k_img, (B, 3, IMG_HW, IMG_HW), jnp.float32)
    qst = jax.random.randint(k_qst, (B, T), 0, qst_vocab_size, jnp.int32)

    run = jax.jit(functools.partial(vqa_forward, ans_vocab_size=ans_vocab_size))
    out = jax.block_until_ready(run(params, img, qst))
    assert out.shape == (B, ans_vocab_size) and out.dtype == jnp.float32
    assert bool(jnp.all(jnp.isfinite(out)))
    print("KERNEL_OK")
</pallas_src>

<mosaic_0001>
module attributes {stable_mosaic.version = 11 : i64} {
  func.func @_matmul_kernel(%arg0: i32, %arg1: memref<1024x27xbf16, #tpu.memory_space<vmem>>, %arg2: memref<27x128xbf16, #tpu.memory_space<vmem>>, %arg3: memref<1x128xf32, #tpu.memory_space<vmem>>, %arg4: memref<1024x128xbf16, #tpu.memory_space<vmem>>) attributes {dimension_semantics = [#tpu.dimension_semantics<parallel>], iteration_bounds = array<i64: 2>, scalar_prefetch = 0 : i64, scratch_operands = 0 : i64, tpu.core_type = #tpu.core_type<tc>, window_params = [{transform_indices = @transform_0, window_bounds = array<i64: 1024, 27>}, {pipeline_mode = #tpu.pipeline_mode<synchronous>, transform_indices = @transform_1, window_bounds = array<i64: 27, 128>}, {pipeline_mode = #tpu.pipeline_mode<synchronous>, transform_indices = @transform_2, window_bounds = array<i64: 1, 128>}, {transform_indices = @transform_3, window_bounds = array<i64: 1024, 128>}]} {
    %c0 = arith.constant 0 : index
    %c0_0 = arith.constant 0 : index
    %0 = vector.load %arg1[%c0, %c0_0] : memref<1024x27xbf16, #tpu.memory_space<vmem>>, vector<1024x27xbf16>
    %c0_1 = arith.constant 0 : index
    %c0_2 = arith.constant 0 : index
    %1 = vector.load %arg2[%c0_1, %c0_2] : memref<27x128xbf16, #tpu.memory_space<vmem>>, vector<27x128xbf16>
    %cst = arith.constant dense<0.000000e+00> : vector<1024x128xf32>
    %2 = tpu.matmul %0, %1, %cst {dimension_numbers = #tpu.dot_dimension_numbers<[1], [0], [0], [1], [0, 0, 1, 1], [], []>} : vector<1024x27xbf16>, vector<27x128xbf16>, vector<1024x128xf32> -> vector<1024x128xf32>
    %c0_3 = arith.constant 0 : index
    %c0_4 = arith.constant 0 : index
    %3 = vector.load %arg3[%c0_3, %c0_4] : memref<1x128xf32, #tpu.memory_space<vmem>>, vector<1x128xf32>
    %4 = vector.broadcast %3 : vector<1x128xf32> to vector<1024x128xf32>
    %5 = arith.addf %2, %4 : vector<1024x128xf32>
    %cst_5 = arith.constant 0.000000e+00 : f32
    %6 = vector.broadcast %cst_5 : f32 to vector<1024x128xf32>
    %7 = arith.maximumf %5, %6 : vector<1024x128xf32>
    %8 = arith.truncf %7 : vector<1024x128xf32> to vector<1024x128xbf16>
    %c0_6 = arith.constant 0 : index
    %c0_7 = arith.constant 0 : index
    %9 = vector.load %arg4[%c0_6, %c0_7] : memref<1024x128xbf16, #tpu.memory_space<vmem>>, vector<1024x128xbf16>
    tpu.vector_store %arg4[%c0_6, %c0_7], %8 {strides = array<i32>} : memref<1024x128xbf16, #tpu.memory_space<vmem>>, vector<1024x128xbf16>,
    return
  }
  func.func @transform_0(%arg0: i32) -> (i32, i32) {
    %c0_i32 = arith.constant 0 : i32
    %c0_i32_0 = arith.constant 0 : i32
    return %arg0, %c0_i32 : i32, i32
  }
  func.func @transform_1(%arg0: i32) -> (i32, i32) {
    %c0_i32 = arith.constant 0 : i32
    %c0_i32_0 = arith.constant 0 : i32
    %c0_i32_1 = arith.constant 0 : i32
    return %c0_i32, %c0_i32_0 : i32, i32
  }
  func.func @transform_2(%arg0: i32) -> (i32, i32) {
    %c0_i32 = arith.constant 0 : i32
    %c0_i32_0 = arith.constant 0 : i32
    %c0_i32_1 = arith.constant 0 : i32
    return %c0_i32, %c0_i32_0 : i32, i32
  }
  func.func @transform_3(%arg0: i32) -> (i32, i32) {
    %c0_i32 = arith.constant 0 : i32
    %c0_i32_0 = arith.constant 0 : i32
    return %arg0, %c0_i32 : i32, i32
  }
}

module attributes {stable_mosaic.version = 11 : i64} {
  func.func @_matmul_kernel(%arg0: i32, %arg1: memref<512x1152xbf16, #tpu.memory_space<vmem>>, %arg2: memref<1152x128xbf16, #tpu.memory_space<vmem>>, %arg3: memref<1x128xf32, #tpu.memory_space<vmem>>, %arg4: memref<512x128xbf16, #tpu.memory_space<vmem>>) attributes {dimension_semantics = [#tpu.dimension_semantics<parallel>], iteration_bounds = array<i64: 1>, scalar_prefetch = 0 : i64, scratch_operands = 0 : i64, tpu.core_type = #tpu.core_type<tc>, window_params = [{transform_indices = @transform_0, window_bounds = array<i64: 512, 1152>}, {pipeline_mode = #tpu.pipeline_mode<synchronous>, transform_indices = @transform_1, window_bounds = array<i64: 1152, 128>}, {pipeline_mode = #tpu.pipeline_mode<synchronous>, transform_indices = @transform_2, window_bounds = array<i64: 1, 128>}, {transform_indices = @transform_3, window_bounds = array<i64: 512, 128>}]} {
    %c0 = arith.constant 0 : index
    %c0_0 = arith.constant 0 : index
    %0 = vector.load %arg1[%c0, %c0_0] : memref<512x1152xbf16, #tpu.memory_space<vmem>>, vector<512x1152xbf16>
    %c0_1 = arith.constant 0 : index
    %c0_2 = arith.constant 0 : index
    %1 = vector.load %arg2[%c0_1, %c0_2] : memref<1152x128xbf16, #tpu.memory_space<vmem>>, vector<1152x128xbf16>
    %cst = arith.constant dense<0.000000e+00> : vector<512x128xf32>
    %2 = tpu.matmul %0, %1, %cst {dimension_numbers = #tpu.dot_dimension_numbers<[1], [0], [0], [1], [0, 0, 1, 1], [], []>} : vector<512x1152xbf16>, vector<1152x128xbf16>, vector<512x128xf32> -> vector<512x128xf32>
    %c0_3 = arith.constant 0 : index
    %c0_4 = arith.constant 0 : index
    %3 = vector.load %arg3[%c0_3, %c0_4] : memref<1x128xf32, #tpu.memory_space<vmem>>, vector<1x128xf32>
    %4 = vector.broadcast %3 : vector<1x128xf32> to vector<512x128xf32>
    %5 = arith.addf %2, %4 : vector<512x128xf32>
    %cst_5 = arith.constant 0.000000e+00 : f32
    %6 = vector.broadcast %cst_5 : f32 to vector<512x128xf32>
    %7 = arith.maximumf %5, %6 : vector<512x128xf32>
    %8 = arith.truncf %7 : vector<512x128xf32> to vector<512x128xbf16>
    %c0_6 = arith.constant 0 : index
    %c0_7 = arith.constant 0 : index
    %9 = vector.load %arg4[%c0_6, %c0_7] : memref<512x128xbf16, #tpu.memory_space<vmem>>, vector<512x128xbf16>
    tpu.vector_store %arg4[%c0_6, %c0_7], %8 {strides = array<i32>} : memref<512x128xbf16, #tpu.memory_space<vmem>>, vector<512x128xbf16>,
    return
  }
  func.func @transform_0(%arg0: i32) -> (i32, i32) {
    %c0_i32 = arith.constant 0 : i32
    %c0_i32_0 = arith.constant 0 : i32
    return %arg0, %c0_i32 : i32, i32
  }
  func.func @transform_1(%arg0: i32) -> (i32, i32) {
    %c0_i32 = arith.constant 0 : i32
    %c0_i32_0 = arith.constant 0 : i32
    %c0_i32_1 = arith.constant 0 : i32
    return %c0_i32, %c0_i32_0 : i32, i32
  }
  func.func @transform_2(%arg0: i32) -> (i32, i32) {
    %c0_i32 = arith.constant 0 : i32
    %c0_i32_0 = arith.constant 0 : i32
    %c0_i32_1 = arith.constant 0 : i32
    return %c0_i32, %c0_i32_0 : i32, i32
  }
  func.func @transform_3(%arg0: i32) -> (i32, i32) {
    %c0_i32 = arith.constant 0 : i32
    %c0_i32_0 = arith.constant 0 : i32
    return %arg0, %c0_i32 : i32, i32
  }
}

module attributes {stable_mosaic.version = 11 : i64} {
  func.func @_fused_tail_kernel(%arg0: memref<8x2048xbf16, #tpu.memory_space<vmem>>, %arg1: memref<2048x128xbf16, #tpu.memory_space<vmem>>, %arg2: memref<1x128xf32, #tpu.memory_space<vmem>>, %arg3: memref<128x128xbf16, #tpu.memory_space<vmem>>, %arg4: memref<1x128xf32, #tpu.memory_space<vmem>>, %arg5: memref<128x128xbf16, #tpu.memory_space<vmem>>, %arg6: memref<1x128xf32, #tpu.memory_space<vmem>>, %arg7: memref<8x8x128xf32, #tpu.memory_space<vmem>>, %arg8: memref<128x512xbf16, #tpu.memory_space<vmem>>, %arg9: memref<128x512xbf16, #tpu.memory_space<vmem>>, %arg10: memref<1x512xf32, #tpu.memory_space<vmem>>, %arg11: memref<128x128xbf16, #tpu.memory_space<vmem>>, %arg12: memref<128x128xbf16, #tpu.memory_space<vmem>>, %arg13: memref<1x128xf32, #tpu.memory_space<vmem>>, %arg14: memref<128x128xbf16, #tpu.memory_space<vmem>>, %arg15: memref<1x128xf32, #tpu.memory_space<vmem>>, %arg16: memref<128x128xbf16, #tpu.memory_space<vmem>>, %arg17: memref<1x128xf32, #tpu.memory_space<vmem>>, %arg18: memref<8x128xf32, #tpu.memory_space<vmem>>, %arg19: memref<8x8x512xf32, #tpu.memory_space<vmem>>) attributes {dimension_semantics = [], scalar_prefetch = 0 : i64, scratch_operands = 1 : i64, tpu.core_type = #tpu.core_type<tc>} {
    %c0 = arith.constant 0 : index
    %c0_0 = arith.constant 0 : index
    %0 = vector.load %arg0[%c0, %c0_0] : memref<8x2048xbf16, #tpu.memory_space<vmem>>, vector<8x2048xbf16>
    %c0_1 = arith.constant 0 : index
    %c0_2 = arith.constant 0 : index
    %1 = vector.load %arg1[%c0_1, %c0_2] : memref<2048x128xbf16, #tpu.memory_space<vmem>>, vector<2048x128xbf16>
    %cst = arith.constant dense<0.000000e+00> : vector<8x128xf32>
    %2 = tpu.matmul %0, %1, %cst {dimension_numbers = #tpu.dot_dimension_numbers<[1], [0], [0], [1], [0, 0, 1, 1], [], []>} : vector<8x2048xbf16>, vector<2048x128xbf16>, vector<8x128xf32> -> vector<8x128xf32>
    %c0_3 = arith.constant 0 : index
    %c0_4 = arith.constant 0 : index
    %3 = vector.load %arg2[%c0_3, %c0_4] : memref<1x128xf32, #tpu.memory_space<vmem>>, vector<1x128xf32>
    %4 = vector.broadcast %3 : vector<1x128xf32> to vector<8x128xf32>
    %5 = arith.addf %2, %4 : vector<8x128xf32>
    %cst_5 = arith.constant 0.000000e+00 : f32
    %6 = vector.broadcast %cst_5 : f32 to vector<8x128xf32>
    %7 = arith.maximumf %5, %6 : vector<8x128xf32>
    %8 = arith.truncf %7 : vector<8x128xf32> to vector<8x128xbf16>
    %c0_6 = arith.constant 0 : index
    %c0_7 = arith.constant 0 : index
    %9 = vector.load %arg3[%c0_6, %c0_7] : memref<128x128xbf16, #tpu.memory_space<vmem>>, vector<128x128xbf16>
    %cst_8 = arith.constant dense<0.000000e+00> : vector<8x128xf32>
    %10 = tpu.matmul %8, %9, %cst_8 {dimension_numbers = #tpu.dot_dimension_numbers<[1], [0], [0], [1], [0, 0, 1, 1], [], []>} : vector<8x128xbf16>, vector<128x128xbf16>, vector<8x128xf32> -> vector<8x128xf32>
    %c0_9 = arith.constant 0 : index
    %c0_10 = arith.constant 0 : index
    %11 = vector.load %arg4[%c0_9, %c0_10] : memref<1x128xf32, #tpu.memory_space<vmem>>, vector<1x128xf32>
    %12 = vector.broadcast %11 : vector<1x128xf32> to vector<8x128xf32>
    %13 = arith.addf %10, %12 : vector<8x128xf32>
    %cst_11 = arith.constant 0.000000e+00 : f32
    %14 = vector.broadcast %cst_11 : f32 to vector<8x128xf32>
    %15 = arith.maximumf %13, %14 : vector<8x128xf32>
    %16 = arith.truncf %15 : vector<8x128xf32> to vector<8x128xbf16>
    %c0_12 = arith.constant 0 : index
    %c0_13 = arith.constant 0 : index
    %17 = vector.load %arg5[%c0_12, %c0_13] : memref<128x128xbf16, #tpu.memory_space<vmem>>, vector<128x128xbf16>
    %cst_14 = arith.constant dense<0.000000e+00> : vector<8x128xf32>
    %18 = tpu.matmul %16, %17, %cst_14 {dimension_numbers = #tpu.dot_dimension_numbers<[1], [0], [0], [1], [0, 0, 1, 1], [], []>} : vector<8x128xbf16>, vector<128x128xbf16>, vector<8x128xf32> -> vector<8x128xf32>
    %c0_15 = arith.constant 0 : index
    %c0_16 = arith.constant 0 : index
    %19 = vector.load %arg6[%c0_15, %c0_16] : memref<1x128xf32, #tpu.memory_space<vmem>>, vector<1x128xf32>
    %20 = vector.broadcast %19 : vector<1x128xf32> to vector<8x128xf32>
    %21 = arith.addf %18, %20 : vector<8x128xf32>
    %22 = arith.mulf %21, %21 : vector<8x128xf32>
    %cst_17 = arith.constant dense<0.000000e+00> : vector<8xf32>
    %23 = vector.multi_reduction <add>, %22, %cst_17 [1] : vector<8x128xf32> to vector<8xf32>
    %24 = vector.shape_cast %23 : vector<8xf32> to vector<8x1xf32>
    %cst_18 = arith.constant 9.99999996E-13 : f32
    %25 = vector.broadcast %cst_18 : f32 to vector<8x1xf32>
    %26 = arith.addf %24, %25 : vector<8x1xf32>
    %27 = math.rsqrt %26 : vector<8x1xf32>
    %28 = vector.broadcast %27 : vector<8x1xf32> to vector<8x128xf32>
    %29 = arith.mulf %21, %28 : vector<8x128xf32>
    %c0_19 = arith.constant 0 : index
    %c0_20 = arith.constant 0 : index
    %c0_21 = arith.constant 0 : index
    %30 = vector.load %arg7[%c0_19, %c0_20, %c0_21] : memref<8x8x128xf32, #tpu.memory_space<vmem>>, vector<8x8x128xf32>
    %31 = math.tanh %30 : vector<8x8x128xf32>
    %32 = vector.shape_cast %31 : vector<8x8x128xf32> to vector<64x128xf32>
    %33 = arith.truncf %32 : vector<64x128xf32> to vector<64x128xbf16>
    %c0_22 = arith.constant 0 : index
    %c0_23 = arith.constant 0 : index
    %34 = vector.load %arg8[%c0_22, %c0_23] : memref<128x512xbf16, #tpu.memory_space<vmem>>, vector<128x512xbf16>
    %cst_24 = arith.constant dense<0.000000e+00> : vector<64x512xf32>
    %35 = tpu.matmul %33, %34, %cst_24 {dimension_numbers = #tpu.dot_dimension_numbers<[1], [0], [0], [1], [0, 0, 1, 1], [], []>} : vector<64x128xbf16>, vector<128x512xbf16>, vector<64x512xf32> -> vector<64x512xf32>
    %c0_25 = arith.constant 0 : index
    %c0_26 = arith.constant 0 : index
    %36 = vector.load %arg10[%c0_25, %c0_26] : memref<1x512xf32, #tpu.memory_space<vmem>>, vector<1x512xf32>
    %37 = vector.broadcast %36 : vector<1x512xf32> to vector<64x512xf32>
    %38 = arith.addf %35, %37 : vector<64x512xf32>
    %39 = vector.shape_cast %38 : vector<64x512xf32> to vector<8x8x512xf32>
    %c0_27 = arith.constant 0 : index
    %c0_28 = arith.constant 0 : index
    %c0_29 = arith.constant 0 : index
    %40 = vector.load %arg19[%c0_27, %c0_28, %c0_29] : memref<8x8x512xf32, #tpu.memory_space<vmem>>, vector<8x8x512xf32>
    tpu.vector_store %arg19[%c0_27, %c0_28, %c0_29], %39 {strides = array<i32>} : memref<8x8x512xf32, #tpu.memory_space<vmem>>, vector<8x8x512xf32>,
    %c0_30 = arith.constant 0 : index
    %c0_31 = arith.constant 0 : index
    %41 = vector.load %arg9[%c0_30, %c0_31] : memref<128x512xbf16, #tpu.memory_space<vmem>>, vector<128x512xbf16>
    %cst_32 = arith.constant 0.000000e+00 : f32
    %42 = vector.broadcast %cst_32 : f32 to vector<8x128xf32>
    %cst_33 = arith.constant 0.000000e+00 : f32
    %43 = vector.broadcast %cst_33 : f32 to vector<8x128xf32>
    %c0_i32 = arith.constant 0 : i32
    %44 = arith.index_cast %c0_i32 : i32 to index
    %c0_34 = arith.constant 0 : index
    %c0_35 = arith.constant 0 : index
    %45 = vector.load %arg19[%44, %c0_34, %c0_35] : memref<8x8x512xf32, #tpu.memory_space<vmem>>, vector<1x8x512xf32>
    %46 = vector.shape_cast %45 : vector<1x8x512xf32> to vector<8x512xf32>
    %47 = arith.truncf %42 : vector<8x128xf32> to vector<8x128xbf16>
    %cst_36 = arith.constant dense<0.000000e+00> : vector<8x512xf32>
    %48 = tpu.matmul %47, %41, %cst_36 {dimension_numbers = #tpu.dot_dimension_numbers<[1], [0], [0], [1], [0, 0, 1, 1], [], []>} : vector<8x128xbf16>, vector<128x512xbf16>, vector<8x512xf32> -> vector<8x512xf32>
    %49 = arith.addf %46, %48 : vector<8x512xf32>
    %50 = vector.extract_strided_slice %49 {offsets = [0, 0], sizes = [8, 128], strides = [1, 1]} : vector<8x512xf32> to vector<8x128xf32>
    %51 = arith.negf %50 : vector<8x128xf32>
    %52 = math.exp %51 : vector<8x128xf32>
    %cst_37 = arith.constant 1.000000e+00 : f32
    %53 = vector.broadcast %cst_37 : f32 to vector<8x128xf32>
    %54 = arith.addf %53, %52 : vector<8x128xf32>
    %55 = arith.divf %53, %54 : vector<8x128xf32>
    %56 = vector.extract_strided_slice %49 {offsets = [0, 128], sizes = [8, 128], strides = [1, 1]} : vector<8x512xf32> to vector<8x128xf32>
    %57 = arith.negf %56 : vector<8x128xf32>
    %58 = math.exp %57 : vector<8x128xf32>
    %cst_38 = arith.constant 1.000000e+00 : f32
    %59 = vector.broadcast %cst_38 : f32 to vector<8x128xf32>
    %60 = arith.addf %59, %58 : vector<8x128xf32>
    %61 = arith.divf %59, %60 : vector<8x128xf32>
    %62 = vector.extract_strided_slice %49 {offsets = [0, 256], sizes = [8, 128], strides = [1, 1]} : vector<8x512xf32> to vector<8x128xf32>
    %63 = math.tanh %62 : vector<8x128xf32>
    %64 = vector.extract_strided_slice %49 {offsets = [0, 384], sizes = [8, 128], strides = [1, 1]} : vector<8x512xf32> to vector<8x128xf32>
    %65 = arith.negf %64 : vector<8x128xf32>
    %66 = math.exp %65 : vector<8x128xf32>
    %cst_39 = arith.constant 1.000000e+00 : f32
    %67 = vector.broadcast %cst_39 : f32 to vector<8x128xf32>
    %68 = arith.addf %67, %66 : vector<8x128xf32>
    %69 = arith.divf %67, %68 : vector<8x128xf32>
    %70 = arith.mulf %61, %43 : vector<8x128xf32>
    %71 = arith.mulf %55, %63 : vector<8x128xf32>
    %72 = arith.addf %70, %71 : vector<8x128xf32>
    %73 = math.tanh %72 : vector<8x128xf32>
    %74 = arith.mulf %69, %73 : vector<8x128xf32>
    %c1_i32 = arith.constant 1 : i32
    %75 = arith.index_cast %c1_i32 : i32 to index
    %c0_40 = arith.constant 0 : index
    %c0_41 = arith.constant 0 : index
    %76 = vector.load %arg19[%75, %c0_40, %c0_41] : memref<8x8x512xf32, #tpu.memory_space<vmem>>, vector<1x8x512xf32>
    %77 = vector.shape_cast %76 : vector<1x8x512xf32> to vector<8x512xf32>
    %78 = arith.truncf %74 : vector<8x128xf32> to vector<8x128xbf16>
    %cst_42 = arith.constant dense<0.000000e+00> : vector<8x512xf32>
    %79 = tpu.matmul %78, %41, %cst_42 {dimension_numbers = #tpu.dot_dimension_numbers<[1], [0], [0], [1], [0, 0, 1, 1], [], []>} : vector<8x128xbf16>, vector<128x512xbf16>, vector<8x512xf32> -> vector<8x512xf32>
    %80 = arith.addf %77, %79 : vector<8x512xf32>
    %81 = vector.extract_strided_slice %80 {offsets = [0, 0], sizes = [8, 128], strides = [1, 1]} : vector<8x512xf32> to vector<8x128xf32>
    %82 = arith.negf %81 : vector<8x128xf32>
    %83 = math.exp %82 : vector<8x128xf32>
    %cst_43 = arith.constant 1.000000e+00 : f32
    %84 = vector.broadcast %cst_43 : f32 to vector<8x128xf32>
    %85 = arith.addf %84, %83 : vector<8x128xf32>
    %86 = arith.divf %84, %85 : vector<8x128xf32>
    %87 = vector.extract_strided_slice %80 {offsets = [0, 128], sizes = [8, 128], strides = [1, 1]} : vector<8x512xf32> to vector<8x128xf32>
    %88 = arith.negf %87 : vector<8x128xf32>
    %89 = math.exp %88 : vector<8x128xf32>
    %cst_44 = arith.constant 1.000000e+00 : f32
    %90 = vector.broadcast %cst_44 : f32 to vector<8x128xf32>
    %91 = arith.addf %90, %89 : vector<8x128xf32>
    %92 = arith.divf %90, %91 : vector<8x128xf32>
    %93 = vector.extract_strided_slice %80 {offsets = [0, 256], sizes = [8, 128], strides = [1, 1]} : vector<8x512xf32> to vector<8x128xf32>
    %94 = math.tanh %93 : vector<8x128xf32>
    %95 = vector.extract_strided_slice %80 {offsets = [0, 384], sizes = [8, 128], strides = [1, 1]} : vector<8x512xf32> to vector<8x128xf32>
    %96 = arith.negf %95 : vector<8x128xf32>
    %97 = math.exp %96 : vector<8x128xf32>
    %cst_45 = arith.constant 1.000000e+00 : f32
    %98 = vector.broadcast %cst_45 : f32 to vector<8x128xf32>
    %99 = arith.addf %98, %97 : vector<8x128xf32>
    %100 = arith.divf %98, %99 : vector<8x128xf32>
    %101 = arith.mulf %92, %72 : vector<8x128xf32>
    %102 = arith.mulf %86, %94 : vector<8x128xf32>
    %103 = arith.addf %101, %102 : vector<8x128xf32>
    %104 = math.tanh %103 : vector<8x128xf32>
    %105 = arith.mulf %100, %104 : vector<8x128xf32>
    %c2_i32 = arith.constant 2 : i32
    %106 = arith.index_cast %c2_i32 : i32 to index
    %c0_46 = arith.constant 0 : index
    %c0_47 = arith.constant 0 : index
    %107 = vector.load %arg19[%106, %c0_46, %c0_47] : memref<8x8x512xf32, #tpu.memory_space<vmem>>, vector<1x8x512xf32>
    %108 = vector.shape_cast %107 : vector<1x8x512xf32> to vector<8x512xf32>
    %109 = arith.truncf %105 : vector<8x128xf32> to vector<8x128xbf16>
    %cst_48 = arith.constant dense<0.000000e+00> : vector<8x512xf32>
    %110 = tpu.matmul %109, %41, %cst_48 {dimension_numbers = #tpu.dot_dimension_numbers<[1], [0], [0], [1], [0, 0, 1, 1], [], []>} : vector<8x128xbf16>, vector<128x512xbf16>, vector<8x512xf32> -> vector<8x512xf32>
    %111 = arith.addf %108, %110 : vector<8x512xf32>
    %112 = vector.extract_strided_slice %111 {offsets = [0, 0], sizes = [8, 128], strides = [1, 1]} : vector<8x512xf32> to vector<8x128xf32>
    %113 = arith.negf %112 : vector<8x128xf32>
    %114 = math.exp %113 : vector<8x128xf32>
    %cst_49 = arith.constant 1.000000e+00 : f32
    %115 = vector.broadcast %cst_49 : f32 to vector<8x128xf32>
    %116 = arith.addf %115, %114 : vector<8x128xf32>
    %117 = arith.divf %115, %116 : vector<8x128xf32>
    %118 = vector.extract_strided_slice %111 {offsets = [0, 128], sizes = [8, 128], strides = [1, 1]} : vector<8x512xf32> to vector<8x128xf32>
    %119 = arith.negf %118 : vector<8x128xf32>
    %120 = math.exp %119 : vector<8x128xf32>
    %cst_50 = arith.constant 1.000000e+00 : f32
    %121 = vector.broadcast %cst_50 : f32 to vector<8x128xf32>
    %122 = arith.addf %121, %120 : vector<8x128xf32>
    %123 = arith.divf %121, %122 : vector<8x128xf32>
    %124 = vector.extract_strided_slice %111 {offsets = [0, 256], sizes = [8, 128], strides = [1, 1]} : vector<8x512xf32> to vector<8x128xf32>
    %125 = math.tanh %124 : vector<8x128xf32>
    %126 = vector.extract_strided_slice %111 {offsets = [0, 384], sizes = [8, 128], strides = [1, 1]} : vector<8x512xf32> to vector<8x128xf32>
    %127 = arith.negf %126 : vector<8x128xf32>
    %128 = math.exp %127 : vector<8x128xf32>
    %cst_51 = arith.constant 1.000000e+00 : f32
    %129 = vector.broadcast %cst_51 : f32 to vector<8x128xf32>
    %130 = arith.addf %129, %128 : vector<8x128xf32>
    %131 = arith.divf %129, %130 : vector<8x128xf32>
    %132 = arith.mulf %123, %103 : vector<8x128xf32>
    %133 = arith.mulf %117, %125 : vector<8x128xf32>
    %134 = arith.addf %132, %133 : vector<8x128xf32>
    %135 = math.tanh %134 : vector<8x128xf32>
    %136 = arith.mulf %131, %135 : vector<8x128xf32>
    %c3_i32 = arith.constant 3 : i32
    %137 = arith.index_cast %c3_i32 : i32 to index
    %c0_52 = arith.constant 0 : index
    %c0_53 = arith.constant 0 : index
    %138 = vector.load %arg19[%137, %c0_52, %c0_53] : memref<8x8x512xf32, #tpu.memory_space<vmem>>, vector<1x8x512xf32>
    %139 = vector.shape_cast %138 : vector<1x8x512xf32> to vector<8x512xf32>
    %140 = arith.truncf %136 : vector<8x128xf32> to vector<8x128xbf16>
    %cst_54 = arith.constant dense<0.000000e+00> : vector<8x512xf32>
    %141 = tpu.matmul %140, %41, %cst_54 {dimension_numbers = #tpu.dot_dimension_numbers<[1], [0], [0], [1], [0, 0, 1, 1], [], []>} : vector<8x128xbf16>, vector<128x512xbf16>, vector<8x512xf32> -> vector<8x512xf32>
    %142 = arith.addf %139, %141 : vector<8x512xf32>
    %143 = vector.extract_strided_slice %142 {offsets = [0, 0], sizes = [8, 128], strides = [1, 1]} : vector<8x512xf32> to vector<8x128xf32>
    %144 = arith.negf %143 : vector<8x128xf32>
    %145 = math.exp %144 : vector<8x128xf32>
    %cst_55 = arith.constant 1.000000e+00 : f32
    %146 = vector.broadcast %cst_55 : f32 to vector<8x128xf32>
    %147 = arith.addf %146, %145 : vector<8x128xf32>
    %148 = arith.divf %146, %147 : vector<8x128xf32>
    %149 = vector.extract_strided_slice %142 {offsets = [0, 128], sizes = [8, 128], strides = [1, 1]} : vector<8x512xf32> to vector<8x128xf32>
    %150 = arith.negf %149 : vector<8x128xf32>
    %151 = math.exp %150 : vector<8x128xf32>
    %cst_56 = arith.constant 1.000000e+00 : f32
    %152 = vector.broadcast %cst_56 : f32 to vector<8x128xf32>
    %153 = arith.addf %152, %151 : vector<8x128xf32>
    %154 = arith.divf %152, %153 : vector<8x128xf32>
    %155 = vector.extract_strided_slice %142 {offsets = [0, 256], sizes = [8, 128], strides = [1, 1]} : vector<8x512xf32> to vector<8x128xf32>
    %156 = math.tanh %155 : vector<8x128xf32>
    %157 = vector.extract_strided_slice %142 {offsets = [0, 384], sizes = [8, 128], strides = [1, 1]} : vector<8x512xf32> to vector<8x128xf32>
    %158 = arith.negf %157 : vector<8x128xf32>
    %159 = math.exp %158 : vector<8x128xf32>
    %cst_57 = arith.constant 1.000000e+00 : f32
    %160 = vector.broadcast %cst_57 : f32 to vector<8x128xf32>
    %161 = arith.addf %160, %159 : vector<8x128xf32>
    %162 = arith.divf %160, %161 : vector<8x128xf32>
    %163 = arith.mulf %154, %134 : vector<8x128xf32>
    %164 = arith.mulf %148, %156 : vector<8x128xf32>
    %165 = arith.addf %163, %164 : vector<8x128xf32>
    %166 = math.tanh %165 : vector<8x128xf32>
    %167 = arith.mulf %162, %166 : vector<8x128xf32>
    %c4_i32 = arith.constant 4 : i32
    %168 = arith.index_cast %c4_i32 : i32 to index
    %c0_58 = arith.constant 0 : index
    %c0_59 = arith.constant 0 : index
    %169 = vector.load %arg19[%168, %c0_58, %c0_59] : memref<8x8x512xf32, #tpu.memory_space<vmem>>, vector<1x8x512xf32>
    %170 = vector.shape_cast %169 : vector<1x8x512xf32> to vector<8x512xf32>
    %171 = arith.truncf %167 : vector<8x128xf32> to vector<8x128xbf16>
    %cst_60 = arith.constant dense<0.000000e+00> : vector<8x512xf32>
    %172 = tpu.matmul %171, %41, %cst_60 {dimension_numbers = #tpu.dot_dimension_numbers<[1], [0], [0], [1], [0, 0, 1, 1], [], []>} : vector<8x128xbf16>, vector<128x512xbf16>, vector<8x512xf32> -> vector<8x512xf32>
    %173 = arith.addf %170, %172 : vector<8x512xf32>
    %174 = vector.extract_strided_slice %173 {offsets = [0, 0], sizes = [8, 128], strides = [1, 1]} : vector<8x512xf32> to vector<8x128xf32>
    %175 = arith.negf %174 : vector<8x128xf32>
    %176 = math.exp %175 : vector<8x128xf32>
    %cst_61 = arith.constant 1.000000e+00 : f32
    %177 = vector.broadcast %cst_61 : f32 to vector<8x128xf32>
    %178 = arith.addf %177, %176 : vector<8x128xf32>
    %179 = arith.divf %177, %178 : vector<8x128xf32>
    %180 = vector.extract_strided_slice %173 {offsets = [0, 128], sizes = [8, 128], strides = [1, 1]} : vector<8x512xf32> to vector<8x128xf32>
    %181 = arith.negf %180 : vector<8x128xf32>
    %182 = math.exp %181 : vector<8x128xf32>
    %cst_62 = arith.constant 1.000000e+00 : f32
    %183 = vector.broadcast %cst_62 : f32 to vector<8x128xf32>
    %184 = arith.addf %183, %182 : vector<8x128xf32>
    %185 = arith.divf %183, %184 : vector<8x128xf32>
    %186 = vector.extract_strided_slice %173 {offsets = [0, 256], sizes = [8, 128], strides = [1, 1]} : vector<8x512xf32> to vector<8x128xf32>
    %187 = math.tanh %186 : vector<8x128xf32>
    %188 = vector.extract_strided_slice %173 {offsets = [0, 384], sizes = [8, 128], strides = [1, 1]} : vector<8x512xf32> to vector<8x128xf32>
    %189 = arith.negf %188 : vector<8x128xf32>
    %190 = math.exp %189 : vector<8x128xf32>
    %cst_63 = arith.constant 1.000000e+00 : f32
    %191 = vector.broadcast %cst_63 : f32 to vector<8x128xf32>
    %192 = arith.addf %191, %190 : vector<8x128xf32>
    %193 = arith.divf %191, %192 : vector<8x128xf32>
    %194 = arith.mulf %185, %165 : vector<8x128xf32>
    %195 = arith.mulf %179, %187 : vector<8x128xf32>
    %196 = arith.addf %194, %195 : vector<8x128xf32>
    %197 = math.tanh %196 : vector<8x128xf32>
    %198 = arith.mulf %193, %197 : vector<8x128xf32>
    %c5_i32 = arith.constant 5 : i32
    %199 = arith.index_cast %c5_i32 : i32 to index
    %c0_64 = arith.constant 0 : index
    %c0_65 = arith.constant 0 : index
    %200 = vector.load %arg19[%199, %c0_64, %c0_65] : memref<8x8x512xf32, #tpu.memory_space<vmem>>, vector<1x8x512xf32>
    %201 = vector.shape_cast %200 : vector<1x8x512xf32> to vector<8x512xf32>
    %202 = arith.truncf %198 : vector<8x128xf32> to vector<8x128xbf16>
    %cst_66 = arith.constant dense<0.000000e+00> : vector<8x512xf32>
    %203 = tpu.matmul %202, %41, %cst_66 {dimension_numbers = #tpu.dot_dimension_numbers<[1], [0], [0], [1], [0, 0, 1, 1], [], []>} : vector<8x128xbf16>, vector<128x512xbf16>, vector<8x512xf32> -> vector<8x512xf32>
    %204 = arith.addf %201, %203 : vector<8x512xf32>
    %205 = vector.extract_strided_slice %204 {offsets = [0, 0], sizes = [8, 128], strides = [1, 1]} : vector<8x512xf32> to vector<8x128xf32>
    %206 = arith.negf %205 : vector<8x128xf32>
    %207 = math.exp %206 : vector<8x128xf32>
    %cst_67 = arith.constant 1.000000e+00 : f32
    %208 = vector.broadcast %cst_67 : f32 to vector<8x128xf32>
    %209 = arith.addf %208, %207 : vector<8x128xf32>
    %210 = arith.divf %208, %209 : vector<8x128xf32>
    %211 = vector.extract_strided_slice %204 {offsets = [0, 128], sizes = [8, 128], strides = [1, 1]} : vector<8x512xf32> to vector<8x128xf32>
    %212 = arith.negf %211 : vector<8x128xf32>
    %213 = math.exp %212 : vector<8x128xf32>
    %cst_68 = arith.constant 1.000000e+00 : f32
    %214 = vector.broadcast %cst_68 : f32 to vector<8x128xf32>
    %215 = arith.addf %214, %213 : vector<8x128xf32>
    %216 = arith.divf %214, %215 : vector<8x128xf32>
    %217 = vector.extract_strided_slice %204 {offsets = [0, 256], sizes = [8, 128], strides = [1, 1]} : vector<8x512xf32> to vector<8x128xf32>
    %218 = math.tanh %217 : vector<8x128xf32>
    %219 = vector.extract_strided_slice %204 {offsets = [0, 384], sizes = [8, 128], strides = [1, 1]} : vector<8x512xf32> to vector<8x128xf32>
    %220 = arith.negf %219 : vector<8x128xf32>
    %221 = math.exp %220 : vector<8x128xf32>
    %cst_69 = arith.constant 1.000000e+00 : f32
    %222 = vector.broadcast %cst_69 : f32 to vector<8x128xf32>
    %223 = arith.addf %222, %221 : vector<8x128xf32>
    %224 = arith.divf %222, %223 : vector<8x128xf32>
    %225 = arith.mulf %216, %196 : vector<8x128xf32>
    %226 = arith.mulf %210, %218 : vector<8x128xf32>
    %227 = arith.addf %225, %226 : vector<8x128xf32>
    %228 = math.tanh %227 : vector<8x128xf32>
    %229 = arith.mulf %224, %228 : vector<8x128xf32>
    %c6_i32 = arith.constant 6 : i32
    %230 = arith.index_cast %c6_i32 : i32 to index
    %c0_70 = arith.constant 0 : index
    %c0_71 = arith.constant 0 : index
    %231 = vector.load %arg19[%230, %c0_70, %c0_71] : memref<8x8x512xf32, #tpu.memory_space<vmem>>, vector<1x8x512xf32>
    %232 = vector.shape_cast %231 : vector<1x8x512xf32> to vector<8x512xf32>
    %233 = arith.truncf %229 : vector<8x128xf32> to vector<8x128xbf16>
    %cst_72 = arith.constant dense<0.000000e+00> : vector<8x512xf32>
    %234 = tpu.matmul %233, %41, %cst_72 {dimension_numbers = #tpu.dot_dimension_numbers<[1], [0], [0], [1], [0, 0, 1, 1], [], []>} : vector<8x128xbf16>, vector<128x512xbf16>, vector<8x512xf32> -> vector<8x512xf32>
    %235 = arith.addf %232, %234 : vector<8x512xf32>
    %236 = vector.extract_strided_slice %235 {offsets = [0, 0], sizes = [8, 128], strides = [1, 1]} : vector<8x512xf32> to vector<8x128xf32>
    %237 = arith.negf %236 : vector<8x128xf32>
    %238 = math.exp %237 : vector<8x128xf32>
    %cst_73 = arith.constant 1.000000e+00 : f32
    %239 = vector.broadcast %cst_73 : f32 to vector<8x128xf32>
    %240 = arith.addf %239, %238 : vector<8x128xf32>
    %241 = arith.divf %239, %240 : vector<8x128xf32>
    %242 = vector.extract_strided_slice %235 {offsets = [0, 128], sizes = [8, 128], strides = [1, 1]} : vector<8x512xf32> to vector<8x128xf32>
    %243 = arith.negf %242 : vector<8x128xf32>
    %244 = math.exp %243 : vector<8x128xf32>
    %cst_74 = arith.constant 1.000000e+00 : f32
    %245 = vector.broadcast %cst_74 : f32 to vector<8x128xf32>
    %246 = arith.addf %245, %244 : vector<8x128xf32>
    %247 = arith.divf %245, %246 : vector<8x128xf32>
    %248 = vector.extract_strided_slice %235 {offsets = [0, 256], sizes = [8, 128], strides = [1, 1]} : vector<8x512xf32> to vector<8x128xf32>
    %249 = math.tanh %248 : vector<8x128xf32>
    %250 = vector.extract_strided_slice %235 {offsets = [0, 384], sizes = [8, 128], strides = [1, 1]} : vector<8x512xf32> to vector<8x128xf32>
    %251 = arith.negf %250 : vector<8x128xf32>
    %252 = math.exp %251 : vector<8x128xf32>
    %cst_75 = arith.constant 1.000000e+00 : f32
    %253 = vector.broadcast %cst_75 : f32 to vector<8x128xf32>
    %254 = arith.addf %253, %252 : vector<8x128xf32>
    %255 = arith.divf %253, %254 : vector<8x128xf32>
    %256 = arith.mulf %247, %227 : vector<8x128xf32>
    %257 = arith.mulf %241, %249 : vector<8x128xf32>
    %258 = arith.addf %256, %257 : vector<8x128xf32>
    %259 = math.tanh %258 : vector<8x128xf32>
    %260 = arith.mulf %255, %259 : vector<8x128xf32>
    %c7_i32 = arith.constant 7 : i32
    %261 = arith.index_cast %c7_i32 : i32 to index
    %c0_76 = arith.constant 0 : index
    %c0_77 = arith.constant 0 : index
    %262 = vector.load %arg19[%261, %c0_76, %c0_77] : memref<8x8x512xf32, #tpu.memory_space<vmem>>, vector<1x8x512xf32>
    %263 = vector.shape_cast %262 : vector<1x8x512xf32> to vector<8x512xf32>
    %264 = arith.truncf %260 : vector<8x128xf32> to vector<8x128xbf16>
    %cst_78 = arith.constant dense<0.000000e+00> : vector<8x512xf32>
    %265 = tpu.matmul %264, %41, %cst_78 {dimension_numbers = #tpu.dot_dimension_numbers<[1], [0], [0], [1], [0, 0, 1, 1], [], []>} : vector<8x128xbf16>, vector<128x512xbf16>, vector<8x512xf32> -> vector<8x512xf32>
    %266 = arith.addf %263, %265 : vector<8x512xf32>
    %267 = vector.extract_strided_slice %266 {offsets = [0, 0], sizes = [8, 128], strides = [1, 1]} : vector<8x512xf32> to vector<8x128xf32>
    %268 = arith.negf %267 : vector<8x128xf32>
    %269 = math.exp %268 : vector<8x128xf32>
    %cst_79 = arith.constant 1.000000e+00 : f32
    %270 = vector.broadcast %cst_79 : f32 to vector<8x128xf32>
    %271 = arith.addf %270, %269 : vector<8x128xf32>
    %272 = arith.divf %270, %271 : vector<8x128xf32>
    %273 = vector.extract_strided_slice %266 {offsets = [0, 128], sizes = [8, 128], strides = [1, 1]} : vector<8x512xf32> to vector<8x128xf32>
    %274 = arith.negf %273 : vector<8x128xf32>
    %275 = math.exp %274 : vector<8x128xf32>
    %cst_80 = arith.constant 1.000000e+00 : f32
    %276 = vector.broadcast %cst_80 : f32 to vector<8x128xf32>
    %277 = arith.addf %276, %275 : vector<8x128xf32>
    %278 = arith.divf %276, %277 : vector<8x128xf32>
    %279 = vector.extract_strided_slice %266 {offsets = [0, 256], sizes = [8, 128], strides = [1, 1]} : vector<8x512xf32> to vector<8x128xf32>
    %280 = math.tanh %279 : vector<8x128xf32>
    %281 = vector.extract_strided_slice %266 {offsets = [0, 384], sizes = [8, 128], strides = [1, 1]} : vector<8x512xf32> to vector<8x128xf32>
    %282 = arith.negf %281 : vector<8x128xf32>
    %283 = math.exp %282 : vector<8x128xf32>
    %cst_81 = arith.constant 1.000000e+00 : f32
    %284 = vector.broadcast %cst_81 : f32 to vector<8x128xf32>
    %285 = arith.addf %284, %283 : vector<8x128xf32>
    %286 = arith.divf %284, %285 : vector<8x128xf32>
    %287 = arith.mulf %278, %258 : vector<8x128xf32>
    %288 = arith.mulf %272, %280 : vector<8x128xf32>
    %289 = arith.addf %287, %288 : vector<8x128xf32>
    %290 = math.tanh %289 : vector<8x128xf32>
    %291 = arith.mulf %286, %290 : vector<8x128xf32>
    %c8_i32 = arith.constant 8 : i32
    %292 = math.tanh %291 : vector<8x128xf32>
    %293 = arith.truncf %292 : vector<8x128xf32> to vector<8x128xbf16>
    %c0_82 = arith.constant 0 : index
    %c0_83 = arith.constant 0 : index
    %294 = vector.load %arg11[%c0_82, %c0_83] : memref<128x128xbf16, #tpu.memory_space<vmem>>, vector<128x128xbf16>
    %cst_84 = arith.constant dense<0.000000e+00> : vector<8x128xf32>
    %295 = tpu.matmul %293, %294, %cst_84 {dimension_numbers = #tpu.dot_dimension_numbers<[1], [0], [0], [1], [0, 0, 1, 1], [], []>} : vector<8x128xbf16>, vector<128x128xbf16>, vector<8x128xf32> -> vector<8x128xf32>
    %296 = math.tanh %289 : vector<8x128xf32>
    %297 = arith.truncf %296 : vector<8x128xf32> to vector<8x128xbf16>
    %c0_85 = arith.constant 0 : index
    %c0_86 = arith.constant 0 : index
    %298 = vector.load %arg12[%c0_85, %c0_86] : memref<128x128xbf16, #tpu.memory_space<vmem>>, vector<128x128xbf16>
    %cst_87 = arith.constant dense<0.000000e+00> : vector<8x128xf32>
    %299 = tpu.matmul %297, %298, %cst_87 {dimension_numbers = #tpu.dot_dimension_numbers<[1], [0], [0], [1], [0, 0, 1, 1], [], []>} : vector<8x128xbf16>, vector<128x128xbf16>, vector<8x128xf32> -> vector<8x128xf32>
    %300 = arith.addf %295, %299 : vector<8x128xf32>
    %c0_88 = arith.constant 0 : index
    %c0_89 = arith.constant 0 : index
    %301 = vector.load %arg13[%c0_88, %c0_89] : memref<1x128xf32, #tpu.memory_space<vmem>>, vector<1x128xf32>
    %302 = vector.broadcast %301 : vector<1x128xf32> to vector<8x128xf32>
    %303 = arith.addf %300, %302 : vector<8x128xf32>
    %304 = arith.mulf %29, %303 : vector<8x128xf32>
    %305 = math.tanh %304 : vector<8x128xf32>
    %306 = arith.truncf %305 : vector<8x128xf32> to vector<8x128xbf16>
    %c0_90 = arith.constant 0 : index
    %c0_91 = arith.constant 0 : index
    %307 = vector.load %arg14[%c0_90, %c0_91] : memref<128x128xbf16, #tpu.memory_space<vmem>>, vector<128x128xbf16>
    %cst_92 = arith.constant dense<0.000000e+00> : vector<8x128xf32>
    %308 = tpu.matmul %306, %307, %cst_92 {dimension_numbers = #tpu.dot_dimension_numbers<[1], [0], [0], [1], [0, 0, 1, 1], [], []>} : vector<8x128xbf16>, vector<128x128xbf16>, vector<8x128xf32> -> vector<8x128xf32>
    %c0_93 = arith.constant 0 : index
    %c0_94 = arith.constant 0 : index
    %309 = vector.load %arg15[%c0_93, %c0_94] : memref<1x128xf32, #tpu.memory_space<vmem>>, vector<1x128xf32>
    %310 = vector.broadcast %309 : vector<1x128xf32> to vector<8x128xf32>
    %311 = arith.addf %308, %310 : vector<8x128xf32>
    %312 = math.tanh %311 : vector<8x128xf32>
    %313 = arith.truncf %312 : vector<8x128xf32> to vector<8x128xbf16>
    %c0_95 = arith.constant 0 : index
    %c0_96 = arith.constant 0 : index
    %314 = vector.load %arg16[%c0_95, %c0_96] : memref<128x128xbf16, #tpu.memory_space<vmem>>, vector<128x128xbf16>
    %cst_97 = arith.constant dense<0.000000e+00> : vector<8x128xf32>
    %315 = tpu.matmul %313, %314, %cst_97 {dimension_numbers = #tpu.dot_dimension_numbers<[1], [0], [0], [1], [0, 0, 1, 1], [], []>} : vector<8x128xbf16>, vector<128x128xbf16>, vector<8x128xf32> -> vector<8x128xf32>
    %c0_98 = arith.constant 0 : index
    %c0_99 = arith.constant 0 : index
    %316 = vector.load %arg17[%c0_98, %c0_99] : memref<1x128xf32, #tpu.memory_space<vmem>>, vector<1x128xf32>
    %317 = vector.broadcast %316 : vector<1x128xf32> to vector<8x128xf32>
    %318 = arith.addf %315, %317 : vector<8x128xf32>
    %c0_100 = arith.constant 0 : index
    %c0_101 = arith.constant 0 : index
    %319 = vector.load %arg18[%c0_100, %c0_101] : memref<8x128xf32, #tpu.memory_space<vmem>>, vector<8x128xf32>
    tpu.vector_store %arg18[%c0_100, %c0_101], %318 {strides = array<i32>} : memref<8x128xf32, #tpu.memory_space<vmem>>, vector<8x128xf32>,
    return
  }
}

</mosaic_0001>

<llo_original>
// kernel: vqa_forward.3
$region0: #{vqa_forward.3}
  #allocation0 [shape = 'u32[]', space=smem, size = 0x4, offset = 0x4, fixed_abs, tag = 'smem constant byte address 0x4 - core index']
  #allocation1 [shape = 'u32[72,128]{1,0:T(1,128)}', space=vmem, size = 0x9000, scoped, tag = 'internal scratch']
  %s0 = inlined_call_operand.vmem [shape: bf16[2048,27], index: 0, kind: input, shape index: {}]
  %s1 = inlined_call_operand.vmem [shape: bf16[27,128], index: 1, kind: input, shape index: {}]
  %s2 = inlined_call_operand.vmem [shape: f32[1,128], index: 2, kind: input, shape index: {}]
  %s3 = inlined_call_operand.vmem [shape: bf16[2048,128], index: 3, kind: output, shape index: {}]
  %s4 = sld [smem:[#allocation0]]
  $region45: #{vqa_forward.3} parent=0
    _
  %s6 = ssub.s32 1, %s4
  %s7 = scalar_select 0, %s6, %s4
  loop: start=0, step=1, limit=4
  $region2: #{vqa_forward.3} parent=0 // loop_pre_header
    _
  $region3: #{vqa_forward.3} parent=0 // loop_header
    %s9 = sphi 0, %s13
    %p10 = scmp.ge.s32.totalorder %s9, 4
    %s19 = sphi 0, %s21
    %s22 = sphi 0, %s19
    %s23 = sphi 0, %s22
    %s39 = sphi 0, %s23
    %s43 = sphi 0, %s43
    %s45 = sphi 0, %s43
    %s46 = sphi 0, %s45
    %s60 = sphi 0, %s46
    %s64 = sphi 0, %s64
    %s66 = sphi 0, %s64
    %s67 = sphi 0, %s66
    %s81 = sphi 0, %s67
    %s87 = sphi 0, %s89
    %s90 = sphi 0, %s87
    %s91 = sphi 0, %s90
    %s107 = sphi 0, %s91
  $region4: #{vqa_forward.3} parent=0 // loop_header_branch
    %12 = sbr.rel (%p10) target = $region8
  $region5: #{vqa_forward.3} parent=0 // loop_body
    %s14 = ssub.s32 %s9, 1
    %s15 = ssub.s32 %s9, 2
    %s16 = sadd.s32 %s9, 1
    %s17 = ssub.s32 %s9, %s16
    %p18 = scmp.eq.s32.totalorder %s17, 0
    %s20 = sadd.s32 %s19, 1
    %s21 = scalar_select %p18, %s19, %s20
    %p24 = pneg %p18
    %p25 = scmp.eq.s32.totalorder %s9, 1
    %p26 = por %p24, %p25
    %p27 = scmp.ne.s32.totalorder %s19, %s22
    %p28 = scmp.eq.s32.totalorder %s9, 0
    %p29 = por %p27, %p28
    %p30 = scmp.ne.s32.totalorder %s19, %s22
    %p31 = scmp.eq.s32.totalorder %s14, 1
    %p32 = por %p30, %p31
    %p33 = scmp.ne.s32.totalorder %s22, %s23
    %p34 = scmp.eq.s32.totalorder %s14, 0
    %p35 = por %p33, %p34
    %p36 = scmp.ne.s32.totalorder %s22, %s23
    %p37 = scmp.eq.s32.totalorder %s15, 1
    %p38 = por %p36, %p37
    %p40 = scmp.ne.s32.totalorder %s23, %s39
    %p41 = scmp.eq.s32.totalorder %s15, 0
    %p42 = por %p40, %p41
    %s44 = sadd.s32 %s43, 1
    %p47 = scmp.eq.s32.totalorder %s9, 1
    %p48 = scmp.ne.s32.totalorder %s43, %s45
    %p49 = scmp.eq.s32.totalorder %s9, 0
    %p50 = por %p48, %p49
    %p51 = scmp.ne.s32.totalorder %s43, %s45
    %p52 = scmp.eq.s32.totalorder %s14, 1
    %p53 = por %p51, %p52
    %p54 = scmp.ne.s32.totalorder %s45, %s46
    %p55 = scmp.eq.s32.totalorder %s14, 0
    %p56 = por %p54, %p55
    %p57 = scmp.ne.s32.totalorder %s45, %s46
    %p58 = scmp.eq.s32.totalorder %s15, 1
    %p59 = por %p57, %p58
    %p61 = scmp.ne.s32.totalorder %s46, %s60
    %p62 = scmp.eq.s32.totalorder %s15, 0
    %p63 = por %p61, %p62
    %s65 = sadd.s32 %s64, 1
    %p68 = scmp.eq.s32.totalorder %s9, 1
    %p69 = scmp.ne.s32.totalorder %s64, %s66
    %p70 = scmp.eq.s32.totalorder %s9, 0
    %p71 = por %p69, %p70
    %p72 = scmp.ne.s32.totalorder %s64, %s66
    %p73 = scmp.eq.s32.totalorder %s14, 1
    %p74 = por %p72, %p73
    %p75 = scmp.ne.s32.totalorder %s66, %s67
    %p76 = scmp.eq.s32.totalorder %s14, 0
    %p77 = por %p75, %p76
    %p78 = scmp.ne.s32.totalorder %s66, %s67
    %p79 = scmp.eq.s32.totalorder %s15, 1
    %p80 = por %p78, %p79
    %p82 = scmp.ne.s32.totalorder %s67, %s81
    %p83 = scmp.eq.s32.totalorder %s15, 0
    %p84 = por %p82, %p83
    %s85 = ssub.s32 %s9, %s16
    %p86 = scmp.eq.s32.totalorder %s85, 0
    %s88 = sadd.s32 %s87, 1
    %s89 = scalar_select %p86, %s87, %s88
    %p92 = pneg %p86
    %p93 = scmp.eq.s32.totalorder %s9, 1
    %p94 = por %p92, %p93
    %p95 = scmp.ne.s32.totalorder %s87, %s90
    %p96 = scmp.eq.s32.totalorder %s9, 0
    %p97 = por %p95, %p96
    %p98 = scmp.ne.s32.totalorder %s87, %s90
    %p99 = scmp.eq.s32.totalorder %s14, 1
    %p100 = por %p98, %p99
    %p101 = scmp.ne.s32.totalorder %s90, %s91
    %p102 = scmp.eq.s32.totalorder %s14, 0
    %p103 = por %p101, %p102
    %p104 = scmp.ne.s32.totalorder %s90, %s91
    %p105 = scmp.eq.s32.totalorder %s15, 1
    %p106 = por %p104, %p105
    %p108 = scmp.ne.s32.totalorder %s91, %s107
    %p109 = scmp.eq.s32.totalorder %s15, 0
    %p110 = por %p108, %p109
    %p111 = scmp.le.s32.totalorder 1, %s9
    %p112 = scmp.lt.s32.totalorder %s9, 3
    %p113 = pnand %p111, %p112
    %p114 = pneg %p113
    // Predicated region
    $region9: #{vqa_forward.3} parent=5 // pred_check
      _
    $region10: #{vqa_forward.3} parent=5 // pred_check_branch
      %116 = sbr.rel (%p113) target = $region12
    $region11: #{vqa_forward.3} parent=5 // pred_region
      %s117 = ssub.s32 %s9, 1
      // Predicated region
      $region13: #{vqa_forward.3} parent=11 // pred_check
        %p118 = pneg %p56
      $region14: #{vqa_forward.3} parent=11 // pred_check_branch
        %120 = sbr.rel (%p118) target = $region16
      $region15: #{vqa_forward.3} parent=11 // pred_region
        _
      $region16: #{vqa_forward.3} parent=11 // pred_fallthru
        _
      // Predicated region
      $region17: #{vqa_forward.3} parent=11 // pred_check
        %p121 = pneg %p77
      $region18: #{vqa_forward.3} parent=11 // pred_check_branch
        %123 = sbr.rel (%p121) target = $region20
      $region19: #{vqa_forward.3} parent=11 // pred_region
        _
      $region20: #{vqa_forward.3} parent=11 // pred_fallthru
        _
    $region12: #{vqa_forward.3} parent=5 // pred_fallthru
      _
    %p124 = scmp.lt.s32.totalorder %s9, 2
    // Predicated region
    $region21: #{vqa_forward.3} parent=5 // pred_check
      %p125 = pneg %p124
    $region22: #{vqa_forward.3} parent=5 // pred_check_branch
      %127 = sbr.rel (%p125) target = $region24
    $region23: #{vqa_forward.3} parent=5 // pred_region
      // Predicated region
      $region25: #{vqa_forward.3} parent=23 // pred_check
        %p128 = pneg %p29
      $region26: #{vqa_forward.3} parent=23 // pred_check_branch
        %130 = sbr.rel (%p128) target = $region28
      $region27: #{vqa_forward.3} parent=23 // pred_region
        %s131 = smul.u32 128, %s9
        %p132 = scmp.lt.s32.totalorder %s131, 255
        %s133 = scalar_select %p132, %s131, 255
        %s134 = smul.addr %s133, 4
        %s135 = scalar_lea.vmem %s0, %s134
        %s136 = smul.u32 128, %s9
      $region28: #{vqa_forward.3} parent=23 // pred_fallthru
        _
    $region24: #{vqa_forward.3} parent=5 // pred_fallthru
      _
    %p137 = scmp.le.s32.totalorder 1, %s9
    %p138 = scmp.lt.s32.totalorder %s9, 3
    %p139 = pnand %p137, %p138
    %p140 = pneg %p139
    // Predicated region
    $region29: #{vqa_forward.3} parent=5 // pred_check
      _
    $region30: #{vqa_forward.3} parent=5 // pred_check_branch
      %142 = sbr.rel (%p139) target = $region32
    $region31: #{vqa_forward.3} parent=5 // pred_region
      %s143 = ssub.s32 %s9, 1
      %s144 = smul.u32 128, %s14
      %p145 = scmp.lt.s32.totalorder %s144, 255
      %s146 = scalar_select %p145, %s144, 255
      %s147 = smul.addr %s146, 4
      %s148 = scalar_lea.vmem %s0, %s147
      %p149 = pneg %p35
      %p150 = pneg %p32
      %p151 = pneg %p56
      %p152 = pneg %p53
      %p153 = pneg %p77
      %p154 = pneg %p74
      %p155 = pneg %p103
      %p156 = pneg %p100
      %s157 = smul.u32 128, %s14
      %p158 = scmp.lt.s32.totalorder %s157, 255
      %s159 = scalar_select %p158, %s157, 255
      %s160 = smul.addr %s159, 4
      %s161 = scalar_lea.vmem %s3, %s160
      %s162 = smul.u32 128, %s14
      %p163 = scmp.lt.s32.totalorder %s162, 255
      %s164 = scalar_select %p163, %s162, 255
      %s165 = smul.addr %s164, 4
      %s166 = scalar_lea.vmem %s0, %s165
      %s167 = smul.u32 128, %s14
      %s168 = smul.u32 128, %s14
      %p169 = scmp.lt.s32.totalorder %s168, 255
      %s170 = scalar_select %p169, %s168, 255
      %s171 = smul.addr %s170, 4
      %s172 = scalar_lea.vmem %s3, %s171
      %s173 = smul.u32 128, %s14
      %v175 = vld [vmem:[%s166] sm:$0xf]
      %v176 = vld [vmem:[%s166 + $0x4] sm:$0xf]
      %v177 = vld [vmem:[%s166 + $0x8] sm:$0xf]
      %v178 = vld [vmem:[%s166 + $0xc] sm:$0xf]
      %v179 = vld [vmem:[%s166 + $0x10] sm:$0xf]
      %v180 = vld [vmem:[%s166 + $0x14] sm:$0xf]
      %v181 = vld [vmem:[%s166 + $0x18] sm:$0xf]
      %v182 = vld [vmem:[%s166 + $0x1c] sm:$0xf]
      %v183 = vld [vmem:[%s166 + $0x20] sm:$0xf]
      %v184 = vld [vmem:[%s166 + $0x24] sm:$0xf]
      %v185 = vld [vmem:[%s166 + $0x28] sm:$0xf]
      %v186 = vld [vmem:[%s166 + $0x2c] sm:$0xf]
      %v187 = vld [vmem:[%s166 + $0x30] sm:$0xf]
      %v188 = vld [vmem:[%s166 + $0x34] sm:$0xf]
      %v189 = vld [vmem:[%s166 + $0x38] sm:$0xf]
      %v190 = vld [vmem:[%s166 + $0x3c] sm:$0xf]
      %v191 = vld [vmem:[%s166 + $0x40] sm:$0xf]
      %v192 = vld [vmem:[%s166 + $0x44] sm:$0xf]
      %v193 = vld [vmem:[%s166 + $0x48] sm:$0xf]
      %v194 = vld [vmem:[%s166 + $0x4c] sm:$0xf]
      %v195 = vld [vmem:[%s166 + $0x50] sm:$0xf]
      %v196 = vld [vmem:[%s166 + $0x54] sm:$0xf]
      %v197 = vld [vmem:[%s166 + $0x58] sm:$0xf]
      %v198 = vld [vmem:[%s166 + $0x5c] sm:$0xf]
      %v199 = vld [vmem:[%s166 + $0x60] sm:$0xf]
      %v200 = vld [vmem:[%s166 + $0x64] sm:$0xf]
      %v201 = vld [vmem:[%s166 + $0x68] sm:$0xf]
      %v202 = vld [vmem:[%s166 + $0x6c] sm:$0xf]
      %v203 = vld [vmem:[%s166 + $0x70] sm:$0xf]
      %v204 = vld [vmem:[%s166 + $0x74] sm:$0xf]
      %v205 = vld [vmem:[%s166 + $0x78] sm:$0xf]
      %v206 = vld [vmem:[%s166 + $0x7c] sm:$0xf]
      %v207 = vld [vmem:[%s166 + $0x80] sm:$0xf]
      %v208 = vld [vmem:[%s166 + $0x84] sm:$0xf]
      %v209 = vld [vmem:[%s166 + $0x88] sm:$0xf]
      %v210 = vld [vmem:[%s166 + $0x8c] sm:$0xf]
      %v211 = vld [vmem:[%s166 + $0x90] sm:$0xf]
      %v212 = vld [vmem:[%s166 + $0x94] sm:$0xf]
      %v213 = vld [vmem:[%s166 + $0x98] sm:$0xf]
      %v214 = vld [vmem:[%s166 + $0x9c] sm:$0xf]
      %v215 = vld [vmem:[%s166 + $0xa0] sm:$0xf]
      %v216 = vld [vmem:[%s166 + $0xa4] sm:$0xf]
      %v217 = vld [vmem:[%s166 + $0xa8] sm:$0xf]
      %v218 = vld [vmem:[%s166 + $0xac] sm:$0xf]
      %v219 = vld [vmem:[%s166 + $0xb0] sm:$0xf]
      %v220 = vld [vmem:[%s166 + $0xb4] sm:$0xf]
      %v221 = vld [vmem:[%s166 + $0xb8] sm:$0xf]
      %v222 = vld [vmem:[%s166 + $0xbc] sm:$0xf]
      %v223 = vld [vmem:[%s166 + $0xc0] sm:$0xf]
      %v224 = vld [vmem:[%s166 + $0xc4] sm:$0xf]
      %v225 = vld [vmem:[%s166 + $0xc8] sm:$0xf]
      %v226 = vld [vmem:[%s166 + $0xcc] sm:$0xf]
      %v227 = vld [vmem:[%s166 + $0xd0] sm:$0xf]
      %v228 = vld [vmem:[%s166 + $0xd4] sm:$0xf]
      %v229 = vld [vmem:[%s166 + $0xd8] sm:$0xf]
      %v230 = vld [vmem:[%s166 + $0xdc] sm:$0xf]
      %v231 = vld [vmem:[%s166 + $0xe0] sm:$0xf]
      %v232 = vld [vmem:[%s166 + $0xe4] sm:$0xf]
      %v233 = vld [vmem:[%s166 + $0xe8] sm:$0xf]
      %v234 = vld [vmem:[%s166 + $0xec] sm:$0xf]
      %v235 = vld [vmem:[%s166 + $0xf0] sm:$0xf]
      %v236 = vld [vmem:[%s166 + $0xf4] sm:$0xf]
      %v237 = vld [vmem:[%s166 + $0xf8] sm:$0xf]
      %v238 = vld [vmem:[%s166 + $0xfc] sm:$0xf]
      %v239 = vld [vmem:[%s166 + $0x100] sm:$0xf]
      %v240 = vld [vmem:[%s166 + $0x104] sm:$0xf]
      %v241 = vld [vmem:[%s166 + $0x108] sm:$0xf]
      %v242 = vld [vmem:[%s166 + $0x10c] sm:$0xf]
      %v243 = vld [vmem:[%s166 + $0x110] sm:$0xf]
      %v244 = vld [vmem:[%s166 + $0x114] sm:$0xf]
      %v245 = vld [vmem:[%s166 + $0x118] sm:$0xf]
      %v246 = vld [vmem:[%s166 + $0x11c] sm:$0xf]
      %v247 = vld [vmem:[%s166 + $0x120] sm:$0xf]
      %v248 = vld [vmem:[%s166 + $0x124] sm:$0xf]
      %v249 = vld [vmem:[%s166 + $0x128] sm:$0xf]
      %v250 = vld [vmem:[%s166 + $0x12c] sm:$0xf]
      %v251 = vld [vmem:[%s166 + $0x130] sm:$0xf]
      %v252 = vld [vmem:[%s166 + $0x134] sm:$0xf]
      %v253 = vld [vmem:[%s166 + $0x138] sm:$0xf]
      %v254 = vld [vmem:[%s166 + $0x13c] sm:$0xf]
      %v255 = vld [vmem:[%s166 + $0x140] sm:$0xf]
      %v256 = vld [vmem:[%s166 + $0x144] sm:$0xf]
      %v257 = vld [vmem:[%s166 + $0x148] sm:$0xf]
      %v258 = vld [vmem:[%s166 + $0x14c] sm:$0xf]
      %v259 = vld [vmem:[%s166 + $0x150] sm:$0xf]
      %v260 = vld [vmem:[%s166 + $0x154] sm:$0xf]
      %v261 = vld [vmem:[%s166 + $0x158] sm:$0xf]
      %v262 = vld [vmem:[%s166 + $0x15c] sm:$0xf]
      %v263 = vld [vmem:[%s166 + $0x160] sm:$0xf]
      %v264 = vld [vmem:[%s166 + $0x164] sm:$0xf]
      %v265 = vld [vmem:[%s166 + $0x168] sm:$0xf]
      %v266 = vld [vmem:[%s166 + $0x16c] sm:$0xf]
      %v267 = vld [vmem:[%s166 + $0x170] sm:$0xf]
      %v268 = vld [vmem:[%s166 + $0x174] sm:$0xf]
      %v269 = vld [vmem:[%s166 + $0x178] sm:$0xf]
      %v270 = vld [vmem:[%s166 + $0x17c] sm:$0xf]
      %v271 = vld [vmem:[%s166 + $0x180] sm:$0xf]
      %v272 = vld [vmem:[%s166 + $0x184] sm:$0xf]
      %v273 = vld [vmem:[%s166 + $0x188] sm:$0xf]
      %v274 = vld [vmem:[%s166 + $0x18c] sm:$0xf]
      %v275 = vld [vmem:[%s166 + $0x190] sm:$0xf]
      %v276 = vld [vmem:[%s166 + $0x194] sm:$0xf]
      %v277 = vld [vmem:[%s166 + $0x198] sm:$0xf]
      %v278 = vld [vmem:[%s166 + $0x19c] sm:$0xf]
      %v279 = vld [vmem:[%s166 + $0x1a0] sm:$0xf]
      %v280 = vld [vmem:[%s166 + $0x1a4] sm:$0xf]
      %v281 = vld [vmem:[%s166 + $0x1a8] sm:$0xf]
      %v282 = vld [vmem:[%s166 + $0x1ac] sm:$0xf]
      %v283 = vld [vmem:[%s166 + $0x1b0] sm:$0xf]
      %v284 = vld [vmem:[%s166 + $0x1b4] sm:$0xf]
      %v285 = vld [vmem:[%s166 + $0x1b8] sm:$0xf]
      %v286 = vld [vmem:[%s166 + $0x1bc] sm:$0xf]
      %v287 = vld [vmem:[%s166 + $0x1c0] sm:$0xf]
      %v288 = vld [vmem:[%s166 + $0x1c4] sm:$0xf]
      %v289 = vld [vmem:[%s166 + $0x1c8] sm:$0xf]
      %v290 = vld [vmem:[%s166 + $0x1cc] sm:$0xf]
      %v291 = vld [vmem:[%s166 + $0x1d0] sm:$0xf]
      %v292 = vld [vmem:[%s166 + $0x1d4] sm:$0xf]
      %v293 = vld [vmem:[%s166 + $0x1d8] sm:$0xf]
      %v294 = vld [vmem:[%s166 + $0x1dc] sm:$0xf]
      %v295 = vld [vmem:[%s166 + $0x1e0] sm:$0xf]
      %v296 = vld [vmem:[%s166 + $0x1e4] sm:$0xf]
      %v297 = vld [vmem:[%s166 + $0x1e8] sm:$0xf]
      %v298 = vld [vmem:[%s166 + $0x1ec] sm:$0xf]
      %v299 = vld [vmem:[%s166 + $0x1f0] sm:$0xf]
      %v300 = vld [vmem:[%s166 + $0x1f4] sm:$0xf]
      %v301 = vld [vmem:[%s166 + $0x1f8] sm:$0xf]
      %v302 = vld [vmem:[%s166 + $0x1fc] sm:$0xf]
      %v303 = vld [vmem:[%s1] sm:$0xf]
      %v304 = vld [vmem:[%s1 + $0x4] sm:$0xf]
      %v305 = vld [vmem:[%s1 + $0x8] sm:$0xf]
      %v306 = vld [vmem:[%s1 + $0xc] sm:$0x3]
      %v307 = vld [vmem:[%s2] sm:$0x1]
      %v309 = vperm.slane %v307, 0
      %v439 = vunpack.c.l.b16 %v175
      %v440 = vunpack.c.l.b16 %v176
      %v441 = vunpack.c.l.b16 %v177
      %v442 = vunpack.c.l.b16 %v178
      %v443 = vunpack.c.l.b16 %v179
      %v444 = vunpack.c.l.b16 %v180
      %v445 = vunpack.c.l.b16 %v181
      %v446 = vunpack.c.l.b16 %v182
      %v447 = vunpack.c.l.b16 %v183
      %v448 = vunpack.c.l.b16 %v184
      %v449 = vunpack.c.l.b16 %v185
      %v450 = vunpack.c.l.b16 %v186
      %v451 = vunpack.c.l.b16 %v187
      %v452 = vunpack.c.l.b16 %v188
      %v453 = vunpack.c.l.b16 %v189
      %v454 = vunpack.c.l.b16 %v190
      %v455 = vunpack.c.l.b16 %v191
      %v456 = vunpack.c.l.b16 %v192
      %v457 = vunpack.c.l.b16 %v193
      %v458 = vunpack.c.l.b16 %v194
      %v459 = vunpack.c.l.b16 %v195
      %v460 = vunpack.c.l.b16 %v196
      %v461 = vunpack.c.l.b16 %v197
      %v462 = vunpack.c.l.b16 %v198
      %v463 = vunpack.c.l.b16 %v199
      %v464 = vunpack.c.l.b16 %v200
      %v465 = vunpack.c.l.b16 %v201
      %v466 = vunpack.c.l.b16 %v202
      %v467 = vunpack.c.l.b16 %v203
      %v468 = vunpack.c.l.b16 %v204
      %v469 = vunpack.c.l.b16 %v205
      %v470 = vunpack.c.l.b16 %v206
      %v471 = vunpack.c.l.b16 %v207
      %v472 = vunpack.c.l.b16 %v208
      %v473 = vunpack.c.l.b16 %v209
      %v474 = vunpack.c.l.b16 %v210
      %v475 = vunpack.c.l.b16 %v211
      %v476 = vunpack.c.l.b16 %v212
      %v477 = vunpack.c.l.b16 %v213
      %v478 = vunpack.c.l.b16 %v214
      %v479 = vunpack.c.l.b16 %v215
      %v480 = vunpack.c.l.b16 %v216
      %v481 = vunpack.c.l.b16 %v217
      %v482 = vunpack.c.l.b16 %v218
      %v483 = vunpack.c.l.b16 %v219
      %v484 = vunpack.c.l.b16 %v220
      %v485 = vunpack.c.l.b16 %v221
      %v486 = vunpack.c.l.b16 %v222
      %v487 = vunpack.c.l.b16 %v223
      %v488 = vunpack.c.l.b16 %v224
      %v489 = vunpack.c.l.b16 %v225
      %v490 = vunpack.c.l.b16 %v226
      %v491 = vunpack.c.l.b16 %v227
      %v492 = vunpack.c.l.b16 %v228
      %v493 = vunpack.c.l.b16 %v229
      %v494 = vunpack.c.l.b16 %v230
      %v495 = vunpack.c.l.b16 %v231
      %v496 = vunpack.c.l.b16 %v232
      %v497 = vunpack.c.l.b16 %v233
      %v498 = vunpack.c.l.b16 %v234
      %v499 = vunpack.c.l.b16 %v235
      %v500 = vunpack.c.l.b16 %v236
      %v501 = vunpack.c.l.b16 %v237
      %v502 = vunpack.c.l.b16 %v238
      %v503 = vunpack.c.l.b16 %v239
      %v504 = vunpack.c.l.b16 %v240
      %v505 = vunpack.c.l.b16 %v241
      %v506 = vunpack.c.l.b16 %v242
      %v507 = vunpack.c.l.b16 %v243
      %v508 = vunpack.c.l.b16 %v244
      %v509 = vunpack.c.l.b16 %v245
      %v510 = vunpack.c.l.b16 %v246
      %v511 = vunpack.c.l.b16 %v247
      %v512 = vunpack.c.l.b16 %v248
      %v513 = vunpack.c.l.b16 %v249
      %v514 = vunpack.c.l.b16 %v250
      %v515 = vunpack.c.l.b16 %v251
      %v516 = vunpack.c.l.b16 %v252
      %v517 = vunpack.c.l.b16 %v253
      %v518 = vunpack.c.l.b16 %v254
      %v519 = vunpack.c.l.b16 %v255
      %v520 = vunpack.c.l.b16 %v256
      %v521 = vunpack.c.l.b16 %v257
      %v522 = vunpack.c.l.b16 %v258
      %v523 = vunpack.c.l.b16 %v259
      %v524 = vunpack.c.l.b16 %v260
      %v525 = vunpack.c.l.b16 %v261
      %v526 = vunpack.c.l.b16 %v262
      %v527 = vunpack.c.l.b16 %v263
      %v528 = vunpack.c.l.b16 %v264
      %v529 = vunpack.c.l.b16 %v265
      %v530 = vunpack.c.l.b16 %v266
      %v531 = vunpack.c.l.b16 %v267
      %v532 = vunpack.c.l.b16 %v268
      %v533 = vunpack.c.l.b16 %v269
      %v534 = vunpack.c.l.b16 %v270
      %v535 = vunpack.c.l.b16 %v271
      %v536 = vunpack.c.l.b16 %v272
      %v537 = vunpack.c.l.b16 %v273
      %v538 = vunpack.c.l.b16 %v274
      %v539 = vunpack.c.l.b16 %v275
      %v540 = vunpack.c.l.b16 %v276
      %v541 = vunpack.c.l.b16 %v277
      %v542 = vunpack.c.l.b16 %v278
      %v543 = vunpack.c.l.b16 %v279
      %v544 = vunpack.c.l.b16 %v280
      %v545 = vunpack.c.l.b16 %v281
      %v546 = vunpack.c.l.b16 %v282
      %v547 = vunpack.c.l.b16 %v283
      %v548 = vunpack.c.l.b16 %v284
      %v549 = vunpack.c.l.b16 %v285
      %v550 = vunpack.c.l.b16 %v286
      %v551 = vunpack.c.l.b16 %v287
      %v552 = vunpack.c.l.b16 %v288
      %v553 = vunpack.c.l.b16 %v289
      %v554 = vunpack.c.l.b16 %v290
      %v555 = vunpack.c.l.b16 %v291
      %v556 = vunpack.c.l.b16 %v292
      %v557 = vunpack.c.l.b16 %v293
      %v558 = vunpack.c.l.b16 %v294
      %v559 = vunpack.c.l.b16 %v295
      %v560 = vunpack.c.l.b16 %v296
      %v561 = vunpack.c.l.b16 %v297
      %v562 = vunpack.c.l.b16 %v298
      %v563 = vunpack.c.l.b16 %v299
      %v564 = vunpack.c.l.b16 %v300
      %v565 = vunpack.c.l.b16 %v301
      %v566 = vunpack.c.l.b16 %v302
      %v567 = vpack.c.b16 %v440, %v439
      %v568 = vpack.c.b16 %v442, %v441
      %v569 = vpack.c.b16 %v444, %v443
      %v570 = vpack.c.b16 %v446, %v445
      %v571 = vpack.c.b16 %v448, %v447
      %v572 = vpack.c.b16 %v450, %v449
      %v573 = vpack.c.b16 %v452, %v451
      %v574 = vpack.c.b16 %v454, %v453
      %v575 = vpack.c.b16 %v456, %v455
      %v576 = vpack.c.b16 %v458, %v457
      %v577 = vpack.c.b16 %v460, %v459
      %v578 = vpack.c.b16 %v462, %v461
      %v579 = vpack.c.b16 %v464, %v463
      %v580 = vpack.c.b16 %v466, %v465
      %v581 = vpack.c.b16 %v468, %v467
      %v582 = vpack.c.b16 %v470, %v469
      %v583 = vpack.c.b16 %v472, %v471
      %v584 = vpack.c.b16 %v474, %v473
      %v585 = vpack.c.b16 %v476, %v475
      %v586 = vpack.c.b16 %v478, %v477
      %v587 = vpack.c.b16 %v480, %v479
      %v588 = vpack.c.b16 %v482, %v481
      %v589 = vpack.c.b16 %v484, %v483
      %v590 = vpack.c.b16 %v486, %v485
      %v591 = vpack.c.b16 %v488, %v487
      %v592 = vpack.c.b16 %v490, %v489
      %v593 = vpack.c.b16 %v492, %v491
      %v594 = vpack.c.b16 %v494, %v493
      %v595 = vpack.c.b16 %v496, %v495
      %v596 = vpack.c.b16 %v498, %v497
      %v597 = vpack.c.b16 %v500, %v499
      %v598 = vpack.c.b16 %v502, %v501
      %v599 = vpack.c.b16 %v504, %v503
      %v600 = vpack.c.b16 %v506, %v505
      %v601 = vpack.c.b16 %v508, %v507
      %v602 = vpack.c.b16 %v510, %v509
      %v603 = vpack.c.b16 %v512, %v511
      %v604 = vpack.c.b16 %v514, %v513
      %v605 = vpack.c.b16 %v516, %v515
      %v606 = vpack.c.b16 %v518, %v517
      %v607 = vpack.c.b16 %v520, %v519
      %v608 = vpack.c.b16 %v522, %v521
      %v609 = vpack.c.b16 %v524, %v523
      %v610 = vpack.c.b16 %v526, %v525
      %v611 = vpack.c.b16 %v528, %v527
      %v612 = vpack.c.b16 %v530, %v529
      %v613 = vpack.c.b16 %v532, %v531
      %v614 = vpack.c.b16 %v534, %v533
      %v615 = vpack.c.b16 %v536, %v535
      %v616 = vpack.c.b16 %v538, %v537
      %v617 = vpack.c.b16 %v540, %v539
      %v618 = vpack.c.b16 %v542, %v541
      %v619 = vpack.c.b16 %v544, %v543
      %v620 = vpack.c.b16 %v546, %v545
      %v621 = vpack.c.b16 %v548, %v547
      %v622 = vpack.c.b16 %v550, %v549
      %v623 = vpack.c.b16 %v552, %v551
      %v624 = vpack.c.b16 %v554, %v553
      %v625 = vpack.c.b16 %v556, %v555
      %v626 = vpack.c.b16 %v558, %v557
      %v627 = vpack.c.b16 %v560, %v559
      %v628 = vpack.c.b16 %v562, %v561
      %v629 = vpack.c.b16 %v564, %v563
      %v630 = vpack.c.b16 %v566, %v565
      %v635 = vunpack.c.l.b16 %v303
      %v636 = vunpack.c.l.b16 %v304
      %v637 = vunpack.c.l.b16 %v305
      %v638 = vunpack.c.l.b16 %v306
      %v639 = vpack.c.b16 %v636, %v635
      %v640 = vpack.c.b16 %v638, %v637
      %vm642 = vcmask 220160
      %v644 = vsel %vm642, %v567, 0
      %v647 = vsel %vm642, %v568, 0
      %v650 = vsel %vm642, %v569, 0
      %v653 = vsel %vm642, %v570, 0
      %v656 = vsel %vm642, %v571, 0
      %v659 = vsel %vm642, %v572, 0
      %v662 = vsel %vm642, %v573, 0
      %v665 = vsel %vm642, %v574, 0
      %v668 = vsel %vm642, %v575, 0
      %v671 = vsel %vm642, %v576, 0
      %v674 = vsel %vm642, %v577, 0
      %v677 = vsel %vm642, %v578, 0
      %v680 = vsel %vm642, %v579, 0
      %v683 = vsel %vm642, %v580, 0
      %v686 = vsel %vm642, %v581, 0
      %v689 = vsel %vm642, %v582, 0
      %v692 = vsel %vm642, %v583, 0
      %v695 = vsel %vm642, %v584, 0
      %v698 = vsel %vm642, %v585, 0
      %v701 = vsel %vm642, %v586, 0
      %v704 = vsel %vm642, %v587, 0
      %v707 = vsel %vm642, %v588, 0
      %v710 = vsel %vm642, %v589, 0
      %v713 = vsel %vm642, %v590, 0
      %v716 = vsel %vm642, %v591, 0
      %v719 = vsel %vm642, %v592, 0
      %v722 = vsel %vm642, %v593, 0
      %v725 = vsel %vm642, %v594, 0
      %v728 = vsel %vm642, %v595, 0
      %v731 = vsel %vm642, %v596, 0
      %v734 = vsel %vm642, %v597, 0
      %v737 = vsel %vm642, %v598, 0
      %v740 = vsel %vm642, %v599, 0
      %v743 = vsel %vm642, %v600, 0
      %v746 = vsel %vm642, %v601, 0
      %v749 = vsel %vm642, %v602, 0
      %v752 = vsel %vm642, %v603, 0
      %v755 = vsel %vm642, %v604, 0
      %v758 = vsel %vm642, %v605, 0
      %v761 = vsel %vm642, %v606, 0
      %v764 = vsel %vm642, %v607, 0
      %v767 = vsel %vm642, %v608, 0
      %v770 = vsel %vm642, %v609, 0
      %v773 = vsel %vm642, %v610, 0
      %v776 = vsel %vm642, %v611, 0
      %v779 = vsel %vm642, %v612, 0
      %v782 = vsel %vm642, %v613, 0
      %v785 = vsel %vm642, %v614, 0
      %v788 = vsel %vm642, %v615, 0
      %v791 = vsel %vm642, %v616, 0
      %v794 = vsel %vm642, %v617, 0
      %v797 = vsel %vm642, %v618, 0
      %v800 = vsel %vm642, %v619, 0
      %v803 = vsel %vm642, %v620, 0
      %v806 = vsel %vm642, %v621, 0
      %v809 = vsel %vm642, %v622, 0
      %v812 = vsel %vm642, %v623, 0
      %v815 = vsel %vm642, %v624, 0
      %v818 = vsel %vm642, %v625, 0
      %v821 = vsel %vm642, %v626, 0
      %v824 = vsel %vm642, %v627, 0
      %v827 = vsel %vm642, %v628, 0
      %v830 = vsel %vm642, %v629, 0
      %v833 = vsel %vm642, %v630, 0
      %vm835 = vcmask 1044480
      %vm836 = vcmask 1045504
      %v837 = vsel %vm835, 4294967295, 65535
      %v838 = vsel %vm836, %v837, 0
      %v840 = vand.u32 %v640, %v838
      %842 = vmatpush.bf16.msra.mxu0 0
      %843 = vmatpush.bf16.msra.mxu0 0
      %844 = vmatpush.bf16.msra.mxu0 0
      %845 = vmatpush.bf16.msra.mxu0 0
      %846 = vmatpush.bf16.msra.mxu0 0
      %847 = vmatpush.bf16.msra.mxu0 0
      %848 = vmatpush.bf16.msra.mxu0 %v840
      %849 = vmatpush.bf16.msra.mxu0 %v639
      %850 = vmatmul.bf16.gmra.mxu0 %v644
      %v851 = vpop.f32.mrf.mxu0
      %v852 = vadd.f32 %v309, %v851
      %v853 = vpop.f32.mrf.mxu0
      %v854 = vadd.f32 %v309, %v853
      %855 = vmatmul.bf16.gmra.mxu0 %v647
      %v856 = vpop.f32.mrf.mxu0
      %v857 = vadd.f32 %v309, %v856
      %v858 = vpop.f32.mrf.mxu0
      %v859 = vadd.f32 %v309, %v858
      %860 = vmatmul.bf16.gmra.mxu0 %v650
      %v861 = vpop.f32.mrf.mxu0
      %v862 = vadd.f32 %v309, %v861
      %v863 = vpop.f32.mrf.mxu0
      %v864 = vadd.f32 %v309, %v863
      %865 = vmatmul.bf16.gmra.mxu0 %v653
      %v866 = vpop.f32.mrf.mxu0
      %v867 = vadd.f32 %v309, %v866
      %v868 = vpop.f32.mrf.mxu0
      %v869 = vadd.f32 %v309, %v868
      %870 = vmatmul.bf16.gmra.mxu0 %v656
      %v871 = vpop.f32.mrf.mxu0
      %v872 = vadd.f32 %v309, %v871
      %v873 = vpop.f32.mrf.mxu0
      %v874 = vadd.f32 %v309, %v873
      %875 = vmatmul.bf16.gmra.mxu0 %v659
      %v876 = vpop.f32.mrf.mxu0
      %v877 = vadd.f32 %v309, %v876
      %v878 = vpop.f32.mrf.mxu0
      %v879 = vadd.f32 %v309, %v878
      %880 = vmatmul.bf16.gmra.mxu0 %v662
      %v881 = vpop.f32.mrf.mxu0
      %v882 = vadd.f32 %v309, %v881
      %v883 = vpop.f32.mrf.mxu0
      %v884 = vadd.f32 %v309, %v883
      %885 = vmatmul.bf16.gmra.mxu0 %v665
      %v886 = vpop.f32.mrf.mxu0
      %v887 = vadd.f32 %v309, %v886
      %v888 = vpop.f32.mrf.mxu0
      %v889 = vadd.f32 %v309, %v888
      %890 = vmatmul.bf16.gmra.mxu0 %v668
      %v891 = vpop.f32.mrf.mxu0
      %v892 = vadd.f32 %v309, %v891
      %v893 = vpop.f32.mrf.mxu0
      %v894 = vadd.f32 %v309, %v893
      %895 = vmatmul.bf16.gmra.mxu0 %v671
      %v896 = vpop.f32.mrf.mxu0
      %v897 = vadd.f32 %v309, %v896
      %v898 = vpop.f32.mrf.mxu0
      %v899 = vadd.f32 %v309, %v898
      %900 = vmatmul.bf16.gmra.mxu0 %v674
      %v901 = vpop.f32.mrf.mxu0
      %v902 = vadd.f32 %v309, %v901
      %v903 = vpop.f32.mrf.mxu0
      %v904 = vadd.f32 %v309, %v903
      %905 = vmatmul.bf16.gmra.mxu0 %v677
      %v906 = vpop.f32.mrf.mxu0
      %v907 = vadd.f32 %v309, %v906
      %v908 = vpop.f32.mrf.mxu0
      %v909 = vadd.f32 %v309, %v908
      %910 = vmatmul.bf16.gmra.mxu0 %v680
      %v911 = vpop.f32.mrf.mxu0
      %v912 = vadd.f32 %v309, %v911
      %v913 = vpop.f32.mrf.mxu0
      %v914 = vadd.f32 %v309, %v913
      %915 = vmatmul.bf16.gmra.mxu0 %v683
      %v916 = vpop.f32.mrf.mxu0
      %v917 = vadd.f32 %v309, %v916
      %v918 = vpop.f32.mrf.mxu0
      %v919 = vadd.f32 %v309, %v918
      %920 = vmatmul.bf16.gmra.mxu0 %v686
      %v921 = vpop.f32.mrf.mxu0
      %v922 = vadd.f32 %v309, %v921
      %v923 = vpop.f32.mrf.mxu0
      %v924 = vadd.f32 %v309, %v923
      %925 = vmatmul.bf16.gmra.mxu0 %v689
      %v926 = vpop.f32.mrf.mxu0
      %v927 = vadd.f32 %v309, %v926
      %v928 = vpop.f32.mrf.mxu0
      %v929 = vadd.f32 %v309, %v928
      %930 = vmatmul.bf16.gmra.mxu0 %v692
      %v931 = vpop.f32.mrf.mxu0
      %v932 = vadd.f32 %v309, %v931
      %v933 = vpop.f32.mrf.mxu0
      %v934 = vadd.f32 %v309, %v933
      %935 = vmatmul.bf16.gmra.mxu0 %v695
      %v936 = vpop.f32.mrf.mxu0
      %v937 = vadd.f32 %v309, %v936
      %v938 = vpop.f32.mrf.mxu0
      %v939 = vadd.f32 %v309, %v938
      %940 = vmatmul.bf16.gmra.mxu0 %v698
      %v941 = vpop.f32.mrf.mxu0
      %v942 = vadd.f32 %v309, %v941
      %v943 = vpop.f32.mrf.mxu0
      %v944 = vadd.f32 %v309, %v943
      %945 = vmatmul.bf16.gmra.mxu0 %v701
      %v946 = vpop.f32.mrf.mxu0
      %v947 = vadd.f32 %v309, %v946
      %v948 = vpop.f32.mrf.mxu0
      %v949 = vadd.f32 %v309, %v948
      %950 = vmatmul.bf16.gmra.mxu0 %v704
      %v951 = vpop.f32.mrf.mxu0
      %v952 = vadd.f32 %v309, %v951
      %v953 = vpop.f32.mrf.mxu0
      %v954 = vadd.f32 %v309, %v953
      %955 = vmatmul.bf16.gmra.mxu0 %v707
      %v956 = vpop.f32.mrf.mxu0
      %v957 = vadd.f32 %v309, %v956
      %v958 = vpop.f32.mrf.mxu0
      %v959 = vadd.f32 %v309, %v958
      %960 = vmatmul.bf16.gmra.mxu0 %v710
      %v961 = vpop.f32.mrf.mxu0
      %v962 = vadd.f32 %v309, %v961
      %v963 = vpop.f32.mrf.mxu0
      %v964 = vadd.f32 %v309, %v963
      %965 = vmatmul.bf16.gmra.mxu0 %v713
      %v966 = vpop.f32.mrf.mxu0
      %v967 = vadd.f32 %v309, %v966
      %v968 = vpop.f32.mrf.mxu0
      %v969 = vadd.f32 %v309, %v968
      %970 = vmatmul.bf16.gmra.mxu0 %v716
      %v971 = vpop.f32.mrf.mxu0
      %v972 = vadd.f32 %v309, %v971
      %v973 = vpop.f32.mrf.mxu0
      %v974 = vadd.f32 %v309, %v973
      %975 = vmatmul.bf16.gmra.mxu0 %v719
      %v976 = vpop.f32.mrf.mxu0
      %v977 = vadd.f32 %v309, %v976
      %v978 = vpop.f32.mrf.mxu0
      %v979 = vadd.f32 %v309, %v978
      %980 = vmatmul.bf16.gmra.mxu0 %v722
      %v981 = vpop.f32.mrf.mxu0
      %v982 = vadd.f32 %v309, %v981
      %v983 = vpop.f32.mrf.mxu0
      %v984 = vadd.f32 %v309, %v983
      %985 = vmatmul.bf16.gmra.mxu0 %v725
      %v986 = vpop.f32.mrf.mxu0
      %v987 = vadd.f32 %v309, %v986
      %v988 = vpop.f32.mrf.mxu0
      %v989 = vadd.f32 %v309, %v988
      %990 = vmatmul.bf16.gmra.mxu0 %v728
      %v991 = vpop.f32.mrf.mxu0
      %v992 = vadd.f32 %v309, %v991
      %v993 = vpop.f32.mrf.mxu0
      %v994 = vadd.f32 %v309, %v993
      %995 = vmatmul.bf16.gmra.mxu0 %v731
      %v996 = vpop.f32.mrf.mxu0
      %v997 = vadd.f32 %v309, %v996
      %v998 = vpop.f32.mrf.mxu0
      %v999 = vadd.f32 %v309, %v998
      %1000 = vmatmul.bf16.gmra.mxu0 %v734
      %v1001 = vpop.f32.mrf.mxu0
      %v1002 = vadd.f32 %v309, %v1001
      %v1003 = vpop.f32.mrf.mxu0
      %v1004 = vadd.f32 %v309, %v1003
      %1005 = vmatmul.bf16.gmra.mxu0 %v737
      %v1006 = vpop.f32.mrf.mxu0
      %v1007 = vadd.f32 %v309, %v1006
      %v1008 = vpop.f32.mrf.mxu0
      %v1009 = vadd.f32 %v309, %v1008
      %1010 = vmatmul.bf16.gmra.mxu0 %v740
      %v1011 = vpop.f32.mrf.mxu0
      %v1012 = vadd.f32 %v309, %v1011
      %v1013 = vpop.f32.mrf.mxu0
      %v1014 = vadd.f32 %v309, %v1013
      %1015 = vmatmul.bf16.gmra.mxu0 %v743
      %v1016 = vpop.f32.mrf.mxu0
      %v1017 = vadd.f32 %v309, %v1016
      %v1018 = vpop.f32.mrf.mxu0
      %v1019 = vadd.f32 %v309, %v1018
      %1020 = vmatmul.bf16.gmra.mxu0 %v746
      %v1021 = vpop.f32.mrf.mxu0
      %v1022 = vadd.f32 %v309, %v1021
      %v1023 = vpop.f32.mrf.mxu0
      %v1024 = vadd.f32 %v309, %v1023
      %1025 = vmatmul.bf16.gmra.mxu0 %v749
      %v1026 = vpop.f32.mrf.mxu0
      %v1027 = vadd.f32 %v309, %v1026
      %v1028 = vpop.f32.mrf.mxu0
      %v1029 = vadd.f32 %v309, %v1028
      %1030 = vmatmul.bf16.gmra.mxu0 %v752
      %v1031 = vpop.f32.mrf.mxu0
      %v1032 = vadd.f32 %v309, %v1031
      %v1033 = vpop.f32.mrf.mxu0
      %v1034 = vadd.f32 %v309, %v1033
      %1035 = vmatmul.bf16.gmra.mxu0 %v755
      %v1036 = vpop.f32.mrf.mxu0
      %v1037 = vadd.f32 %v309, %v1036
      %v1038 = vpop.f32.mrf.mxu0
      %v1039 = vadd.f32 %v309, %v1038
      %1040 = vmatmul.bf16.gmra.mxu0 %v758
      %v1041 = vpop.f32.mrf.mxu0
      %v1042 = vadd.f32 %v309, %v1041
      %v1043 = vpop.f32.mrf.mxu0
      %v1044 = vadd.f32 %v309, %v1043
      %1045 = vmatmul.bf16.gmra.mxu0 %v761
      %v1046 = vpop.f32.mrf.mxu0
      %v1047 = vadd.f32 %v309, %v1046
      %v1048 = vpop.f32.mrf.mxu0
      %v1049 = vadd.f32 %v309, %v1048
      %1050 = vmatmul.bf16.gmra.mxu0 %v764
      %v1051 = vpop.f32.mrf.mxu0
      %v1052 = vadd.f32 %v309, %v1051
      %v1053 = vpop.f32.mrf.mxu0
      %v1054 = vadd.f32 %v309, %v1053
      %1055 = vmatmul.bf16.gmra.mxu0 %v767
      %v1056 = vpop.f32.mrf.mxu0
      %v1057 = vadd.f32 %v309, %v1056
      %v1058 = vpop.f32.mrf.mxu0
      %v1059 = vadd.f32 %v309, %v1058
      %1060 = vmatmul.bf16.gmra.mxu0 %v770
      %v1061 = vpop.f32.mrf.mxu0
      %v1062 = vadd.f32 %v309, %v1061
      %v1063 = vpop.f32.mrf.mxu0
      %v1064 = vadd.f32 %v309, %v1063
      %1065 = vmatmul.bf16.gmra.mxu0 %v773
      %v1066 = vpop.f32.mrf.mxu0
      %v1067 = vadd.f32 %v309, %v1066
      %v1068 = vpop.f32.mrf.mxu0
      %v1069 = vadd.f32 %v309, %v1068
      %1070 = vmatmul.bf16.gmra.mxu0 %v776
      %v1071 = vpop.f32.mrf.mxu0
      %v1072 = vadd.f32 %v309, %v1071
      %v1073 = vpop.f32.mrf.mxu0
      %v1074 = vadd.f32 %v309, %v1073
      %1075 = vmatmul.bf16.gmra.mxu0 %v779
      %v1076 = vpop.f32.mrf.mxu0
      %v1077 = vadd.f32 %v309, %v1076
      %v1078 = vpop.f32.mrf.mxu0
      %v1079 = vadd.f32 %v309, %v1078
      %1080 = vmatmul.bf16.gmra.mxu0 %v782
      %v1081 = vpop.f32.mrf.mxu0
      %v1082 = vadd.f32 %v309, %v1081
      %v1083 = vpop.f32.mrf.mxu0
      %v1084 = vadd.f32 %v309, %v1083
      %1085 = vmatmul.bf16.gmra.mxu0 %v785
      %v1086 = vpop.f32.mrf.mxu0
      %v1087 = vadd.f32 %v309, %v1086
      %v1088 = vpop.f32.mrf.mxu0
      %v1089 = vadd.f32 %v309, %v1088
      %1090 = vmatmul.bf16.gmra.mxu0 %v788
      %v1091 = vpop.f32.mrf.mxu0
      %v1092 = vadd.f32 %v309, %v1091
      %v1093 = vpop.f32.mrf.mxu0
      %v1094 = vadd.f32 %v309, %v1093
      %1095 = vmatmul.bf16.gmra.mxu0 %v791
      %v1096 = vpop.f32.mrf.mxu0
      %v1097 = vadd.f32 %v309, %v1096
      %v1098 = vpop.f32.mrf.mxu0
      %v1099 = vadd.f32 %v309, %v1098
      %1100 = vmatmul.bf16.gmra.mxu0 %v794
      %v1101 = vpop.f32.mrf.mxu0
      %v1102 = vadd.f32 %v309, %v1101
      %v1103 = vpop.f32.mrf.mxu0
      %v1104 = vadd.f32 %v309, %v1103
      %1105 = vmatmul.bf16.gmra.mxu0 %v797
      %v1106 = vpop.f32.mrf.mxu0
      %v1107 = vadd.f32 %v309, %v1106
      %v1108 = vpop.f32.mrf.mxu0
      %v1109 = vadd.f32 %v309, %v1108
      %1110 = vmatmul.bf16.gmra.mxu0 %v800
      %v1111 = vpop.f32.mrf.mxu0
      %v1112 = vadd.f32 %v309, %v1111
      %v1113 = vpop.f32.mrf.mxu0
      %v1114 = vadd.f32 %v309, %v1113
      %1115 = vmatmul.bf16.gmra.mxu0 %v803
      %v1116 = vpop.f32.mrf.mxu0
      %v1117 = vadd.f32 %v309, %v1116
      %v1118 = vpop.f32.mrf.mxu0
      %v1119 = vadd.f32 %v309, %v1118
      %1120 = vmatmul.bf16.gmra.mxu0 %v806
      %v1121 = vpop.f32.mrf.mxu0
      %v1122 = vadd.f32 %v309, %v1121
      %v1123 = vpop.f32.mrf.mxu0
      %v1124 = vadd.f32 %v309, %v1123
      %1125 = vmatmul.bf16.gmra.mxu0 %v809
      %v1126 = vpop.f32.mrf.mxu0
      %v1127 = vadd.f32 %v309, %v1126
      %v1128 = vpop.f32.mrf.mxu0
      %v1129 = vadd.f32 %v309, %v1128
      %1130 = vmatmul.bf16.gmra.mxu0 %v812
      %v1131 = vpop.f32.mrf.mxu0
      %v1132 = vadd.f32 %v309, %v1131
      %v1133 = vpop.f32.mrf.mxu0
      %v1134 = vadd.f32 %v309, %v1133
      %1135 = vmatmul.bf16.gmra.mxu0 %v815
      %v1136 = vpop.f32.mrf.mxu0
      %v1137 = vadd.f32 %v309, %v1136
      %v1138 = vpop.f32.mrf.mxu0
      %v1139 = vadd.f32 %v309, %v1138
      %1140 = vmatmul.bf16.gmra.mxu0 %v818
      %v1141 = vpop.f32.mrf.mxu0
      %v1142 = vadd.f32 %v309, %v1141
      %v1143 = vpop.f32.mrf.mxu0
      %v1144 = vadd.f32 %v309, %v1143
      %1145 = vmatmul.bf16.gmra.mxu0 %v821
      %v1146 = vpop.f32.mrf.mxu0
      %v1147 = vadd.f32 %v309, %v1146
      %v1148 = vpop.f32.mrf.mxu0
      %v1149 = vadd.f32 %v309, %v1148
      %1150 = vmatmul.bf16.gmra.mxu0 %v824
      %v1151 = vpop.f32.mrf.mxu0
      %v1152 = vadd.f32 %v309, %v1151
      %v1153 = vpop.f32.mrf.mxu0
      %v1154 = vadd.f32 %v309, %v1153
      %1155 = vmatmul.bf16.gmra.mxu0 %v827
      %v1156 = vpop.f32.mrf.mxu0
      %v1157 = vadd.f32 %v309, %v1156
      %v1158 = vpop.f32.mrf.mxu0
      %v1159 = vadd.f32 %v309, %v1158
      %1160 = vmatmul.bf16.gmra.mxu0 %v830
      %v1161 = vpop.f32.mrf.mxu0
      %v1162 = vadd.f32 %v309, %v1161
      %v1163 = vpop.f32.mrf.mxu0
      %v1164 = vadd.f32 %v309, %v1163
      %1165 = vmatmul.bf16.gmra.mxu0 %v833
      %v1166 = vpop.f32.mrf.mxu0
      %v1167 = vadd.f32 %v309, %v1166
      %v1168 = vpop.f32.mrf.mxu0
      %v1169 = vadd.f32 %v309, %v1168
      %1170 = vdwg.mxu0
      %v1171 = vmax.f32 %v852, 0.0
      %v1172 = vmax.f32 %v854, 0.0
      %v1173 = vmax.f32 %v857, 0.0
      %v1174 = vmax.f32 %v859, 0.0
      %v1175 = vmax.f32 %v862, 0.0
      %v1176 = vmax.f32 %v864, 0.0
      %v1177 = vmax.f32 %v867, 0.0
      %v1178 = vmax.f32 %v869, 0.0
      %v1179 = vmax.f32 %v872, 0.0
      %v1180 = vmax.f32 %v874, 0.0
      %v1181 = vmax.f32 %v877, 0.0
      %v1182 = vmax.f32 %v879, 0.0
      %v1183 = vmax.f32 %v882, 0.0
      %v1184 = vmax.f32 %v884, 0.0
      %v1185 = vmax.f32 %v887, 0.0
      %v1186 = vmax.f32 %v889, 0.0
      %v1187 = vmax.f32 %v892, 0.0
      %v1188 = vmax.f32 %v894, 0.0
      %v1189 = vmax.f32 %v897, 0.0
      %v1190 = vmax.f32 %v899, 0.0
      %v1191 = vmax.f32 %v902, 0.0
      %v1192 = vmax.f32 %v904, 0.0
      %v1193 = vmax.f32 %v907, 0.0
      %v1194 = vmax.f32 %v909, 0.0
      %v1195 = vmax.f32 %v912, 0.0
      %v1196 = vmax.f32 %v914, 0.0
      %v1197 = vmax.f32 %v917, 0.0
      %v1198 = vmax.f32 %v919, 0.0
      %v1199 = vmax.f32 %v922, 0.0
      %v1200 = vmax.f32 %v924, 0.0
      %v1201 = vmax.f32 %v927, 0.0
      %v1202 = vmax.f32 %v929, 0.0
      %v1203 = vmax.f32 %v932, 0.0
      %v1204 = vmax.f32 %v934, 0.0
      %v1205 = vmax.f32 %v937, 0.0
      %v1206 = vmax.f32 %v939, 0.0
      %v1207 = vmax.f32 %v942, 0.0
      %v1208 = vmax.f32 %v944, 0.0
      %v1209 = vmax.f32 %v947, 0.0
      %v1210 = vmax.f32 %v949, 0.0
      %v1211 = vmax.f32 %v952, 0.0
      %v1212 = vmax.f32 %v954, 0.0
      %v1213 = vmax.f32 %v957, 0.0
      %v1214 = vmax.f32 %v959, 0.0
      %v1215 = vmax.f32 %v962, 0.0
      %v1216 = vmax.f32 %v964, 0.0
      %v1217 = vmax.f32 %v967, 0.0
      %v1218 = vmax.f32 %v969, 0.0
      %v1219 = vmax.f32 %v972, 0.0
      %v1220 = vmax.f32 %v974, 0.0
      %v1221 = vmax.f32 %v977, 0.0
      %v1222 = vmax.f32 %v979, 0.0
      %v1223 = vmax.f32 %v982, 0.0
      %v1224 = vmax.f32 %v984, 0.0
      %v1225 = vmax.f32 %v987, 0.0
      %v1226 = vmax.f32 %v989, 0.0
      %v1227 = vmax.f32 %v992, 0.0
      %v1228 = vmax.f32 %v994, 0.0
      %v1229 = vmax.f32 %v997, 0.0
      %v1230 = vmax.f32 %v999, 0.0
      %v1231 = vmax.f32 %v1002, 0.0
      %v1232 = vmax.f32 %v1004, 0.0
      %v1233 = vmax.f32 %v1007, 0.0
      %v1234 = vmax.f32 %v1009, 0.0
      %v1235 = vmax.f32 %v1012, 0.0
      %v1236 = vmax.f32 %v1014, 0.0
      %v1237 = vmax.f32 %v1017, 0.0
      %v1238 = vmax.f32 %v1019, 0.0
      %v1239 = vmax.f32 %v1022, 0.0
      %v1240 = vmax.f32 %v1024, 0.0
      %v1241 = vmax.f32 %v1027, 0.0
      %v1242 = vmax.f32 %v1029, 0.0
      %v1243 = vmax.f32 %v1032, 0.0
      %v1244 = vmax.f32 %v1034, 0.0
      %v1245 = vmax.f32 %v1037, 0.0
      %v1246 = vmax.f32 %v1039, 0.0
      %v1247 = vmax.f32 %v1042, 0.0
      %v1248 = vmax.f32 %v1044, 0.0
      %v1249 = vmax.f32 %v1047, 0.0
      %v1250 = vmax.f32 %v1049, 0.0
      %v1251 = vmax.f32 %v1052, 0.0
      %v1252 = vmax.f32 %v1054, 0.0
      %v1253 = vmax.f32 %v1057, 0.0
      %v1254 = vmax.f32 %v1059, 0.0
      %v1255 = vmax.f32 %v1062, 0.0
      %v1256 = vmax.f32 %v1064, 0.0
      %v1257 = vmax.f32 %v1067, 0.0
      %v1258 = vmax.f32 %v1069, 0.0
      %v1259 = vmax.f32 %v1072, 0.0
      %v1260 = vmax.f32 %v1074, 0.0
      %v1261 = vmax.f32 %v1077, 0.0
      %v1262 = vmax.f32 %v1079, 0.0
      %v1263 = vmax.f32 %v1082, 0.0
      %v1264 = vmax.f32 %v1084, 0.0
      %v1265 = vmax.f32 %v1087, 0.0
      %v1266 = vmax.f32 %v1089, 0.0
      %v1267 = vmax.f32 %v1092, 0.0
      %v1268 = vmax.f32 %v1094, 0.0
      %v1269 = vmax.f32 %v1097, 0.0
      %v1270 = vmax.f32 %v1099, 0.0
      %v1271 = vmax.f32 %v1102, 0.0
      %v1272 = vmax.f32 %v1104, 0.0
      %v1273 = vmax.f32 %v1107, 0.0
      %v1274 = vmax.f32 %v1109, 0.0
      %v1275 = vmax.f32 %v1112, 0.0
      %v1276 = vmax.f32 %v1114, 0.0
      %v1277 = vmax.f32 %v1117, 0.0
      %v1278 = vmax.f32 %v1119, 0.0
      %v1279 = vmax.f32 %v1122, 0.0
      %v1280 = vmax.f32 %v1124, 0.0
      %v1281 = vmax.f32 %v1127, 0.0
      %v1282 = vmax.f32 %v1129, 0.0
      %v1283 = vmax.f32 %v1132, 0.0
      %v1284 = vmax.f32 %v1134, 0.0
      %v1285 = vmax.f32 %v1137, 0.0
      %v1286 = vmax.f32 %v1139, 0.0
      %v1287 = vmax.f32 %v1142, 0.0
      %v1288 = vmax.f32 %v1144, 0.0
      %v1289 = vmax.f32 %v1147, 0.0
      %v1290 = vmax.f32 %v1149, 0.0
      %v1291 = vmax.f32 %v1152, 0.0
      %v1292 = vmax.f32 %v1154, 0.0
      %v1293 = vmax.f32 %v1157, 0.0
      %v1294 = vmax.f32 %v1159, 0.0
      %v1295 = vmax.f32 %v1162, 0.0
      %v1296 = vmax.f32 %v1164, 0.0
      %v1297 = vmax.f32 %v1167, 0.0
      %v1298 = vmax.f32 %v1169, 0.0
      %v1299 = vpack.c.bf16 %v1171, %v1171
      %v1300 = vpack.c.bf16 %v1172, %v1172
      %v1301 = vpack.c.bf16 %v1173, %v1173
      %v1302 = vpack.c.bf16 %v1174, %v1174
      %v1303 = vpack.c.bf16 %v1175, %v1175
      %v1304 = vpack.c.bf16 %v1176, %v1176
      %v1305 = vpack.c.bf16 %v1177, %v1177
      %v1306 = vpack.c.bf16 %v1178, %v1178
      %v1307 = vpack.c.bf16 %v1179, %v1179
      %v1308 = vpack.c.bf16 %v1180, %v1180
      %v1309 = vpack.c.bf16 %v1181, %v1181
      %v1310 = vpack.c.bf16 %v1182, %v1182
      %v1311 = vpack.c.bf16 %v1183, %v1183
      %v1312 = vpack.c.bf16 %v1184, %v1184
      %v1313 = vpack.c.bf16 %v1185, %v1185
      %v1314 = vpack.c.bf16 %v1186, %v1186
      %v1315 = vpack.c.bf16 %v1187, %v1187
      %v1316 = vpack.c.bf16 %v1188, %v1188
      %v1317 = vpack.c.bf16 %v1189, %v1189
      %v1318 = vpack.c.bf16 %v1190, %v1190
      %v1319 = vpack.c.bf16 %v1191, %v1191
      %v1320 = vpack.c.bf16 %v1192, %v1192
      %v1321 = vpack.c.bf16 %v1193, %v1193
      %v1322 = vpack.c.bf16 %v1194, %v1194
      %v1323 = vpack.c.bf16 %v1195, %v1195
      %v1324 = vpack.c.bf16 %v1196, %v1196
      %v1325 = vpack.c.bf16 %v1197, %v1197
      %v1326 = vpack.c.bf16 %v1198, %v1198
      %v1327 = vpack.c.bf16 %v1199, %v1199
      %v1328 = vpack.c.bf16 %v1200, %v1200
      %v1329 = vpack.c.bf16 %v1201, %v1201
      %v1330 = vpack.c.bf16 %v1202, %v1202
      %v1331 = vpack.c.bf16 %v1203, %v1203
      %v1332 = vpack.c.bf16 %v1204, %v1204
      %v1333 = vpack.c.bf16 %v1205, %v1205
      %v1334 = vpack.c.bf16 %v1206, %v1206
      %v1335 = vpack.c.bf16 %v1207, %v1207
      %v1336 = vpack.c.bf16 %v1208, %v1208
      %v1337 = vpack.c.bf16 %v1209, %v1209
      %v1338 = vpack.c.bf16 %v1210, %v1210
      %v1339 = vpack.c.bf16 %v1211, %v1211
      %v1340 = vpack.c.bf16 %v1212, %v1212
      %v1341 = vpack.c.bf16 %v1213, %v1213
      %v1342 = vpack.c.bf16 %v1214, %v1214
      %v1343 = vpack.c.bf16 %v1215, %v1215
      %v1344 = vpack.c.bf16 %v1216, %v1216
      %v1345 = vpack.c.bf16 %v1217, %v1217
      %v1346 = vpack.c.bf16 %v1218, %v1218
      %v1347 = vpack.c.bf16 %v1219, %v1219
      %v1348 = vpack.c.bf16 %v1220, %v1220
      %v1349 = vpack.c.bf16 %v1221, %v1221
      %v1350 = vpack.c.bf16 %v1222, %v1222
      %v1351 = vpack.c.bf16 %v1223, %v1223
      %v1352 = vpack.c.bf16 %v1224, %v1224
      %v1353 = vpack.c.bf16 %v1225, %v1225
      %v1354 = vpack.c.bf16 %v1226, %v1226
      %v1355 = vpack.c.bf16 %v1227, %v1227
      %v1356 = vpack.c.bf16 %v1228, %v1228
      %v1357 = vpack.c.bf16 %v1229, %v1229
      %v1358 = vpack.c.bf16 %v1230, %v1230
      %v1359 = vpack.c.bf16 %v1231, %v1231
      %v1360 = vpack.c.bf16 %v1232, %v1232
      %v1361 = vpack.c.bf16 %v1233, %v1233
      %v1362 = vpack.c.bf16 %v1234, %v1234
      %v1363 = vpack.c.bf16 %v1235, %v1235
      %v1364 = vpack.c.bf16 %v1236, %v1236
      %v1365 = vpack.c.bf16 %v1237, %v1237
      %v1366 = vpack.c.bf16 %v1238, %v1238
      %v1367 = vpack.c.bf16 %v1239, %v1239
      %v1368 = vpack.c.bf16 %v1240, %v1240
      %v1369 = vpack.c.bf16 %v1241, %v1241
      %v1370 = vpack.c.bf16 %v1242, %v1242
      %v1371 = vpack.c.bf16 %v1243, %v1243
      %v1372 = vpack.c.bf16 %v1244, %v1244
      %v1373 = vpack.c.bf16 %v1245, %v1245
      %v1374 = vpack.c.bf16 %v1246, %v1246
      %v1375 = vpack.c.bf16 %v1247, %v1247
      %v1376 = vpack.c.bf16 %v1248, %v1248
      %v1377 = vpack.c.bf16 %v1249, %v1249
      %v1378 = vpack.c.bf16 %v1250, %v1250
      %v1379 = vpack.c.bf16 %v1251, %v1251
      %v1380 = vpack.c.bf16 %v1252, %v1252
      %v1381 = vpack.c.bf16 %v1253, %v1253
      %v1382 = vpack.c.bf16 %v1254, %v1254
      %v1383 = vpack.c.bf16 %v1255, %v1255
      %v1384 = vpack.c.bf16 %v1256, %v1256
      %v1385 = vpack.c.bf16 %v1257, %v1257
      %v1386 = vpack.c.bf16 %v1258, %v1258
      %v1387 = vpack.c.bf16 %v1259, %v1259
      %v1388 = vpack.c.bf16 %v1260, %v1260
      %v1389 = vpack.c.bf16 %v1261, %v1261
      %v1390 = vpack.c.bf16 %v1262, %v1262
      %v1391 = vpack.c.bf16 %v1263, %v1263
      %v1392 = vpack.c.bf16 %v1264, %v1264
      %v1393 = vpack.c.bf16 %v1265, %v1265
      %v1394 = vpack.c.bf16 %v1266, %v1266
      %v1395 = vpack.c.bf16 %v1267, %v1267
      %v1396 = vpack.c.bf16 %v1268, %v1268
      %v1397 = vpack.c.bf16 %v1269, %v1269
      %v1398 = vpack.c.bf16 %v1270, %v1270
      %v1399 = vpack.c.bf16 %v1271, %v1271
      %v1400 = vpack.c.bf16 %v1272, %v1272
      %v1401 = vpack.c.bf16 %v1273, %v1273
      %v1402 = vpack.c.bf16 %v1274, %v1274
      %v1403 = vpack.c.bf16 %v1275, %v1275
      %v1404 = vpack.c.bf16 %v1276, %v1276
      %v1405 = vpack.c.bf16 %v1277, %v1277
      %v1406 = vpack.c.bf16 %v1278, %v1278
      %v1407 = vpack.c.bf16 %v1279, %v1279
      %v1408 = vpack.c.bf16 %v1280, %v1280
      %v1409 = vpack.c.bf16 %v1281, %v1281
      %v1410 = vpack.c.bf16 %v1282, %v1282
      %v1411 = vpack.c.bf16 %v1283, %v1283
      %v1412 = vpack.c.bf16 %v1284, %v1284
      %v1413 = vpack.c.bf16 %v1285, %v1285
      %v1414 = vpack.c.bf16 %v1286, %v1286
      %v1415 = vpack.c.bf16 %v1287, %v1287
      %v1416 = vpack.c.bf16 %v1288, %v1288
      %v1417 = vpack.c.bf16 %v1289, %v1289
      %v1418 = vpack.c.bf16 %v1290, %v1290
      %v1419 = vpack.c.bf16 %v1291, %v1291
      %v1420 = vpack.c.bf16 %v1292, %v1292
      %v1421 = vpack.c.bf16 %v1293, %v1293
      %v1422 = vpack.c.bf16 %v1294, %v1294
      %v1423 = vpack.c.bf16 %v1295, %v1295
      %v1424 = vpack.c.bf16 %v1296, %v1296
      %v1425 = vpack.c.bf16 %v1297, %v1297
      %v1426 = vpack.c.bf16 %v1298, %v1298
      %1427 = vst [vmem:[%s172] sm:$0xf] %v1299
      %1428 = vst [vmem:[%s172 + $0x4] sm:$0xf] %v1300
      %1429 = vst [vmem:[%s172 + $0x8] sm:$0xf] %v1301
      %1430 = vst [vmem:[%s172 + $0xc] sm:$0xf] %v1302
      %1431 = vst [vmem:[%s172 + $0x10] sm:$0xf] %v1303
      %1432 = vst [vmem:[%s172 + $0x14] sm:$0xf] %v1304
      %1433 = vst [vmem:[%s172 + $0x18] sm:$0xf] %v1305
      %1434 = vst [vmem:[%s172 + $0x1c] sm:$0xf] %v1306
      %1435 = vst [vmem:[%s172 + $0x20] sm:$0xf] %v1307
      %1436 = vst [vmem:[%s172 + $0x24] sm:$0xf] %v1308
      %1437 = vst [vmem:[%s172 + $0x28] sm:$0xf] %v1309
      %1438 = vst [vmem:[%s172 + $0x2c] sm:$0xf] %v1310
      %1439 = vst [vmem:[%s172 + $0x30] sm:$0xf] %v1311
      %1440 = vst [vmem:[%s172 + $0x34] sm:$0xf] %v1312
      %1441 = vst [vmem:[%s172 + $0x38] sm:$0xf] %v1313
      %1442 = vst [vmem:[%s172 + $0x3c] sm:$0xf] %v1314
      %1443 = vst [vmem:[%s172 + $0x40] sm:$0xf] %v1315
      %1444 = vst [vmem:[%s172 + $0x44] sm:$0xf] %v1316
      %1445 = vst [vmem:[%s172 + $0x48] sm:$0xf] %v1317
      %1446 = vst [vmem:[%s172 + $0x4c] sm:$0xf] %v1318
      %1447 = vst [vmem:[%s172 + $0x50] sm:$0xf] %v1319
      %1448 = vst [vmem:[%s172 + $0x54] sm:$0xf] %v1320
      %1449 = vst [vmem:[%s172 + $0x58] sm:$0xf] %v1321
      %1450 = vst [vmem:[%s172 + $0x5c] sm:$0xf] %v1322
      %1451 = vst [vmem:[%s172 + $0x60] sm:$0xf] %v1323
      %1452 = vst [vmem:[%s172 + $0x64] sm:$0xf] %v1324
      %1453 = vst [vmem:[%s172 + $0x68] sm:$0xf] %v1325
      %1454 = vst [vmem:[%s172 + $0x6c] sm:$0xf] %v1326
      %1455 = vst [vmem:[%s172 + $0x70] sm:$0xf] %v1327
      %1456 = vst [vmem:[%s172 + $0x74] sm:$0xf] %v1328
      %1457 = vst [vmem:[%s172 + $0x78] sm:$0xf] %v1329
      %1458 = vst [vmem:[%s172 + $0x7c] sm:$0xf] %v1330
      %1459 = vst [vmem:[%s172 + $0x80] sm:$0xf] %v1331
      %1460 = vst [vmem:[%s172 + $0x84] sm:$0xf] %v1332
      %1461 = vst [vmem:[%s172 + $0x88] sm:$0xf] %v1333
      %1462 = vst [vmem:[%s172 + $0x8c] sm:$0xf] %v1334
      %1463 = vst [vmem:[%s172 + $0x90] sm:$0xf] %v1335
      %1464 = vst [vmem:[%s172 + $0x94] sm:$0xf] %v1336
      %1465 = vst [vmem:[%s172 + $0x98] sm:$0xf] %v1337
      %1466 = vst [vmem:[%s172 + $0x9c] sm:$0xf] %v1338
      %1467 = vst [vmem:[%s172 + $0xa0] sm:$0xf] %v1339
      %1468 = vst [vmem:[%s172 + $0xa4] sm:$0xf] %v1340
      %1469 = vst [vmem:[%s172 + $0xa8] sm:$0xf] %v1341
      %1470 = vst [vmem:[%s172 + $0xac] sm:$0xf] %v1342
      %1471 = vst [vmem:[%s172 + $0xb0] sm:$0xf] %v1343
      %1472 = vst [vmem:[%s172 + $0xb4] sm:$0xf] %v1344
      %1473 = vst [vmem:[%s172 + $0xb8] sm:$0xf] %v1345
      %1474 = vst [vmem:[%s172 + $0xbc] sm:$0xf] %v1346
      %1475 = vst [vmem:[%s172 + $0xc0] sm:$0xf] %v1347
      %1476 = vst [vmem:[%s172 + $0xc4] sm:$0xf] %v1348
      %1477 = vst [vmem:[%s172 + $0xc8] sm:$0xf] %v1349
      %1478 = vst [vmem:[%s172 + $0xcc] sm:$0xf] %v1350
      %1479 = vst [vmem:[%s172 + $0xd0] sm:$0xf] %v1351
      %1480 = vst [vmem:[%s172 + $0xd4] sm:$0xf] %v1352
      %1481 = vst [vmem:[%s172 + $0xd8] sm:$0xf] %v1353
      %1482 = vst [vmem:[%s172 + $0xdc] sm:$0xf] %v1354
      %1483 = vst [vmem:[%s172 + $0xe0] sm:$0xf] %v1355
      %1484 = vst [vmem:[%s172 + $0xe4] sm:$0xf] %v1356
      %1485 = vst [vmem:[%s172 + $0xe8] sm:$0xf] %v1357
      %1486 = vst [vmem:[%s172 + $0xec] sm:$0xf] %v1358
      %1487 = vst [vmem:[%s172 + $0xf0] sm:$0xf] %v1359
      %1488 = vst [vmem:[%s172 + $0xf4] sm:$0xf] %v1360
      %1489 = vst [vmem:[%s172 + $0xf8] sm:$0xf] %v1361
      %1490 = vst [vmem:[%s172 + $0xfc] sm:$0xf] %v1362
      %1491 = vst [vmem:[%s172 + $0x100] sm:$0xf] %v1363
      %1492 = vst [vmem:[%s172 + $0x104] sm:$0xf] %v1364
      %1493 = vst [vmem:[%s172 + $0x108] sm:$0xf] %v1365
      %1494 = vst [vmem:[%s172 + $0x10c] sm:$0xf] %v1366
      %1495 = vst [vmem:[%s172 + $0x110] sm:$0xf] %v1367
      %1496 = vst [vmem:[%s172 + $0x114] sm:$0xf] %v1368
      %1497 = vst [vmem:[%s172 + $0x118] sm:$0xf] %v1369
      %1498 = vst [vmem:[%s172 + $0x11c] sm:$0xf] %v1370
      %1499 = vst [vmem:[%s172 + $0x120] sm:$0xf] %v1371
      %1500 = vst [vmem:[%s172 + $0x124] sm:$0xf] %v1372
      %1501 = vst [vmem:[%s172 + $0x128] sm:$0xf] %v1373
      %1502 = vst [vmem:[%s172 + $0x12c] sm:$0xf] %v1374
      %1503 = vst [vmem:[%s172 + $0x130] sm:$0xf] %v1375
      %1504 = vst [vmem:[%s172 + $0x134] sm:$0xf] %v1376
      %1505 = vst [vmem:[%s172 + $0x138] sm:$0xf] %v1377
      %1506 = vst [vmem:[%s172 + $0x13c] sm:$0xf] %v1378
      %1507 = vst [vmem:[%s172 + $0x140] sm:$0xf] %v1379
      %1508 = vst [vmem:[%s172 + $0x144] sm:$0xf] %v1380
      %1509 = vst [vmem:[%s172 + $0x148] sm:$0xf] %v1381
      %1510 = vst [vmem:[%s172 + $0x14c] sm:$0xf] %v1382
      %1511 = vst [vmem:[%s172 + $0x150] sm:$0xf] %v1383
      %1512 = vst [vmem:[%s172 + $0x154] sm:$0xf] %v1384
      %1513 = vst [vmem:[%s172 + $0x158] sm:$0xf] %v1385
      %1514 = vst [vmem:[%s172 + $0x15c] sm:$0xf] %v1386
      %1515 = vst [vmem:[%s172 + $0x160] sm:$0xf] %v1387
      %1516 = vst [vmem:[%s172 + $0x164] sm:$0xf] %v1388
      %1517 = vst [vmem:[%s172 + $0x168] sm:$0xf] %v1389
      %1518 = vst [vmem:[%s172 + $0x16c] sm:$0xf] %v1390
      %1519 = vst [vmem:[%s172 + $0x170] sm:$0xf] %v1391
      %1520 = vst [vmem:[%s172 + $0x174] sm:$0xf] %v1392
      %1521 = vst [vmem:[%s172 + $0x178] sm:$0xf] %v1393
      %1522 = vst [vmem:[%s172 + $0x17c] sm:$0xf] %v1394
      %1523 = vst [vmem:[%s172 + $0x180] sm:$0xf] %v1395
      %1524 = vst [vmem:[%s172 + $0x184] sm:$0xf] %v1396
      %1525 = vst [vmem:[%s172 + $0x188] sm:$0xf] %v1397
      %1526 = vst [vmem:[%s172 + $0x18c] sm:$0xf] %v1398
      %1527 = vst [vmem:[%s172 + $0x190] sm:$0xf] %v1399
      %1528 = vst [vmem:[%s172 + $0x194] sm:$0xf] %v1400
      %1529 = vst [vmem:[%s172 + $0x198] sm:$0xf] %v1401
      %1530 = vst [vmem:[%s172 + $0x19c] sm:$0xf] %v1402
      %1531 = vst [vmem:[%s172 + $0x1a0] sm:$0xf] %v1403
      %1532 = vst [vmem:[%s172 + $0x1a4] sm:$0xf] %v1404
      %1533 = vst [vmem:[%s172 + $0x1a8] sm:$0xf] %v1405
      %1534 = vst [vmem:[%s172 + $0x1ac] sm:$0xf] %v1406
      %1535 = vst [vmem:[%s172 + $0x1b0] sm:$0xf] %v1407
      %1536 = vst [vmem:[%s172 + $0x1b4] sm:$0xf] %v1408
      %1537 = vst [vmem:[%s172 + $0x1b8] sm:$0xf] %v1409
      %1538 = vst [vmem:[%s172 + $0x1bc] sm:$0xf] %v1410
      %1539 = vst [vmem:[%s172 + $0x1c0] sm:$0xf] %v1411
      %1540 = vst [vmem:[%s172 + $0x1c4] sm:$0xf] %v1412
      %1541 = vst [vmem:[%s172 + $0x1c8] sm:$0xf] %v1413
      %1542 = vst [vmem:[%s172 + $0x1cc] sm:$0xf] %v1414
      %1543 = vst [vmem:[%s172 + $0x1d0] sm:$0xf] %v1415
      %1544 = vst [vmem:[%s172 + $0x1d4] sm:$0xf] %v1416
      %1545 = vst [vmem:[%s172 + $0x1d8] sm:$0xf] %v1417
      %1546 = vst [vmem:[%s172 + $0x1dc] sm:$0xf] %v1418
      %1547 = vst [vmem:[%s172 + $0x1e0] sm:$0xf] %v1419
      %1548 = vst [vmem:[%s172 + $0x1e4] sm:$0xf] %v1420
      %1549 = vst [vmem:[%s172 + $0x1e8] sm:$0xf] %v1421
      %1550 = vst [vmem:[%s172 + $0x1ec] sm:$0xf] %v1422
      %1551 = vst [vmem:[%s172 + $0x1f0] sm:$0xf] %v1423
      %1552 = vst [vmem:[%s172 + $0x1f4] sm:$0xf] %v1424
      %1553 = vst [vmem:[%s172 + $0x1f8] sm:$0xf] %v1425
      %1554 = vst [vmem:[%s172 + $0x1fc] sm:$0xf] %v1426
      %s1555 = smul.u32 128, %s14
      %p1556 = scmp.lt.s32.totalorder %s1555, 255
      %s1557 = scalar_select %p1556, %s1555, 255
      %s1558 = smul.addr %s1557, 4
      %s1559 = scalar_lea.vmem %s3, %s1558
      // Predicated region
      $region33: #{vqa_forward.3} parent=31 // pred_check
        %p1560 = pneg %p100
      $region34: #{vqa_forward.3} parent=31 // pred_check_branch
        %1562 = sbr.rel (%p1560) target = $region36
      $region35: #{vqa_forward.3} parent=31 // pred_region
        %s1563 = smul.u32 128, %s14
      $region36: #{vqa_forward.3} parent=31 // pred_fallthru
        _
    $region32: #{vqa_forward.3} parent=5 // pred_fallthru
      _
    %p1564 = scmp.le.s32.totalorder 2, %s9
    // Predicated region
    $region37: #{vqa_forward.3} parent=5 // pred_check
      %p1565 = pneg %p1564
    $region38: #{vqa_forward.3} parent=5 // pred_check_branch
      %1567 = sbr.rel (%p1565) target = $region40
    $region39: #{vqa_forward.3} parent=5 // pred_region
      %s1568 = ssub.s32 %s9, 2
      // Predicated region
      $region41: #{vqa_forward.3} parent=39 // pred_check
        %p1569 = pneg %p106
      $region42: #{vqa_forward.3} parent=39 // pred_check_branch
        %1571 = sbr.rel (%p1569) target = $region44
      $region43: #{vqa_forward.3} parent=39 // pred_region
        %s1572 = smul.u32 128, %s15
        %p1573 = scmp.lt.s32.totalorder %s1572, 255
        %s1574 = scalar_select %p1573, %s1572, 255
        %s1575 = smul.addr %s1574, 4
        %s1576 = scalar_lea.vmem %s3, %s1575
      $region44: #{vqa_forward.3} parent=39 // pred_fallthru
        _
    $region40: #{vqa_forward.3} parent=5 // pred_fallthru
      _
  $region6: #{vqa_forward.3} parent=0 // loop_footer
    %s13 = sadd.s32 1, %s9
  $region7: #{vqa_forward.3} parent=0 // loop_footer_branch
    %8 = sbr.rel target = $region3
  $region8: #{vqa_forward.3} parent=0 // loop_exit
    _

// kernel: vqa_forward.4
$region0: #{vqa_forward.4}
  #allocation0 [shape = 'u32[]', space=smem, size = 0x4, offset = 0x4, fixed_abs, tag = 'smem constant byte address 0x4 - core index']
  #allocation1 [shape = 'u32[72,128]{1,0:T(1,128)}', space=vmem, size = 0x9000, scoped, tag = 'internal scratch']
  %s0 = inlined_call_operand.vmem [shape: bf16[512,1152], index: 0, kind: input, shape index: {}]
  %s1 = inlined_call_operand.vmem [shape: bf16[1152,128], index: 1, kind: input, shape index: {}]
  %s2 = inlined_call_operand.vmem [shape: f32[1,128], index: 2, kind: input, shape index: {}]
  %s3 = inlined_call_operand.vmem [shape: bf16[512,128], index: 3, kind: output, shape index: {}]
  %s4 = sld [smem:[#allocation0]]
  $region22: #{vqa_forward.4} parent=0
    _
  %s6 = ssub.s32 1, %s4
  %s7 = scalar_select 0, %s6, %s4
  // Predicated region
  $region2: #{vqa_forward.4} parent=0 // pred_check
    _
  $region3: #{vqa_forward.4} parent=0 // pred_check_branch
    %9 = sbr.rel (0) target = $region5
  $region4: #{vqa_forward.4} parent=0 // pred_region
    _
  $region5: #{vqa_forward.4} parent=0 // pred_fallthru
    _
  // Predicated region
  $region6: #{vqa_forward.4} parent=0 // pred_check
    _
  $region7: #{vqa_forward.4} parent=0 // pred_check_branch
    %11 = sbr.rel (0) target = $region9
  $region8: #{vqa_forward.4} parent=0 // pred_region
    _
  $region9: #{vqa_forward.4} parent=0 // pred_fallthru
    _
  // Predicated region
  $region10: #{vqa_forward.4} parent=0 // pred_check
    _
  $region11: #{vqa_forward.4} parent=0 // pred_check_branch
    %13 = sbr.rel (0) target = $region13
  $region12: #{vqa_forward.4} parent=0 // pred_region
    _
  $region13: #{vqa_forward.4} parent=0 // pred_fallthru
    _
  %v14 = vld [vmem:[%s0] sm:$0xff]
  %v15 = vld [vmem:[%s0 + $0x8] sm:$0xff]
  %v16 = vld [vmem:[%s0 + $0x10] sm:$0xff]
  %v17 = vld [vmem:[%s0 + $0x18] sm:$0xff]
  %v18 = vld [vmem:[%s0 + $0x20] sm:$0xf]
  %v19 = vld [vmem:[%s0 + $0x24] sm:$0xff]
  %v20 = vld [vmem:[%s0 + $0x2c] sm:$0xff]
  %v21 = vld [vmem:[%s0 + $0x34] sm:$0xff]
  %v22 = vld [vmem:[%s0 + $0x3c] sm:$0xff]
  %v23 = vld [vmem:[%s0 + $0x44] sm:$0xf]
  %v24 = vld [vmem:[%s0 + $0x48] sm:$0xff]
  %v25 = vld [vmem:[%s0 + $0x50] sm:$0xff]
  %v26 = vld [vmem:[%s0 + $0x58] sm:$0xff]
  %v27 = vld [vmem:[%s0 + $0x60] sm:$0xff]
  %v28 = vld [vmem:[%s0 + $0x68] sm:$0xf]
  %v29 = vld [vmem:[%s0 + $0x6c] sm:$0xff]
  %v30 = vld [vmem:[%s0 + $0x74] sm:$0xff]
  %v31 = vld [vmem:[%s0 + $0x7c] sm:$0xff]
  %v32 = vld [vmem:[%s0 + $0x84] sm:$0xff]
  %v33 = vld [vmem:[%s0 + $0x8c] sm:$0xf]
  %v34 = vld [vmem:[%s0 + $0x90] sm:$0xff]
  %v35 = vld [vmem:[%s0 + $0x98] sm:$0xff]
  %v36 = vld [vmem:[%s0 + $0xa0] sm:$0xff]
  %v37 = vld [vmem:[%s0 + $0xa8] sm:$0xff]
  %v38 = vld [vmem:[%s0 + $0xb0] sm:$0xf]
  %v39 = vld [vmem:[%s0 + $0xb4] sm:$0xff]
  %v40 = vld [vmem:[%s0 + $0xbc] sm:$0xff]
  %v41 = vld [vmem:[%s0 + $0xc4] sm:$0xff]
  %v42 = vld [vmem:[%s0 + $0xcc] sm:$0xff]
  %v43 = vld [vmem:[%s0 + $0xd4] sm:$0xf]
  %v44 = vld [vmem:[%s0 + $0xd8] sm:$0xff]
  %v45 = vld [vmem:[%s0 + $0xe0] sm:$0xff]
  %v46 = vld [vmem:[%s0 + $0xe8] sm:$0xff]
  %v47 = vld [vmem:[%s0 + $0xf0] sm:$0xff]
  %v48 = vld [vmem:[%s0 + $0xf8] sm:$0xf]
  %v49 = vld [vmem:[%s0 + $0xfc] sm:$0xff]
  %v50 = vld [vmem:[%s0 + $0x104] sm:$0xff]
  %v51 = vld [vmem:[%s0 + $0x10c] sm:$0xff]
  %v52 = vld [vmem:[%s0 + $0x114] sm:$0xff]
  %v53 = vld [vmem:[%s0 + $0x11c] sm:$0xf]
  %v54 = vld [vmem:[%s0 + $0x120] sm:$0xff]
  %v55 = vld [vmem:[%s0 + $0x128] sm:$0xff]
  %v56 = vld [vmem:[%s0 + $0x130] sm:$0xff]
  %v57 = vld [vmem:[%s0 + $0x138] sm:$0xff]
  %v58 = vld [vmem:[%s0 + $0x140] sm:$0xf]
  %v59 = vld [vmem:[%s0 + $0x144] sm:$0xff]
  %v60 = vld [vmem:[%s0 + $0x14c] sm:$0xff]
  %v61 = vld [vmem:[%s0 + $0x154] sm:$0xff]
  %v62 = vld [vmem:[%s0 + $0x15c] sm:$0xff]
  %v63 = vld [vmem:[%s0 + $0x164] sm:$0xf]
  %v64 = vld [vmem:[%s0 + $0x168] sm:$0xff]
  %v65 = vld [vmem:[%s0 + $0x170] sm:$0xff]
  %v66 = vld [vmem:[%s0 + $0x178] sm:$0xff]
  %v67 = vld [vmem:[%s0 + $0x180] sm:$0xff]
  %v68 = vld [vmem:[%s0 + $0x188] sm:$0xf]
  %v69 = vld [vmem:[%s0 + $0x18c] sm:$0xff]
  %v70 = vld [vmem:[%s0 + $0x194] sm:$0xff]
  %v71 = vld [vmem:[%s0 + $0x19c] sm:$0xff]
  %v72 = vld [vmem:[%s0 + $0x1a4] sm:$0xff]
  %v73 = vld [vmem:[%s0 + $0x1ac] sm:$0xf]
  %v74 = vld [vmem:[%s0 + $0x1b0] sm:$0xff]
  %v75 = vld [vmem:[%s0 + $0x1b8] sm:$0xff]
  %v76 = vld [vmem:[%s0 + $0x1c0] sm:$0xff]
  %v77 = vld [vmem:[%s0 + $0x1c8] sm:$0xff]
  %v78 = vld [vmem:[%s0 + $0x1d0] sm:$0xf]
  %v79 = vld [vmem:[%s0 + $0x1d4] sm:$0xff]
  %v80 = vld [vmem:[%s0 + $0x1dc] sm:$0xff]
  %v81 = vld [vmem:[%s0 + $0x1e4] sm:$0xff]
  %v82 = vld [vmem:[%s0 + $0x1ec] sm:$0xff]
  %v83 = vld [vmem:[%s0 + $0x1f4] sm:$0xf]
  %v84 = vld [vmem:[%s0 + $0x1f8] sm:$0xff]
  %v85 = vld [vmem:[%s0 + $0x200] sm:$0xff]
  %v86 = vld [vmem:[%s0 + $0x208] sm:$0xff]
  %v87 = vld [vmem:[%s0 + $0x210] sm:$0xff]
  %v88 = vld [vmem:[%s0 + $0x218] sm:$0xf]
  %v89 = vld [vmem:[%s0 + $0x21c] sm:$0xff]
  %v90 = vld [vmem:[%s0 + $0x224] sm:$0xff]
  %v91 = vld [vmem:[%s0 + $0x22c] sm:$0xff]
  %v92 = vld [vmem:[%s0 + $0x234] sm:$0xff]
  %v93 = vld [vmem:[%s0 + $0x23c] sm:$0xf]
  %v94 = vld [vmem:[%s0 + $0x240] sm:$0xff]
  %v95 = vld [vmem:[%s0 + $0x248] sm:$0xff]
  %v96 = vld [vmem:[%s0 + $0x250] sm:$0xff]
  %v97 = vld [vmem:[%s0 + $0x258] sm:$0xff]
  %v98 = vld [vmem:[%s0 + $0x260] sm:$0xf]
  %v99 = vld [vmem:[%s0 + $0x264] sm:$0xff]
  %v100 = vld [vmem:[%s0 + $0x26c] sm:$0xff]
  %v101 = vld [vmem:[%s0 + $0x274] sm:$0xff]
  %v102 = vld [vmem:[%s0 + $0x27c] sm:$0xff]
  %v103 = vld [vmem:[%s0 + $0x284] sm:$0xf]
  %v104 = vld [vmem:[%s0 + $0x288] sm:$0xff]
  %v105 = vld [vmem:[%s0 + $0x290] sm:$0xff]
  %v106 = vld [vmem:[%s0 + $0x298] sm:$0xff]
  %v107 = vld [vmem:[%s0 + $0x2a0] sm:$0xff]
  %v108 = vld [vmem:[%s0 + $0x2a8] sm:$0xf]
  %v109 = vld [vmem:[%s0 + $0x2ac] sm:$0xff]
  %v110 = vld [vmem:[%s0 + $0x2b4] sm:$0xff]
  %v111 = vld [vmem:[%s0 + $0x2bc] sm:$0xff]
  %v112 = vld [vmem:[%s0 + $0x2c4] sm:$0xff]
  %v113 = vld [vmem:[%s0 + $0x2cc] sm:$0xf]
  %v114 = vld [vmem:[%s0 + $0x2d0] sm:$0xff]
  %v115 = vld [vmem:[%s0 + $0x2d8] sm:$0xff]
  %v116 = vld [vmem:[%s0 + $0x2e0] sm:$0xff]
  %v117 = vld [vmem:[%s0 + $0x2e8] sm:$0xff]
  %v118 = vld [vmem:[%s0 + $0x2f0] sm:$0xf]
  %v119 = vld [vmem:[%s0 + $0x2f4] sm:$0xff]
  %v120 = vld [vmem:[%s0 + $0x2fc] sm:$0xff]
  %v121 = vld [vmem:[%s0 + $0x304] sm:$0xff]
  %v122 = vld [vmem:[%s0 + $0x30c] sm:$0xff]
  %v123 = vld [vmem:[%s0 + $0x314] sm:$0xf]
  %v124 = vld [vmem:[%s0 + $0x318] sm:$0xff]
  %v125 = vld [vmem:[%s0 + $0x320] sm:$0xff]
  %v126 = vld [vmem:[%s0 + $0x328] sm:$0xff]
  %v127 = vld [vmem:[%s0 + $0x330] sm:$0xff]
  %v128 = vld [vmem:[%s0 + $0x338] sm:$0xf]
  %v129 = vld [vmem:[%s0 + $0x33c] sm:$0xff]
  %v130 = vld [vmem:[%s0 + $0x344] sm:$0xff]
  %v131 = vld [vmem:[%s0 + $0x34c] sm:$0xff]
  %v132 = vld [vmem:[%s0 + $0x354] sm:$0xff]
  %v133 = vld [vmem:[%s0 + $0x35c] sm:$0xf]
  %v134 = vld [vmem:[%s0 + $0x360] sm:$0xff]
  %v135 = vld [vmem:[%s0 + $0x368] sm:$0xff]
  %v136 = vld [vmem:[%s0 + $0x370] sm:$0xff]
  %v137 = vld [vmem:[%s0 + $0x378] sm:$0xff]
  %v138 = vld [vmem:[%s0 + $0x380] sm:$0xf]
  %v139 = vld [vmem:[%s0 + $0x384] sm:$0xff]
  %v140 = vld [vmem:[%s0 + $0x38c] sm:$0xff]
  %v141 = vld [vmem:[%s0 + $0x394] sm:$0xff]
  %v142 = vld [vmem:[%s0 + $0x39c] sm:$0xff]
  %v143 = vld [vmem:[%s0 + $0x3a4] sm:$0xf]
  %v144 = vld [vmem:[%s0 + $0x3a8] sm:$0xff]
  %v145 = vld [vmem:[%s0 + $0x3b0] sm:$0xff]
  %v146 = vld [vmem:[%s0 + $0x3b8] sm:$0xff]
  %v147 = vld [vmem:[%s0 + $0x3c0] sm:$0xff]
  %v148 = vld [vmem:[%s0 + $0x3c8] sm:$0xf]
  %v149 = vld [vmem:[%s0 + $0x3cc] sm:$0xff]
  %v150 = vld [vmem:[%s0 + $0x3d4] sm:$0xff]
  %v151 = vld [vmem:[%s0 + $0x3dc] sm:$0xff]
  %v152 = vld [vmem:[%s0 + $0x3e4] sm:$0xff]
  %v153 = vld [vmem:[%s0 + $0x3ec] sm:$0xf]
  %v154 = vld [vmem:[%s0 + $0x3f0] sm:$0xff]
  %v155 = vld [vmem:[%s0 + $0x3f8] sm:$0xff]
  %v156 = vld [vmem:[%s0 + $0x400] sm:$0xff]
  %v157 = vld [vmem:[%s0 + $0x408] sm:$0xff]
  %v158 = vld [vmem:[%s0 + $0x410] sm:$0xf]
  %v159 = vld [vmem:[%s0 + $0x414] sm:$0xff]
  %v160 = vld [vmem:[%s0 + $0x41c] sm:$0xff]
  %v161 = vld [vmem:[%s0 + $0x424] sm:$0xff]
  %v162 = vld [vmem:[%s0 + $0x42c] sm:$0xff]
  %v163 = vld [vmem:[%s0 + $0x434] sm:$0xf]
  %v164 = vld [vmem:[%s0 + $0x438] sm:$0xff]
  %v165 = vld [vmem:[%s0 + $0x440] sm:$0xff]
  %v166 = vld [vmem:[%s0 + $0x448] sm:$0xff]
  %v167 = vld [vmem:[%s0 + $0x450] sm:$0xff]
  %v168 = vld [vmem:[%s0 + $0x458] sm:$0xf]
  %v169 = vld [vmem:[%s0 + $0x45c] sm:$0xff]
  %v170 = vld [vmem:[%s0 + $0x464] sm:$0xff]
  %v171 = vld [vmem:[%s0 + $0x46c] sm:$0xff]
  %v172 = vld [vmem:[%s0 + $0x474] sm:$0xff]
  %v173 = vld [vmem:[%s0 + $0x47c] sm:$0xf]
  %v174 = vld [vmem:[%s0 + $0x480] sm:$0xff]
  %v175 = vld [vmem:[%s0 + $0x488] sm:$0xff]
  %v176 = vld [vmem:[%s0 + $0x490] sm:$0xff]
  %v177 = vld [vmem:[%s0 + $0x498] sm:$0xff]
  %v178 = vld [vmem:[%s0 + $0x4a0] sm:$0xf]
  %v179 = vld [vmem:[%s0 + $0x4a4] sm:$0xff]
  %v180 = vld [vmem:[%s0 + $0x4ac] sm:$0xff]
  %v181 = vld [vmem:[%s0 + $0x4b4] sm:$0xff]
  %v182 = vld [vmem:[%s0 + $0x4bc] sm:$0xff]
  %v183 = vld [vmem:[%s0 + $0x4c4] sm:$0xf]
  %v184 = vld [vmem:[%s0 + $0x4c8] sm:$0xff]
  %v185 = vld [vmem:[%s0 + $0x4d0] sm:$0xff]
  %v186 = vld [vmem:[%s0 + $0x4d8] sm:$0xff]
  %v187 = vld [vmem:[%s0 + $0x4e0] sm:$0xff]
  %v188 = vld [vmem:[%s0 + $0x4e8] sm:$0xf]
  %v189 = vld [vmem:[%s0 + $0x4ec] sm:$0xff]
  %v190 = vld [vmem:[%s0 + $0x4f4] sm:$0xff]
  %v191 = vld [vmem:[%s0 + $0x4fc] sm:$0xff]
  %v192 = vld [vmem:[%s0 + $0x504] sm:$0xff]
  %v193 = vld [vmem:[%s0 + $0x50c] sm:$0xf]
  %v194 = vld [vmem:[%s0 + $0x510] sm:$0xff]
  %v195 = vld [vmem:[%s0 + $0x518] sm:$0xff]
  %v196 = vld [vmem:[%s0 + $0x520] sm:$0xff]
  %v197 = vld [vmem:[%s0 + $0x528] sm:$0xff]
  %v198 = vld [vmem:[%s0 + $0x530] sm:$0xf]
  %v199 = vld [vmem:[%s0 + $0x534] sm:$0xff]
  %v200 = vld [vmem:[%s0 + $0x53c] sm:$0xff]
  %v201 = vld [vmem:[%s0 + $0x544] sm:$0xff]
  %v202 = vld [vmem:[%s0 + $0x54c] sm:$0xff]
  %v203 = vld [vmem:[%s0 + $0x554] sm:$0xf]
  %v204 = vld [vmem:[%s0 + $0x558] sm:$0xff]
  %v205 = vld [vmem:[%s0 + $0x560] sm:$0xff]
  %v206 = vld [vmem:[%s0 + $0x568] sm:$0xff]
  %v207 = vld [vmem:[%s0 + $0x570] sm:$0xff]
  %v208 = vld [vmem:[%s0 + $0x578] sm:$0xf]
  %v209 = vld [vmem:[%s0 + $0x57c] sm:$0xff]
  %v210 = vld [vmem:[%s0 + $0x584] sm:$0xff]
  %v211 = vld [vmem:[%s0 + $0x58c] sm:$0xff]
  %v212 = vld [vmem:[%s0 + $0x594] sm:$0xff]
  %v213 = vld [vmem:[%s0 + $0x59c] sm:$0xf]
  %v214 = vld [vmem:[%s0 + $0x5a0] sm:$0xff]
  %v215 = vld [vmem:[%s0 + $0x5a8] sm:$0xff]
  %v216 = vld [vmem:[%s0 + $0x5b0] sm:$0xff]
  %v217 = vld [vmem:[%s0 + $0x5b8] sm:$0xff]
  %v218 = vld [vmem:[%s0 + $0x5c0] sm:$0xf]
  %v219 = vld [vmem:[%s0 + $0x5c4] sm:$0xff]
  %v220 = vld [vmem:[%s0 + $0x5cc] sm:$0xff]
  %v221 = vld [vmem:[%s0 + $0x5d4] sm:$0xff]
  %v222 = vld [vmem:[%s0 + $0x5dc] sm:$0xff]
  %v223 = vld [vmem:[%s0 + $0x5e4] sm:$0xf]
  %v224 = vld [vmem:[%s0 + $0x5e8] sm:$0xff]
  %v225 = vld [vmem:[%s0 + $0x5f0] sm:$0xff]
  %v226 = vld [vmem:[%s0 + $0x5f8] sm:$0xff]
  %v227 = vld [vmem:[%s0 + $0x600] sm:$0xff]
  %v228 = vld [vmem:[%s0 + $0x608] sm:$0xf]
  %v229 = vld [vmem:[%s0 + $0x60c] sm:$0xff]
  %v230 = vld [vmem:[%s0 + $0x614] sm:$0xff]
  %v231 = vld [vmem:[%s0 + $0x61c] sm:$0xff]
  %v232 = vld [vmem:[%s0 + $0x624] sm:$0xff]
  %v233 = vld [vmem:[%s0 + $0x62c] sm:$0xf]
  %v234 = vld [vmem:[%s0 + $0x630] sm:$0xff]
  %v235 = vld [vmem:[%s0 + $0x638] sm:$0xff]
  %v236 = vld [vmem:[%s0 + $0x640] sm:$0xff]
  %v237 = vld [vmem:[%s0 + $0x648] sm:$0xff]
  %v238 = vld [vmem:[%s0 + $0x650] sm:$0xf]
  %v239 = vld [vmem:[%s0 + $0x654] sm:$0xff]
  %v240 = vld [vmem:[%s0 + $0x65c] sm:$0xff]
  %v241 = vld [vmem:[%s0 + $0x664] sm:$0xff]
  %v242 = vld [vmem:[%s0 + $0x66c] sm:$0xff]
  %v243 = vld [vmem:[%s0 + $0x674] sm:$0xf]
  %v244 = vld [vmem:[%s0 + $0x678] sm:$0xff]
  %v245 = vld [vmem:[%s0 + $0x680] sm:$0xff]
  %v246 = vld [vmem:[%s0 + $0x688] sm:$0xff]
  %v247 = vld [vmem:[%s0 + $0x690] sm:$0xff]
  %v248 = vld [vmem:[%s0 + $0x698] sm:$0xf]
  %v249 = vld [vmem:[%s0 + $0x69c] sm:$0xff]
  %v250 = vld [vmem:[%s0 + $0x6a4] sm:$0xff]
  %v251 = vld [vmem:[%s0 + $0x6ac] sm:$0xff]
  %v252 = vld [vmem:[%s0 + $0x6b4] sm:$0xff]
  %v253 = vld [vmem:[%s0 + $0x6bc] sm:$0xf]
  %v254 = vld [vmem:[%s0 + $0x6c0] sm:$0xff]
  %v255 = vld [vmem:[%s0 + $0x6c8] sm:$0xff]
  %v256 = vld [vmem:[%s0 + $0x6d0] sm:$0xff]
  %v257 = vld [vmem:[%s0 + $0x6d8] sm:$0xff]
  %v258 = vld [vmem:[%s0 + $0x6e0] sm:$0xf]
  %v259 = vld [vmem:[%s0 + $0x6e4] sm:$0xff]
  %v260 = vld [vmem:[%s0 + $0x6ec] sm:$0xff]
  %v261 = vld [vmem:[%s0 + $0x6f4] sm:$0xff]
  %v262 = vld [vmem:[%s0 + $0x6fc] sm:$0xff]
  %v263 = vld [vmem:[%s0 + $0x704] sm:$0xf]
  %v264 = vld [vmem:[%s0 + $0x708] sm:$0xff]
  %v265 = vld [vmem:[%s0 + $0x710] sm:$0xff]
  %v266 = vld [vmem:[%s0 + $0x718] sm:$0xff]
  %v267 = vld [vmem:[%s0 + $0x720] sm:$0xff]
  %v268 = vld [vmem:[%s0 + $0x728] sm:$0xf]
  %v269 = vld [vmem:[%s0 + $0x72c] sm:$0xff]
  %v270 = vld [vmem:[%s0 + $0x734] sm:$0xff]
  %v271 = vld [vmem:[%s0 + $0x73c] sm:$0xff]
  %v272 = vld [vmem:[%s0 + $0x744] sm:$0xff]
  %v273 = vld [vmem:[%s0 + $0x74c] sm:$0xf]
  %v274 = vld [vmem:[%s0 + $0x750] sm:$0xff]
  %v275 = vld [vmem:[%s0 + $0x758] sm:$0xff]
  %v276 = vld [vmem:[%s0 + $0x760] sm:$0xff]
  %v277 = vld [vmem:[%s0 + $0x768] sm:$0xff]
  %v278 = vld [vmem:[%s0 + $0x770] sm:$0xf]
  %v279 = vld [vmem:[%s0 + $0x774] sm:$0xff]
  %v280 = vld [vmem:[%s0 + $0x77c] sm:$0xff]
  %v281 = vld [vmem:[%s0 + $0x784] sm:$0xff]
  %v282 = vld [vmem:[%s0 + $0x78c] sm:$0xff]
  %v283 = vld [vmem:[%s0 + $0x794] sm:$0xf]
  %v284 = vld [vmem:[%s0 + $0x798] sm:$0xff]
  %v285 = vld [vmem:[%s0 + $0x7a0] sm:$0xff]
  %v286 = vld [vmem:[%s0 + $0x7a8] sm:$0xff]
  %v287 = vld [vmem:[%s0 + $0x7b0] sm:$0xff]
  %v288 = vld [vmem:[%s0 + $0x7b8] sm:$0xf]
  %v289 = vld [vmem:[%s0 + $0x7bc] sm:$0xff]
  %v290 = vld [vmem:[%s0 + $0x7c4] sm:$0xff]
  %v291 = vld [vmem:[%s0 + $0x7cc] sm:$0xff]
  %v292 = vld [vmem:[%s0 + $0x7d4] sm:$0xff]
  %v293 = vld [vmem:[%s0 + $0x7dc] sm:$0xf]
  %v294 = vld [vmem:[%s0 + $0x7e0] sm:$0xff]
  %v295 = vld [vmem:[%s0 + $0x7e8] sm:$0xff]
  %v296 = vld [vmem:[%s0 + $0x7f0] sm:$0xff]
  %v297 = vld [vmem:[%s0 + $0x7f8] sm:$0xff]
  %v298 = vld [vmem:[%s0 + $0x800] sm:$0xf]
  %v299 = vld [vmem:[%s0 + $0x804] sm:$0xff]
  %v300 = vld [vmem:[%s0 + $0x80c] sm:$0xff]
  %v301 = vld [vmem:[%s0 + $0x814] sm:$0xff]
  %v302 = vld [vmem:[%s0 + $0x81c] sm:$0xff]
  %v303 = vld [vmem:[%s0 + $0x824] sm:$0xf]
  %v304 = vld [vmem:[%s0 + $0x828] sm:$0xff]
  %v305 = vld [vmem:[%s0 + $0x830] sm:$0xff]
  %v306 = vld [vmem:[%s0 + $0x838] sm:$0xff]
  %v307 = vld [vmem:[%s0 + $0x840] sm:$0xff]
  %v308 = vld [vmem:[%s0 + $0x848] sm:$0xf]
  %v309 = vld [vmem:[%s0 + $0x84c] sm:$0xff]
  %v310 = vld [vmem:[%s0 + $0x854] sm:$0xff]
  %v311 = vld [vmem:[%s0 + $0x85c] sm:$0xff]
  %v312 = vld [vmem:[%s0 + $0x864] sm:$0xff]
  %v313 = vld [vmem:[%s0 + $0x86c] sm:$0xf]
  %v314 = vld [vmem:[%s0 + $0x870] sm:$0xff]
  %v315 = vld [vmem:[%s0 + $0x878] sm:$0xff]
  %v316 = vld [vmem:[%s0 + $0x880] sm:$0xff]
  %v317 = vld [vmem:[%s0 + $0x888] sm:$0xff]
  %v318 = vld [vmem:[%s0 + $0x890] sm:$0xf]
  %v319 = vld [vmem:[%s0 + $0x894] sm:$0xff]
  %v320 = vld [vmem:[%s0 + $0x89c] sm:$0xff]
  %v321 = vld [vmem:[%s0 + $0x8a4] sm:$0xff]
  %v322 = vld [vmem:[%s0 + $0x8ac] sm:$0xff]
  %v323 = vld [vmem:[%s0 + $0x8b4] sm:$0xf]
  %v324 = vld [vmem:[%s0 + $0x8b8] sm:$0xff]
  %v325 = vld [vmem:[%s0 + $0x8c0] sm:$0xff]
  %v326 = vld [vmem:[%s0 + $0x8c8] sm:$0xff]
  %v327 = vld [vmem:[%s0 + $0x8d0] sm:$0xff]
  %v328 = vld [vmem:[%s0 + $0x8d8] sm:$0xf]
  %v329 = vld [vmem:[%s0 + $0x8dc] sm:$0xff]
  %v330 = vld [vmem:[%s0 + $0x8e4] sm:$0xff]
  %v331 = vld [vmem:[%s0 + $0x8ec] sm:$0xff]
  %v332 = vld [vmem:[%s0 + $0x8f4] sm:$0xff]
  %v333 = vld [vmem:[%s0 + $0x8fc] sm:$0xf]
  %v334 = vld [vmem:[%s1] sm:$0xf]
  %v335 = vld [vmem:[%s1 + $0x4] sm:$0xf]
  %v336 = vld [vmem:[%s1 + $0x8] sm:$0xf]
  %v337 = vld [vmem:[%s1 + $0xc] sm:$0xf]
  %v338 = vld [vmem:[%s1 + $0x10] sm:$0xf]
  %v339 = vld [vmem:[%s1 + $0x14] sm:$0xf]
  %v340 = vld [vmem:[%s1 + $0x18] sm:$0xf]
  %v341 = vld [vmem:[%s1 + $0x1c] sm:$0xf]
  %v342 = vld [vmem:[%s1 + $0x20] sm:$0xf]
  %v343 = vld [vmem:[%s1 + $0x24] sm:$0xf]
  %v344 = vld [vmem:[%s1 + $0x28] sm:$0xf]
  %v345 = vld [vmem:[%s1 + $0x2c] sm:$0xf]
  %v346 = vld [vmem:[%s1 + $0x30] sm:$0xf]
  %v347 = vld [vmem:[%s1 + $0x34] sm:$0xf]
  %v348 = vld [vmem:[%s1 + $0x38] sm:$0xf]
  %v349 = vld [vmem:[%s1 + $0x3c] sm:$0xf]
  %v350 = vld [vmem:[%s1 + $0x40] sm:$0xf]
  %v351 = vld [vmem:[%s1 + $0x44] sm:$0xf]
  %v352 = vld [vmem:[%s1 + $0x48] sm:$0xf]
  %v353 = vld [vmem:[%s1 + $0x4c] sm:$0xf]
  %v354 = vld [vmem:[%s1 + $0x50] sm:$0xf]
  %v355 = vld [vmem:[%s1 + $0x54] sm:$0xf]
  %v356 = vld [vmem:[%s1 + $0x58] sm:$0xf]
  %v357 = vld [vmem:[%s1 + $0x5c] sm:$0xf]
  %v358 = vld [vmem:[%s1 + $0x60] sm:$0xf]
  %v359 = vld [vmem:[%s1 + $0x64] sm:$0xf]
  %v360 = vld [vmem:[%s1 + $0x68] sm:$0xf]
  %v361 = vld [vmem:[%s1 + $0x6c] sm:$0xf]
  %v362 = vld [vmem:[%s1 + $0x70] sm:$0xf]
  %v363 = vld [vmem:[%s1 + $0x74] sm:$0xf]
  %v364 = vld [vmem:[%s1 + $0x78] sm:$0xf]
  %v365 = vld [vmem:[%s1 + $0x7c] sm:$0xf]
  %v366 = vld [vmem:[%s1 + $0x80] sm:$0xf]
  %v367 = vld [vmem:[%s1 + $0x84] sm:$0xf]
  %v368 = vld [vmem:[%s1 + $0x88] sm:$0xf]
  %v369 = vld [vmem:[%s1 + $0x8c] sm:$0xf]
  %v370 = vld [vmem:[%s1 + $0x90] sm:$0xf]
  %v371 = vld [vmem:[%s1 + $0x94] sm:$0xf]
  %v372 = vld [vmem:[%s1 + $0x98] sm:$0xf]
  %v373 = vld [vmem:[%s1 + $0x9c] sm:$0xf]
  %v374 = vld [vmem:[%s1 + $0xa0] sm:$0xf]
  %v375 = vld [vmem:[%s1 + $0xa4] sm:$0xf]
  %v376 = vld [vmem:[%s1 + $0xa8] sm:$0xf]
  %v377 = vld [vmem:[%s1 + $0xac] sm:$0xf]
  %v378 = vld [vmem:[%s1 + $0xb0] sm:$0xf]
  %v379 = vld [vmem:[%s1 + $0xb4] sm:$0xf]
  %v380 = vld [vmem:[%s1 + $0xb8] sm:$0xf]
  %v381 = vld [vmem:[%s1 + $0xbc] sm:$0xf]
  %v382 = vld [vmem:[%s1 + $0xc0] sm:$0xf]
  %v383 = vld [vmem:[%s1 + $0xc4] sm:$0xf]
  %v384 = vld [vmem:[%s1 + $0xc8] sm:$0xf]
  %v385 = vld [vmem:[%s1 + $0xcc] sm:$0xf]
  %v386 = vld [vmem:[%s1 + $0xd0] sm:$0xf]
  %v387 = vld [vmem:[%s1 + $0xd4] sm:$0xf]
  %v388 = vld [vmem:[%s1 + $0xd8] sm:$0xf]
  %v389 = vld [vmem:[%s1 + $0xdc] sm:$0xf]
  %v390 = vld [vmem:[%s1 + $0xe0] sm:$0xf]
  %v391 = vld [vmem:[%s1 + $0xe4] sm:$0xf]
  %v392 = vld [vmem:[%s1 + $0xe8] sm:$0xf]
  %v393 = vld [vmem:[%s1 + $0xec] sm:$0xf]
  %v394 = vld [vmem:[%s1 + $0xf0] sm:$0xf]
  %v395 = vld [vmem:[%s1 + $0xf4] sm:$0xf]
  %v396 = vld [vmem:[%s1 + $0xf8] sm:$0xf]
  %v397 = vld [vmem:[%s1 + $0xfc] sm:$0xf]
  %v398 = vld [vmem:[%s1 + $0x100] sm:$0xf]
  %v399 = vld [vmem:[%s1 + $0x104] sm:$0xf]
  %v400 = vld [vmem:[%s1 + $0x108] sm:$0xf]
  %v401 = vld [vmem:[%s1 + $0x10c] sm:$0xf]
  %v402 = vld [vmem:[%s1 + $0x110] sm:$0xf]
  %v403 = vld [vmem:[%s1 + $0x114] sm:$0xf]
  %v404 = vld [vmem:[%s1 + $0x118] sm:$0xf]
  %v405 = vld [vmem:[%s1 + $0x11c] sm:$0xf]
  %v406 = vld [vmem:[%s1 + $0x120] sm:$0xf]
  %v407 = vld [vmem:[%s1 + $0x124] sm:$0xf]
  %v408 = vld [vmem:[%s1 + $0x128] sm:$0xf]
  %v409 = vld [vmem:[%s1 + $0x12c] sm:$0xf]
  %v410 = vld [vmem:[%s1 + $0x130] sm:$0xf]
  %v411 = vld [vmem:[%s1 + $0x134] sm:$0xf]
  %v412 = vld [vmem:[%s1 + $0x138] sm:$0xf]
  %v413 = vld [vmem:[%s1 + $0x13c] sm:$0xf]
  %v414 = vld [vmem:[%s1 + $0x140] sm:$0xf]
  %v415 = vld [vmem:[%s1 + $0x144] sm:$0xf]
  %v416 = vld [vmem:[%s1 + $0x148] sm:$0xf]
  %v417 = vld [vmem:[%s1 + $0x14c] sm:$0xf]
  %v418 = vld [vmem:[%s1 + $0x150] sm:$0xf]
  %v419 = vld [vmem:[%s1 + $0x154] sm:$0xf]
  %v420 = vld [vmem:[%s1 + $0x158] sm:$0xf]
  %v421 = vld [vmem:[%s1 + $0x15c] sm:$0xf]
  %v422 = vld [vmem:[%s1 + $0x160] sm:$0xf]
  %v423 = vld [vmem:[%s1 + $0x164] sm:$0xf]
  %v424 = vld [vmem:[%s1 + $0x168] sm:$0xf]
  %v425 = vld [vmem:[%s1 + $0x16c] sm:$0xf]
  %v426 = vld [vmem:[%s1 + $0x170] sm:$0xf]
  %v427 = vld [vmem:[%s1 + $0x174] sm:$0xf]
  %v428 = vld [vmem:[%s1 + $0x178] sm:$0xf]
  %v429 = vld [vmem:[%s1 + $0x17c] sm:$0xf]
  %v430 = vld [vmem:[%s1 + $0x180] sm:$0xf]
  %v431 = vld [vmem:[%s1 + $0x184] sm:$0xf]
  %v432 = vld [vmem:[%s1 + $0x188] sm:$0xf]
  %v433 = vld [vmem:[%s1 + $0x18c] sm:$0xf]
  %v434 = vld [vmem:[%s1 + $0x190] sm:$0xf]
  %v435 = vld [vmem:[%s1 + $0x194] sm:$0xf]
  %v436 = vld [vmem:[%s1 + $0x198] sm:$0xf]
  %v437 = vld [vmem:[%s1 + $0x19c] sm:$0xf]
  %v438 = vld [vmem:[%s1 + $0x1a0] sm:$0xf]
  %v439 = vld [vmem:[%s1 + $0x1a4] sm:$0xf]
  %v440 = vld [vmem:[%s1 + $0x1a8] sm:$0xf]
  %v441 = vld [vmem:[%s1 + $0x1ac] sm:$0xf]
  %v442 = vld [vmem:[%s1 + $0x1b0] sm:$0xf]
  %v443 = vld [vmem:[%s1 + $0x1b4] sm:$0xf]
  %v444 = vld [vmem:[%s1 + $0x1b8] sm:$0xf]
  %v445 = vld [vmem:[%s1 + $0x1bc] sm:$0xf]
  %v446 = vld [vmem:[%s1 + $0x1c0] sm:$0xf]
  %v447 = vld [vmem:[%s1 + $0x1c4] sm:$0xf]
  %v448 = vld [vmem:[%s1 + $0x1c8] sm:$0xf]
  %v449 = vld [vmem:[%s1 + $0x1cc] sm:$0xf]
  %v450 = vld [vmem:[%s1 + $0x1d0] sm:$0xf]
  %v451 = vld [vmem:[%s1 + $0x1d4] sm:$0xf]
  %v452 = vld [vmem:[%s1 + $0x1d8] sm:$0xf]
  %v453 = vld [vmem:[%s1 + $0x1dc] sm:$0xf]
  %v454 = vld [vmem:[%s1 + $0x1e0] sm:$0xf]
  %v455 = vld [vmem:[%s1 + $0x1e4] sm:$0xf]
  %v456 = vld [vmem:[%s1 + $0x1e8] sm:$0xf]
  %v457 = vld [vmem:[%s1 + $0x1ec] sm:$0xf]
  %v458 = vld [vmem:[%s1 + $0x1f0] sm:$0xf]
  %v459 = vld [vmem:[%s1 + $0x1f4] sm:$0xf]
  %v460 = vld [vmem:[%s1 + $0x1f8] sm:$0xf]
  %v461 = vld [vmem:[%s1 + $0x1fc] sm:$0xf]
  %v462 = vld [vmem:[%s1 + $0x200] sm:$0xf]
  %v463 = vld [vmem:[%s1 + $0x204] sm:$0xf]
  %v464 = vld [vmem:[%s1 + $0x208] sm:$0xf]
  %v465 = vld [vmem:[%s1 + $0x20c] sm:$0xf]
  %v466 = vld [vmem:[%s1 + $0x210] sm:$0xf]
  %v467 = vld [vmem:[%s1 + $0x214] sm:$0xf]
  %v468 = vld [vmem:[%s1 + $0x218] sm:$0xf]
  %v469 = vld [vmem:[%s1 + $0x21c] sm:$0xf]
  %v470 = vld [vmem:[%s1 + $0x220] sm:$0xf]
  %v471 = vld [vmem:[%s1 + $0x224] sm:$0xf]
  %v472 = vld [vmem:[%s1 + $0x228] sm:$0xf]
  %v473 = vld [vmem:[%s1 + $0x22c] sm:$0xf]
  %v474 = vld [vmem:[%s1 + $0x230] sm:$0xf]
  %v475 = vld [vmem:[%s1 + $0x234] sm:$0xf]
  %v476 = vld [vmem:[%s1 + $0x238] sm:$0xf]
  %v477 = vld [vmem:[%s1 + $0x23c] sm:$0xf]
  %v478 = vld [vmem:[%s2] sm:$0x1]
  %v480 = vperm.slane %v478, 0
  %v802 = vunpack.c.l.b16 %v14
  %v803 = vunpack.c.h.b16 %v14
  %v804 = vunpack.c.l.b16 %v15
  %v805 = vunpack.c.h.b16 %v15
  %v806 = vunpack.c.l.b16 %v16
  %v807 = vunpack.c.h.b16 %v16
  %v808 = vunpack.c.l.b16 %v17
  %v809 = vunpack.c.h.b16 %v17
  %v810 = vunpack.c.l.b16 %v18
  %v811 = vunpack.c.l.b16 %v19
  %v812 = vunpack.c.h.b16 %v19
  %v813 = vunpack.c.l.b16 %v20
  %v814 = vunpack.c.h.b16 %v20
  %v815 = vunpack.c.l.b16 %v21
  %v816 = vunpack.c.h.b16 %v21
  %v817 = vunpack.c.l.b16 %v22
  %v818 = vunpack.c.h.b16 %v22
  %v819 = vunpack.c.l.b16 %v23
  %v820 = vunpack.c.l.b16 %v24
  %v821 = vunpack.c.h.b16 %v24
  %v822 = vunpack.c.l.b16 %v25
  %v823 = vunpack.c.h.b16 %v25
  %v824 = vunpack.c.l.b16 %v26
  %v825 = vunpack.c.h.b16 %v26
  %v826 = vunpack.c.l.b16 %v27
  %v827 = vunpack.c.h.b16 %v27
  %v828 = vunpack.c.l.b16 %v28
  %v829 = vunpack.c.l.b16 %v29
  %v830 = vunpack.c.h.b16 %v29
  %v831 = vunpack.c.l.b16 %v30
  %v832 = vunpack.c.h.b16 %v30
  %v833 = vunpack.c.l.b16 %v31
  %v834 = vunpack.c.h.b16 %v31
  %v835 = vunpack.c.l.b16 %v32
  %v836 = vunpack.c.h.b16 %v32
  %v837 = vunpack.c.l.b16 %v33
  %v838 = vunpack.c.l.b16 %v34
  %v839 = vunpack.c.h.b16 %v34
  %v840 = vunpack.c.l.b16 %v35
  %v841 = vunpack.c.h.b16 %v35
  %v842 = vunpack.c.l.b16 %v36
  %v843 = vunpack.c.h.b16 %v36
  %v844 = vunpack.c.l.b16 %v37
  %v845 = vunpack.c.h.b16 %v37
  %v846 = vunpack.c.l.b16 %v38
  %v847 = vunpack.c.l.b16 %v39
  %v848 = vunpack.c.h.b16 %v39
  %v849 = vunpack.c.l.b16 %v40
  %v850 = vunpack.c.h.b16 %v40
  %v851 = vunpack.c.l.b16 %v41
  %v852 = vunpack.c.h.b16 %v41
  %v853 = vunpack.c.l.b16 %v42
  %v854 = vunpack.c.h.b16 %v42
  %v855 = vunpack.c.l.b16 %v43
  %v856 = vunpack.c.l.b16 %v44
  %v857 = vunpack.c.h.b16 %v44
  %v858 = vunpack.c.l.b16 %v45
  %v859 = vunpack.c.h.b16 %v45
  %v860 = vunpack.c.l.b16 %v46
  %v861 = vunpack.c.h.b16 %v46
  %v862 = vunpack.c.l.b16 %v47
  %v863 = vunpack.c.h.b16 %v47
  %v864 = vunpack.c.l.b16 %v48
  %v865 = vunpack.c.l.b16 %v49
  %v866 = vunpack.c.h.b16 %v49
  %v867 = vunpack.c.l.b16 %v50
  %v868 = vunpack.c.h.b16 %v50
  %v869 = vunpack.c.l.b16 %v51
  %v870 = vunpack.c.h.b16 %v51
  %v871 = vunpack.c.l.b16 %v52
  %v872 = vunpack.c.h.b16 %v52
  %v873 = vunpack.c.l.b16 %v53
  %v874 = vunpack.c.l.b16 %v54
  %v875 = vunpack.c.h.b16 %v54
  %v876 = vunpack.c.l.b16 %v55
  %v877 = vunpack.c.h.b16 %v55
  %v878 = vunpack.c.l.b16 %v56
  %v879 = vunpack.c.h.b16 %v56
  %v880 = vunpack.c.l.b16 %v57
  %v881 = vunpack.c.h.b16 %v57
  %v882 = vunpack.c.l.b16 %v58
  %v883 = vunpack.c.l.b16 %v59
  %v884 = vunpack.c.h.b16 %v59
  %v885 = vunpack.c.l.b16 %v60
  %v886 = vunpack.c.h.b16 %v60
  %v887 = vunpack.c.l.b16 %v61
  %v888 = vunpack.c.h.b16 %v61
  %v889 = vunpack.c.l.b16 %v62
  %v890 = vunpack.c.h.b16 %v62
  %v891 = vunpack.c.l.b16 %v63
  %v892 = vunpack.c.l.b16 %v64
  %v893 = vunpack.c.h.b16 %v64
  %v894 = vunpack.c.l.b16 %v65
  %v895 = vunpack.c.h.b16 %v65
  %v896 = vunpack.c.l.b16 %v66
  %v897 = vunpack.c.h.b16 %v66
  %v898 = vunpack.c.l.b16 %v67
  %v899 = vunpack.c.h.b16 %v67
  %v900 = vunpack.c.l.b16 %v68
  %v901 = vunpack.c.l.b16 %v69
  %v902 = vunpack.c.h.b16 %v69
  %v903 = vunpack.c.l.b16 %v70
  %v904 = vunpack.c.h.b16 %v70
  %v905 = vunpack.c.l.b16 %v71
  %v906 = vunpack.c.h.b16 %v71
  %v907 = vunpack.c.l.b16 %v72
  %v908 = vunpack.c.h.b16 %v72
  %v909 = vunpack.c.l.b16 %v73
  %v910 = vunpack.c.l.b16 %v74
  %v911 = vunpack.c.h.b16 %v74
  %v912 = vunpack.c.l.b16 %v75
  %v913 = vunpack.c.h.b16 %v75
  %v914 = vunpack.c.l.b16 %v76
  %v915 = vunpack.c.h.b16 %v76
  %v916 = vunpack.c.l.b16 %v77
  %v917 = vunpack.c.h.b16 %v77
  %v918 = vunpack.c.l.b16 %v78
  %v919 = vunpack.c.l.b16 %v79
  %v920 = vunpack.c.h.b16 %v79
  %v921 = vunpack.c.l.b16 %v80
  %v922 = vunpack.c.h.b16 %v80
  %v923 = vunpack.c.l.b16 %v81
  %v924 = vunpack.c.h.b16 %v81
  %v925 = vunpack.c.l.b16 %v82
  %v926 = vunpack.c.h.b16 %v82
  %v927 = vunpack.c.l.b16 %v83
  %v928 = vunpack.c.l.b16 %v84
  %v929 = vunpack.c.h.b16 %v84
  %v930 = vunpack.c.l.b16 %v85
  %v931 = vunpack.c.h.b16 %v85
  %v932 = vunpack.c.l.b16 %v86
  %v933 = vunpack.c.h.b16 %v86
  %v934 = vunpack.c.l.b16 %v87
  %v935 = vunpack.c.h.b16 %v87
  %v936 = vunpack.c.l.b16 %v88
  %v937 = vunpack.c.l.b16 %v89
  %v938 = vunpack.c.h.b16 %v89
  %v939 = vunpack.c.l.b16 %v90
  %v940 = vunpack.c.h.b16 %v90
  %v941 = vunpack.c.l.b16 %v91
  %v942 = vunpack.c.h.b16 %v91
  %v943 = vunpack.c.l.b16 %v92
  %v944 = vunpack.c.h.b16 %v92
  %v945 = vunpack.c.l.b16 %v93
  %v946 = vunpack.c.l.b16 %v94
  %v947 = vunpack.c.h.b16 %v94
  %v948 = vunpack.c.l.b16 %v95
  %v949 = vunpack.c.h.b16 %v95
  %v950 = vunpack.c.l.b16 %v96
  %v951 = vunpack.c.h.b16 %v96
  %v952 = vunpack.c.l.b16 %v97
  %v953 = vunpack.c.h.b16 %v97
  %v954 = vunpack.c.l.b16 %v98
  %v955 = vunpack.c.l.b16 %v99
  %v956 = vunpack.c.h.b16 %v99
  %v957 = vunpack.c.l.b16 %v100
  %v958 = vunpack.c.h.b16 %v100
  %v959 = vunpack.c.l.b16 %v101
  %v960 = vunpack.c.h.b16 %v101
  %v961 = vunpack.c.l.b16 %v102
  %v962 = vunpack.c.h.b16 %v102
  %v963 = vunpack.c.l.b16 %v103
  %v964 = vunpack.c.l.b16 %v104
  %v965 = vunpack.c.h.b16 %v104
  %v966 = vunpack.c.l.b16 %v105
  %v967 = vunpack.c.h.b16 %v105
  %v968 = vunpack.c.l.b16 %v106
  %v969 = vunpack.c.h.b16 %v106
  %v970 = vunpack.c.l.b16 %v107
  %v971 = vunpack.c.h.b16 %v107
  %v972 = vunpack.c.l.b16 %v108
  %v973 = vunpack.c.l.b16 %v109
  %v974 = vunpack.c.h.b16 %v109
  %v975 = vunpack.c.l.b16 %v110
  %v976 = vunpack.c.h.b16 %v110
  %v977 = vunpack.c.l.b16 %v111
  %v978 = vunpack.c.h.b16 %v111
  %v979 = vunpack.c.l.b16 %v112
  %v980 = vunpack.c.h.b16 %v112
  %v981 = vunpack.c.l.b16 %v113
  %v982 = vunpack.c.l.b16 %v114
  %v983 = vunpack.c.h.b16 %v114
  %v984 = vunpack.c.l.b16 %v115
  %v985 = vunpack.c.h.b16 %v115
  %v986 = vunpack.c.l.b16 %v116
  %v987 = vunpack.c.h.b16 %v116
  %v988 = vunpack.c.l.b16 %v117
  %v989 = vunpack.c.h.b16 %v117
  %v990 = vunpack.c.l.b16 %v118
  %v991 = vunpack.c.l.b16 %v119
  %v992 = vunpack.c.h.b16 %v119
  %v993 = vunpack.c.l.b16 %v120
  %v994 = vunpack.c.h.b16 %v120
  %v995 = vunpack.c.l.b16 %v121
  %v996 = vunpack.c.h.b16 %v121
  %v997 = vunpack.c.l.b16 %v122
  %v998 = vunpack.c.h.b16 %v122
  %v999 = vunpack.c.l.b16 %v123
  %v1000 = vunpack.c.l.b16 %v124
  %v1001 = vunpack.c.h.b16 %v124
  %v1002 = vunpack.c.l.b16 %v125
  %v1003 = vunpack.c.h.b16 %v125
  %v1004 = vunpack.c.l.b16 %v126
  %v1005 = vunpack.c.h.b16 %v126
  %v1006 = vunpack.c.l.b16 %v127
  %v1007 = vunpack.c.h.b16 %v127
  %v1008 = vunpack.c.l.b16 %v128
  %v1009 = vunpack.c.l.b16 %v129
  %v1010 = vunpack.c.h.b16 %v129
  %v1011 = vunpack.c.l.b16 %v130
  %v1012 = vunpack.c.h.b16 %v130
  %v1013 = vunpack.c.l.b16 %v131
  %v1014 = vunpack.c.h.b16 %v131
  %v1015 = vunpack.c.l.b16 %v132
  %v1016 = vunpack.c.h.b16 %v132
  %v1017 = vunpack.c.l.b16 %v133
  %v1018 = vunpack.c.l.b16 %v134
  %v1019 = vunpack.c.h.b16 %v134
  %v1020 = vunpack.c.l.b16 %v135
  %v1021 = vunpack.c.h.b16 %v135
  %v1022 = vunpack.c.l.b16 %v136
  %v1023 = vunpack.c.h.b16 %v136
  %v1024 = vunpack.c.l.b16 %v137
  %v1025 = vunpack.c.h.b16 %v137
  %v1026 = vunpack.c.l.b16 %v138
  %v1027 = vunpack.c.l.b16 %v139
  %v1028 = vunpack.c.h.b16 %v139
  %v1029 = vunpack.c.l.b16 %v140
  %v1030 = vunpack.c.h.b16 %v140
  %v1031 = vunpack.c.l.b16 %v141
  %v1032 = vunpack.c.h.b16 %v141
  %v1033 = vunpack.c.l.b16 %v142
  %v1034 = vunpack.c.h.b16 %v142
  %v1035 = vunpack.c.l.b16 %v143
  %v1036 = vunpack.c.l.b16 %v144
  %v1037 = vunpack.c.h.b16 %v144
  %v1038 = vunpack.c.l.b16 %v145
  %v1039 = vunpack.c.h.b16 %v145
  %v1040 = vunpack.c.l.b16 %v146
  %v1041 = vunpack.c.h.b16 %v146
  %v1042 = vunpack.c.l.b16 %v147
  %v1043 = vunpack.c.h.b16 %v147
  %v1044 = vunpack.c.l.b16 %v148
  %v1045 = vunpack.c.l.b16 %v149
  %v1046 = vunpack.c.h.b16 %v149
  %v1047 = vunpack.c.l.b16 %v150
  %v1048 = vunpack.c.h.b16 %v150
  %v1049 = vunpack.c.l.b16 %v151
  %v1050 = vunpack.c.h.b16 %v151
  %v1051 = vunpack.c.l.b16 %v152
  %v1052 = vunpack.c.h.b16 %v152
  %v1053 = vunpack.c.l.b16 %v153
  %v1054 = vunpack.c.l.b16 %v154
  %v1055 = vunpack.c.h.b16 %v154
  %v1056 = vunpack.c.l.b16 %v155
  %v1057 = vunpack.c.h.b16 %v155
  %v1058 = vunpack.c.l.b16 %v156
  %v1059 = vunpack.c.h.b16 %v156
  %v1060 = vunpack.c.l.b16 %v157
  %v1061 = vunpack.c.h.b16 %v157
  %v1062 = vunpack.c.l.b16 %v158
  %v1063 = vunpack.c.l.b16 %v159
  %v1064 = vunpack.c.h.b16 %v159
  %v1065 = vunpack.c.l.b16 %v160
  %v1066 = vunpack.c.h.b16 %v160
  %v1067 = vunpack.c.l.b16 %v161
  %v1068 = vunpack.c.h.b16 %v161
  %v1069 = vunpack.c.l.b16 %v162
  %v1070 = vunpack.c.h.b16 %v162
  %v1071 = vunpack.c.l.b16 %v163
  %v1072 = vunpack.c.l.b16 %v164
  %v1073 = vunpack.c.h.b16 %v164
  %v1074 = vunpack.c.l.b16 %v165
  %v1075 = vunpack.c.h.b16 %v165
  %v1076 = vunpack.c.l.b16 %v166
  %v1077 = vunpack.c.h.b16 %v166
  %v1078 = vunpack.c.l.b16 %v167
  %v1079 = vunpack.c.h.b16 %v167
  %v1080 = vunpack.c.l.b16 %v168
  %v1081 = vunpack.c.l.b16 %v169
  %v1082 = vunpack.c.h.b16 %v169
  %v1083 = vunpack.c.l.b16 %v170
  %v1084 = vunpack.c.h.b16 %v170
  %v1085 = vunpack.c.l.b16 %v171
  %v1086 = vunpack.c.h.b16 %v171
  %v1087 = vunpack.c.l.b16 %v172
  %v1088 = vunpack.c.h.b16 %v172
  %v1089 = vunpack.c.l.b16 %v173
  %v1090 = vunpack.c.l.b16 %v174
  %v1091 = vunpack.c.h.b16 %v174
  %v1092 = vunpack.c.l.b16 %v175
  %v1093 = vunpack.c.h.b16 %v175
  %v1094 = vunpack.c.l.b16 %v176
  %v1095 = vunpack.c.h.b16 %v176
  %v1096 = vunpack.c.l.b16 %v177
  %v1097 = vunpack.c.h.b16 %v177
  %v1098 = vunpack.c.l.b16 %v178
  %v1099 = vunpack.c.l.b16 %v179
  %v1100 = vunpack.c.h.b16 %v179
  %v1101 = vunpack.c.l.b16 %v180
  %v1102 = vunpack.c.h.b16 %v180
  %v1103 = vunpack.c.l.b16 %v181
  %v1104 = vunpack.c.h.b16 %v181
  %v1105 = vunpack.c.l.b16 %v182
  %v1106 = vunpack.c.h.b16 %v182
  %v1107 = vunpack.c.l.b16 %v183
  %v1108 = vunpack.c.l.b16 %v184
  %v1109 = vunpack.c.h.b16 %v184
  %v1110 = vunpack.c.l.b16 %v185
  %v1111 = vunpack.c.h.b16 %v185
  %v1112 = vunpack.c.l.b16 %v186
  %v1113 = vunpack.c.h.b16 %v186
  %v1114 = vunpack.c.l.b16 %v187
  %v1115 = vunpack.c.h.b16 %v187
  %v1116 = vunpack.c.l.b16 %v188
  %v1117 = vunpack.c.l.b16 %v189
  %v1118 = vunpack.c.h.b16 %v189
  %v1119 = vunpack.c.l.b16 %v190
  %v1120 = vunpack.c.h.b16 %v190
  %v1121 = vunpack.c.l.b16 %v191
  %v1122 = vunpack.c.h.b16 %v191
  %v1123 = vunpack.c.l.b16 %v192
  %v1124 = vunpack.c.h.b16 %v192
  %v1125 = vunpack.c.l.b16 %v193
  %v1126 = vunpack.c.l.b16 %v194
  %v1127 = vunpack.c.h.b16 %v194
  %v1128 = vunpack.c.l.b16 %v195
  %v1129 = vunpack.c.h.b16 %v195
  %v1130 = vunpack.c.l.b16 %v196
  %v1131 = vunpack.c.h.b16 %v196
  %v1132 = vunpack.c.l.b16 %v197
  %v1133 = vunpack.c.h.b16 %v197
  %v1134 = vunpack.c.l.b16 %v198
  %v1135 = vunpack.c.l.b16 %v199
  %v1136 = vunpack.c.h.b16 %v199
  %v1137 = vunpack.c.l.b16 %v200
  %v1138 = vunpack.c.h.b16 %v200
  %v1139 = vunpack.c.l.b16 %v201
  %v1140 = vunpack.c.h.b16 %v201
  %v1141 = vunpack.c.l.b16 %v202
  %v1142 = vunpack.c.h.b16 %v202
  %v1143 = vunpack.c.l.b16 %v203
  %v1144 = vunpack.c.l.b16 %v204
  %v1145 = vunpack.c.h.b16 %v204
  %v1146 = vunpack.c.l.b16 %v205
  %v1147 = vunpack.c.h.b16 %v205
  %v1148 = vunpack.c.l.b16 %v206
  %v1149 = vunpack.c.h.b16 %v206
  %v1150 = vunpack.c.l.b16 %v207
  %v1151 = vunpack.c.h.b16 %v207
  %v1152 = vunpack.c.l.b16 %v208
  %v1153 = vunpack.c.l.b16 %v209
  %v1154 = vunpack.c.h.b16 %v209
  %v1155 = vunpack.c.l.b16 %v210
  %v1156 = vunpack.c.h.b16 %v210
  %v1157 = vunpack.c.l.b16 %v211
  %v1158 = vunpack.c.h.b16 %v211
  %v1159 = vunpack.c.l.b16 %v212
  %v1160 = vunpack.c.h.b16 %v212
  %v1161 = vunpack.c.l.b16 %v213
  %v1162 = vunpack.c.l.b16 %v214
  %v1163 = vunpack.c.h.b16 %v214
  %v1164 = vunpack.c.l.b16 %v215
  %v1165 = vunpack.c.h.b16 %v215
  %v1166 = vunpack.c.l.b16 %v216
  %v1167 = vunpack.c.h.b16 %v216
  %v1168 = vunpack.c.l.b16 %v217
  %v1169 = vunpack.c.h.b16 %v217
  %v1170 = vunpack.c.l.b16 %v218
  %v1171 = vunpack.c.l.b16 %v219
  %v1172 = vunpack.c.h.b16 %v219
  %v1173 = vunpack.c.l.b16 %v220
  %v1174 = vunpack.c.h.b16 %v220
  %v1175 = vunpack.c.l.b16 %v221
  %v1176 = vunpack.c.h.b16 %v221
  %v1177 = vunpack.c.l.b16 %v222
  %v1178 = vunpack.c.h.b16 %v222
  %v1179 = vunpack.c.l.b16 %v223
  %v1180 = vunpack.c.l.b16 %v224
  %v1181 = vunpack.c.h.b16 %v224
  %v1182 = vunpack.c.l.b16 %v225
  %v1183 = vunpack.c.h.b16 %v225
  %v1184 = vunpack.c.l.b16 %v226
  %v1185 = vunpack.c.h.b16 %v226
  %v1186 = vunpack.c.l.b16 %v227
  %v1187 = vunpack.c.h.b16 %v227
  %v1188 = vunpack.c.l.b16 %v228
  %v1189 = vunpack.c.l.b16 %v229
  %v1190 = vunpack.c.h.b16 %v229
  %v1191 = vunpack.c.l.b16 %v230
  %v1192 = vunpack.c.h.b16 %v230
  %v1193 = vunpack.c.l.b16 %v231
  %v1194 = vunpack.c.h.b16 %v231
  %v1195 = vunpack.c.l.b16 %v232
  %v1196 = vunpack.c.h.b16 %v232
  %v1197 = vunpack.c.l.b16 %v233
  %v1198 = vunpack.c.l.b16 %v234
  %v1199 = vunpack.c.h.b16 %v234
  %v1200 = vunpack.c.l.b16 %v235
  %v1201 = vunpack.c.h.b16 %v235
  %v1202 = vunpack.c.l.b16 %v236
  %v1203 = vunpack.c.h.b16 %v236
  %v1204 = vunpack.c.l.b16 %v237
  %v1205 = vunpack.c.h.b16 %v237
  %v1206 = vunpack.c.l.b16 %v238
  %v1207 = vunpack.c.l.b16 %v239
  %v1208 = vunpack.c.h.b16 %v239
  %v1209 = vunpack.c.l.b16 %v240
  %v1210 = vunpack.c.h.b16 %v240
  %v1211 = vunpack.c.l.b16 %v241
  %v1212 = vunpack.c.h.b16 %v241
  %v1213 = vunpack.c.l.b16 %v242
  %v1214 = vunpack.c.h.b16 %v242
  %v1215 = vunpack.c.l.b16 %v243
  %v1216 = vunpack.c.l.b16 %v244
  %v1217 = vunpack.c.h.b16 %v244
  %v1218 = vunpack.c.l.b16 %v245
  %v1219 = vunpack.c.h.b16 %v245
  %v1220 = vunpack.c.l.b16 %v246
  %v1221 = vunpack.c.h.b16 %v246
  %v1222 = vunpack.c.l.b16 %v247
  %v1223 = vunpack.c.h.b16 %v247
  %v1224 = vunpack.c.l.b16 %v248
  %v1225 = vunpack.c.l.b16 %v249
  %v1226 = vunpack.c.h.b16 %v249
  %v1227 = vunpack.c.l.b16 %v250
  %v1228 = vunpack.c.h.b16 %v250
  %v1229 = vunpack.c.l.b16 %v251
  %v1230 = vunpack.c.h.b16 %v251
  %v1231 = vunpack.c.l.b16 %v252
  %v1232 = vunpack.c.h.b16 %v252
  %v1233 = vunpack.c.l.b16 %v253
  %v1234 = vunpack.c.l.b16 %v254
  %v1235 = vunpack.c.h.b16 %v254
  %v1236 = vunpack.c.l.b16 %v255
  %v1237 = vunpack.c.h.b16 %v255
  %v1238 = vunpack.c.l.b16 %v256
  %v1239 = vunpack.c.h.b16 %v256
  %v1240 = vunpack.c.l.b16 %v257
  %v1241 = vunpack.c.h.b16 %v257
  %v1242 = vunpack.c.l.b16 %v258
  %v1243 = vunpack.c.l.b16 %v259
  %v1244 = vunpack.c.h.b16 %v259
  %v1245 = vunpack.c.l.b16 %v260
  %v1246 = vunpack.c.h.b16 %v260
  %v1247 = vunpack.c.l.b16 %v261
  %v1248 = vunpack.c.h.b16 %v261
  %v1249 = vunpack.c.l.b16 %v262
  %v1250 = vunpack.c.h.b16 %v262
  %v1251 = vunpack.c.l.b16 %v263
  %v1252 = vunpack.c.l.b16 %v264
  %v1253 = vunpack.c.h.b16 %v264
  %v1254 = vunpack.c.l.b16 %v265
  %v1255 = vunpack.c.h.b16 %v265
  %v1256 = vunpack.c.l.b16 %v266
  %v1257 = vunpack.c.h.b16 %v266
  %v1258 = vunpack.c.l.b16 %v267
  %v1259 = vunpack.c.h.b16 %v267
  %v1260 = vunpack.c.l.b16 %v268
  %v1261 = vunpack.c.l.b16 %v269
  %v1262 = vunpack.c.h.b16 %v269
  %v1263 = vunpack.c.l.b16 %v270
  %v1264 = vunpack.c.h.b16 %v270
  %v1265 = vunpack.c.l.b16 %v271
  %v1266 = vunpack.c.h.b16 %v271
  %v1267 = vunpack.c.l.b16 %v272
  %v1268 = vunpack.c.h.b16 %v272
  %v1269 = vunpack.c.l.b16 %v273
  %v1270 = vunpack.c.l.b16 %v274
  %v1271 = vunpack.c.h.b16 %v274
  %v1272 = vunpack.c.l.b16 %v275
  %v1273 = vunpack.c.h.b16 %v275
  %v1274 = vunpack.c.l.b16 %v276
  %v1275 = vunpack.c.h.b16 %v276
  %v1276 = vunpack.c.l.b16 %v277
  %v1277 = vunpack.c.h.b16 %v277
  %v1278 = vunpack.c.l.b16 %v278
  %v1279 = vunpack.c.l.b16 %v279
  %v1280 = vunpack.c.h.b16 %v279
  %v1281 = vunpack.c.l.b16 %v280
  %v1282 = vunpack.c.h.b16 %v280
  %v1283 = vunpack.c.l.b16 %v281
  %v1284 = vunpack.c.h.b16 %v281
  %v1285 = vunpack.c.l.b16 %v282
  %v1286 = vunpack.c.h.b16 %v282
  %v1287 = vunpack.c.l.b16 %v283
  %v1288 = vunpack.c.l.b16 %v284
  %v1289 = vunpack.c.h.b16 %v284
  %v1290 = vunpack.c.l.b16 %v285
  %v1291 = vunpack.c.h.b16 %v285
  %v1292 = vunpack.c.l.b16 %v286
  %v1293 = vunpack.c.h.b16 %v286
  %v1294 = vunpack.c.l.b16 %v287
  %v1295 = vunpack.c.h.b16 %v287
  %v1296 = vunpack.c.l.b16 %v288
  %v1297 = vunpack.c.l.b16 %v289
  %v1298 = vunpack.c.h.b16 %v289
  %v1299 = vunpack.c.l.b16 %v290
  %v1300 = vunpack.c.h.b16 %v290
  %v1301 = vunpack.c.l.b16 %v291
  %v1302 = vunpack.c.h.b16 %v291
  %v1303 = vunpack.c.l.b16 %v292
  %v1304 = vunpack.c.h.b16 %v292
  %v1305 = vunpack.c.l.b16 %v293
  %v1306 = vunpack.c.l.b16 %v294
  %v1307 = vunpack.c.h.b16 %v294
  %v1308 = vunpack.c.l.b16 %v295
  %v1309 = vunpack.c.h.b16 %v295
  %v1310 = vunpack.c.l.b16 %v296
  %v1311 = vunpack.c.h.b16 %v296
  %v1312 = vunpack.c.l.b16 %v297
  %v1313 = vunpack.c.h.b16 %v297
  %v1314 = vunpack.c.l.b16 %v298
  %v1315 = vunpack.c.l.b16 %v299
  %v1316 = vunpack.c.h.b16 %v299
  %v1317 = vunpack.c.l.b16 %v300
  %v1318 = vunpack.c.h.b16 %v300
  %v1319 = vunpack.c.l.b16 %v301
  %v1320 = vunpack.c.h.b16 %v301
  %v1321 = vunpack.c.l.b16 %v302
  %v1322 = vunpack.c.h.b16 %v302
  %v1323 = vunpack.c.l.b16 %v303
  %v1324 = vunpack.c.l.b16 %v304
  %v1325 = vunpack.c.h.b16 %v304
  %v1326 = vunpack.c.l.b16 %v305
  %v1327 = vunpack.c.h.b16 %v305
  %v1328 = vunpack.c.l.b16 %v306
  %v1329 = vunpack.c.h.b16 %v306
  %v1330 = vunpack.c.l.b16 %v307
  %v1331 = vunpack.c.h.b16 %v307
  %v1332 = vunpack.c.l.b16 %v308
  %v1333 = vunpack.c.l.b16 %v309
  %v1334 = vunpack.c.h.b16 %v309
  %v1335 = vunpack.c.l.b16 %v310
  %v1336 = vunpack.c.h.b16 %v310
  %v1337 = vunpack.c.l.b16 %v311
  %v1338 = vunpack.c.h.b16 %v311
  %v1339 = vunpack.c.l.b16 %v312
  %v1340 = vunpack.c.h.b16 %v312
  %v1341 = vunpack.c.l.b16 %v313
  %v1342 = vunpack.c.l.b16 %v314
  %v1343 = vunpack.c.h.b16 %v314
  %v1344 = vunpack.c.l.b16 %v315
  %v1345 = vunpack.c.h.b16 %v315
  %v1346 = vunpack.c.l.b16 %v316
  %v1347 = vunpack.c.h.b16 %v316
  %v1348 = vunpack.c.l.b16 %v317
  %v1349 = vunpack.c.h.b16 %v317
  %v1350 = vunpack.c.l.b16 %v318
  %v1351 = vunpack.c.l.b16 %v319
  %v1352 = vunpack.c.h.b16 %v319
  %v1353 = vunpack.c.l.b16 %v320
  %v1354 = vunpack.c.h.b16 %v320
  %v1355 = vunpack.c.l.b16 %v321
  %v1356 = vunpack.c.h.b16 %v321
  %v1357 = vunpack.c.l.b16 %v322
  %v1358 = vunpack.c.h.b16 %v322
  %v1359 = vunpack.c.l.b16 %v323
  %v1360 = vunpack.c.l.b16 %v324
  %v1361 = vunpack.c.h.b16 %v324
  %v1362 = vunpack.c.l.b16 %v325
  %v1363 = vunpack.c.h.b16 %v325
  %v1364 = vunpack.c.l.b16 %v326
  %v1365 = vunpack.c.h.b16 %v326
  %v1366 = vunpack.c.l.b16 %v327
  %v1367 = vunpack.c.h.b16 %v327
  %v1368 = vunpack.c.l.b16 %v328
  %v1369 = vunpack.c.l.b16 %v329
  %v1370 = vunpack.c.h.b16 %v329
  %v1371 = vunpack.c.l.b16 %v330
  %v1372 = vunpack.c.h.b16 %v330
  %v1373 = vunpack.c.l.b16 %v331
  %v1374 = vunpack.c.h.b16 %v331
  %v1375 = vunpack.c.l.b16 %v332
  %v1376 = vunpack.c.h.b16 %v332
  %v1377 = vunpack.c.l.b16 %v333
  %v1378 = vpack.c.b16 %v811, %v802
  %v1379 = vpack.c.b16 %v812, %v803
  %v1380 = vpack.c.b16 %v813, %v804
  %v1381 = vpack.c.b16 %v814, %v805
  %v1382 = vpack.c.b16 %v815, %v806
  %v1383 = vpack.c.b16 %v816, %v807
  %v1384 = vpack.c.b16 %v817, %v808
  %v1385 = vpack.c.b16 %v818, %v809
  %v1386 = vpack.c.b16 %v819, %v810
  %v1387 = vpack.c.b16 %v829, %v820
  %v1388 = vpack.c.b16 %v830, %v821
  %v1389 = vpack.c.b16 %v831, %v822
  %v1390 = vpack.c.b16 %v832, %v823
  %v1391 = vpack.c.b16 %v833, %v824
  %v1392 = vpack.c.b16 %v834, %v825
  %v1393 = vpack.c.b16 %v835, %v826
  %v1394 = vpack.c.b16 %v836, %v827
  %v1395 = vpack.c.b16 %v837, %v828
  %v1396 = vpack.c.b16 %v847, %v838
  %v1397 = vpack.c.b16 %v848, %v839
  %v1398 = vpack.c.b16 %v849, %v840
  %v1399 = vpack.c.b16 %v850, %v841
  %v1400 = vpack.c.b16 %v851, %v842
  %v1401 = vpack.c.b16 %v852, %v843
  %v1402 = vpack.c.b16 %v853, %v844
  %v1403 = vpack.c.b16 %v854, %v845
  %v1404 = vpack.c.b16 %v855, %v846
  %v1405 = vpack.c.b16 %v865, %v856
  %v1406 = vpack.c.b16 %v866, %v857
  %v1407 = vpack.c.b16 %v867, %v858
  %v1408 = vpack.c.b16 %v868, %v859
  %v1409 = vpack.c.b16 %v869, %v860
  %v1410 = vpack.c.b16 %v870, %v861
  %v1411 = vpack.c.b16 %v871, %v862
  %v1412 = vpack.c.b16 %v872, %v863
  %v1413 = vpack.c.b16 %v873, %v864
  %v1414 = vpack.c.b16 %v883, %v874
  %v1415 = vpack.c.b16 %v884, %v875
  %v1416 = vpack.c.b16 %v885, %v876
  %v1417 = vpack.c.b16 %v886, %v877
  %v1418 = vpack.c.b16 %v887, %v878
  %v1419 = vpack.c.b16 %v888, %v879
  %v1420 = vpack.c.b16 %v889, %v880
  %v1421 = vpack.c.b16 %v890, %v881
  %v1422 = vpack.c.b16 %v891, %v882
  %v1423 = vpack.c.b16 %v901, %v892
  %v1424 = vpack.c.b16 %v902, %v893
  %v1425 = vpack.c.b16 %v903, %v894
  %v1426 = vpack.c.b16 %v904, %v895
  %v1427 = vpack.c.b16 %v905, %v896
  %v1428 = vpack.c.b16 %v906, %v897
  %v1429 = vpack.c.b16 %v907, %v898
  %v1430 = vpack.c.b16 %v908, %v899
  %v1431 = vpack.c.b16 %v909, %v900
  %v1432 = vpack.c.b16 %v919, %v910
  %v1433 = vpack.c.b16 %v920, %v911
  %v1434 = vpack.c.b16 %v921, %v912
  %v1435 = vpack.c.b16 %v922, %v913
  %v1436 = vpack.c.b16 %v923, %v914
  %v1437 = vpack.c.b16 %v924, %v915
  %v1438 = vpack.c.b16 %v925, %v916
  %v1439 = vpack.c.b16 %v926, %v917
  %v1440 = vpack.c.b16 %v927, %v918
  %v1441 = vpack.c.b16 %v937, %v928
  %v1442 = vpack.c.b16 %v938, %v929
  %v1443 = vpack.c.b16 %v939, %v930
  %v1444 = vpack.c.b16 %v940, %v931
  %v1445 = vpack.c.b16 %v941, %v932
  %v1446 = vpack.c.b16 %v942, %v933
  %v1447 = vpack.c.b16 %v943, %v934
  %v1448 = vpack.c.b16 %v944, %v935
  %v1449 = vpack.c.b16 %v945, %v936
  %v1450 = vpack.c.b16 %v955, %v946
  %v1451 = vpack.c.b16 %v956, %v947
  %v1452 = vpack.c.b16 %v957, %v948
  %v1453 = vpack.c.b16 %v958, %v949
  %v1454 = vpack.c.b16 %v959, %v950
  %v1455 = vpack.c.b16 %v960, %v951
  %v1456 = vpack.c.b16 %v961, %v952
  %v1457 = vpack.c.b16 %v962, %v953
  %v1458 = vpack.c.b16 %v963, %v954
  %v1459 = vpack.c.b16 %v973, %v964
  %v1460 = vpack.c.b16 %v974, %v965
  %v1461 = vpack.c.b16 %v975, %v966
  %v1462 = vpack.c.b16 %v976, %v967
  %v1463 = vpack.c.b16 %v977, %v968
  %v1464 = vpack.c.b16 %v978, %v969
  %v1465 = vpack.c.b16 %v979, %v970
  %v1466 = vpack.c.b16 %v980, %v971
  %v1467 = vpack.c.b16 %v981, %v972
  %v1468 = vpack.c.b16 %v991, %v982
  %v1469 = vpack.c.b16 %v992, %v983
  %v1470 = vpack.c.b16 %v993, %v984
  %v1471 = vpack.c.b16 %v994, %v985
  %v1472 = vpack.c.b16 %v995, %v986
  %v1473 = vpack.c.b16 %v996, %v987
  %v1474 = vpack.c.b16 %v997, %v988
  %v1475 = vpack.c.b16 %v998, %v989
  %v1476 = vpack.c.b16 %v999, %v990
  %v1477 = vpack.c.b16 %v1009, %v1000
  %v1478 = vpack.c.b16 %v1010, %v1001
  %v1479 = vpack.c.b16 %v1011, %v1002
  %v1480 = vpack.c.b16 %v1012, %v1003
  %v1481 = vpack.c.b16 %v1013, %v1004
  %v1482 = vpack.c.b16 %v1014, %v1005
  %v1483 = vpack.c.b16 %v1015, %v1006
  %v1484 = vpack.c.b16 %v1016, %v1007
  %v1485 = vpack.c.b16 %v1017, %v1008
  %v1486 = vpack.c.b16 %v1027, %v1018
  %v1487 = vpack.c.b16 %v1028, %v1019
  %v1488 = vpack.c.b16 %v1029, %v1020
  %v1489 = vpack.c.b16 %v1030, %v1021
  %v1490 = vpack.c.b16 %v1031, %v1022
  %v1491 = vpack.c.b16 %v1032, %v1023
  %v1492 = vpack.c.b16 %v1033, %v1024
  %v1493 = vpack.c.b16 %v1034, %v1025
  %v1494 = vpack.c.b16 %v1035, %v1026
  %v1495 = vpack.c.b16 %v1045, %v1036
  %v1496 = vpack.c.b16 %v1046, %v1037
  %v1497 = vpack.c.b16 %v1047, %v1038
  %v1498 = vpack.c.b16 %v1048, %v1039
  %v1499 = vpack.c.b16 %v1049, %v1040
  %v1500 = vpack.c.b16 %v1050, %v1041
  %v1501 = vpack.c.b16 %v1051, %v1042
  %v1502 = vpack.c.b16 %v1052, %v1043
  %v1503 = vpack.c.b16 %v1053, %v1044
  %v1504 = vpack.c.b16 %v1063, %v1054
  %v1505 = vpack.c.b16 %v1064, %v1055
  %v1506 = vpack.c.b16 %v1065, %v1056
  %v1507 = vpack.c.b16 %v1066, %v1057
  %v1508 = vpack.c.b16 %v1067, %v1058
  %v1509 = vpack.c.b16 %v1068, %v1059
  %v1510 = vpack.c.b16 %v1069, %v1060
  %v1511 = vpack.c.b16 %v1070, %v1061
  %v1512 = vpack.c.b16 %v1071, %v1062
  %v1513 = vpack.c.b16 %v1081, %v1072
  %v1514 = vpack.c.b16 %v1082, %v1073
  %v1515 = vpack.c.b16 %v1083, %v1074
  %v1516 = vpack.c.b16 %v1084, %v1075
  %v1517 = vpack.c.b16 %v1085, %v1076
  %v1518 = vpack.c.b16 %v1086, %v1077
  %v1519 = vpack.c.b16 %v1087, %v1078
  %v1520 = vpack.c.b16 %v1088, %v1079
  %v1521 = vpack.c.b16 %v1089, %v1080
  %v1522 = vpack.c.b16 %v1099, %v1090
  %v1523 = vpack.c.b16 %v1100, %v1091
  %v1524 = vpack.c.b16 %v1101, %v1092
  %v1525 = vpack.c.b16 %v1102, %v1093
  %v1526 = vpack.c.b16 %v1103, %v1094
  %v1527 = vpack.c.b16 %v1104, %v1095
  %v1528 = vpack.c.b16 %v1105, %v1096
  %v1529 = vpack.c.b16 %v1106, %v1097
  %v1530 = vpack.c.b16 %v1107, %v1098
  %v1531 = vpack.c.b16 %v1117, %v1108
  %v1532 = vpack.c.b16 %v1118, %v1109
  %v1533 = vpack.c.b16 %v1119, %v1110
  %v1534 = vpack.c.b16 %v1120, %v1111
  %v1535 = vpack.c.b16 %v1121, %v1112
  %v1536 = vpack.c.b16 %v1122, %v1113
  %v1537 = vpack.c.b16 %v1123, %v1114
  %v1538 = vpack.c.b16 %v1124, %v1115
  %v1539 = vpack.c.b16 %v1125, %v1116
  %v1540 = vpack.c.b16 %v1135, %v1126
  %v1541 = vpack.c.b16 %v1136, %v1127
  %v1542 = vpack.c.b16 %v1137, %v1128
  %v1543 = vpack.c.b16 %v1138, %v1129
  %v1544 = vpack.c.b16 %v1139, %v1130
  %v1545 = vpack.c.b16 %v1140, %v1131
  %v1546 = vpack.c.b16 %v1141, %v1132
  %v1547 = vpack.c.b16 %v1142, %v1133
  %v1548 = vpack.c.b16 %v1143, %v1134
  %v1549 = vpack.c.b16 %v1153, %v1144
  %v1550 = vpack.c.b16 %v1154, %v1145
  %v1551 = vpack.c.b16 %v1155, %v1146
  %v1552 = vpack.c.b16 %v1156, %v1147
  %v1553 = vpack.c.b16 %v1157, %v1148
  %v1554 = vpack.c.b16 %v1158, %v1149
  %v1555 = vpack.c.b16 %v1159, %v1150
  %v1556 = vpack.c.b16 %v1160, %v1151
  %v1557 = vpack.c.b16 %v1161, %v1152
  %v1558 = vpack.c.b16 %v1171, %v1162
  %v1559 = vpack.c.b16 %v1172, %v1163
  %v1560 = vpack.c.b16 %v1173, %v1164
  %v1561 = vpack.c.b16 %v1174, %v1165
  %v1562 = vpack.c.b16 %v1175, %v1166
  %v1563 = vpack.c.b16 %v1176, %v1167
  %v1564 = vpack.c.b16 %v1177, %v1168
  %v1565 = vpack.c.b16 %v1178, %v1169
  %v1566 = vpack.c.b16 %v1179, %v1170
  %v1567 = vpack.c.b16 %v1189, %v1180
  %v1568 = vpack.c.b16 %v1190, %v1181
  %v1569 = vpack.c.b16 %v1191, %v1182
  %v1570 = vpack.c.b16 %v1192, %v1183
  %v1571 = vpack.c.b16 %v1193, %v1184
  %v1572 = vpack.c.b16 %v1194, %v1185
  %v1573 = vpack.c.b16 %v1195, %v1186
  %v1574 = vpack.c.b16 %v1196, %v1187
  %v1575 = vpack.c.b16 %v1197, %v1188
  %v1576 = vpack.c.b16 %v1207, %v1198
  %v1577 = vpack.c.b16 %v1208, %v1199
  %v1578 = vpack.c.b16 %v1209, %v1200
  %v1579 = vpack.c.b16 %v1210, %v1201
  %v1580 = vpack.c.b16 %v1211, %v1202
  %v1581 = vpack.c.b16 %v1212, %v1203
  %v1582 = vpack.c.b16 %v1213, %v1204
  %v1583 = vpack.c.b16 %v1214, %v1205
  %v1584 = vpack.c.b16 %v1215, %v1206
  %v1585 = vpack.c.b16 %v1225, %v1216
  %v1586 = vpack.c.b16 %v1226, %v1217
  %v1587 = vpack.c.b16 %v1227, %v1218
  %v1588 = vpack.c.b16 %v1228, %v1219
  %v1589 = vpack.c.b16 %v1229, %v1220
  %v1590 = vpack.c.b16 %v1230, %v1221
  %v1591 = vpack.c.b16 %v1231, %v1222
  %v1592 = vpack.c.b16 %v1232, %v1223
  %v1593 = vpack.c.b16 %v1233, %v1224
  %v1594 = vpack.c.b16 %v1243, %v1234
  %v1595 = vpack.c.b16 %v1244, %v1235
  %v1596 = vpack.c.b16 %v1245, %v1236
  %v1597 = vpack.c.b16 %v1246, %v1237
  %v1598 = vpack.c.b16 %v1247, %v1238
  %v1599 = vpack.c.b16 %v1248, %v1239
  %v1600 = vpack.c.b16 %v1249, %v1240
  %v1601 = vpack.c.b16 %v1250, %v1241
  %v1602 = vpack.c.b16 %v1251, %v1242
  %v1603 = vpack.c.b16 %v1261, %v1252
  %v1604 = vpack.c.b16 %v1262, %v1253
  %v1605 = vpack.c.b16 %v1263, %v1254
  %v1606 = vpack.c.b16 %v1264, %v1255
  %v1607 = vpack.c.b16 %v1265, %v1256
  %v1608 = vpack.c.b16 %v1266, %v1257
  %v1609 = vpack.c.b16 %v1267, %v1258
  %v1610 = vpack.c.b16 %v1268, %v1259
  %v1611 = vpack.c.b16 %v1269, %v1260
  %v1612 = vpack.c.b16 %v1279, %v1270
  %v1613 = vpack.c.b16 %v1280, %v1271
  %v1614 = vpack.c.b16 %v1281, %v1272
  %v1615 = vpack.c.b16 %v1282, %v1273
  %v1616 = vpack.c.b16 %v1283, %v1274
  %v1617 = vpack.c.b16 %v1284, %v1275
  %v1618 = vpack.c.b16 %v1285, %v1276
  %v1619 = vpack.c.b16 %v1286, %v1277
  %v1620 = vpack.c.b16 %v1287, %v1278
  %v1621 = vpack.c.b16 %v1297, %v1288
  %v1622 = vpack.c.b16 %v1298, %v1289
  %v1623 = vpack.c.b16 %v1299, %v1290
  %v1624 = vpack.c.b16 %v1300, %v1291
  %v1625 = vpack.c.b16 %v1301, %v1292
  %v1626 = vpack.c.b16 %v1302, %v1293
  %v1627 = vpack.c.b16 %v1303, %v1294
  %v1628 = vpack.c.b16 %v1304, %v1295
  %v1629 = vpack.c.b16 %v1305, %v1296
  %v1630 = vpack.c.b16 %v1315, %v1306
  %v1631 = vpack.c.b16 %v1316, %v1307
  %v1632 = vpack.c.b16 %v1317, %v1308
  %v1633 = vpack.c.b16 %v1318, %v1309
  %v1634 = vpack.c.b16 %v1319, %v1310
  %v1635 = vpack.c.b16 %v1320, %v1311
  %v1636 = vpack.c.b16 %v1321, %v1312
  %v1637 = vpack.c.b16 %v1322, %v1313
  %v1638 = vpack.c.b16 %v1323, %v1314
  %v1639 = vpack.c.b16 %v1333, %v1324
  %v1640 = vpack.c.b16 %v1334, %v1325
  %v1641 = vpack.c.b16 %v1335, %v1326
  %v1642 = vpack.c.b16 %v1336, %v1327
  %v1643 = vpack.c.b16 %v1337, %v1328
  %v1644 = vpack.c.b16 %v1338, %v1329
  %v1645 = vpack.c.b16 %v1339, %v1330
  %v1646 = vpack.c.b16 %v1340, %v1331
  %v1647 = vpack.c.b16 %v1341, %v1332
  %v1648 = vpack.c.b16 %v1351, %v1342
  %v1649 = vpack.c.b16 %v1352, %v1343
  %v1650 = vpack.c.b16 %v1353, %v1344
  %v1651 = vpack.c.b16 %v1354, %v1345
  %v1652 = vpack.c.b16 %v1355, %v1346
  %v1653 = vpack.c.b16 %v1356, %v1347
  %v1654 = vpack.c.b16 %v1357, %v1348
  %v1655 = vpack.c.b16 %v1358, %v1349
  %v1656 = vpack.c.b16 %v1359, %v1350
  %v1657 = vpack.c.b16 %v1369, %v1360
  %v1658 = vpack.c.b16 %v1370, %v1361
  %v1659 = vpack.c.b16 %v1371, %v1362
  %v1660 = vpack.c.b16 %v1372, %v1363
  %v1661 = vpack.c.b16 %v1373, %v1364
  %v1662 = vpack.c.b16 %v1374, %v1365
  %v1663 = vpack.c.b16 %v1375, %v1366
  %v1664 = vpack.c.b16 %v1376, %v1367
  %v1665 = vpack.c.b16 %v1377, %v1368
  %v2098 = vunpack.c.l.b16 %v334
  %v2099 = vunpack.c.l.b16 %v335
  %v2100 = vunpack.c.l.b16 %v336
  %v2101 = vunpack.c.l.b16 %v337
  %v2102 = vunpack.c.l.b16 %v338
  %v2103 = vunpack.c.l.b16 %v339
  %v2104 = vunpack.c.l.b16 %v340
  %v2105 = vunpack.c.l.b16 %v341
  %v2106 = vunpack.c.l.b16 %v342
  %v2107 = vunpack.c.l.b16 %v343
  %v2108 = vunpack.c.l.b16 %v344
  %v2109 = vunpack.c.l.b16 %v345
  %v2110 = vunpack.c.l.b16 %v346
  %v2111 = vunpack.c.l.b16 %v347
  %v2112 = vunpack.c.l.b16 %v348
  %v2113 = vunpack.c.l.b16 %v349
  %v2114 = vunpack.c.l.b16 %v350
  %v2115 = vunpack.c.l.b16 %v351
  %v2116 = vunpack.c.l.b16 %v352
  %v2117 = vunpack.c.l.b16 %v353
  %v2118 = vunpack.c.l.b16 %v354
  %v2119 = vunpack.c.l.b16 %v355
  %v2120 = vunpack.c.l.b16 %v356
  %v2121 = vunpack.c.l.b16 %v357
  %v2122 = vunpack.c.l.b16 %v358
  %v2123 = vunpack.c.l.b16 %v359
  %v2124 = vunpack.c.l.b16 %v360
  %v2125 = vunpack.c.l.b16 %v361
  %v2126 = vunpack.c.l.b16 %v362
  %v2127 = vunpack.c.l.b16 %v363
  %v2128 = vunpack.c.l.b16 %v364
  %v2129 = vunpack.c.l.b16 %v365
  %v2130 = vunpack.c.l.b16 %v366
  %v2131 = vunpack.c.l.b16 %v367
  %v2132 = vunpack.c.l.b16 %v368
  %v2133 = vunpack.c.l.b16 %v369
  %v2134 = vunpack.c.l.b16 %v370
  %v2135 = vunpack.c.l.b16 %v371
  %v2136 = vunpack.c.l.b16 %v372
  %v2137 = vunpack.c.l.b16 %v373
  %v2138 = vunpack.c.l.b16 %v374
  %v2139 = vunpack.c.l.b16 %v375
  %v2140 = vunpack.c.l.b16 %v376
  %v2141 = vunpack.c.l.b16 %v377
  %v2142 = vunpack.c.l.b16 %v378
  %v2143 = vunpack.c.l.b16 %v379
  %v2144 = vunpack.c.l.b16 %v380
  %v2145 = vunpack.c.l.b16 %v381
  %v2146 = vunpack.c.l.b16 %v382
  %v2147 = vunpack.c.l.b16 %v383
  %v2148 = vunpack.c.l.b16 %v384
  %v2149 = vunpack.c.l.b16 %v385
  %v2150 = vunpack.c.l.b16 %v386
  %v2151 = vunpack.c.l.b16 %v387
  %v2152 = vunpack.c.l.b16 %v388
  %v2153 = vunpack.c.l.b16 %v389
  %v2154 = vunpack.c.l.b16 %v390
  %v2155 = vunpack.c.l.b16 %v391
  %v2156 = vunpack.c.l.b16 %v392
  %v2157 = vunpack.c.l.b16 %v393
  %v2158 = vunpack.c.l.b16 %v394
  %v2159 = vunpack.c.l.b16 %v395
  %v2160 = vunpack.c.l.b16 %v396
  %v2161 = vunpack.c.l.b16 %v397
  %v2162 = vunpack.c.l.b16 %v398
  %v2163 = vunpack.c.l.b16 %v399
  %v2164 = vunpack.c.l.b16 %v400
  %v2165 = vunpack.c.l.b16 %v401
  %v2166 = vunpack.c.l.b16 %v402
  %v2167 = vunpack.c.l.b16 %v403
  %v2168 = vunpack.c.l.b16 %v404
  %v2169 = vunpack.c.l.b16 %v405
  %v2170 = vunpack.c.l.b16 %v406
  %v2171 = vunpack.c.l.b16 %v407
  %v2172 = vunpack.c.l.b16 %v408
  %v2173 = vunpack.c.l.b16 %v409
  %v2174 = vunpack.c.l.b16 %v410
  %v2175 = vunpack.c.l.b16 %v411
  %v2176 = vunpack.c.l.b16 %v412
  %v2177 = vunpack.c.l.b16 %v413
  %v2178 = vunpack.c.l.b16 %v414
  %v2179 = vunpack.c.l.b16 %v415
  %v2180 = vunpack.c.l.b16 %v416
  %v2181 = vunpack.c.l.b16 %v417
  %v2182 = vunpack.c.l.b16 %v418
  %v2183 = vunpack.c.l.b16 %v419
  %v2184 = vunpack.c.l.b16 %v420
  %v2185 = vunpack.c.l.b16 %v421
  %v2186 = vunpack.c.l.b16 %v422
  %v2187 = vunpack.c.l.b16 %v423
  %v2188 = vunpack.c.l.b16 %v424
  %v2189 = vunpack.c.l.b16 %v425
  %v2190 = vunpack.c.l.b16 %v426
  %v2191 = vunpack.c.l.b16 %v427
  %v2192 = vunpack.c.l.b16 %v428
  %v2193 = vunpack.c.l.b16 %v429
  %v2194 = vunpack.c.l.b16 %v430
  %v2195 = vunpack.c.l.b16 %v431
  %v2196 = vunpack.c.l.b16 %v432
  %v2197 = vunpack.c.l.b16 %v433
  %v2198 = vunpack.c.l.b16 %v434
  %v2199 = vunpack.c.l.b16 %v435
  %v2200 = vunpack.c.l.b16 %v436
  %v2201 = vunpack.c.l.b16 %v437
  %v2202 = vunpack.c.l.b16 %v438
  %v2203 = vunpack.c.l.b16 %v439
  %v2204 = vunpack.c.l.b16 %v440
  %v2205 = vunpack.c.l.b16 %v441
  %v2206 = vunpack.c.l.b16 %v442
  %v2207 = vunpack.c.l.b16 %v443
  %v2208 = vunpack.c.l.b16 %v444
  %v2209 = vunpack.c.l.b16 %v445
  %v2210 = vunpack.c.l.b16 %v446
  %v2211 = vunpack.c.l.b16 %v447
  %v2212 = vunpack.c.l.b16 %v448
  %v2213 = vunpack.c.l.b16 %v449
  %v2214 = vunpack.c.l.b16 %v450
  %v2215 = vunpack.c.l.b16 %v451
  %v2216 = vunpack.c.l.b16 %v452
  %v2217 = vunpack.c.l.b16 %v453
  %v2218 = vunpack.c.l.b16 %v454
  %v2219 = vunpack.c.l.b16 %v455
  %v2220 = vunpack.c.l.b16 %v456
  %v2221 = vunpack.c.l.b16 %v457
  %v2222 = vunpack.c.l.b16 %v458
  %v2223 = vunpack.c.l.b16 %v459
  %v2224 = vunpack.c.l.b16 %v460
  %v2225 = vunpack.c.l.b16 %v461
  %v2226 = vunpack.c.l.b16 %v462
  %v2227 = vunpack.c.l.b16 %v463
  %v2228 = vunpack.c.l.b16 %v464
  %v2229 = vunpack.c.l.b16 %v465
  %v2230 = vunpack.c.l.b16 %v466
  %v2231 = vunpack.c.l.b16 %v467
  %v2232 = vunpack.c.l.b16 %v468
  %v2233 = vunpack.c.l.b16 %v469
  %v2234 = vunpack.c.l.b16 %v470
  %v2235 = vunpack.c.l.b16 %v471
  %v2236 = vunpack.c.l.b16 %v472
  %v2237 = vunpack.c.l.b16 %v473
  %v2238 = vunpack.c.l.b16 %v474
  %v2239 = vunpack.c.l.b16 %v475
  %v2240 = vunpack.c.l.b16 %v476
  %v2241 = vunpack.c.l.b16 %v477
  %v2242 = vpack.c.b16 %v2099, %v2098
  %v2243 = vpack.c.b16 %v2101, %v2100
  %v2244 = vpack.c.b16 %v2103, %v2102
  %v2245 = vpack.c.b16 %v2105, %v2104
  %v2246 = vpack.c.b16 %v2107, %v2106
  %v2247 = vpack.c.b16 %v2109, %v2108
  %v2248 = vpack.c.b16 %v2111, %v2110
  %v2249 = vpack.c.b16 %v2113, %v2112
  %v2250 = vpack.c.b16 %v2115, %v2114
  %v2251 = vpack.c.b16 %v2117, %v2116
  %v2252 = vpack.c.b16 %v2119, %v2118
  %v2253 = vpack.c.b16 %v2121, %v2120
  %v2254 = vpack.c.b16 %v2123, %v2122
  %v2255 = vpack.c.b16 %v2125, %v2124
  %v2256 = vpack.c.b16 %v2127, %v2126
  %v2257 = vpack.c.b16 %v2129, %v2128
  %v2258 = vpack.c.b16 %v2131, %v2130
  %v2259 = vpack.c.b16 %v2133, %v2132
  %v2260 = vpack.c.b16 %v2135, %v2134
  %v2261 = vpack.c.b16 %v2137, %v2136
  %v2262 = vpack.c.b16 %v2139, %v2138
  %v2263 = vpack.c.b16 %v2141, %v2140
  %v2264 = vpack.c.b16 %v2143, %v2142
  %v2265 = vpack.c.b16 %v2145, %v2144
  %v2266 = vpack.c.b16 %v2147, %v2146
  %v2267 = vpack.c.b16 %v2149, %v2148
  %v2268 = vpack.c.b16 %v2151, %v2150
  %v2269 = vpack.c.b16 %v2153, %v2152
  %v2270 = vpack.c.b16 %v2155, %v2154
  %v2271 = vpack.c.b16 %v2157, %v2156
  %v2272 = vpack.c.b16 %v2159, %v2158
  %v2273 = vpack.c.b16 %v2161, %v2160
  %v2274 = vpack.c.b16 %v2163, %v2162
  %v2275 = vpack.c.b16 %v2165, %v2164
  %v2276 = vpack.c.b16 %v2167, %v2166
  %v2277 = vpack.c.b16 %v2169, %v2168
  %v2278 = vpack.c.b16 %v2171, %v2170
  %v2279 = vpack.c.b16 %v2173, %v2172
  %v2280 = vpack.c.b16 %v2175, %v2174
  %v2281 = vpack.c.b16 %v2177, %v2176
  %v2282 = vpack.c.b16 %v2179, %v2178
  %v2283 = vpack.c.b16 %v2181, %v2180
  %v2284 = vpack.c.b16 %v2183, %v2182
  %v2285 = vpack.c.b16 %v2185, %v2184
  %v2286 = vpack.c.b16 %v2187, %v2186
  %v2287 = vpack.c.b16 %v2189, %v2188
  %v2288 = vpack.c.b16 %v2191, %v2190
  %v2289 = vpack.c.b16 %v2193, %v2192
  %v2290 = vpack.c.b16 %v2195, %v2194
  %v2291 = vpack.c.b16 %v2197, %v2196
  %v2292 = vpack.c.b16 %v2199, %v2198
  %v2293 = vpack.c.b16 %v2201, %v2200
  %v2294 = vpack.c.b16 %v2203, %v2202
  %v2295 = vpack.c.b16 %v2205, %v2204
  %v2296 = vpack.c.b16 %v2207, %v2206
  %v2297 = vpack.c.b16 %v2209, %v2208
  %v2298 = vpack.c.b16 %v2211, %v2210
  %v2299 = vpack.c.b16 %v2213, %v2212
  %v2300 = vpack.c.b16 %v2215, %v2214
  %v2301 = vpack.c.b16 %v2217, %v2216
  %v2302 = vpack.c.b16 %v2219, %v2218
  %v2303 = vpack.c.b16 %v2221, %v2220
  %v2304 = vpack.c.b16 %v2223, %v2222
  %v2305 = vpack.c.b16 %v2225, %v2224
  %v2306 = vpack.c.b16 %v2227, %v2226
  %v2307 = vpack.c.b16 %v2229, %v2228
  %v2308 = vpack.c.b16 %v2231, %v2230
  %v2309 = vpack.c.b16 %v2233, %v2232
  %v2310 = vpack.c.b16 %v2235, %v2234
  %v2311 = vpack.c.b16 %v2237, %v2236
  %v2312 = vpack.c.b16 %v2239, %v2238
  %v2313 = vpack.c.b16 %v2241, %v2240
  %2386 = vmatpush.bf16.msra.mxu0 %v2249
  %2387 = vmatpush.bf16.msra.mxu0 %v2248
  %2388 = vmatpush.bf16.msra.mxu0 %v2247
  %2389 = vmatpush.bf16.msra.mxu0 %v2246
  %2390 = vmatpush.bf16.msra.mxu0 %v2245
  %2391 = vmatpush.bf16.msra.mxu0 %v2244
  %2392 = vmatpush.bf16.msra.mxu0 %v2243
  %2393 = vmatpush.bf16.msra.mxu0 %v2242
  %2394 = vmatmul.bf16.gmra.mxu0 %v1378
  %v2395 = vpop.f32.mrf.mxu0
  %v2396 = vadd.f32 %v480, %v2395
  %v2397 = vpop.f32.mrf.mxu0
  %v2398 = vadd.f32 %v480, %v2397
  %2399 = vmatmul.bf16.gmra.mxu0 %v1387
  %v2400 = vpop.f32.mrf.mxu0
  %v2401 = vadd.f32 %v480, %v2400
  %v2402 = vpop.f32.mrf.mxu0
  %v2403 = vadd.f32 %v480, %v2402
  %2404 = vmatmul.bf16.gmra.mxu0 %v1396
  %v2405 = vpop.f32.mrf.mxu0
  %v2406 = vadd.f32 %v480, %v2405
  %v2407 = vpop.f32.mrf.mxu0
  %v2408 = vadd.f32 %v480, %v2407
  %2409 = vmatmul.bf16.gmra.mxu0 %v1405
  %v2410 = vpop.f32.mrf.mxu0
  %v2411 = vadd.f32 %v480, %v2410
  %v2412 = vpop.f32.mrf.mxu0
  %v2413 = vadd.f32 %v480, %v2412
  %2414 = vmatmul.bf16.gmra.mxu0 %v1414
  %v2415 = vpop.f32.mrf.mxu0
  %v2416 = vadd.f32 %v480, %v2415
  %v2417 = vpop.f32.mrf.mxu0
  %v2418 = vadd.f32 %v480, %v2417
  %2419 = vmatmul.bf16.gmra.mxu0 %v1423
  %v2420 = vpop.f32.mrf.mxu0
  %v2421 = vadd.f32 %v480, %v2420
  %v2422 = vpop.f32.mrf.mxu0
  %v2423 = vadd.f32 %v480, %v2422
  %2424 = vmatmul.bf16.gmra.mxu0 %v1432
  %v2425 = vpop.f32.mrf.mxu0
  %v2426 = vadd.f32 %v480, %v2425
  %v2427 = vpop.f32.mrf.mxu0
  %v2428 = vadd.f32 %v480, %v2427
  %2429 = vmatmul.bf16.gmra.mxu0 %v1441
  %v2430 = vpop.f32.mrf.mxu0
  %v2431 = vadd.f32 %v480, %v2430
  %v2432 = vpop.f32.mrf.mxu0
  %v2433 = vadd.f32 %v480, %v2432
  %2434 = vmatmul.bf16.gmra.mxu0 %v1450
  %v2435 = vpop.f32.mrf.mxu0
  %v2436 = vadd.f32 %v480, %v2435
  %v2437 = vpop.f32.mrf.mxu0
  %v2438 = vadd.f32 %v480, %v2437
  %2439 = vmatmul.bf16.gmra.mxu0 %v1459
  %v2440 = vpop.f32.mrf.mxu0
  %v2441 = vadd.f32 %v480, %v2440
  %v2442 = vpop.f32.mrf.mxu0
  %v2443 = vadd.f32 %v480, %v2442
  %2444 = vmatmul.bf16.gmra.mxu0 %v1468
  %v2445 = vpop.f32.mrf.mxu0
  %v2446 = vadd.f32 %v480, %v2445
  %v2447 = vpop.f32.mrf.mxu0
  %v2448 = vadd.f32 %v480, %v2447
  %2449 = vmatmul.bf16.gmra.mxu0 %v1477
  %v2450 = vpop.f32.mrf.mxu0
  %v2451 = vadd.f32 %v480, %v2450
  %v2452 = vpop.f32.mrf.mxu0
  %v2453 = vadd.f32 %v480, %v2452
  %2454 = vmatmul.bf16.gmra.mxu0 %v1486
  %v2455 = vpop.f32.mrf.mxu0
  %v2456 = vadd.f32 %v480, %v2455
  %v2457 = vpop.f32.mrf.mxu0
  %v2458 = vadd.f32 %v480, %v2457
  %2459 = vmatmul.bf16.gmra.mxu0 %v1495
  %v2460 = vpop.f32.mrf.mxu0
  %v2461 = vadd.f32 %v480, %v2460
  %v2462 = vpop.f32.mrf.mxu0
  %v2463 = vadd.f32 %v480, %v2462
  %2464 = vmatmul.bf16.gmra.mxu0 %v1504
  %v2465 = vpop.f32.mrf.mxu0
  %v2466 = vadd.f32 %v480, %v2465
  %v2467 = vpop.f32.mrf.mxu0
  %v2468 = vadd.f32 %v480, %v2467
  %2469 = vmatmul.bf16.gmra.mxu0 %v1513
  %v2470 = vpop.f32.mrf.mxu0
  %v2471 = vadd.f32 %v480, %v2470
  %v2472 = vpop.f32.mrf.mxu0
  %v2473 = vadd.f32 %v480, %v2472
  %2474 = vmatmul.bf16.gmra.mxu0 %v1522
  %v2475 = vpop.f32.mrf.mxu0
  %v2476 = vadd.f32 %v480, %v2475
  %v2477 = vpop.f32.mrf.mxu0
  %v2478 = vadd.f32 %v480, %v2477
  %2479 = vmatmul.bf16.gmra.mxu0 %v1531
  %v2480 = vpop.f32.mrf.mxu0
  %v2481 = vadd.f32 %v480, %v2480
  %v2482 = vpop.f32.mrf.mxu0
  %v2483 = vadd.f32 %v480, %v2482
  %2484 = vmatmul.bf16.gmra.mxu0 %v1540
  %v2485 = vpop.f32.mrf.mxu0
  %v2486 = vadd.f32 %v480, %v2485
  %v2487 = vpop.f32.mrf.mxu0
  %v2488 = vadd.f32 %v480, %v2487
  %2489 = vmatmul.bf16.gmra.mxu0 %v1549
  %v2490 = vpop.f32.mrf.mxu0
  %v2491 = vadd.f32 %v480, %v2490
  %v2492 = vpop.f32.mrf.mxu0
  %v2493 = vadd.f32 %v480, %v2492
  %2494 = vmatmul.bf16.gmra.mxu0 %v1558
  %v2495 = vpop.f32.mrf.mxu0
  %v2496 = vadd.f32 %v480, %v2495
  %v2497 = vpop.f32.mrf.mxu0
  %v2498 = vadd.f32 %v480, %v2497
  %2499 = vmatmul.bf16.gmra.mxu0 %v1567
  %v2500 = vpop.f32.mrf.mxu0
  %v2501 = vadd.f32 %v480, %v2500
  %v2502 = vpop.f32.mrf.mxu0
  %v2503 = vadd.f32 %v480, %v2502
  %2504 = vmatmul.bf16.gmra.mxu0 %v1576
  %v2505 = vpop.f32.mrf.mxu0
  %v2506 = vadd.f32 %v480, %v2505
  %v2507 = vpop.f32.mrf.mxu0
  %v2508 = vadd.f32 %v480, %v2507
  %2509 = vmatmul.bf16.gmra.mxu0 %v1585
  %v2510 = vpop.f32.mrf.mxu0
  %v2511 = vadd.f32 %v480, %v2510
  %v2512 = vpop.f32.mrf.mxu0
  %v2513 = vadd.f32 %v480, %v2512
  %2514 = vmatmul.bf16.gmra.mxu0 %v1594
  %v2515 = vpop.f32.mrf.mxu0
  %v2516 = vadd.f32 %v480, %v2515
  %v2517 = vpop.f32.mrf.mxu0
  %v2518 = vadd.f32 %v480, %v2517
  %2519 = vmatmul.bf16.gmra.mxu0 %v1603
  %v2520 = vpop.f32.mrf.mxu0
  %v2521 = vadd.f32 %v480, %v2520
  %v2522 = vpop.f32.mrf.mxu0
  %v2523 = vadd.f32 %v480, %v2522
  %2524 = vmatmul.bf16.gmra.mxu0 %v1612
  %v2525 = vpop.f32.mrf.mxu0
  %v2526 = vadd.f32 %v480, %v2525
  %v2527 = vpop.f32.mrf.mxu0
  %v2528 = vadd.f32 %v480, %v2527
  %2529 = vmatmul.bf16.gmra.mxu0 %v1621
  %v2530 = vpop.f32.mrf.mxu0
  %v2531 = vadd.f32 %v480, %v2530
  %v2532 = vpop.f32.mrf.mxu0
  %v2533 = vadd.f32 %v480, %v2532
  %2534 = vmatmul.bf16.gmra.mxu0 %v1630
  %v2535 = vpop.f32.mrf.mxu0
  %v2536 = vadd.f32 %v480, %v2535
  %v2537 = vpop.f32.mrf.mxu0
  %v2538 = vadd.f32 %v480, %v2537
  %2539 = vmatmul.bf16.gmra.mxu0 %v1639
  %v2540 = vpop.f32.mrf.mxu0
  %v2541 = vadd.f32 %v480, %v2540
  %v2542 = vpop.f32.mrf.mxu0
  %v2543 = vadd.f32 %v480, %v2542
  %2544 = vmatmul.bf16.gmra.mxu0 %v1648
  %v2545 = vpop.f32.mrf.mxu0
  %v2546 = vadd.f32 %v480, %v2545
  %v2547 = vpop.f32.mrf.mxu0
  %v2548 = vadd.f32 %v480, %v2547
  %2549 = vmatmul.bf16.gmra.mxu0 %v1657
  %v2550 = vpop.f32.mrf.mxu0
  %v2551 = vadd.f32 %v480, %v2550
  %v2552 = vpop.f32.mrf.mxu0
  %v2553 = vadd.f32 %v480, %v2552
  %2554 = vdwg.mxu0
  %2555 = vmatpush.bf16.msra.mxu0 %v2257
  %2556 = vmatpush.bf16.msra.mxu0 %v2256
  %2557 = vmatpush.bf16.msra.mxu0 %v2255
  %2558 = vmatpush.bf16.msra.mxu0 %v2254
  %2559 = vmatpush.bf16.msra.mxu0 %v2253
  %2560 = vmatpush.bf16.msra.mxu0 %v2252
  %2561 = vmatpush.bf16.msra.mxu0 %v2251
  %2562 = vmatpush.bf16.msra.mxu0 %v2250
  %2563 = vmatmul.bf16.gmra.mxu0 %v1379
  %v2564 = vpop.f32.mrf.mxu0
  %v2565 = vadd.f32 %v2396, %v2564
  %v2566 = vpop.f32.mrf.mxu0
  %v2567 = vadd.f32 %v2398, %v2566
  %2568 = vmatmul.bf16.gmra.mxu0 %v1388
  %v2569 = vpop.f32.mrf.mxu0
  %v2570 = vadd.f32 %v2401, %v2569
  %v2571 = vpop.f32.mrf.mxu0
  %v2572 = vadd.f32 %v2403, %v2571
  %2573 = vmatmul.bf16.gmra.mxu0 %v1397
  %v2574 = vpop.f32.mrf.mxu0
  %v2575 = vadd.f32 %v2406, %v2574
  %v2576 = vpop.f32.mrf.mxu0
  %v2577 = vadd.f32 %v2408, %v2576
  %2578 = vmatmul.bf16.gmra.mxu0 %v1406
  %v2579 = vpop.f32.mrf.mxu0
  %v2580 = vadd.f32 %v2411, %v2579
  %v2581 = vpop.f32.mrf.mxu0
  %v2582 = vadd.f32 %v2413, %v2581
  %2583 = vmatmul.bf16.gmra.mxu0 %v1415
  %v2584 = vpop.f32.mrf.mxu0
  %v2585 = vadd.f32 %v2416, %v2584
  %v2586 = vpop.f32.mrf.mxu0
  %v2587 = vadd.f32 %v2418, %v2586
  %2588 = vmatmul.bf16.gmra.mxu0 %v1424
  %v2589 = vpop.f32.mrf.mxu0
  %v2590 = vadd.f32 %v2421, %v2589
  %v2591 = vpop.f32.mrf.mxu0
  %v2592 = vadd.f32 %v2423, %v2591
  %2593 = vmatmul.bf16.gmra.mxu0 %v1433
  %v2594 = vpop.f32.mrf.mxu0
  %v2595 = vadd.f32 %v2426, %v2594
  %v2596 = vpop.f32.mrf.mxu0
  %v2597 = vadd.f32 %v2428, %v2596
  %2598 = vmatmul.bf16.gmra.mxu0 %v1442
  %v2599 = vpop.f32.mrf.mxu0
  %v2600 = vadd.f32 %v2431, %v2599
  %v2601 = vpop.f32.mrf.mxu0
  %v2602 = vadd.f32 %v2433, %v2601
  %2603 = vmatmul.bf16.gmra.mxu0 %v1451
  %v2604 = vpop.f32.mrf.mxu0
  %v2605 = vadd.f32 %v2436, %v2604
  %v2606 = vpop.f32.mrf.mxu0
  %v2607 = vadd.f32 %v2438, %v2606
  %2608 = vmatmul.bf16.gmra.mxu0 %v1460
  %v2609 = vpop.f32.mrf.mxu0
  %v2610 = vadd.f32 %v2441, %v2609
  %v2611 = vpop.f32.mrf.mxu0
  %v2612 = vadd.f32 %v2443, %v2611
  %2613 = vmatmul.bf16.gmra.mxu0 %v1469
  %v2614 = vpop.f32.mrf.mxu0
  %v2615 = vadd.f32 %v2446, %v2614
  %v2616 = vpop.f32.mrf.mxu0
  %v2617 = vadd.f32 %v2448, %v2616
  %2618 = vmatmul.bf16.gmra.mxu0 %v1478
  %v2619 = vpop.f32.mrf.mxu0
  %v2620 = vadd.f32 %v2451, %v2619
  %v2621 = vpop.f32.mrf.mxu0
  %v2622 = vadd.f32 %v2453, %v2621
  %2623 = vmatmul.bf16.gmra.mxu0 %v1487
  %v2624 = vpop.f32.mrf.mxu0
  %v2625 = vadd.f32 %v2456, %v2624
  %v2626 = vpop.f32.mrf.mxu0
  %v2627 = vadd.f32 %v2458, %v2626
  %2628 = vmatmul.bf16.gmra.mxu0 %v1496
  %v2629 = vpop.f32.mrf.mxu0
  %v2630 = vadd.f32 %v2461, %v2629
  %v2631 = vpop.f32.mrf.mxu0
  %v2632 = vadd.f32 %v2463, %v2631
  %2633 = vmatmul.bf16.gmra.mxu0 %v1505
  %v2634 = vpop.f32.mrf.mxu0
  %v2635 = vadd.f32 %v2466, %v2634
  %v2636 = vpop.f32.mrf.mxu0
  %v2637 = vadd.f32 %v2468, %v2636
  %2638 = vmatmul.bf16.gmra.mxu0 %v1514
  %v2639 = vpop.f32.mrf.mxu0
  %v2640 = vadd.f32 %v2471, %v2639
  %v2641 = vpop.f32.mrf.mxu0
  %v2642 = vadd.f32 %v2473, %v2641
  %2643 = vmatmul.bf16.gmra.mxu0 %v1523
  %v2644 = vpop.f32.mrf.mxu0
  %v2645 = vadd.f32 %v2476, %v2644
  %v2646 = vpop.f32.mrf.mxu0
  %v2647 = vadd.f32 %v2478, %v2646
  %2648 = vmatmul.bf16.gmra.mxu0 %v1532
  %v2649 = vpop.f32.mrf.mxu0
  %v2650 = vadd.f32 %v2481, %v2649
  %v2651 = vpop.f32.mrf.mxu0
  %v2652 = vadd.f32 %v2483, %v2651
  %2653 = vmatmul.bf16.gmra.mxu0 %v1541
  %v2654 = vpop.f32.mrf.mxu0
  %v2655 = vadd.f32 %v2486, %v2654
  %v2656 = vpop.f32.mrf.mxu0
  %v2657 = vadd.f32 %v2488, %v2656
  %2658 = vmatmul.bf16.gmra.mxu0 %v1550
  %v2659 = vpop.f32.mrf.mxu0
  %v2660 = vadd.f32 %v2491, %v2659
  %v2661 = vpop.f32.mrf.mxu0
  %v2662 = vadd.f32 %v2493, %v2661
  %2663 = vmatmul.bf16.gmra.mxu0 %v1559
  %v2664 = vpop.f32.mrf.mxu0
  %v2665 = vadd.f32 %v2496, %v2664
  %v2666 = vpop.f32.mrf.mxu0
  %v2667 = vadd.f32 %v2498, %v2666
  %2668 = vmatmul.bf16.gmra.mxu0 %v1568
  %v2669 = vpop.f32.mrf.mxu0
  %v2670 = vadd.f32 %v2501, %v2669
  %v2671 = vpop.f32.mrf.mxu0
  %v2672 = vadd.f32 %v2503, %v2671
  %2673 = vmatmul.bf16.gmra.mxu0 %v1577
  %v2674 = vpop.f32.mrf.mxu0
  %v2675 = vadd.f32 %v2506, %v2674
  %v2676 = vpop.f32.mrf.mxu0
  %v2677 = vadd.f32 %v2508, %v2676
  %2678 = vmatmul.bf16.gmra.mxu0 %v1586
  %v2679 = vpop.f32.mrf.mxu0
  %v2680 = vadd.f32 %v2511, %v2679
  %v2681 = vpop.f32.mrf.mxu0
  %v2682 = vadd.f32 %v2513, %v2681
  %2683 = vmatmul.bf16.gmra.mxu0 %v1595
  %v2684 = vpop.f32.mrf.mxu0
  %v2685 = vadd.f32 %v2516, %v2684
  %v2686 = vpop.f32.mrf.mxu0
  %v2687 = vadd.f32 %v2518, %v2686
  %2688 = vmatmul.bf16.gmra.mxu0 %v1604
  %v2689 = vpop.f32.mrf.mxu0
  %v2690 = vadd.f32 %v2521, %v2689
  %v2691 = vpop.f32.mrf.mxu0
  %v2692 = vadd.f32 %v2523, %v2691
  %2693 = vmatmul.bf16.gmra.mxu0 %v1613
  %v2694 = vpop.f32.mrf.mxu0
  %v2695 = vadd.f32 %v2526, %v2694
  %v2696 = vpop.f32.mrf.mxu0
  %v2697 = vadd.f32 %v2528, %v2696
  %2698 = vmatmul.bf16.gmra.mxu0 %v1622
  %v2699 = vpop.f32.mrf.mxu0
  %v2700 = vadd.f32 %v2531, %v2699
  %v2701 = vpop.f32.mrf.mxu0
  %v2702 = vadd.f32 %v2533, %v2701
  %2703 = vmatmul.bf16.gmra.mxu0 %v1631
  %v2704 = vpop.f32.mrf.mxu0
  %v2705 = vadd.f32 %v2536, %v2704
  %v2706 = vpop.f32.mrf.mxu0
  %v2707 = vadd.f32 %v2538, %v2706
  %2708 = vmatmul.bf16.gmra.mxu0 %v1640
  %v2709 = vpop.f32.mrf.mxu0
  %v2710 = vadd.f32 %v2541, %v2709
  %v2711 = vpop.f32.mrf.mxu0
  %v2712 = vadd.f32 %v2543, %v2711
  %2713 = vmatmul.bf16.gmra.mxu0 %v1649
  %v2714 = vpop.f32.mrf.mxu0
  %v2715 = vadd.f32 %v2546, %v2714
  %v2716 = vpop.f32.mrf.mxu0
  %v2717 = vadd.f32 %v2548, %v2716
  %2718 = vmatmul.bf16.gmra.mxu0 %v1658
  %v2719 = vpop.f32.mrf.mxu0
  %v2720 = vadd.f32 %v2551, %v2719
  %v2721 = vpop.f32.mrf.mxu0
  %v2722 = vadd.f32 %v2553, %v2721
  %2723 = vdwg.mxu0
  %2724 = vmatpush.bf16.msra.mxu0 %v2265
  %2725 = vmatpush.bf16.msra.mxu0 %v2264
  %2726 = vmatpush.bf16.msra.mxu0 %v2263
  %2727 = vmatpush.bf16.msra.mxu0 %v2262
  %2728 = vmatpush.bf16.msra.mxu0 %v2261
  %2729 = vmatpush.bf16.msra.mxu0 %v2260
  %2730 = vmatpush.bf16.msra.mxu0 %v2259
  %2731 = vmatpush.bf16.msra.mxu0 %v2258
  %2732 = vmatmul.bf16.gmra.mxu0 %v1380
  %v2733 = vpop.f32.mrf.mxu0
  %v2734 = vadd.f32 %v2565, %v2733
  %v2735 = vpop.f32.mrf.mxu0
  %v2736 = vadd.f32 %v2567, %v2735
  %2737 = vmatmul.bf16.gmra.mxu0 %v1389
  %v2738 = vpop.f32.mrf.mxu0
  %v2739 = vadd.f32 %v2570, %v2738
  %v2740 = vpop.f32.mrf.mxu0
  %v2741 = vadd.f32 %v2572, %v2740
  %2742 = vmatmul.bf16.gmra.mxu0 %v1398
  %v2743 = vpop.f32.mrf.mxu0
  %v2744 = vadd.f32 %v2575, %v2743
  %v2745 = vpop.f32.mrf.mxu0
  %v2746 = vadd.f32 %v2577, %v2745
  %2747 = vmatmul.bf16.gmra.mxu0 %v1407
  %v2748 = vpop.f32.mrf.mxu0
  %v2749 = vadd.f32 %v2580, %v2748
  %v2750 = vpop.f32.mrf.mxu0
  %v2751 = vadd.f32 %v2582, %v2750
  %2752 = vmatmul.bf16.gmra.mxu0 %v1416
  %v2753 = vpop.f32.mrf.mxu0
  %v2754 = vadd.f32 %v2585, %v2753
  %v2755 = vpop.f32.mrf.mxu0
  %v2756 = vadd.f32 %v2587, %v2755
  %2757 = vmatmul.bf16.gmra.mxu0 %v1425
  %v2758 = vpop.f32.mrf.mxu0
  %v2759 = vadd.f32 %v2590, %v2758
  %v2760 = vpop.f32.mrf.mxu0
  %v2761 = vadd.f32 %v2592, %v2760
  %2762 = vmatmul.bf16.gmra.mxu0 %v1434
  %v2763 = vpop.f32.mrf.mxu0
  %v2764 = vadd.f32 %v2595, %v2763
  %v2765 = vpop.f32.mrf.mxu0
  %v2766 = vadd.f32 %v2597, %v2765
  %2767 = vmatmul.bf16.gmra.mxu0 %v1443
  %v2768 = vpop.f32.mrf.mxu0
  %v2769 = vadd.f32 %v2600, %v2768
  %v2770 = vpop.f32.mrf.mxu0
  %v2771 = vadd.f32 %v2602, %v2770
  %2772 = vmatmul.bf16.gmra.mxu0 %v1452
  %v2773 = vpop.f32.mrf.mxu0
  %v2774 = vadd.f32 %v2605, %v2773
  %v2775 = vpop.f32.mrf.mxu0
  %v2776 = vadd.f32 %v2607, %v2775
  %2777 = vmatmul.bf16.gmra.mxu0 %v1461
  %v2778 = vpop.f32.mrf.mxu0
  %v2779 = vadd.f32 %v2610, %v2778
  %v2780 = vpop.f32.mrf.mxu0
  %v2781 = vadd.f32 %v2612, %v2780
  %2782 = vmatmul.bf16.gmra.mxu0 %v1470
  %v2783 = vpop.f32.mrf.mxu0
  %v2784 = vadd.f32 %v2615, %v2783
  %v2785 = vpop.f32.mrf.mxu0
  %v2786 = vadd.f32 %v2617, %v2785
  %2787 = vmatmul.bf16.gmra.mxu0 %v1479
  %v2788 = vpop.f32.mrf.mxu0
  %v2789 = vadd.f32 %v2620, %v2788
  %v2790 = vpop.f32.mrf.mxu0
  %v2791 = vadd.f32 %v2622, %v2790
  %2792 = vmatmul.bf16.gmra.mxu0 %v1488
  %v2793 = vpop.f32.mrf.mxu0
  %v2794 = vadd.f32 %v2625, %v2793
  %v2795 = vpop.f32.mrf.mxu0
  %v2796 = vadd.f32 %v2627, %v2795
  %2797 = vmatmul.bf16.gmra.mxu0 %v1497
  %v2798 = vpop.f32.mrf.mxu0
  %v2799 = vadd.f32 %v2630, %v2798
  %v2800 = vpop.f32.mrf.mxu0
  %v2801 = vadd.f32 %v2632, %v2800
  %2802 = vmatmul.bf16.gmra.mxu0 %v1506
  %v2803 = vpop.f32.mrf.mxu0
  %v2804 = vadd.f32 %v2635, %v2803
  %v2805 = vpop.f32.mrf.mxu0
  %v2806 = vadd.f32 %v2637, %v2805
  %2807 = vmatmul.bf16.gmra.mxu0 %v1515
  %v2808 = vpop.f32.mrf.mxu0
  %v2809 = vadd.f32 %v2640, %v2808
  %v2810 = vpop.f32.mrf.mxu0
  %v2811 = vadd.f32 %v2642, %v2810
  %2812 = vmatmul.bf16.gmra.mxu0 %v1524
  %v2813 = vpop.f32.mrf.mxu0
  %v2814 = vadd.f32 %v2645, %v2813
  %v2815 = vpop.f32.mrf.mxu0
  %v2816 = vadd.f32 %v2647, %v2815
  %2817 = vmatmul.bf16.gmra.mxu0 %v1533
  %v2818 = vpop.f32.mrf.mxu0
  %v2819 = vadd.f32 %v2650, %v2818
  %v2820 = vpop.f32.mrf.mxu0
  %v2821 = vadd.f32 %v2652, %v2820
  %2822 = vmatmul.bf16.gmra.mxu0 %v1542
  %v2823 = vpop.f32.mrf.mxu0
  %v2824 = vadd.f32 %v2655, %v2823
  %v2825 = vpop.f32.mrf.mxu0
  %v2826 = vadd.f32 %v2657, %v2825
  %2827 = vmatmul.bf16.gmra.mxu0 %v1551
  %v2828 = vpop.f32.mrf.mxu0
  %v2829 = vadd.f32 %v2660, %v2828
  %v2830 = vpop.f32.mrf.mxu0
  %v2831 = vadd.f32 %v2662, %v2830
  %2832 = vmatmul.bf16.gmra.mxu0 %v1560
  %v2833 = vpop.f32.mrf.mxu0
  %v2834 = vadd.f32 %v2665, %v2833
  %v2835 = vpop.f32.mrf.mxu0
  %v2836 = vadd.f32 %v2667, %v2835
  %2837 = vmatmul.bf16.gmra.mxu0 %v1569
  %v2838 = vpop.f32.mrf.mxu0
  %v2839 = vadd.f32 %v2670, %v2838
  %v2840 = vpop.f32.mrf.mxu0
  %v2841 = vadd.f32 %v2672, %v2840
  %2842 = vmatmul.bf16.gmra.mxu0 %v1578
  %v2843 = vpop.f32.mrf.mxu0
  %v2844 = vadd.f32 %v2675, %v2843
  %v2845 = vpop.f32.mrf.mxu0
  %v2846 = vadd.f32 %v2677, %v2845
  %2847 = vmatmul.bf16.gmra.mxu0 %v1587
  %v2848 = vpop.f32.mrf.mxu0
  %v2849 = vadd.f32 %v2680, %v2848
  %v2850 = vpop.f32.mrf.mxu0
  %v2851 = vadd.f32 %v2682, %v2850
  %2852 = vmatmul.bf16.gmra.mxu0 %v1596
  %v2853 = vpop.f32.mrf.mxu0
  %v2854 = vadd.f32 %v2685, %v2853
  %v2855 = vpop.f32.mrf.mxu0
  %v2856 = vadd.f32 %v2687, %v2855
  %2857 = vmatmul.bf16.gmra.mxu0 %v1605
  %v2858 = vpop.f32.mrf.mxu0
  %v2859 = vadd.f32 %v2690, %v2858
  %v2860 = vpop.f32.mrf.mxu0
  %v2861 = vadd.f32 %v2692, %v2860
  %2862 = vmatmul.bf16.gmra.mxu0 %v1614
  %v2863 = vpop.f32.mrf.mxu0
  %v2864 = vadd.f32 %v2695, %v2863
  %v2865 = vpop.f32.mrf.mxu0
  %v2866 = vadd.f32 %v2697, %v2865
  %2867 = vmatmul.bf16.gmra.mxu0 %v1623
  %v2868 = vpop.f32.mrf.mxu0
  %v2869 = vadd.f32 %v2700, %v2868
  %v2870 = vpop.f32.mrf.mxu0
  %v2871 = vadd.f32 %v2702, %v2870
  %2872 = vmatmul.bf16.gmra.mxu0 %v1632
  %v2873 = vpop.f32.mrf.mxu0
  %v2874 = vadd.f32 %v2705, %v2873
  %v2875 = vpop.f32.mrf.mxu0
  %v2876 = vadd.f32 %v2707, %v2875
  %2877 = vmatmul.bf16.gmra.mxu0 %v1641
  %v2878 = vpop.f32.mrf.mxu0
  %v2879 = vadd.f32 %v2710, %v2878
  %v2880 = vpop.f32.mrf.mxu0
  %v2881 = vadd.f32 %v2712, %v2880
  %2882 = vmatmul.bf16.gmra.mxu0 %v1650
  %v2883 = vpop.f32.mrf.mxu0
  %v2884 = vadd.f32 %v2715, %v2883
  %v2885 = vpop.f32.mrf.mxu0
  %v2886 = vadd.f32 %v2717, %v2885
  %2887 = vmatmul.bf16.gmra.mxu0 %v1659
  %v2888 = vpop.f32.mrf.mxu0
  %v2889 = vadd.f32 %v2720, %v2888
  %v2890 = vpop.f32.mrf.mxu0
  %v2891 = vadd.f32 %v2722, %v2890
  %2892 = vdwg.mxu0
  %2893 = vmatpush.bf16.msra.mxu0 %v2273
  %2894 = vmatpush.bf16.msra.mxu0 %v2272
  %2895 = vmatpush.bf16.msra.mxu0 %v2271
  %2896 = vmatpush.bf16.msra.mxu0 %v2270
  %2897 = vmatpush.bf16.msra.mxu0 %v2269
  %2898 = vmatpush.bf16.msra.mxu0 %v2268
  %2899 = vmatpush.bf16.msra.mxu0 %v2267
  %2900 = vmatpush.bf16.msra.mxu0 %v2266
  %2901 = vmatmul.bf16.gmra.mxu0 %v1381
  %v2902 = vpop.f32.mrf.mxu0
  %v2903 = vadd.f32 %v2734, %v2902
  %v2904 = vpop.f32.mrf.mxu0
  %v2905 = vadd.f32 %v2736, %v2904
  %2906 = vmatmul.bf16.gmra.mxu0 %v1390
  %v2907 = vpop.f32.mrf.mxu0
  %v2908 = vadd.f32 %v2739, %v2907
  %v2909 = vpop.f32.mrf.mxu0
  %v2910 = vadd.f32 %v2741, %v2909
  %2911 = vmatmul.bf16.gmra.mxu0 %v1399
  %v2912 = vpop.f32.mrf.mxu0
  %v2913 = vadd.f32 %v2744, %v2912
  %v2914 = vpop.f32.mrf.mxu0
  %v2915 = vadd.f32 %v2746, %v2914
  %2916 = vmatmul.bf16.gmra.mxu0 %v1408
  %v2917 = vpop.f32.mrf.mxu0
  %v2918 = vadd.f32 %v2749, %v2917
  %v2919 = vpop.f32.mrf.mxu0
  %v2920 = vadd.f32 %v2751, %v2919
  %2921 = vmatmul.bf16.gmra.mxu0 %v1417
  %v2922 = vpop.f32.mrf.mxu0
  %v2923 = vadd.f32 %v2754, %v2922
  %v2924 = vpop.f32.mrf.mxu0
  %v2925 = vadd.f32 %v2756, %v2924
  %2926 = vmatmul.bf16.gmra.mxu0 %v1426
  %v2927 = vpop.f32.mrf.mxu0
  %v2928 = vadd.f32 %v2759, %v2927
  %v2929 = vpop.f32.mrf.mxu0
  %v2930 = vadd.f32 %v2761, %v2929
  %2931 = vmatmul.bf16.gmra.mxu0 %v1435
  %v2932 = vpop.f32.mrf.mxu0
  %v2933 = vadd.f32 %v2764, %v2932
  %v2934 = vpop.f32.mrf.mxu0
  %v2935 = vadd.f32 %v2766, %v2934
  %2936 = vmatmul.bf16.gmra.mxu0 %v1444
  %v2937 = vpop.f32.mrf.mxu0
  %v2938 = vadd.f32 %v2769, %v2937
  %v2939 = vpop.f32.mrf.mxu0
  %v2940 = vadd.f32 %v2771, %v2939
  %2941 = vmatmul.bf16.gmra.mxu0 %v1453
  %v2942 = vpop.f32.mrf.mxu0
  %v2943 = vadd.f32 %v2774, %v2942
  %v2944 = vpop.f32.mrf.mxu0
  %v2945 = vadd.f32 %v2776, %v2944
  %2946 = vmatmul.bf16.gmra.mxu0 %v1462
  %v2947 = vpop.f32.mrf.mxu0
  %v2948 = vadd.f32 %v2779, %v2947
  %v2949 = vpop.f32.mrf.mxu0
  %v2950 = vadd.f32 %v2781, %v2949
  %2951 = vmatmul.bf16.gmra.mxu0 %v1471
  %v2952 = vpop.f32.mrf.mxu0
  %v2953 = vadd.f32 %v2784, %v2952
  %v2954 = vpop.f32.mrf.mxu0
  %v2955 = vadd.f32 %v2786, %v2954
  %2956 = vmatmul.bf16.gmra.mxu0 %v1480
  %v2957 = vpop.f32.mrf.mxu0
  %v2958 = vadd.f32 %v2789, %v2957
  %v2959 = vpop.f32.mrf.mxu0
  %v2960 = vadd.f32 %v2791, %v2959
  %2961 = vmatmul.bf16.gmra.mxu0 %v1489
  %v2962 = vpop.f32.mrf.mxu0
  %v2963 = vadd.f32 %v2794, %v2962
  %v2964 = vpop.f32.mrf.mxu0
  %v2965 = vadd.f32 %v2796, %v2964
  %2966 = vmatmul.bf16.gmra.mxu0 %v1498
  %v2967 = vpop.f32.mrf.mxu0
  %v2968 = vadd.f32 %v2799, %v2967
  %v2969 = vpop.f32.mrf.mxu0
  %v2970 = vadd.f32 %v2801, %v2969
  %2971 = vmatmul.bf16.gmra.mxu0 %v1507
  %v2972 = vpop.f32.mrf.mxu0
  %v2973 = vadd.f32 %v2804, %v2972
  %v2974 = vpop.f32.mrf.mxu0
  %v2975 = vadd.f32 %v2806, %v2974
  %2976 = vmatmul.bf16.gmra.mxu0 %v1516
  %v2977 = vpop.f32.mrf.mxu0
  %v2978 = vadd.f32 %v2809, %v2977
  %v2979 = vpop.f32.mrf.mxu0
  %v2980 = vadd.f32 %v2811, %v2979
  %2981 = vmatmul.bf16.gmra.mxu0 %v1525
  %v2982 = vpop.f32.mrf.mxu0
  %v2983 = vadd.f32 %v2814, %v2982
  %v2984 = vpop.f32.mrf.mxu0
  %v2985 = vadd.f32 %v2816, %v2984
  %2986 = vmatmul.bf16.gmra.mxu0 %v1534
  %v2987 = vpop.f32.mrf.mxu0
  %v2988 = vadd.f32 %v2819, %v2987
  %v2989 = vpop.f32.mrf.mxu0
  %v2990 = vadd.f32 %v2821, %v2989
  %2991 = vmatmul.bf16.gmra.mxu0 %v1543
  %v2992 = vpop.f32.mrf.mxu0
  %v2993 = vadd.f32 %v2824, %v2992
  %v2994 = vpop.f32.mrf.mxu0
  %v2995 = vadd.f32 %v2826, %v2994
  %2996 = vmatmul.bf16.gmra.mxu0 %v1552
  %v2997 = vpop.f32.mrf.mxu0
  %v2998 = vadd.f32 %v2829, %v2997
  %v2999 = vpop.f32.mrf.mxu0
  %v3000 = vadd.f32 %v2831, %v2999
  %3001 = vmatmul.bf16.gmra.mxu0 %v1561
  %v3002 = vpop.f32.mrf.mxu0
  %v3003 = vadd.f32 %v2834, %v3002
  %v3004 = vpop.f32.mrf.mxu0
  %v3005 = vadd.f32 %v2836, %v3004
  %3006 = vmatmul.bf16.gmra.mxu0 %v1570
  %v3007 = vpop.f32.mrf.mxu0
  %v3008 = vadd.f32 %v2839, %v3007
  %v3009 = vpop.f32.mrf.mxu0
  %v3010 = vadd.f32 %v2841, %v3009
  %3011 = vmatmul.bf16.gmra.mxu0 %v1579
  %v3012 = vpop.f32.mrf.mxu0
  %v3013 = vadd.f32 %v2844, %v3012
  %v3014 = vpop.f32.mrf.mxu0
  %v3015 = vadd.f32 %v2846, %v3014
  %3016 = vmatmul.bf16.gmra.mxu0 %v1588
  %v3017 = vpop.f32.mrf.mxu0
  %v3018 = vadd.f32 %v2849, %v3017
  %v3019 = vpop.f32.mrf.mxu0
  %v3020 = vadd.f32 %v2851, %v3019
  %3021 = vmatmul.bf16.gmra.mxu0 %v1597
  %v3022 = vpop.f32.mrf.mxu0
  %v3023 = vadd.f32 %v2854, %v3022
  %v3024 = vpop.f32.mrf.mxu0
  %v3025 = vadd.f32 %v2856, %v3024
  %3026 = vmatmul.bf16.gmra.mxu0 %v1606
  %v3027 = vpop.f32.mrf.mxu0
  %v3028 = vadd.f32 %v2859, %v3027
  %v3029 = vpop.f32.mrf.mxu0
  %v3030 = vadd.f32 %v2861, %v3029
  %3031 = vmatmul.bf16.gmra.mxu0 %v1615
  %v3032 = vpop.f32.mrf.mxu0
  %v3033 = vadd.f32 %v2864, %v3032
  %v3034 = vpop.f32.mrf.mxu0
  %v3035 = vadd.f32 %v2866, %v3034
  %3036 = vmatmul.bf16.gmra.mxu0 %v1624
  %v3037 = vpop.f32.mrf.mxu0
  %v3038 = vadd.f32 %v2869, %v3037
  %v3039 = vpop.f32.mrf.mxu0
  %v3040 = vadd.f32 %v2871, %v3039
  %3041 = vmatmul.bf16.gmra.mxu0 %v1633
  %v3042 = vpop.f32.mrf.mxu0
  %v3043 = vadd.f32 %v2874, %v3042
  %v3044 = vpop.f32.mrf.mxu0
  %v3045 = vadd.f32 %v2876, %v3044
  %3046 = vmatmul.bf16.gmra.mxu0 %v1642
  %v3047 = vpop.f32.mrf.mxu0
  %v3048 = vadd.f32 %v2879, %v3047
  %v3049 = vpop.f32.mrf.mxu0
  %v3050 = vadd.f32 %v2881, %v3049
  %3051 = vmatmul.bf16.gmra.mxu0 %v1651
  %v3052 = vpop.f32.mrf.mxu0
  %v3053 = vadd.f32 %v2884, %v3052
  %v3054 = vpop.f32.mrf.mxu0
  %v3055 = vadd.f32 %v2886, %v3054
  %3056 = vmatmul.bf16.gmra.mxu0 %v1660
  %v3057 = vpop.f32.mrf.mxu0
  %v3058 = vadd.f32 %v2889, %v3057
  %v3059 = vpop.f32.mrf.mxu0
  %v3060 = vadd.f32 %v2891, %v3059
  %3061 = vdwg.mxu0
  %3062 = vmatpush.bf16.msra.mxu0 %v2281
  %3063 = vmatpush.bf16.msra.mxu0 %v2280
  %3064 = vmatpush.bf16.msra.mxu0 %v2279
  %3065 = vmatpush.bf16.msra.mxu0 %v2278
  %3066 = vmatpush.bf16.msra.mxu0 %v2277
  %3067 = vmatpush.bf16.msra.mxu0 %v2276
  %3068 = vmatpush.bf16.msra.mxu0 %v2275
  %3069 = vmatpush.bf16.msra.mxu0 %v2274
  %3070 = vmatmul.bf16.gmra.mxu0 %v1382
  %v3071 = vpop.f32.mrf.mxu0
  %v3072 = vadd.f32 %v2903, %v3071
  %v3073 = vpop.f32.mrf.mxu0
  %v3074 = vadd.f32 %v2905, %v3073
  %3075 = vmatmul.bf16.gmra.mxu0 %v1391
  %v3076 = vpop.f32.mrf.mxu0
  %v3077 = vadd.f32 %v2908, %v3076
  %v3078 = vpop.f32.mrf.mxu0
  %v3079 = vadd.f32 %v2910, %v3078
  %3080 = vmatmul.bf16.gmra.mxu0 %v1400
  %v3081 = vpop.f32.mrf.mxu0
  %v3082 = vadd.f32 %v2913, %v3081
  %v3083 = vpop.f32.mrf.mxu0
  %v3084 = vadd.f32 %v2915, %v3083
  %3085 = vmatmul.bf16.gmra.mxu0 %v1409
  %v3086 = vpop.f32.mrf.mxu0
  %v3087 = vadd.f32 %v2918, %v3086
  %v3088 = vpop.f32.mrf.mxu0
  %v3089 = vadd.f32 %v2920, %v3088
  %3090 = vmatmul.bf16.gmra.mxu0 %v1418
  %v3091 = vpop.f32.mrf.mxu0
  %v3092 = vadd.f32 %v2923, %v3091
  %v3093 = vpop.f32.mrf.mxu0
  %v3094 = vadd.f32 %v2925, %v3093
  %3095 = vmatmul.bf16.gmra.mxu0 %v1427
  %v3096 = vpop.f32.mrf.mxu0
  %v3097 = vadd.f32 %v2928, %v3096
  %v3098 = vpop.f32.mrf.mxu0
  %v3099 = vadd.f32 %v2930, %v3098
  %3100 = vmatmul.bf16.gmra.mxu0 %v1436
  %v3101 = vpop.f32.mrf.mxu0
  %v3102 = vadd.f32 %v2933, %v3101
  %v3103 = vpop.f32.mrf.mxu0
  %v3104 = vadd.f32 %v2935, %v3103
  %3105 = vmatmul.bf16.gmra.mxu0 %v1445
  %v3106 = vpop.f32.mrf.mxu0
  %v3107 = vadd.f32 %v2938, %v3106
  %v3108 = vpop.f32.mrf.mxu0
  %v3109 = vadd.f32 %v2940, %v3108
  %3110 = vmatmul.bf16.gmra.mxu0 %v1454
  %v3111 = vpop.f32.mrf.mxu0
  %v3112 = vadd.f32 %v2943, %v3111
  %v3113 = vpop.f32.mrf.mxu0
  %v3114 = vadd.f32 %v2945, %v3113
  %3115 = vmatmul.bf16.gmra.mxu0 %v1463
  %v3116 = vpop.f32.mrf.mxu0
  %v3117 = vadd.f32 %v2948, %v3116
  %v3118 = vpop.f32.mrf.mxu0
  %v3119 = vadd.f32 %v2950, %v3118
  %3120 = vmatmul.bf16.gmra.mxu0 %v1472
  %v3121 = vpop.f32.mrf.mxu0
  %v3122 = vadd.f32 %v2953, %v3121
  %v3123 = vpop.f32.mrf.mxu0
  %v3124 = vadd.f32 %v2955, %v3123
  %3125 = vmatmul.bf16.gmra.mxu0 %v1481
  %v3126 = vpop.f32.mrf.mxu0
  %v3127 = vadd.f32 %v2958, %v3126
  %v3128 = vpop.f32.mrf.mxu0
  %v3129 = vadd.f32 %v2960, %v3128
  %3130 = vmatmul.bf16.gmra.mxu0 %v1490
  %v3131 = vpop.f32.mrf.mxu0
  %v3132 = vadd.f32 %v2963, %v3131
  %v3133 = vpop.f32.mrf.mxu0
  %v3134 = vadd.f32 %v2965, %v3133
  %3135 = vmatmul.bf16.gmra.mxu0 %v1499
  %v3136 = vpop.f32.mrf.mxu0
  %v3137 = vadd.f32 %v2968, %v3136
  %v3138 = vpop.f32.mrf.mxu0
  %v3139 = vadd.f32 %v2970, %v3138
  %3140 = vmatmul.bf16.gmra.mxu0 %v1508
  %v3141 = vpop.f32.mrf.mxu0
  %v3142 = vadd.f32 %v2973, %v3141
  %v3143 = vpop.f32.mrf.mxu0
  %v3144 = vadd.f32 %v2975, %v3143
  %3145 = vmatmul.bf16.gmra.mxu0 %v1517
  %v3146 = vpop.f32.mrf.mxu0
  %v3147 = vadd.f32 %v2978, %v3146
  %v3148 = vpop.f32.mrf.mxu0
  %v3149 = vadd.f32 %v2980, %v3148
  %3150 = vmatmul.bf16.gmra.mxu0 %v1526
  %v3151 = vpop.f32.mrf.mxu0
  %v3152 = vadd.f32 %v2983, %v3151
  %v3153 = vpop.f32.mrf.mxu0
  %v3154 = vadd.f32 %v2985, %v3153
  %3155 = vmatmul.bf16.gmra.mxu0 %v1535
  %v3156 = vpop.f32.mrf.mxu0
  %v3157 = vadd.f32 %v2988, %v3156
  %v3158 = vpop.f32.mrf.mxu0
  %v3159 = vadd.f32 %v2990, %v3158
  %3160 = vmatmul.bf16.gmra.mxu0 %v1544
  %v3161 = vpop.f32.mrf.mxu0
  %v3162 = vadd.f32 %v2993, %v3161
  %v3163 = vpop.f32.mrf.mxu0
  %v3164 = vadd.f32 %v2995, %v3163
  %3165 = vmatmul.bf16.gmra.mxu0 %v1553
  %v3166 = vpop.f32.mrf.mxu0
  %v3167 = vadd.f32 %v2998, %v3166
  %v3168 = vpop.f32.mrf.mxu0
  %v3169 = vadd.f32 %v3000, %v3168
  %3170 = vmatmul.bf16.gmra.mxu0 %v1562
  %v3171 = vpop.f32.mrf.mxu0
  %v3172 = vadd.f32 %v3003, %v3171
  %v3173 = vpop.f32.mrf.mxu0
  %v3174 = vadd.f32 %v3005, %v3173
  %3175 = vmatmul.bf16.gmra.mxu0 %v1571
  %v3176 = vpop.f32.mrf.mxu0
  %v3177 = vadd.f32 %v3008, %v3176
  %v3178 = vpop.f32.mrf.mxu0
  %v3179 = vadd.f32 %v3010, %v3178
  %3180 = vmatmul.bf16.gmra.mxu0 %v1580
  %v3181 = vpop.f32.mrf.mxu0
  %v3182 = vadd.f32 %v3013, %v3181
  %v3183 = vpop.f32.mrf.mxu0
  %v3184 = vadd.f32 %v3015, %v3183
  %3185 = vmatmul.bf16.gmra.mxu0 %v1589
  %v3186 = vpop.f32.mrf.mxu0
  %v3187 = vadd.f32 %v3018, %v3186
  %v3188 = vpop.f32.mrf.mxu0
  %v3189 = vadd.f32 %v3020, %v3188
  %3190 = vmatmul.bf16.gmra.mxu0 %v1598
  %v3191 = vpop.f32.mrf.mxu0
  %v3192 = vadd.f32 %v3023, %v3191
  %v3193 = vpop.f32.mrf.mxu0
  %v3194 = vadd.f32 %v3025, %v3193
  %3195 = vmatmul.bf16.gmra.mxu0 %v1607
  %v3196 = vpop.f32.mrf.mxu0
  %v3197 = vadd.f32 %v3028, %v3196
  %v3198 = vpop.f32.mrf.mxu0
  %v3199 = vadd.f32 %v3030, %v3198
  %3200 = vmatmul.bf16.gmra.mxu0 %v1616
  %v3201 = vpop.f32.mrf.mxu0
  %v3202 = vadd.f32 %v3033, %v3201
  %v3203 = vpop.f32.mrf.mxu0
  %v3204 = vadd.f32 %v3035, %v3203
  %3205 = vmatmul.bf16.gmra.mxu0 %v1625
  %v3206 = vpop.f32.mrf.mxu0
  %v3207 = vadd.f32 %v3038, %v3206
  %v3208 = vpop.f32.mrf.mxu0
  %v3209 = vadd.f32 %v3040, %v3208
  %3210 = vmatmul.bf16.gmra.mxu0 %v1634
  %v3211 = vpop.f32.mrf.mxu0
  %v3212 = vadd.f32 %v3043, %v3211
  %v3213 = vpop.f32.mrf.mxu0
  %v3214 = vadd.f32 %v3045, %v3213
  %3215 = vmatmul.bf16.gmra.mxu0 %v1643
  %v3216 = vpop.f32.mrf.mxu0
  %v3217 = vadd.f32 %v3048, %v3216
  %v3218 = vpop.f32.mrf.mxu0
  %v3219 = vadd.f32 %v3050, %v3218
  %3220 = vmatmul.bf16.gmra.mxu0 %v1652
  %v3221 = vpop.f32.mrf.mxu0
  %v3222 = vadd.f32 %v3053, %v3221
  %v3223 = vpop.f32.mrf.mxu0
  %v3224 = vadd.f32 %v3055, %v3223
  %3225 = vmatmul.bf16.gmra.mxu0 %v1661
  %v3226 = vpop.f32.mrf.mxu0
  %v3227 = vadd.f32 %v3058, %v3226
  %v3228 = vpop.f32.mrf.mxu0
  %v3229 = vadd.f32 %v3060, %v3228
  %3230 = vdwg.mxu0
  %3231 = vmatpush.bf16.msra.mxu0 %v2289
  %3232 = vmatpush.bf16.msra.mxu0 %v2288
  %3233 = vmatpush.bf16.msra.mxu0 %v2287
  %3234 = vmatpush.bf16.msra.mxu0 %v2286
  %3235 = vmatpush.bf16.msra.mxu0 %v2285
  %3236 = vmatpush.bf16.msra.mxu0 %v2284
  %3237 = vmatpush.bf16.msra.mxu0 %v2283
  %3238 = vmatpush.bf16.msra.mxu0 %v2282
  %3239 = vmatmul.bf16.gmra.mxu0 %v1383
  %v3240 = vpop.f32.mrf.mxu0
  %v3241 = vadd.f32 %v3072, %v3240
  %v3242 = vpop.f32.mrf.mxu0
  %v3243 = vadd.f32 %v3074, %v3242
  %3244 = vmatmul.bf16.gmra.mxu0 %v1392
  %v3245 = vpop.f32.mrf.mxu0
  %v3246 = vadd.f32 %v3077, %v3245
  %v3247 = vpop.f32.mrf.mxu0
  %v3248 = vadd.f32 %v3079, %v3247
  %3249 = vmatmul.bf16.gmra.mxu0 %v1401
  %v3250 = vpop.f32.mrf.mxu0
  %v3251 = vadd.f32 %v3082, %v3250
  %v3252 = vpop.f32.mrf.mxu0
  %v3253 = vadd.f32 %v3084, %v3252
  %3254 = vmatmul.bf16.gmra.mxu0 %v1410
  %v3255 = vpop.f32.mrf.mxu0
  %v3256 = vadd.f32 %v3087, %v3255
  %v3257 = vpop.f32.mrf.mxu0
  %v3258 = vadd.f32 %v3089, %v3257
  %3259 = vmatmul.bf16.gmra.mxu0 %v1419
  %v3260 = vpop.f32.mrf.mxu0
  %v3261 = vadd.f32 %v3092, %v3260
  %v3262 = vpop.f32.mrf.mxu0
  %v3263 = vadd.f32 %v3094, %v3262
  %3264 = vmatmul.bf16.gmra.mxu0 %v1428
  %v3265 = vpop.f32.mrf.mxu0
  %v3266 = vadd.f32 %v3097, %v3265
  %v3267 = vpop.f32.mrf.mxu0
  %v3268 = vadd.f32 %v3099, %v3267
  %3269 = vmatmul.bf16.gmra.mxu0 %v1437
  %v3270 = vpop.f32.mrf.mxu0
  %v3271 = vadd.f32 %v3102, %v3270
  %v3272 = vpop.f32.mrf.mxu0
  %v3273 = vadd.f32 %v3104, %v3272
  %3274 = vmatmul.bf16.gmra.mxu0 %v1446
  %v3275 = vpop.f32.mrf.mxu0
  %v3276 = vadd.f32 %v3107, %v3275
  %v3277 = vpop.f32.mrf.mxu0
  %v3278 = vadd.f32 %v3109, %v3277
  %3279 = vmatmul.bf16.gmra.mxu0 %v1455
  %v3280 = vpop.f32.mrf.mxu0
  %v3281 = vadd.f32 %v3112, %v3280
  %v3282 = vpop.f32.mrf.mxu0
  %v3283 = vadd.f32 %v3114, %v3282
  %3284 = vmatmul.bf16.gmra.mxu0 %v1464
  %v3285 = vpop.f32.mrf.mxu0
  %v3286 = vadd.f32 %v3117, %v3285
  %v3287 = vpop.f32.mrf.mxu0
  %v3288 = vadd.f32 %v3119, %v3287
  %3289 = vmatmul.bf16.gmra.mxu0 %v1473
  %v3290 = vpop.f32.mrf.mxu0
  %v3291 = vadd.f32 %v3122, %v3290
  %v3292 = vpop.f32.mrf.mxu0
  %v3293 = vadd.f32 %v3124, %v3292
  %3294 = vmatmul.bf16.gmra.mxu0 %v1482
  %v3295 = vpop.f32.mrf.mxu0
  %v3296 = vadd.f32 %v3127, %v3295
  %v3297 = vpop.f32.mrf.mxu0
  %v3298 = vadd.f32 %v3129, %v3297
  %3299 = vmatmul.bf16.gmra.mxu0 %v1491
  %v3300 = vpop.f32.mrf.mxu0
  %v3301 = vadd.f32 %v3132, %v3300
  %v3302 = vpop.f32.mrf.mxu0
  %v3303 = vadd.f32 %v3134, %v3302
  %3304 = vmatmul.bf16.gmra.mxu0 %v1500
  %v3305 = vpop.f32.mrf.mxu0
  %v3306 = vadd.f32 %v3137, %v3305
  %v3307 = vpop.f32.mrf.mxu0
  %v3308 = vadd.f32 %v3139, %v3307
  %3309 = vmatmul.bf16.gmra.mxu0 %v1509
  %v3310 = vpop.f32.mrf.mxu0
  %v3311 = vadd.f32 %v3142, %v3310
  %v3312 = vpop.f32.mrf.mxu0
  %v3313 = vadd.f32 %v3144, %v3312
  %3314 = vmatmul.bf16.gmra.mxu0 %v1518
  %v3315 = vpop.f32.mrf.mxu0
  %v3316 = vadd.f32 %v3147, %v3315
  %v3317 = vpop.f32.mrf.mxu0
  %v3318 = vadd.f32 %v3149, %v3317
  %3319 = vmatmul.bf16.gmra.mxu0 %v1527
  %v3320 = vpop.f32.mrf.mxu0
  %v3321 = vadd.f32 %v3152, %v3320
  %v3322 = vpop.f32.mrf.mxu0
  %v3323 = vadd.f32 %v3154, %v3322
  %3324 = vmatmul.bf16.gmra.mxu0 %v1536
  %v3325 = vpop.f32.mrf.mxu0
  %v3326 = vadd.f32 %v3157, %v3325
  %v3327 = vpop.f32.mrf.mxu0
  %v3328 = vadd.f32 %v3159, %v3327
  %3329 = vmatmul.bf16.gmra.mxu0 %v1545
  %v3330 = vpop.f32.mrf.mxu0
  %v3331 = vadd.f32 %v3162, %v3330
  %v3332 = vpop.f32.mrf.mxu0
  %v3333 = vadd.f32 %v3164, %v3332
  %3334 = vmatmul.bf16.gmra.mxu0 %v1554
  %v3335 = vpop.f32.mrf.mxu0
  %v3336 = vadd.f32 %v3167, %v3335
  %v3337 = vpop.f32.mrf.mxu0
  %v3338 = vadd.f32 %v3169, %v3337
  %3339 = vmatmul.bf16.gmra.mxu0 %v1563
  %v3340 = vpop.f32.mrf.mxu0
  %v3341 = vadd.f32 %v3172, %v3340
  %v3342 = vpop.f32.mrf.mxu0
  %v3343 = vadd.f32 %v3174, %v3342
  %3344 = vmatmul.bf16.gmra.mxu0 %v1572
  %v3345 = vpop.f32.mrf.mxu0
  %v3346 = vadd.f32 %v3177, %v3345
  %v3347 = vpop.f32.mrf.mxu0
  %v3348 = vadd.f32 %v3179, %v3347
  %3349 = vmatmul.bf16.gmra.mxu0 %v1581
  %v3350 = vpop.f32.mrf.mxu0
  %v3351 = vadd.f32 %v3182, %v3350
  %v3352 = vpop.f32.mrf.mxu0
  %v3353 = vadd.f32 %v3184, %v3352
  %3354 = vmatmul.bf16.gmra.mxu0 %v1590
  %v3355 = vpop.f32.mrf.mxu0
  %v3356 = vadd.f32 %v3187, %v3355
  %v3357 = vpop.f32.mrf.mxu0
  %v3358 = vadd.f32 %v3189, %v3357
  %3359 = vmatmul.bf16.gmra.mxu0 %v1599
  %v3360 = vpop.f32.mrf.mxu0
  %v3361 = vadd.f32 %v3192, %v3360
  %v3362 = vpop.f32.mrf.mxu0
  %v3363 = vadd.f32 %v3194, %v3362
  %3364 = vmatmul.bf16.gmra.mxu0 %v1608
  %v3365 = vpop.f32.mrf.mxu0
  %v3366 = vadd.f32 %v3197, %v3365
  %v3367 = vpop.f32.mrf.mxu0
  %v3368 = vadd.f32 %v3199, %v3367
  %3369 = vmatmul.bf16.gmra.mxu0 %v1617
  %v3370 = vpop.f32.mrf.mxu0
  %v3371 = vadd.f32 %v3202, %v3370
  %v3372 = vpop.f32.mrf.mxu0
  %v3373 = vadd.f32 %v3204, %v3372
  %3374 = vmatmul.bf16.gmra.mxu0 %v1626
  %v3375 = vpop.f32.mrf.mxu0
  %v3376 = vadd.f32 %v3207, %v3375
  %v3377 = vpop.f32.mrf.mxu0
  %v3378 = vadd.f32 %v3209, %v3377
  %3379 = vmatmul.bf16.gmra.mxu0 %v1635
  %v3380 = vpop.f32.mrf.mxu0
  %v3381 = vadd.f32 %v3212, %v3380
  %v3382 = vpop.f32.mrf.mxu0
  %v3383 = vadd.f32 %v3214, %v3382
  %3384 = vmatmul.bf16.gmra.mxu0 %v1644
  %v3385 = vpop.f32.mrf.mxu0
  %v3386 = vadd.f32 %v3217, %v3385
  %v3387 = vpop.f32.mrf.mxu0
  %v3388 = vadd.f32 %v3219, %v3387
  %3389 = vmatmul.bf16.gmra.mxu0 %v1653
  %v3390 = vpop.f32.mrf.mxu0
  %v3391 = vadd.f32 %v3222, %v3390
  %v3392 = vpop.f32.mrf.mxu0
  %v3393 = vadd.f32 %v3224, %v3392
  %3394 = vmatmul.bf16.gmra.mxu0 %v1662
  %v3395 = vpop.f32.mrf.mxu0
  %v3396 = vadd.f32 %v3227, %v3395
  %v3397 = vpop.f32.mrf.mxu0
  %v3398 = vadd.f32 %v3229, %v3397
  %3399 = vdwg.mxu0
  %3400 = vmatpush.bf16.msra.mxu0 %v2297
  %3401 = vmatpush.bf16.msra.mxu0 %v2296
  %3402 = vmatpush.bf16.msra.mxu0 %v2295
  %3403 = vmatpush.bf16.msra.mxu0 %v2294
  %3404 = vmatpush.bf16.msra.mxu0 %v2293
  %3405 = vmatpush.bf16.msra.mxu0 %v2292
  %3406 = vmatpush.bf16.msra.mxu0 %v2291
  %3407 = vmatpush.bf16.msra.mxu0 %v2290
  %3408 = vmatmul.bf16.gmra.mxu0 %v1384
  %v3409 = vpop.f32.mrf.mxu0
  %v3410 = vadd.f32 %v3241, %v3409
  %v3411 = vpop.f32.mrf.mxu0
  %v3412 = vadd.f32 %v3243, %v3411
  %3413 = vmatmul.bf16.gmra.mxu0 %v1393
  %v3414 = vpop.f32.mrf.mxu0
  %v3415 = vadd.f32 %v3246, %v3414
  %v3416 = vpop.f32.mrf.mxu0
  %v3417 = vadd.f32 %v3248, %v3416
  %3418 = vmatmul.bf16.gmra.mxu0 %v1402
  %v3419 = vpop.f32.mrf.mxu0
  %v3420 = vadd.f32 %v3251, %v3419
  %v3421 = vpop.f32.mrf.mxu0
  %v3422 = vadd.f32 %v3253, %v3421
  %3423 = vmatmul.bf16.gmra.mxu0 %v1411
  %v3424 = vpop.f32.mrf.mxu0
  %v3425 = vadd.f32 %v3256, %v3424
  %v3426 = vpop.f32.mrf.mxu0
  %v3427 = vadd.f32 %v3258, %v3426
  %3428 = vmatmul.bf16.gmra.mxu0 %v1420
  %v3429 = vpop.f32.mrf.mxu0
  %v3430 = vadd.f32 %v3261, %v3429
  %v3431 = vpop.f32.mrf.mxu0
  %v3432 = vadd.f32 %v3263, %v3431
  %3433 = vmatmul.bf16.gmra.mxu0 %v1429
  %v3434 = vpop.f32.mrf.mxu0
  %v3435 = vadd.f32 %v3266, %v3434
  %v3436 = vpop.f32.mrf.mxu0
  %v3437 = vadd.f32 %v3268, %v3436
  %3438 = vmatmul.bf16.gmra.mxu0 %v1438
  %v3439 = vpop.f32.mrf.mxu0
  %v3440 = vadd.f32 %v3271, %v3439
  %v3441 = vpop.f32.mrf.mxu0
  %v3442 = vadd.f32 %v3273, %v3441
  %3443 = vmatmul.bf16.gmra.mxu0 %v1447
  %v3444 = vpop.f32.mrf.mxu0
  %v3445 = vadd.f32 %v3276, %v3444
  %v3446 = vpop.f32.mrf.mxu0
  %v3447 = vadd.f32 %v3278, %v3446
  %3448 = vmatmul.bf16.gmra.mxu0 %v1456
  %v3449 = vpop.f32.mrf.mxu0
  %v3450 = vadd.f32 %v3281, %v3449
  %v3451 = vpop.f32.mrf.mxu0
  %v3452 = vadd.f32 %v3283, %v3451
  %3453 = vmatmul.bf16.gmra.mxu0 %v1465
  %v3454 = vpop.f32.mrf.mxu0
  %v3455 = vadd.f32 %v3286, %v3454
  %v3456 = vpop.f32.mrf.mxu0
  %v3457 = vadd.f32 %v3288, %v3456
  %3458 = vmatmul.bf16.gmra.mxu0 %v1474
  %v3459 = vpop.f32.mrf.mxu0
  %v3460 = vadd.f32 %v3291, %v3459
  %v3461 = vpop.f32.mrf.mxu0
  %v3462 = vadd.f32 %v3293, %v3461
  %3463 = vmatmul.bf16.gmra.mxu0 %v1483
  %v3464 = vpop.f32.mrf.mxu0
  %v3465 = vadd.f32 %v3296, %v3464
  %v3466 = vpop.f32.mrf.mxu0
  %v3467 = vadd.f32 %v3298, %v3466
  %3468 = vmatmul.bf16.gmra.mxu0 %v1492
  %v3469 = vpop.f32.mrf.mxu0
  %v3470 = vadd.f32 %v3301, %v3469
  %v3471 = vpop.f32.mrf.mxu0
  %v3472 = vadd.f32 %v3303, %v3471
  %3473 = vmatmul.bf16.gmra.mxu0 %v1501
  %v3474 = vpop.f32.mrf.mxu0
  %v3475 = vadd.f32 %v3306, %v3474
  %v3476 = vpop.f32.mrf.mxu0
  %v3477 = vadd.f32 %v3308, %v3476
  %3478 = vmatmul.bf16.gmra.mxu0 %v1510
  %v3479 = vpop.f32.mrf.mxu0
  %v3480 = vadd.f32 %v3311, %v3479
  %v3481 = vpop.f32.mrf.mxu0
  %v3482 = vadd.f32 %v3313, %v3481
  %3483 = vmatmul.bf16.gmra.mxu0 %v1519
  %v3484 = vpop.f32.mrf.mxu0
  %v3485 = vadd.f32 %v3316, %v3484
  %v3486 = vpop.f32.mrf.mxu0
  %v3487 = vadd.f32 %v3318, %v3486
  %3488 = vmatmul.bf16.gmra.mxu0 %v1528
  %v3489 = vpop.f32.mrf.mxu0
  %v3490 = vadd.f32 %v3321, %v3489
  %v3491 = vpop.f32.mrf.mxu0
  %v3492 = vadd.f32 %v3323, %v3491
  %3493 = vmatmul.bf16.gmra.mxu0 %v1537
  %v3494 = vpop.f32.mrf.mxu0
  %v3495 = vadd.f32 %v3326, %v3494
  %v3496 = vpop.f32.mrf.mxu0
  %v3497 = vadd.f32 %v3328, %v3496
  %3498 = vmatmul.bf16.gmra.mxu0 %v1546
  %v3499 = vpop.f32.mrf.mxu0
  %v3500 = vadd.f32 %v3331, %v3499
  %v3501 = vpop.f32.mrf.mxu0
  %v3502 = vadd.f32 %v3333, %v3501
  %3503 = vmatmul.bf16.gmra.mxu0 %v1555
  %v3504 = vpop.f32.mrf.mxu0
  %v3505 = vadd.f32 %v3336, %v3504
  %v3506 = vpop.f32.mrf.mxu0
  %v3507 = vadd.f32 %v3338, %v3506
  %3508 = vmatmul.bf16.gmra.mxu0 %v1564
  %v3509 = vpop.f32.mrf.mxu0
  %v3510 = vadd.f32 %v3341, %v3509
  %v3511 = vpop.f32.mrf.mxu0
  %v3512 = vadd.f32 %v3343, %v3511
  %3513 = vmatmul.bf16.gmra.mxu0 %v1573
  %v3514 = vpop.f32.mrf.mxu0
  %v3515 = vadd.f32 %v3346, %v3514
  %v3516 = vpop.f32.mrf.mxu0
  %v3517 = vadd.f32 %v3348, %v3516
  %3518 = vmatmul.bf16.gmra.mxu0 %v1582
  %v3519 = vpop.f32.mrf.mxu0
  %v3520 = vadd.f32 %v3351, %v3519
  %v3521 = vpop.f32.mrf.mxu0
  %v3522 = vadd.f32 %v3353, %v3521
  %3523 = vmatmul.bf16.gmra.mxu0 %v1591
  %v3524 = vpop.f32.mrf.mxu0
  %v3525 = vadd.f32 %v3356, %v3524
  %v3526 = vpop.f32.mrf.mxu0
  %v3527 = vadd.f32 %v3358, %v3526
  %3528 = vmatmul.bf16.gmra.mxu0 %v1600
  %v3529 = vpop.f32.mrf.mxu0
  %v3530 = vadd.f32 %v3361, %v3529
  %v3531 = vpop.f32.mrf.mxu0
  %v3532 = vadd.f32 %v3363, %v3531
  %3533 = vmatmul.bf16.gmra.mxu0 %v1609
  %v3534 = vpop.f32.mrf.mxu0
  %v3535 = vadd.f32 %v3366, %v3534
  %v3536 = vpop.f32.mrf.mxu0
  %v3537 = vadd.f32 %v3368, %v3536
  %3538 = vmatmul.bf16.gmra.mxu0 %v1618
  %v3539 = vpop.f32.mrf.mxu0
  %v3540 = vadd.f32 %v3371, %v3539
  %v3541 = vpop.f32.mrf.mxu0
  %v3542 = vadd.f32 %v3373, %v3541
  %3543 = vmatmul.bf16.gmra.mxu0 %v1627
  %v3544 = vpop.f32.mrf.mxu0
  %v3545 = vadd.f32 %v3376, %v3544
  %v3546 = vpop.f32.mrf.mxu0
  %v3547 = vadd.f32 %v3378, %v3546
  %3548 = vmatmul.bf16.gmra.mxu0 %v1636
  %v3549 = vpop.f32.mrf.mxu0
  %v3550 = vadd.f32 %v3381, %v3549
  %v3551 = vpop.f32.mrf.mxu0
  %v3552 = vadd.f32 %v3383, %v3551
  %3553 = vmatmul.bf16.gmra.mxu0 %v1645
  %v3554 = vpop.f32.mrf.mxu0
  %v3555 = vadd.f32 %v3386, %v3554
  %v3556 = vpop.f32.mrf.mxu0
  %v3557 = vadd.f32 %v3388, %v3556
  %3558 = vmatmul.bf16.gmra.mxu0 %v1654
  %v3559 = vpop.f32.mrf.mxu0
  %v3560 = vadd.f32 %v3391, %v3559
  %v3561 = vpop.f32.mrf.mxu0
  %v3562 = vadd.f32 %v3393, %v3561
  %3563 = vmatmul.bf16.gmra.mxu0 %v1663
  %v3564 = vpop.f32.mrf.mxu0
  %v3565 = vadd.f32 %v3396, %v3564
  %v3566 = vpop.f32.mrf.mxu0
  %v3567 = vadd.f32 %v3398, %v3566
  %3568 = vdwg.mxu0
  %3569 = vmatpush.bf16.msra.mxu0 %v2305
  %3570 = vmatpush.bf16.msra.mxu0 %v2304
  %3571 = vmatpush.bf16.msra.mxu0 %v2303
  %3572 = vmatpush.bf16.msra.mxu0 %v2302
  %3573 = vmatpush.bf16.msra.mxu0 %v2301
  %3574 = vmatpush.bf16.msra.mxu0 %v2300
  %3575 = vmatpush.bf16.msra.mxu0 %v2299
  %3576 = vmatpush.bf16.msra.mxu0 %v2298
  %3577 = vmatmul.bf16.gmra.mxu0 %v1385
  %v3578 = vpop.f32.mrf.mxu0
  %v3579 = vadd.f32 %v3410, %v3578
  %v3580 = vpop.f32.mrf.mxu0
  %v3581 = vadd.f32 %v3412, %v3580
  %3582 = vmatmul.bf16.gmra.mxu0 %v1394
  %v3583 = vpop.f32.mrf.mxu0
  %v3584 = vadd.f32 %v3415, %v3583
  %v3585 = vpop.f32.mrf.mxu0
  %v3586 = vadd.f32 %v3417, %v3585
  %3587 = vmatmul.bf16.gmra.mxu0 %v1403
  %v3588 = vpop.f32.mrf.mxu0
  %v3589 = vadd.f32 %v3420, %v3588
  %v3590 = vpop.f32.mrf.mxu0
  %v3591 = vadd.f32 %v3422, %v3590
  %3592 = vmatmul.bf16.gmra.mxu0 %v1412
  %v3593 = vpop.f32.mrf.mxu0
  %v3594 = vadd.f32 %v3425, %v3593
  %v3595 = vpop.f32.mrf.mxu0
  %v3596 = vadd.f32 %v3427, %v3595
  %3597 = vmatmul.bf16.gmra.mxu0 %v1421
  %v3598 = vpop.f32.mrf.mxu0
  %v3599 = vadd.f32 %v3430, %v3598
  %v3600 = vpop.f32.mrf.mxu0
  %v3601 = vadd.f32 %v3432, %v3600
  %3602 = vmatmul.bf16.gmra.mxu0 %v1430
  %v3603 = vpop.f32.mrf.mxu0
  %v3604 = vadd.f32 %v3435, %v3603
  %v3605 = vpop.f32.mrf.mxu0
  %v3606 = vadd.f32 %v3437, %v3605
  %3607 = vmatmul.bf16.gmra.mxu0 %v1439
  %v3608 = vpop.f32.mrf.mxu0
  %v3609 = vadd.f32 %v3440, %v3608
  %v3610 = vpop.f32.mrf.mxu0
  %v3611 = vadd.f32 %v3442, %v3610
  %3612 = vmatmul.bf16.gmra.mxu0 %v1448
  %v3613 = vpop.f32.mrf.mxu0
  %v3614 = vadd.f32 %v3445, %v3613
  %v3615 = vpop.f32.mrf.mxu0
  %v3616 = vadd.f32 %v3447, %v3615
  %3617 = vmatmul.bf16.gmra.mxu0 %v1457
  %v3618 = vpop.f32.mrf.mxu0
  %v3619 = vadd.f32 %v3450, %v3618
  %v3620 = vpop.f32.mrf.mxu0
  %v3621 = vadd.f32 %v3452, %v3620
  %3622 = vmatmul.bf16.gmra.mxu0 %v1466
  %v3623 = vpop.f32.mrf.mxu0
  %v3624 = vadd.f32 %v3455, %v3623
  %v3625 = vpop.f32.mrf.mxu0
  %v3626 = vadd.f32 %v3457, %v3625
  %3627 = vmatmul.bf16.gmra.mxu0 %v1475
  %v3628 = vpop.f32.mrf.mxu0
  %v3629 = vadd.f32 %v3460, %v3628
  %v3630 = vpop.f32.mrf.mxu0
  %v3631 = vadd.f32 %v3462, %v3630
  %3632 = vmatmul.bf16.gmra.mxu0 %v1484
  %v3633 = vpop.f32.mrf.mxu0
  %v3634 = vadd.f32 %v3465, %v3633
  %v3635 = vpop.f32.mrf.mxu0
  %v3636 = vadd.f32 %v3467, %v3635
  %3637 = vmatmul.bf16.gmra.mxu0 %v1493
  %v3638 = vpop.f32.mrf.mxu0
  %v3639 = vadd.f32 %v3470, %v3638
  %v3640 = vpop.f32.mrf.mxu0
  %v3641 = vadd.f32 %v3472, %v3640
  %3642 = vmatmul.bf16.gmra.mxu0 %v1502
  %v3643 = vpop.f32.mrf.mxu0
  %v3644 = vadd.f32 %v3475, %v3643
  %v3645 = vpop.f32.mrf.mxu0
  %v3646 = vadd.f32 %v3477, %v3645
  %3647 = vmatmul.bf16.gmra.mxu0 %v1511
  %v3648 = vpop.f32.mrf.mxu0
  %v3649 = vadd.f32 %v3480, %v3648
  %v3650 = vpop.f32.mrf.mxu0
  %v3651 = vadd.f32 %v3482, %v3650
  %3652 = vmatmul.bf16.gmra.mxu0 %v1520
  %v3653 = vpop.f32.mrf.mxu0
  %v3654 = vadd.f32 %v3485, %v3653
  %v3655 = vpop.f32.mrf.mxu0
  %v3656 = vadd.f32 %v3487, %v3655
  %3657 = vmatmul.bf16.gmra.mxu0 %v1529
  %v3658 = vpop.f32.mrf.mxu0
  %v3659 = vadd.f32 %v3490, %v3658
  %v3660 = vpop.f32.mrf.mxu0
  %v3661 = vadd.f32 %v3492, %v3660
  %3662 = vmatmul.bf16.gmra.mxu0 %v1538
  %v3663 = vpop.f32.mrf.mxu0
  %v3664 = vadd.f32 %v3495, %v3663
  %v3665 = vpop.f32.mrf.mxu0
  %v3666 = vadd.f32 %v3497, %v3665
  %3667 = vmatmul.bf16.gmra.mxu0 %v1547
  %v3668 = vpop.f32.mrf.mxu0
  %v3669 = vadd.f32 %v3500, %v3668
  %v3670 = vpop.f32.mrf.mxu0
  %v3671 = vadd.f32 %v3502, %v3670
  %3672 = vmatmul.bf16.gmra.mxu0 %v1556
  %v3673 = vpop.f32.mrf.mxu0
  %v3674 = vadd.f32 %v3505, %v3673
  %v3675 = vpop.f32.mrf.mxu0
  %v3676 = vadd.f32 %v3507, %v3675
  %3677 = vmatmul.bf16.gmra.mxu0 %v1565
  %v3678 = vpop.f32.mrf.mxu0
  %v3679 = vadd.f32 %v3510, %v3678
  %v3680 = vpop.f32.mrf.mxu0
  %v3681 = vadd.f32 %v3512, %v3680
  %3682 = vmatmul.bf16.gmra.mxu0 %v1574
  %v3683 = vpop.f32.mrf.mxu0
  %v3684 = vadd.f32 %v3515, %v3683
  %v3685 = vpop.f32.mrf.mxu0
  %v3686 = vadd.f32 %v3517, %v3685
  %3687 = vmatmul.bf16.gmra.mxu0 %v1583
  %v3688 = vpop.f32.mrf.mxu0
  %v3689 = vadd.f32 %v3520, %v3688
  %v3690 = vpop.f32.mrf.mxu0
  %v3691 = vadd.f32 %v3522, %v3690
  %3692 = vmatmul.bf16.gmra.mxu0 %v1592
  %v3693 = vpop.f32.mrf.mxu0
  %v3694 = vadd.f32 %v3525, %v3693
  %v3695 = vpop.f32.mrf.mxu0
  %v3696 = vadd.f32 %v3527, %v3695
  %3697 = vmatmul.bf16.gmra.mxu0 %v1601
  %v3698 = vpop.f32.mrf.mxu0
  %v3699 = vadd.f32 %v3530, %v3698
  %v3700 = vpop.f32.mrf.mxu0
  %v3701 = vadd.f32 %v3532, %v3700
  %3702 = vmatmul.bf16.gmra.mxu0 %v1610
  %v3703 = vpop.f32.mrf.mxu0
  %v3704 = vadd.f32 %v3535, %v3703
  %v3705 = vpop.f32.mrf.mxu0
  %v3706 = vadd.f32 %v3537, %v3705
  %3707 = vmatmul.bf16.gmra.mxu0 %v1619
  %v3708 = vpop.f32.mrf.mxu0
  %v3709 = vadd.f32 %v3540, %v3708
  %v3710 = vpop.f32.mrf.mxu0
  %v3711 = vadd.f32 %v3542, %v3710
  %3712 = vmatmul.bf16.gmra.mxu0 %v1628
  %v3713 = vpop.f32.mrf.mxu0
  %v3714 = vadd.f32 %v3545, %v3713
  %v3715 = vpop.f32.mrf.mxu0
  %v3716 = vadd.f32 %v3547, %v3715
  %3717 = vmatmul.bf16.gmra.mxu0 %v1637
  %v3718 = vpop.f32.mrf.mxu0
  %v3719 = vadd.f32 %v3550, %v3718
  %v3720 = vpop.f32.mrf.mxu0
  %v3721 = vadd.f32 %v3552, %v3720
  %3722 = vmatmul.bf16.gmra.mxu0 %v1646
  %v3723 = vpop.f32.mrf.mxu0
  %v3724 = vadd.f32 %v3555, %v3723
  %v3725 = vpop.f32.mrf.mxu0
  %v3726 = vadd.f32 %v3557, %v3725
  %3727 = vmatmul.bf16.gmra.mxu0 %v1655
  %v3728 = vpop.f32.mrf.mxu0
  %v3729 = vadd.f32 %v3560, %v3728
  %v3730 = vpop.f32.mrf.mxu0
  %v3731 = vadd.f32 %v3562, %v3730
  %3732 = vmatmul.bf16.gmra.mxu0 %v1664
  %v3733 = vpop.f32.mrf.mxu0
  %v3734 = vadd.f32 %v3565, %v3733
  %v3735 = vpop.f32.mrf.mxu0
  %v3736 = vadd.f32 %v3567, %v3735
  %3737 = vdwg.mxu0
  %3738 = vmatpush.bf16.msra.mxu0 %v2313
  %3739 = vmatpush.bf16.msra.mxu0 %v2312
  %3740 = vmatpush.bf16.msra.mxu0 %v2311
  %3741 = vmatpush.bf16.msra.mxu0 %v2310
  %3742 = vmatpush.bf16.msra.mxu0 %v2309
  %3743 = vmatpush.bf16.msra.mxu0 %v2308
  %3744 = vmatpush.bf16.msra.mxu0 %v2307
  %3745 = vmatpush.bf16.msra.mxu0 %v2306
  %3746 = vmatmul.bf16.gmra.mxu0 %v1386
  %v3747 = vpop.f32.mrf.mxu0
  %v3748 = vadd.f32 %v3579, %v3747
  %v3749 = vpop.f32.mrf.mxu0
  %v3750 = vadd.f32 %v3581, %v3749
  %3751 = vmatmul.bf16.gmra.mxu0 %v1395
  %v3752 = vpop.f32.mrf.mxu0
  %v3753 = vadd.f32 %v3584, %v3752
  %v3754 = vpop.f32.mrf.mxu0
  %v3755 = vadd.f32 %v3586, %v3754
  %3756 = vmatmul.bf16.gmra.mxu0 %v1404
  %v3757 = vpop.f32.mrf.mxu0
  %v3758 = vadd.f32 %v3589, %v3757
  %v3759 = vpop.f32.mrf.mxu0
  %v3760 = vadd.f32 %v3591, %v3759
  %3761 = vmatmul.bf16.gmra.mxu0 %v1413
  %v3762 = vpop.f32.mrf.mxu0
  %v3763 = vadd.f32 %v3594, %v3762
  %v3764 = vpop.f32.mrf.mxu0
  %v3765 = vadd.f32 %v3596, %v3764
  %3766 = vmatmul.bf16.gmra.mxu0 %v1422
  %v3767 = vpop.f32.mrf.mxu0
  %v3768 = vadd.f32 %v3599, %v3767
  %v3769 = vpop.f32.mrf.mxu0
  %v3770 = vadd.f32 %v3601, %v3769
  %3771 = vmatmul.bf16.gmra.mxu0 %v1431
  %v3772 = vpop.f32.mrf.mxu0
  %v3773 = vadd.f32 %v3604, %v3772
  %v3774 = vpop.f32.mrf.mxu0
  %v3775 = vadd.f32 %v3606, %v3774
  %3776 = vmatmul.bf16.gmra.mxu0 %v1440
  %v3777 = vpop.f32.mrf.mxu0
  %v3778 = vadd.f32 %v3609, %v3777
  %v3779 = vpop.f32.mrf.mxu0
  %v3780 = vadd.f32 %v3611, %v3779
  %3781 = vmatmul.bf16.gmra.mxu0 %v1449
  %v3782 = vpop.f32.mrf.mxu0
  %v3783 = vadd.f32 %v3614, %v3782
  %v3784 = vpop.f32.mrf.mxu0
  %v3785 = vadd.f32 %v3616, %v3784
  %3786 = vmatmul.bf16.gmra.mxu0 %v1458
  %v3787 = vpop.f32.mrf.mxu0
  %v3788 = vadd.f32 %v3619, %v3787
  %v3789 = vpop.f32.mrf.mxu0
  %v3790 = vadd.f32 %v3621, %v3789
  %3791 = vmatmul.bf16.gmra.mxu0 %v1467
  %v3792 = vpop.f32.mrf.mxu0
  %v3793 = vadd.f32 %v3624, %v3792
  %v3794 = vpop.f32.mrf.mxu0
  %v3795 = vadd.f32 %v3626, %v3794
  %3796 = vmatmul.bf16.gmra.mxu0 %v1476
  %v3797 = vpop.f32.mrf.mxu0
  %v3798 = vadd.f32 %v3629, %v3797
  %v3799 = vpop.f32.mrf.mxu0
  %v3800 = vadd.f32 %v3631, %v3799
  %3801 = vmatmul.bf16.gmra.mxu0 %v1485
  %v3802 = vpop.f32.mrf.mxu0
  %v3803 = vadd.f32 %v3634, %v3802
  %v3804 = vpop.f32.mrf.mxu0
  %v3805 = vadd.f32 %v3636, %v3804
  %3806 = vmatmul.bf16.gmra.mxu0 %v1494
  %v3807 = vpop.f32.mrf.mxu0
  %v3808 = vadd.f32 %v3639, %v3807
  %v3809 = vpop.f32.mrf.mxu0
  %v3810 = vadd.f32 %v3641, %v3809
  %3811 = vmatmul.bf16.gmra.mxu0 %v1503
  %v3812 = vpop.f32.mrf.mxu0
  %v3813 = vadd.f32 %v3644, %v3812
  %v3814 = vpop.f32.mrf.mxu0
  %v3815 = vadd.f32 %v3646, %v3814
  %3816 = vmatmul.bf16.gmra.mxu0 %v1512
  %v3817 = vpop.f32.mrf.mxu0
  %v3818 = vadd.f32 %v3649, %v3817
  %v3819 = vpop.f32.mrf.mxu0
  %v3820 = vadd.f32 %v3651, %v3819
  %3821 = vmatmul.bf16.gmra.mxu0 %v1521
  %v3822 = vpop.f32.mrf.mxu0
  %v3823 = vadd.f32 %v3654, %v3822
  %v3824 = vpop.f32.mrf.mxu0
  %v3825 = vadd.f32 %v3656, %v3824
  %3826 = vmatmul.bf16.gmra.mxu0 %v1530
  %v3827 = vpop.f32.mrf.mxu0
  %v3828 = vadd.f32 %v3659, %v3827
  %v3829 = vpop.f32.mrf.mxu0
  %v3830 = vadd.f32 %v3661, %v3829
  %3831 = vmatmul.bf16.gmra.mxu0 %v1539
  %v3832 = vpop.f32.mrf.mxu0
  %v3833 = vadd.f32 %v3664, %v3832
  %v3834 = vpop.f32.mrf.mxu0
  %v3835 = vadd.f32 %v3666, %v3834
  %3836 = vmatmul.bf16.gmra.mxu0 %v1548
  %v3837 = vpop.f32.mrf.mxu0
  %v3838 = vadd.f32 %v3669, %v3837
  %v3839 = vpop.f32.mrf.mxu0
  %v3840 = vadd.f32 %v3671, %v3839
  %3841 = vmatmul.bf16.gmra.mxu0 %v1557
  %v3842 = vpop.f32.mrf.mxu0
  %v3843 = vadd.f32 %v3674, %v3842
  %v3844 = vpop.f32.mrf.mxu0
  %v3845 = vadd.f32 %v3676, %v3844
  %3846 = vmatmul.bf16.gmra.mxu0 %v1566
  %v3847 = vpop.f32.mrf.mxu0
  %v3848 = vadd.f32 %v3679, %v3847
  %v3849 = vpop.f32.mrf.mxu0
  %v3850 = vadd.f32 %v3681, %v3849
  %3851 = vmatmul.bf16.gmra.mxu0 %v1575
  %v3852 = vpop.f32.mrf.mxu0
  %v3853 = vadd.f32 %v3684, %v3852
  %v3854 = vpop.f32.mrf.mxu0
  %v3855 = vadd.f32 %v3686, %v3854
  %3856 = vmatmul.bf16.gmra.mxu0 %v1584
  %v3857 = vpop.f32.mrf.mxu0
  %v3858 = vadd.f32 %v3689, %v3857
  %v3859 = vpop.f32.mrf.mxu0
  %v3860 = vadd.f32 %v3691, %v3859
  %3861 = vmatmul.bf16.gmra.mxu0 %v1593
  %v3862 = vpop.f32.mrf.mxu0
  %v3863 = vadd.f32 %v3694, %v3862
  %v3864 = vpop.f32.mrf.mxu0
  %v3865 = vadd.f32 %v3696, %v3864
  %3866 = vmatmul.bf16.gmra.mxu0 %v1602
  %v3867 = vpop.f32.mrf.mxu0
  %v3868 = vadd.f32 %v3699, %v3867
  %v3869 = vpop.f32.mrf.mxu0
  %v3870 = vadd.f32 %v3701, %v3869
  %3871 = vmatmul.bf16.gmra.mxu0 %v1611
  %v3872 = vpop.f32.mrf.mxu0
  %v3873 = vadd.f32 %v3704, %v3872
  %v3874 = vpop.f32.mrf.mxu0
  %v3875 = vadd.f32 %v3706, %v3874
  %3876 = vmatmul.bf16.gmra.mxu0 %v1620
  %v3877 = vpop.f32.mrf.mxu0
  %v3878 = vadd.f32 %v3709, %v3877
  %v3879 = vpop.f32.mrf.mxu0
  %v3880 = vadd.f32 %v3711, %v3879
  %3881 = vmatmul.bf16.gmra.mxu0 %v1629
  %v3882 = vpop.f32.mrf.mxu0
  %v3883 = vadd.f32 %v3714, %v3882
  %v3884 = vpop.f32.mrf.mxu0
  %v3885 = vadd.f32 %v3716, %v3884
  %3886 = vmatmul.bf16.gmra.mxu0 %v1638
  %v3887 = vpop.f32.mrf.mxu0
  %v3888 = vadd.f32 %v3719, %v3887
  %v3889 = vpop.f32.mrf.mxu0
  %v3890 = vadd.f32 %v3721, %v3889
  %3891 = vmatmul.bf16.gmra.mxu0 %v1647
  %v3892 = vpop.f32.mrf.mxu0
  %v3893 = vadd.f32 %v3724, %v3892
  %v3894 = vpop.f32.mrf.mxu0
  %v3895 = vadd.f32 %v3726, %v3894
  %3896 = vmatmul.bf16.gmra.mxu0 %v1656
  %v3897 = vpop.f32.mrf.mxu0
  %v3898 = vadd.f32 %v3729, %v3897
  %v3899 = vpop.f32.mrf.mxu0
  %v3900 = vadd.f32 %v3731, %v3899
  %3901 = vmatmul.bf16.gmra.mxu0 %v1665
  %v3902 = vpop.f32.mrf.mxu0
  %v3903 = vadd.f32 %v3734, %v3902
  %v3904 = vpop.f32.mrf.mxu0
  %v3905 = vadd.f32 %v3736, %v3904
  %3906 = vdwg.mxu0
  %v3907 = vmax.f32 %v3748, 0.0
  %v3908 = vmax.f32 %v3750, 0.0
  %v3909 = vmax.f32 %v3753, 0.0
  %v3910 = vmax.f32 %v3755, 0.0
  %v3911 = vmax.f32 %v3758, 0.0
  %v3912 = vmax.f32 %v3760, 0.0
  %v3913 = vmax.f32 %v3763, 0.0
  %v3914 = vmax.f32 %v3765, 0.0
  %v3915 = vmax.f32 %v3768, 0.0
  %v3916 = vmax.f32 %v3770, 0.0
  %v3917 = vmax.f32 %v3773, 0.0
  %v3918 = vmax.f32 %v3775, 0.0
  %v3919 = vmax.f32 %v3778, 0.0
  %v3920 = vmax.f32 %v3780, 0.0
  %v3921 = vmax.f32 %v3783, 0.0
  %v3922 = vmax.f32 %v3785, 0.0
  %v3923 = vmax.f32 %v3788, 0.0
  %v3924 = vmax.f32 %v3790, 0.0
  %v3925 = vmax.f32 %v3793, 0.0
  %v3926 = vmax.f32 %v3795, 0.0
  %v3927 = vmax.f32 %v3798, 0.0
  %v3928 = vmax.f32 %v3800, 0.0
  %v3929 = vmax.f32 %v3803, 0.0
  %v3930 = vmax.f32 %v3805, 0.0
  %v3931 = vmax.f32 %v3808, 0.0
  %v3932 = vmax.f32 %v3810, 0.0
  %v3933 = vmax.f32 %v3813, 0.0
  %v3934 = vmax.f32 %v3815, 0.0
  %v3935 = vmax.f32 %v3818, 0.0
  %v3936 = vmax.f32 %v3820, 0.0
  %v3937 = vmax.f32 %v3823, 0.0
  %v3938 = vmax.f32 %v3825, 0.0
  %v3939 = vmax.f32 %v3828, 0.0
  %v3940 = vmax.f32 %v3830, 0.0
  %v3941 = vmax.f32 %v3833, 0.0
  %v3942 = vmax.f32 %v3835, 0.0
  %v3943 = vmax.f32 %v3838, 0.0
  %v3944 = vmax.f32 %v3840, 0.0
  %v3945 = vmax.f32 %v3843, 0.0
  %v3946 = vmax.f32 %v3845, 0.0
  %v3947 = vmax.f32 %v3848, 0.0
  %v3948 = vmax.f32 %v3850, 0.0
  %v3949 = vmax.f32 %v3853, 0.0
  %v3950 = vmax.f32 %v3855, 0.0
  %v3951 = vmax.f32 %v3858, 0.0
  %v3952 = vmax.f32 %v3860, 0.0
  %v3953 = vmax.f32 %v3863, 0.0
  %v3954 = vmax.f32 %v3865, 0.0
  %v3955 = vmax.f32 %v3868, 0.0
  %v3956 = vmax.f32 %v3870, 0.0
  %v3957 = vmax.f32 %v3873, 0.0
  %v3958 = vmax.f32 %v3875, 0.0
  %v3959 = vmax.f32 %v3878, 0.0
  %v3960 = vmax.f32 %v3880, 0.0
  %v3961 = vmax.f32 %v3883, 0.0
  %v3962 = vmax.f32 %v3885, 0.0
  %v3963 = vmax.f32 %v3888, 0.0
  %v3964 = vmax.f32 %v3890, 0.0
  %v3965 = vmax.f32 %v3893, 0.0
  %v3966 = vmax.f32 %v3895, 0.0
  %v3967 = vmax.f32 %v3898, 0.0
  %v3968 = vmax.f32 %v3900, 0.0
  %v3969 = vmax.f32 %v3903, 0.0
  %v3970 = vmax.f32 %v3905, 0.0
  %v3971 = vpack.c.bf16 %v3907, %v3907
  %v3972 = vpack.c.bf16 %v3908, %v3908
  %v3973 = vpack.c.bf16 %v3909, %v3909
  %v3974 = vpack.c.bf16 %v3910, %v3910
  %v3975 = vpack.c.bf16 %v3911, %v3911
  %v3976 = vpack.c.bf16 %v3912, %v3912
  %v3977 = vpack.c.bf16 %v3913, %v3913
  %v3978 = vpack.c.bf16 %v3914, %v3914
  %v3979 = vpack.c.bf16 %v3915, %v3915
  %v3980 = vpack.c.bf16 %v3916, %v3916
  %v3981 = vpack.c.bf16 %v3917, %v3917
  %v3982 = vpack.c.bf16 %v3918, %v3918
  %v3983 = vpack.c.bf16 %v3919, %v3919
  %v3984 = vpack.c.bf16 %v3920, %v3920
  %v3985 = vpack.c.bf16 %v3921, %v3921
  %v3986 = vpack.c.bf16 %v3922, %v3922
  %v3987 = vpack.c.bf16 %v3923, %v3923
  %v3988 = vpack.c.bf16 %v3924, %v3924
  %v3989 = vpack.c.bf16 %v3925, %v3925
  %v3990 = vpack.c.bf16 %v3926, %v3926
  %v3991 = vpack.c.bf16 %v3927, %v3927
  %v3992 = vpack.c.bf16 %v3928, %v3928
  %v3993 = vpack.c.bf16 %v3929, %v3929
  %v3994 = vpack.c.bf16 %v3930, %v3930
  %v3995 = vpack.c.bf16 %v3931, %v3931
  %v3996 = vpack.c.bf16 %v3932, %v3932
  %v3997 = vpack.c.bf16 %v3933, %v3933
  %v3998 = vpack.c.bf16 %v3934, %v3934
  %v3999 = vpack.c.bf16 %v3935, %v3935
  %v4000 = vpack.c.bf16 %v3936, %v3936
  %v4001 = vpack.c.bf16 %v3937, %v3937
  %v4002 = vpack.c.bf16 %v3938, %v3938
  %v4003 = vpack.c.bf16 %v3939, %v3939
  %v4004 = vpack.c.bf16 %v3940, %v3940
  %v4005 = vpack.c.bf16 %v3941, %v3941
  %v4006 = vpack.c.bf16 %v3942, %v3942
  %v4007 = vpack.c.bf16 %v3943, %v3943
  %v4008 = vpack.c.bf16 %v3944, %v3944
  %v4009 = vpack.c.bf16 %v3945, %v3945
  %v4010 = vpack.c.bf16 %v3946, %v3946
  %v4011 = vpack.c.bf16 %v3947, %v3947
  %v4012 = vpack.c.bf16 %v3948, %v3948
  %v4013 = vpack.c.bf16 %v3949, %v3949
  %v4014 = vpack.c.bf16 %v3950, %v3950
  %v4015 = vpack.c.bf16 %v3951, %v3951
  %v4016 = vpack.c.bf16 %v3952, %v3952
  %v4017 = vpack.c.bf16 %v3953, %v3953
  %v4018 = vpack.c.bf16 %v3954, %v3954
  %v4019 = vpack.c.bf16 %v3955, %v3955
  %v4020 = vpack.c.bf16 %v3956, %v3956
  %v4021 = vpack.c.bf16 %v3957, %v3957
  %v4022 = vpack.c.bf16 %v3958, %v3958
  %v4023 = vpack.c.bf16 %v3959, %v3959
  %v4024 = vpack.c.bf16 %v3960, %v3960
  %v4025 = vpack.c.bf16 %v3961, %v3961
  %v4026 = vpack.c.bf16 %v3962, %v3962
  %v4027 = vpack.c.bf16 %v3963, %v3963
  %v4028 = vpack.c.bf16 %v3964, %v3964
  %v4029 = vpack.c.bf16 %v3965, %v3965
  %v4030 = vpack.c.bf16 %v3966, %v3966
  %v4031 = vpack.c.bf16 %v3967, %v3967
  %v4032 = vpack.c.bf16 %v3968, %v3968
  %v4033 = vpack.c.bf16 %v3969, %v3969
  %v4034 = vpack.c.bf16 %v3970, %v3970
  %4035 = vst [vmem:[%s3] sm:$0xf] %v3971
  %4036 = vst [vmem:[%s3 + $0x4] sm:$0xf] %v3972
  %4037 = vst [vmem:[%s3 + $0x8] sm:$0xf] %v3973
  %4038 = vst [vmem:[%s3 + $0xc] sm:$0xf] %v3974
  %4039 = vst [vmem:[%s3 + $0x10] sm:$0xf] %v3975
  %4040 = vst [vmem:[%s3 + $0x14] sm:$0xf] %v3976
  %4041 = vst [vmem:[%s3 + $0x18] sm:$0xf] %v3977
  %4042 = vst [vmem:[%s3 + $0x1c] sm:$0xf] %v3978
  %4043 = vst [vmem:[%s3 + $0x20] sm:$0xf] %v3979
  %4044 = vst [vmem:[%s3 + $0x24] sm:$0xf] %v3980
  %4045 = vst [vmem:[%s3 + $0x28] sm:$0xf] %v3981
  %4046 = vst [vmem:[%s3 + $0x2c] sm:$0xf] %v3982
  %4047 = vst [vmem:[%s3 + $0x30] sm:$0xf] %v3983
  %4048 = vst [vmem:[%s3 + $0x34] sm:$0xf] %v3984
  %4049 = vst [vmem:[%s3 + $0x38] sm:$0xf] %v3985
  %4050 = vst [vmem:[%s3 + $0x3c] sm:$0xf] %v3986
  %4051 = vst [vmem:[%s3 + $0x40] sm:$0xf] %v3987
  %4052 = vst [vmem:[%s3 + $0x44] sm:$0xf] %v3988
  %4053 = vst [vmem:[%s3 + $0x48] sm:$0xf] %v3989
  %4054 = vst [vmem:[%s3 + $0x4c] sm:$0xf] %v3990
  %4055 = vst [vmem:[%s3 + $0x50] sm:$0xf] %v3991
  %4056 = vst [vmem:[%s3 + $0x54] sm:$0xf] %v3992
  %4057 = vst [vmem:[%s3 + $0x58] sm:$0xf] %v3993
  %4058 = vst [vmem:[%s3 + $0x5c] sm:$0xf] %v3994
  %4059 = vst [vmem:[%s3 + $0x60] sm:$0xf] %v3995
  %4060 = vst [vmem:[%s3 + $0x64] sm:$0xf] %v3996
  %4061 = vst [vmem:[%s3 + $0x68] sm:$0xf] %v3997
  %4062 = vst [vmem:[%s3 + $0x6c] sm:$0xf] %v3998
  %4063 = vst [vmem:[%s3 + $0x70] sm:$0xf] %v3999
  %4064 = vst [vmem:[%s3 + $0x74] sm:$0xf] %v4000
  %4065 = vst [vmem:[%s3 + $0x78] sm:$0xf] %v4001
  %4066 = vst [vmem:[%s3 + $0x7c] sm:$0xf] %v4002
  %4067 = vst [vmem:[%s3 + $0x80] sm:$0xf] %v4003
  %4068 = vst [vmem:[%s3 + $0x84] sm:$0xf] %v4004
  %4069 = vst [vmem:[%s3 + $0x88] sm:$0xf] %v4005
  %4070 = vst [vmem:[%s3 + $0x8c] sm:$0xf] %v4006
  %4071 = vst [vmem:[%s3 + $0x90] sm:$0xf] %v4007
  %4072 = vst [vmem:[%s3 + $0x94] sm:$0xf] %v4008
  %4073 = vst [vmem:[%s3 + $0x98] sm:$0xf] %v4009
  %4074 = vst [vmem:[%s3 + $0x9c] sm:$0xf] %v4010
  %4075 = vst [vmem:[%s3 + $0xa0] sm:$0xf] %v4011
  %4076 = vst [vmem:[%s3 + $0xa4] sm:$0xf] %v4012
  %4077 = vst [vmem:[%s3 + $0xa8] sm:$0xf] %v4013
  %4078 = vst [vmem:[%s3 + $0xac] sm:$0xf] %v4014
  %4079 = vst [vmem:[%s3 + $0xb0] sm:$0xf] %v4015
  %4080 = vst [vmem:[%s3 + $0xb4] sm:$0xf] %v4016
  %4081 = vst [vmem:[%s3 + $0xb8] sm:$0xf] %v4017
  %4082 = vst [vmem:[%s3 + $0xbc] sm:$0xf] %v4018
  %4083 = vst [vmem:[%s3 + $0xc0] sm:$0xf] %v4019
  %4084 = vst [vmem:[%s3 + $0xc4] sm:$0xf] %v4020
  %4085 = vst [vmem:[%s3 + $0xc8] sm:$0xf] %v4021
  %4086 = vst [vmem:[%s3 + $0xcc] sm:$0xf] %v4022
  %4087 = vst [vmem:[%s3 + $0xd0] sm:$0xf] %v4023
  %4088 = vst [vmem:[%s3 + $0xd4] sm:$0xf] %v4024
  %4089 = vst [vmem:[%s3 + $0xd8] sm:$0xf] %v4025
  %4090 = vst [vmem:[%s3 + $0xdc] sm:$0xf] %v4026
  %4091 = vst [vmem:[%s3 + $0xe0] sm:$0xf] %v4027
  %4092 = vst [vmem:[%s3 + $0xe4] sm:$0xf] %v4028
  %4093 = vst [vmem:[%s3 + $0xe8] sm:$0xf] %v4029
  %4094 = vst [vmem:[%s3 + $0xec] sm:$0xf] %v4030
  %4095 = vst [vmem:[%s3 + $0xf0] sm:$0xf] %v4031
  %4096 = vst [vmem:[%s3 + $0xf4] sm:$0xf] %v4032
  %4097 = vst [vmem:[%s3 + $0xf8] sm:$0xf] %v4033
  %4098 = vst [vmem:[%s3 + $0xfc] sm:$0xf] %v4034
  // Predicated region
  $region14: #{vqa_forward.4} parent=0 // pred_check
    _
  $region15: #{vqa_forward.4} parent=0 // pred_check_branch
    %4100 = sbr.rel (0) target = $region17
  $region16: #{vqa_forward.4} parent=0 // pred_region
    _
  $region17: #{vqa_forward.4} parent=0 // pred_fallthru
    _
  // Predicated region
  $region18: #{vqa_forward.4} parent=0 // pred_check
    _
  $region19: #{vqa_forward.4} parent=0 // pred_check_branch
    %4102 = sbr.rel (0) target = $region21
  $region20: #{vqa_forward.4} parent=0 // pred_region
    _
  $region21: #{vqa_forward.4} parent=0 // pred_fallthru
    _

// kernel: vqa_forward.5
$region0: #{vqa_forward.5}
  #allocation0 [shape = 'u32[]', space=smem, size = 0x4, offset = 0x4, fixed_abs, tag = 'smem constant byte address 0x4 - core index']
  #allocation1 [shape = 'u32[72,128]{1,0:T(1,128)}', space=vmem, size = 0x9000, scoped, tag = 'internal scratch']
  #allocation2 [shape = 'f32[8,8,512]{2,1,0:T(8,128)}', space=vmem, size = 0x20000, scoped, tag = 'scratch operand']
  %s0 = inlined_call_operand.vmem [shape: bf16[8,2048], index: 0, kind: input, shape index: {}]
  %s1 = inlined_call_operand.vmem [shape: bf16[2048,128], index: 1, kind: input, shape index: {}]
  %s2 = inlined_call_operand.vmem [shape: f32[1,128], index: 2, kind: input, shape index: {}]
  %s3 = inlined_call_operand.vmem [shape: bf16[128,128], index: 3, kind: input, shape index: {}]
  %s4 = inlined_call_operand.vmem [shape: f32[1,128], index: 4, kind: input, shape index: {}]
  %s5 = inlined_call_operand.vmem [shape: bf16[128,128], index: 5, kind: input, shape index: {}]
  %s6 = inlined_call_operand.vmem [shape: f32[1,128], index: 6, kind: input, shape index: {}]
  %s7 = inlined_call_operand.vmem [shape: f32[8,8,128], index: 7, kind: input, shape index: {}]
  %s8 = inlined_call_operand.vmem [shape: bf16[128,512], index: 8, kind: input, shape index: {}]
  %s9 = inlined_call_operand.vmem [shape: bf16[128,512], index: 9, kind: input, shape index: {}]
  %s10 = inlined_call_operand.vmem [shape: f32[1,512], index: 10, kind: input, shape index: {}]
  %s11 = inlined_call_operand.vmem [shape: bf16[128,128], index: 11, kind: input, shape index: {}]
  %s12 = inlined_call_operand.vmem [shape: bf16[128,128], index: 12, kind: input, shape index: {}]
  %s13 = inlined_call_operand.vmem [shape: f32[1,128], index: 13, kind: input, shape index: {}]
  %s14 = inlined_call_operand.vmem [shape: bf16[128,128], index: 14, kind: input, shape index: {}]
  %s15 = inlined_call_operand.vmem [shape: f32[1,128], index: 15, kind: input, shape index: {}]
  %s16 = inlined_call_operand.vmem [shape: bf16[128,128], index: 16, kind: input, shape index: {}]
  %s17 = inlined_call_operand.vmem [shape: f32[1,128], index: 17, kind: input, shape index: {}]
  %s18 = inlined_call_operand.vmem [shape: f32[8,128], index: 18, kind: output, shape index: {}]
  %s19 = sld [smem:[#allocation0]]
  $region82: #{vqa_forward.5} parent=0
    _
  %s21 = ssub.s32 1, %s19
  %s22 = scalar_select 0, %s21, %s19
  // Predicated region
  $region2: #{vqa_forward.5} parent=0 // pred_check
    _
  $region3: #{vqa_forward.5} parent=0 // pred_check_branch
    %24 = sbr.rel (0) target = $region5
  $region4: #{vqa_forward.5} parent=0 // pred_region
    _
  $region5: #{vqa_forward.5} parent=0 // pred_fallthru
    _
  // Predicated region
  $region6: #{vqa_forward.5} parent=0 // pred_check
    _
  $region7: #{vqa_forward.5} parent=0 // pred_check_branch
    %26 = sbr.rel (0) target = $region9
  $region8: #{vqa_forward.5} parent=0 // pred_region
    _
  $region9: #{vqa_forward.5} parent=0 // pred_fallthru
    _
  // Predicated region
  $region10: #{vqa_forward.5} parent=0 // pred_check
    _
  $region11: #{vqa_forward.5} parent=0 // pred_check_branch
    %28 = sbr.rel (0) target = $region13
  $region12: #{vqa_forward.5} parent=0 // pred_region
    _
  $region13: #{vqa_forward.5} parent=0 // pred_fallthru
    _
  // Predicated region
  $region14: #{vqa_forward.5} parent=0 // pred_check
    _
  $region15: #{vqa_forward.5} parent=0 // pred_check_branch
    %30 = sbr.rel (0) target = $region17
  $region16: #{vqa_forward.5} parent=0 // pred_region
    _
  $region17: #{vqa_forward.5} parent=0 // pred_fallthru
    _
  // Predicated region
  $region18: #{vqa_forward.5} parent=0 // pred_check
    _
  $region19: #{vqa_forward.5} parent=0 // pred_check_branch
    %32 = sbr.rel (0) target = $region21
  $region20: #{vqa_forward.5} parent=0 // pred_region
    _
  $region21: #{vqa_forward.5} parent=0 // pred_fallthru
    _
  // Predicated region
  $region22: #{vqa_forward.5} parent=0 // pred_check
    _
  $region23: #{vqa_forward.5} parent=0 // pred_check_branch
    %34 = sbr.rel (0) target = $region25
  $region24: #{vqa_forward.5} parent=0 // pred_region
    _
  $region25: #{vqa_forward.5} parent=0 // pred_fallthru
    _
  // Predicated region
  $region26: #{vqa_forward.5} parent=0 // pred_check
    _
  $region27: #{vqa_forward.5} parent=0 // pred_check_branch
    %36 = sbr.rel (0) target = $region29
  $region28: #{vqa_forward.5} parent=0 // pred_region
    _
  $region29: #{vqa_forward.5} parent=0 // pred_fallthru
    _
  // Predicated region
  $region30: #{vqa_forward.5} parent=0 // pred_check
    _
  $region31: #{vqa_forward.5} parent=0 // pred_check_branch
    %38 = sbr.rel (0) target = $region33
  $region32: #{vqa_forward.5} parent=0 // pred_region
    _
  $region33: #{vqa_forward.5} parent=0 // pred_fallthru
    _
  // Predicated region
  $region34: #{vqa_forward.5} parent=0 // pred_check
    _
  $region35: #{vqa_forward.5} parent=0 // pred_check_branch
    %40 = sbr.rel (0) target = $region37
  $region36: #{vqa_forward.5} parent=0 // pred_region
    _
  $region37: #{vqa_forward.5} parent=0 // pred_fallthru
    _
  // Predicated region
  $region38: #{vqa_forward.5} parent=0 // pred_check
    _
  $region39: #{vqa_forward.5} parent=0 // pred_check_branch
    %42 = sbr.rel (0) target = $region41
  $region40: #{vqa_forward.5} parent=0 // pred_region
    _
  $region41: #{vqa_forward.5} parent=0 // pred_fallthru
    _
  // Predicated region
  $region42: #{vqa_forward.5} parent=0 // pred_check
    _
  $region43: #{vqa_forward.5} parent=0 // pred_check_branch
    %44 = sbr.rel (0) target = $region45
  $region44: #{vqa_forward.5} parent=0 // pred_region
    _
  $region45: #{vqa_forward.5} parent=0 // pred_fallthru
    _
  // Predicated region
  $region46: #{vqa_forward.5} parent=0 // pred_check
    _
  $region47: #{vqa_forward.5} parent=0 // pred_check_branch
    %46 = sbr.rel (0) target = $region49
  $region48: #{vqa_forward.5} parent=0 // pred_region
    _
  $region49: #{vqa_forward.5} parent=0 // pred_fallthru
    _
  // Predicated region
  $region50: #{vqa_forward.5} parent=0 // pred_check
    _
  $region51: #{vqa_forward.5} parent=0 // pred_check_branch
    %48 = sbr.rel (0) target = $region53
  $region52: #{vqa_forward.5} parent=0 // pred_region
    _
  $region53: #{vqa_forward.5} parent=0 // pred_fallthru
    _
  // Predicated region
  $region54: #{vqa_forward.5} parent=0 // pred_check
    _
  $region55: #{vqa_forward.5} parent=0 // pred_check_branch
    %50 = sbr.rel (0) target = $region57
  $region56: #{vqa_forward.5} parent=0 // pred_region
    _
  $region57: #{vqa_forward.5} parent=0 // pred_fallthru
    _
  // Predicated region
  $region58: #{vqa_forward.5} parent=0 // pred_check
    _
  $region59: #{vqa_forward.5} parent=0 // pred_check_branch
    %52 = sbr.rel (0) target = $region61
  $region60: #{vqa_forward.5} parent=0 // pred_region
    _
  $region61: #{vqa_forward.5} parent=0 // pred_fallthru
    _
  // Predicated region
  $region62: #{vqa_forward.5} parent=0 // pred_check
    _
  $region63: #{vqa_forward.5} parent=0 // pred_check_branch
    %54 = sbr.rel (0) target = $region65
  $region64: #{vqa_forward.5} parent=0 // pred_region
    _
  $region65: #{vqa_forward.5} parent=0 // pred_fallthru
    _
  // Predicated region
  $region66: #{vqa_forward.5} parent=0 // pred_check
    _
  $region67: #{vqa_forward.5} parent=0 // pred_check_branch
    %56 = sbr.rel (0) target = $region69
  $region68: #{vqa_forward.5} parent=0 // pred_region
    _
  $region69: #{vqa_forward.5} parent=0 // pred_fallthru
    _
  // Predicated region
  $region70: #{vqa_forward.5} parent=0 // pred_check
    _
  $region71: #{vqa_forward.5} parent=0 // pred_check_branch
    %58 = sbr.rel (0) target = $region73
  $region72: #{vqa_forward.5} parent=0 // pred_region
    _
  $region73: #{vqa_forward.5} parent=0 // pred_fallthru
    _
  %v60 = vld [vmem:[%s0] sm:$0xff]
  %v61 = vld [vmem:[%s0 + $0x8] sm:$0xff]
  %v62 = vld [vmem:[%s0 + $0x10] sm:$0xff]
  %v63 = vld [vmem:[%s0 + $0x18] sm:$0xff]
  %v64 = vld [vmem:[%s0 + $0x20] sm:$0xff]
  %v65 = vld [vmem:[%s0 + $0x28] sm:$0xff]
  %v66 = vld [vmem:[%s0 + $0x30] sm:$0xff]
  %v67 = vld [vmem:[%s0 + $0x38] sm:$0xff]
  %v68 = vld [vmem:[%s1] sm:$0xf]
  %v69 = vld [vmem:[%s1 + $0x4] sm:$0xf]
  %v70 = vld [vmem:[%s1 + $0x8] sm:$0xf]
  %v71 = vld [vmem:[%s1 + $0xc] sm:$0xf]
  %v72 = vld [vmem:[%s1 + $0x10] sm:$0xf]
  %v73 = vld [vmem:[%s1 + $0x14] sm:$0xf]
  %v74 = vld [vmem:[%s1 + $0x18] sm:$0xf]
  %v75 = vld [vmem:[%s1 + $0x1c] sm:$0xf]
  %v76 = vld [vmem:[%s1 + $0x20] sm:$0xf]
  %v77 = vld [vmem:[%s1 + $0x24] sm:$0xf]
  %v78 = vld [vmem:[%s1 + $0x28] sm:$0xf]
  %v79 = vld [vmem:[%s1 + $0x2c] sm:$0xf]
  %v80 = vld [vmem:[%s1 + $0x30] sm:$0xf]
  %v81 = vld [vmem:[%s1 + $0x34] sm:$0xf]
  %v82 = vld [vmem:[%s1 + $0x38] sm:$0xf]
  %v83 = vld [vmem:[%s1 + $0x3c] sm:$0xf]
  %v84 = vld [vmem:[%s1 + $0x40] sm:$0xf]
  %v85 = vld [vmem:[%s1 + $0x44] sm:$0xf]
  %v86 = vld [vmem:[%s1 + $0x48] sm:$0xf]
  %v87 = vld [vmem:[%s1 + $0x4c] sm:$0xf]
  %v88 = vld [vmem:[%s1 + $0x50] sm:$0xf]
  %v89 = vld [vmem:[%s1 + $0x54] sm:$0xf]
  %v90 = vld [vmem:[%s1 + $0x58] sm:$0xf]
  %v91 = vld [vmem:[%s1 + $0x5c] sm:$0xf]
  %v92 = vld [vmem:[%s1 + $0x60] sm:$0xf]
  %v93 = vld [vmem:[%s1 + $0x64] sm:$0xf]
  %v94 = vld [vmem:[%s1 + $0x68] sm:$0xf]
  %v95 = vld [vmem:[%s1 + $0x6c] sm:$0xf]
  %v96 = vld [vmem:[%s1 + $0x70] sm:$0xf]
  %v97 = vld [vmem:[%s1 + $0x74] sm:$0xf]
  %v98 = vld [vmem:[%s1 + $0x78] sm:$0xf]
  %v99 = vld [vmem:[%s1 + $0x7c] sm:$0xf]
  %v100 = vld [vmem:[%s1 + $0x80] sm:$0xf]
  %v101 = vld [vmem:[%s1 + $0x84] sm:$0xf]
  %v102 = vld [vmem:[%s1 + $0x88] sm:$0xf]
  %v103 = vld [vmem:[%s1 + $0x8c] sm:$0xf]
  %v104 = vld [vmem:[%s1 + $0x90] sm:$0xf]
  %v105 = vld [vmem:[%s1 + $0x94] sm:$0xf]
  %v106 = vld [vmem:[%s1 + $0x98] sm:$0xf]
  %v107 = vld [vmem:[%s1 + $0x9c] sm:$0xf]
  %v108 = vld [vmem:[%s1 + $0xa0] sm:$0xf]
  %v109 = vld [vmem:[%s1 + $0xa4] sm:$0xf]
  %v110 = vld [vmem:[%s1 + $0xa8] sm:$0xf]
  %v111 = vld [vmem:[%s1 + $0xac] sm:$0xf]
  %v112 = vld [vmem:[%s1 + $0xb0] sm:$0xf]
  %v113 = vld [vmem:[%s1 + $0xb4] sm:$0xf]
  %v114 = vld [vmem:[%s1 + $0xb8] sm:$0xf]
  %v115 = vld [vmem:[%s1 + $0xbc] sm:$0xf]
  %v116 = vld [vmem:[%s1 + $0xc0] sm:$0xf]
  %v117 = vld [vmem:[%s1 + $0xc4] sm:$0xf]
  %v118 = vld [vmem:[%s1 + $0xc8] sm:$0xf]
  %v119 = vld [vmem:[%s1 + $0xcc] sm:$0xf]
  %v120 = vld [vmem:[%s1 + $0xd0] sm:$0xf]
  %v121 = vld [vmem:[%s1 + $0xd4] sm:$0xf]
  %v122 = vld [vmem:[%s1 + $0xd8] sm:$0xf]
  %v123 = vld [vmem:[%s1 + $0xdc] sm:$0xf]
  %v124 = vld [vmem:[%s1 + $0xe0] sm:$0xf]
  %v125 = vld [vmem:[%s1 + $0xe4] sm:$0xf]
  %v126 = vld [vmem:[%s1 + $0xe8] sm:$0xf]
  %v127 = vld [vmem:[%s1 + $0xec] sm:$0xf]
  %v128 = vld [vmem:[%s1 + $0xf0] sm:$0xf]
  %v129 = vld [vmem:[%s1 + $0xf4] sm:$0xf]
  %v130 = vld [vmem:[%s1 + $0xf8] sm:$0xf]
  %v131 = vld [vmem:[%s1 + $0xfc] sm:$0xf]
  %v132 = vld [vmem:[%s1 + $0x100] sm:$0xf]
  %v133 = vld [vmem:[%s1 + $0x104] sm:$0xf]
  %v134 = vld [vmem:[%s1 + $0x108] sm:$0xf]
  %v135 = vld [vmem:[%s1 + $0x10c] sm:$0xf]
  %v136 = vld [vmem:[%s1 + $0x110] sm:$0xf]
  %v137 = vld [vmem:[%s1 + $0x114] sm:$0xf]
  %v138 = vld [vmem:[%s1 + $0x118] sm:$0xf]
  %v139 = vld [vmem:[%s1 + $0x11c] sm:$0xf]
  %v140 = vld [vmem:[%s1 + $0x120] sm:$0xf]
  %v141 = vld [vmem:[%s1 + $0x124] sm:$0xf]
  %v142 = vld [vmem:[%s1 + $0x128] sm:$0xf]
  %v143 = vld [vmem:[%s1 + $0x12c] sm:$0xf]
  %v144 = vld [vmem:[%s1 + $0x130] sm:$0xf]
  %v145 = vld [vmem:[%s1 + $0x134] sm:$0xf]
  %v146 = vld [vmem:[%s1 + $0x138] sm:$0xf]
  %v147 = vld [vmem:[%s1 + $0x13c] sm:$0xf]
  %v148 = vld [vmem:[%s1 + $0x140] sm:$0xf]
  %v149 = vld [vmem:[%s1 + $0x144] sm:$0xf]
  %v150 = vld [vmem:[%s1 + $0x148] sm:$0xf]
  %v151 = vld [vmem:[%s1 + $0x14c] sm:$0xf]
  %v152 = vld [vmem:[%s1 + $0x150] sm:$0xf]
  %v153 = vld [vmem:[%s1 + $0x154] sm:$0xf]
  %v154 = vld [vmem:[%s1 + $0x158] sm:$0xf]
  %v155 = vld [vmem:[%s1 + $0x15c] sm:$0xf]
  %v156 = vld [vmem:[%s1 + $0x160] sm:$0xf]
  %v157 = vld [vmem:[%s1 + $0x164] sm:$0xf]
  %v158 = vld [vmem:[%s1 + $0x168] sm:$0xf]
  %v159 = vld [vmem:[%s1 + $0x16c] sm:$0xf]
  %v160 = vld [vmem:[%s1 + $0x170] sm:$0xf]
  %v161 = vld [vmem:[%s1 + $0x174] sm:$0xf]
  %v162 = vld [vmem:[%s1 + $0x178] sm:$0xf]
  %v163 = vld [vmem:[%s1 + $0x17c] sm:$0xf]
  %v164 = vld [vmem:[%s1 + $0x180] sm:$0xf]
  %v165 = vld [vmem:[%s1 + $0x184] sm:$0xf]
  %v166 = vld [vmem:[%s1 + $0x188] sm:$0xf]
  %v167 = vld [vmem:[%s1 + $0x18c] sm:$0xf]
  %v168 = vld [vmem:[%s1 + $0x190] sm:$0xf]
  %v169 = vld [vmem:[%s1 + $0x194] sm:$0xf]
  %v170 = vld [vmem:[%s1 + $0x198] sm:$0xf]
  %v171 = vld [vmem:[%s1 + $0x19c] sm:$0xf]
  %v172 = vld [vmem:[%s1 + $0x1a0] sm:$0xf]
  %v173 = vld [vmem:[%s1 + $0x1a4] sm:$0xf]
  %v174 = vld [vmem:[%s1 + $0x1a8] sm:$0xf]
  %v175 = vld [vmem:[%s1 + $0x1ac] sm:$0xf]
  %v176 = vld [vmem:[%s1 + $0x1b0] sm:$0xf]
  %v177 = vld [vmem:[%s1 + $0x1b4] sm:$0xf]
  %v178 = vld [vmem:[%s1 + $0x1b8] sm:$0xf]
  %v179 = vld [vmem:[%s1 + $0x1bc] sm:$0xf]
  %v180 = vld [vmem:[%s1 + $0x1c0] sm:$0xf]
  %v181 = vld [vmem:[%s1 + $0x1c4] sm:$0xf]
  %v182 = vld [vmem:[%s1 + $0x1c8] sm:$0xf]
  %v183 = vld [vmem:[%s1 + $0x1cc] sm:$0xf]
  %v184 = vld [vmem:[%s1 + $0x1d0] sm:$0xf]
  %v185 = vld [vmem:[%s1 + $0x1d4] sm:$0xf]
  %v186 = vld [vmem:[%s1 + $0x1d8] sm:$0xf]
  %v187 = vld [vmem:[%s1 + $0x1dc] sm:$0xf]
  %v188 = vld [vmem:[%s1 + $0x1e0] sm:$0xf]
  %v189 = vld [vmem:[%s1 + $0x1e4] sm:$0xf]
  %v190 = vld [vmem:[%s1 + $0x1e8] sm:$0xf]
  %v191 = vld [vmem:[%s1 + $0x1ec] sm:$0xf]
  %v192 = vld [vmem:[%s1 + $0x1f0] sm:$0xf]
  %v193 = vld [vmem:[%s1 + $0x1f4] sm:$0xf]
  %v194 = vld [vmem:[%s1 + $0x1f8] sm:$0xf]
  %v195 = vld [vmem:[%s1 + $0x1fc] sm:$0xf]
  %v196 = vld [vmem:[%s1 + $0x200] sm:$0xf]
  %v197 = vld [vmem:[%s1 + $0x204] sm:$0xf]
  %v198 = vld [vmem:[%s1 + $0x208] sm:$0xf]
  %v199 = vld [vmem:[%s1 + $0x20c] sm:$0xf]
  %v200 = vld [vmem:[%s1 + $0x210] sm:$0xf]
  %v201 = vld [vmem:[%s1 + $0x214] sm:$0xf]
  %v202 = vld [vmem:[%s1 + $0x218] sm:$0xf]
  %v203 = vld [vmem:[%s1 + $0x21c] sm:$0xf]
  %v204 = vld [vmem:[%s1 + $0x220] sm:$0xf]
  %v205 = vld [vmem:[%s1 + $0x224] sm:$0xf]
  %v206 = vld [vmem:[%s1 + $0x228] sm:$0xf]
  %v207 = vld [vmem:[%s1 + $0x22c] sm:$0xf]
  %v208 = vld [vmem:[%s1 + $0x230] sm:$0xf]
  %v209 = vld [vmem:[%s1 + $0x234] sm:$0xf]
  %v210 = vld [vmem:[%s1 + $0x238] sm:$0xf]
  %v211 = vld [vmem:[%s1 + $0x23c] sm:$0xf]
  %v212 = vld [vmem:[%s1 + $0x240] sm:$0xf]
  %v213 = vld [vmem:[%s1 + $0x244] sm:$0xf]
  %v214 = vld [vmem:[%s1 + $0x248] sm:$0xf]
  %v215 = vld [vmem:[%s1 + $0x24c] sm:$0xf]
  %v216 = vld [vmem:[%s1 + $0x250] sm:$0xf]
  %v217 = vld [vmem:[%s1 + $0x254] sm:$0xf]
  %v218 = vld [vmem:[%s1 + $0x258] sm:$0xf]
  %v219 = vld [vmem:[%s1 + $0x25c] sm:$0xf]
  %v220 = vld [vmem:[%s1 + $0x260] sm:$0xf]
  %v221 = vld [vmem:[%s1 + $0x264] sm:$0xf]
  %v222 = vld [vmem:[%s1 + $0x268] sm:$0xf]
  %v223 = vld [vmem:[%s1 + $0x26c] sm:$0xf]
  %v224 = vld [vmem:[%s1 + $0x270] sm:$0xf]
  %v225 = vld [vmem:[%s1 + $0x274] sm:$0xf]
  %v226 = vld [vmem:[%s1 + $0x278] sm:$0xf]
  %v227 = vld [vmem:[%s1 + $0x27c] sm:$0xf]
  %v228 = vld [vmem:[%s1 + $0x280] sm:$0xf]
  %v229 = vld [vmem:[%s1 + $0x284] sm:$0xf]
  %v230 = vld [vmem:[%s1 + $0x288] sm:$0xf]
  %v231 = vld [vmem:[%s1 + $0x28c] sm:$0xf]
  %v232 = vld [vmem:[%s1 + $0x290] sm:$0xf]
  %v233 = vld [vmem:[%s1 + $0x294] sm:$0xf]
  %v234 = vld [vmem:[%s1 + $0x298] sm:$0xf]
  %v235 = vld [vmem:[%s1 + $0x29c] sm:$0xf]
  %v236 = vld [vmem:[%s1 + $0x2a0] sm:$0xf]
  %v237 = vld [vmem:[%s1 + $0x2a4] sm:$0xf]
  %v238 = vld [vmem:[%s1 + $0x2a8] sm:$0xf]
  %v239 = vld [vmem:[%s1 + $0x2ac] sm:$0xf]
  %v240 = vld [vmem:[%s1 + $0x2b0] sm:$0xf]
  %v241 = vld [vmem:[%s1 + $0x2b4] sm:$0xf]
  %v242 = vld [vmem:[%s1 + $0x2b8] sm:$0xf]
  %v243 = vld [vmem:[%s1 + $0x2bc] sm:$0xf]
  %v244 = vld [vmem:[%s1 + $0x2c0] sm:$0xf]
  %v245 = vld [vmem:[%s1 + $0x2c4] sm:$0xf]
  %v246 = vld [vmem:[%s1 + $0x2c8] sm:$0xf]
  %v247 = vld [vmem:[%s1 + $0x2cc] sm:$0xf]
  %v248 = vld [vmem:[%s1 + $0x2d0] sm:$0xf]
  %v249 = vld [vmem:[%s1 + $0x2d4] sm:$0xf]
  %v250 = vld [vmem:[%s1 + $0x2d8] sm:$0xf]
  %v251 = vld [vmem:[%s1 + $0x2dc] sm:$0xf]
  %v252 = vld [vmem:[%s1 + $0x2e0] sm:$0xf]
  %v253 = vld [vmem:[%s1 + $0x2e4] sm:$0xf]
  %v254 = vld [vmem:[%s1 + $0x2e8] sm:$0xf]
  %v255 = vld [vmem:[%s1 + $0x2ec] sm:$0xf]
  %v256 = vld [vmem:[%s1 + $0x2f0] sm:$0xf]
  %v257 = vld [vmem:[%s1 + $0x2f4] sm:$0xf]
  %v258 = vld [vmem:[%s1 + $0x2f8] sm:$0xf]
  %v259 = vld [vmem:[%s1 + $0x2fc] sm:$0xf]
  %v260 = vld [vmem:[%s1 + $0x300] sm:$0xf]
  %v261 = vld [vmem:[%s1 + $0x304] sm:$0xf]
  %v262 = vld [vmem:[%s1 + $0x308] sm:$0xf]
  %v263 = vld [vmem:[%s1 + $0x30c] sm:$0xf]
  %v264 = vld [vmem:[%s1 + $0x310] sm:$0xf]
  %v265 = vld [vmem:[%s1 + $0x314] sm:$0xf]
  %v266 = vld [vmem:[%s1 + $0x318] sm:$0xf]
  %v267 = vld [vmem:[%s1 + $0x31c] sm:$0xf]
  %v268 = vld [vmem:[%s1 + $0x320] sm:$0xf]
  %v269 = vld [vmem:[%s1 + $0x324] sm:$0xf]
  %v270 = vld [vmem:[%s1 + $0x328] sm:$0xf]
  %v271 = vld [vmem:[%s1 + $0x32c] sm:$0xf]
  %v272 = vld [vmem:[%s1 + $0x330] sm:$0xf]
  %v273 = vld [vmem:[%s1 + $0x334] sm:$0xf]
  %v274 = vld [vmem:[%s1 + $0x338] sm:$0xf]
  %v275 = vld [vmem:[%s1 + $0x33c] sm:$0xf]
  %v276 = vld [vmem:[%s1 + $0x340] sm:$0xf]
  %v277 = vld [vmem:[%s1 + $0x344] sm:$0xf]
  %v278 = vld [vmem:[%s1 + $0x348] sm:$0xf]
  %v279 = vld [vmem:[%s1 + $0x34c] sm:$0xf]
  %v280 = vld [vmem:[%s1 + $0x350] sm:$0xf]
  %v281 = vld [vmem:[%s1 + $0x354] sm:$0xf]
  %v282 = vld [vmem:[%s1 + $0x358] sm:$0xf]
  %v283 = vld [vmem:[%s1 + $0x35c] sm:$0xf]
  %v284 = vld [vmem:[%s1 + $0x360] sm:$0xf]
  %v285 = vld [vmem:[%s1 + $0x364] sm:$0xf]
  %v286 = vld [vmem:[%s1 + $0x368] sm:$0xf]
  %v287 = vld [vmem:[%s1 + $0x36c] sm:$0xf]
  %v288 = vld [vmem:[%s1 + $0x370] sm:$0xf]
  %v289 = vld [vmem:[%s1 + $0x374] sm:$0xf]
  %v290 = vld [vmem:[%s1 + $0x378] sm:$0xf]
  %v291 = vld [vmem:[%s1 + $0x37c] sm:$0xf]
  %v292 = vld [vmem:[%s1 + $0x380] sm:$0xf]
  %v293 = vld [vmem:[%s1 + $0x384] sm:$0xf]
  %v294 = vld [vmem:[%s1 + $0x388] sm:$0xf]
  %v295 = vld [vmem:[%s1 + $0x38c] sm:$0xf]
  %v296 = vld [vmem:[%s1 + $0x390] sm:$0xf]
  %v297 = vld [vmem:[%s1 + $0x394] sm:$0xf]
  %v298 = vld [vmem:[%s1 + $0x398] sm:$0xf]
  %v299 = vld [vmem:[%s1 + $0x39c] sm:$0xf]
  %v300 = vld [vmem:[%s1 + $0x3a0] sm:$0xf]
  %v301 = vld [vmem:[%s1 + $0x3a4] sm:$0xf]
  %v302 = vld [vmem:[%s1 + $0x3a8] sm:$0xf]
  %v303 = vld [vmem:[%s1 + $0x3ac] sm:$0xf]
  %v304 = vld [vmem:[%s1 + $0x3b0] sm:$0xf]
  %v305 = vld [vmem:[%s1 + $0x3b4] sm:$0xf]
  %v306 = vld [vmem:[%s1 + $0x3b8] sm:$0xf]
  %v307 = vld [vmem:[%s1 + $0x3bc] sm:$0xf]
  %v308 = vld [vmem:[%s1 + $0x3c0] sm:$0xf]
  %v309 = vld [vmem:[%s1 + $0x3c4] sm:$0xf]
  %v310 = vld [vmem:[%s1 + $0x3c8] sm:$0xf]
  %v311 = vld [vmem:[%s1 + $0x3cc] sm:$0xf]
  %v312 = vld [vmem:[%s1 + $0x3d0] sm:$0xf]
  %v313 = vld [vmem:[%s1 + $0x3d4] sm:$0xf]
  %v314 = vld [vmem:[%s1 + $0x3d8] sm:$0xf]
  %v315 = vld [vmem:[%s1 + $0x3dc] sm:$0xf]
  %v316 = vld [vmem:[%s1 + $0x3e0] sm:$0xf]
  %v317 = vld [vmem:[%s1 + $0x3e4] sm:$0xf]
  %v318 = vld [vmem:[%s1 + $0x3e8] sm:$0xf]
  %v319 = vld [vmem:[%s1 + $0x3ec] sm:$0xf]
  %v320 = vld [vmem:[%s1 + $0x3f0] sm:$0xf]
  %v321 = vld [vmem:[%s1 + $0x3f4] sm:$0xf]
  %v322 = vld [vmem:[%s1 + $0x3f8] sm:$0xf]
  %v323 = vld [vmem:[%s1 + $0x3fc] sm:$0xf]
  %v324 = vld [vmem:[%s2] sm:$0x1]
  %v326 = vperm.slane %v324, 0
  %v336 = vunpack.c.l.b16 %v60
  %v337 = vunpack.c.h.b16 %v60
  %v338 = vunpack.c.l.b16 %v61
  %v339 = vunpack.c.h.b16 %v61
  %v340 = vunpack.c.l.b16 %v62
  %v341 = vunpack.c.h.b16 %v62
  %v342 = vunpack.c.l.b16 %v63
  %v343 = vunpack.c.h.b16 %v63
  %v344 = vunpack.c.l.b16 %v64
  %v345 = vunpack.c.h.b16 %v64
  %v346 = vunpack.c.l.b16 %v65
  %v347 = vunpack.c.h.b16 %v65
  %v348 = vunpack.c.l.b16 %v66
  %v349 = vunpack.c.h.b16 %v66
  %v350 = vunpack.c.l.b16 %v67
  %v351 = vunpack.c.h.b16 %v67
  %v352 = vpack.c.b16 %v336, %v336
  %v353 = vpack.c.b16 %v337, %v337
  %v354 = vpack.c.b16 %v338, %v338
  %v355 = vpack.c.b16 %v339, %v339
  %v356 = vpack.c.b16 %v340, %v340
  %v357 = vpack.c.b16 %v341, %v341
  %v358 = vpack.c.b16 %v342, %v342
  %v359 = vpack.c.b16 %v343, %v343
  %v360 = vpack.c.b16 %v344, %v344
  %v361 = vpack.c.b16 %v345, %v345
  %v362 = vpack.c.b16 %v346, %v346
  %v363 = vpack.c.b16 %v347, %v347
  %v364 = vpack.c.b16 %v348, %v348
  %v365 = vpack.c.b16 %v349, %v349
  %v366 = vpack.c.b16 %v350, %v350
  %v367 = vpack.c.b16 %v351, %v351
  %v640 = vunpack.c.l.b16 %v68
  %v641 = vunpack.c.l.b16 %v69
  %v642 = vunpack.c.l.b16 %v70
  %v643 = vunpack.c.l.b16 %v71
  %v644 = vunpack.c.l.b16 %v72
  %v645 = vunpack.c.l.b16 %v73
  %v646 = vunpack.c.l.b16 %v74
  %v647 = vunpack.c.l.b16 %v75
  %v648 = vunpack.c.l.b16 %v76
  %v649 = vunpack.c.l.b16 %v77
  %v650 = vunpack.c.l.b16 %v78
  %v651 = vunpack.c.l.b16 %v79
  %v652 = vunpack.c.l.b16 %v80
  %v653 = vunpack.c.l.b16 %v81
  %v654 = vunpack.c.l.b16 %v82
  %v655 = vunpack.c.l.b16 %v83
  %v656 = vunpack.c.l.b16 %v84
  %v657 = vunpack.c.l.b16 %v85
  %v658 = vunpack.c.l.b16 %v86
  %v659 = vunpack.c.l.b16 %v87
  %v660 = vunpack.c.l.b16 %v88
  %v661 = vunpack.c.l.b16 %v89
  %v662 = vunpack.c.l.b16 %v90
  %v663 = vunpack.c.l.b16 %v91
  %v664 = vunpack.c.l.b16 %v92
  %v665 = vunpack.c.l.b16 %v93
  %v666 = vunpack.c.l.b16 %v94
  %v667 = vunpack.c.l.b16 %v95
  %v668 = vunpack.c.l.b16 %v96
  %v669 = vunpack.c.l.b16 %v97
  %v670 = vunpack.c.l.b16 %v98
  %v671 = vunpack.c.l.b16 %v99
  %v672 = vunpack.c.l.b16 %v100
  %v673 = vunpack.c.l.b16 %v101
  %v674 = vunpack.c.l.b16 %v102
  %v675 = vunpack.c.l.b16 %v103
  %v676 = vunpack.c.l.b16 %v104
  %v677 = vunpack.c.l.b16 %v105
  %v678 = vunpack.c.l.b16 %v106
  %v679 = vunpack.c.l.b16 %v107
  %v680 = vunpack.c.l.b16 %v108
  %v681 = vunpack.c.l.b16 %v109
  %v682 = vunpack.c.l.b16 %v110
  %v683 = vunpack.c.l.b16 %v111
  %v684 = vunpack.c.l.b16 %v112
  %v685 = vunpack.c.l.b16 %v113
  %v686 = vunpack.c.l.b16 %v114
  %v687 = vunpack.c.l.b16 %v115
  %v688 = vunpack.c.l.b16 %v116
  %v689 = vunpack.c.l.b16 %v117
  %v690 = vunpack.c.l.b16 %v118
  %v691 = vunpack.c.l.b16 %v119
  %v692 = vunpack.c.l.b16 %v120
  %v693 = vunpack.c.l.b16 %v121
  %v694 = vunpack.c.l.b16 %v122
  %v695 = vunpack.c.l.b16 %v123
  %v696 = vunpack.c.l.b16 %v124
  %v697 = vunpack.c.l.b16 %v125
  %v698 = vunpack.c.l.b16 %v126
  %v699 = vunpack.c.l.b16 %v127
  %v700 = vunpack.c.l.b16 %v128
  %v701 = vunpack.c.l.b16 %v129
  %v702 = vunpack.c.l.b16 %v130
  %v703 = vunpack.c.l.b16 %v131
  %v704 = vunpack.c.l.b16 %v132
  %v705 = vunpack.c.l.b16 %v133
  %v706 = vunpack.c.l.b16 %v134
  %v707 = vunpack.c.l.b16 %v135
  %v708 = vunpack.c.l.b16 %v136
  %v709 = vunpack.c.l.b16 %v137
  %v710 = vunpack.c.l.b16 %v138
  %v711 = vunpack.c.l.b16 %v139
  %v712 = vunpack.c.l.b16 %v140
  %v713 = vunpack.c.l.b16 %v141
  %v714 = vunpack.c.l.b16 %v142
  %v715 = vunpack.c.l.b16 %v143
  %v716 = vunpack.c.l.b16 %v144
  %v717 = vunpack.c.l.b16 %v145
  %v718 = vunpack.c.l.b16 %v146
  %v719 = vunpack.c.l.b16 %v147
  %v720 = vunpack.c.l.b16 %v148
  %v721 = vunpack.c.l.b16 %v149
  %v722 = vunpack.c.l.b16 %v150
  %v723 = vunpack.c.l.b16 %v151
  %v724 = vunpack.c.l.b16 %v152
  %v725 = vunpack.c.l.b16 %v153
  %v726 = vunpack.c.l.b16 %v154
  %v727 = vunpack.c.l.b16 %v155
  %v728 = vunpack.c.l.b16 %v156
  %v729 = vunpack.c.l.b16 %v157
  %v730 = vunpack.c.l.b16 %v158
  %v731 = vunpack.c.l.b16 %v159
  %v732 = vunpack.c.l.b16 %v160
  %v733 = vunpack.c.l.b16 %v161
  %v734 = vunpack.c.l.b16 %v162
  %v735 = vunpack.c.l.b16 %v163
  %v736 = vunpack.c.l.b16 %v164
  %v737 = vunpack.c.l.b16 %v165
  %v738 = vunpack.c.l.b16 %v166
  %v739 = vunpack.c.l.b16 %v167
  %v740 = vunpack.c.l.b16 %v168
  %v741 = vunpack.c.l.b16 %v169
  %v742 = vunpack.c.l.b16 %v170
  %v743 = vunpack.c.l.b16 %v171
  %v744 = vunpack.c.l.b16 %v172
  %v745 = vunpack.c.l.b16 %v173
  %v746 = vunpack.c.l.b16 %v174
  %v747 = vunpack.c.l.b16 %v175
  %v748 = vunpack.c.l.b16 %v176
  %v749 = vunpack.c.l.b16 %v177
  %v750 = vunpack.c.l.b16 %v178
  %v751 = vunpack.c.l.b16 %v179
  %v752 = vunpack.c.l.b16 %v180
  %v753 = vunpack.c.l.b16 %v181
  %v754 = vunpack.c.l.b16 %v182
  %v755 = vunpack.c.l.b16 %v183
  %v756 = vunpack.c.l.b16 %v184
  %v757 = vunpack.c.l.b16 %v185
  %v758 = vunpack.c.l.b16 %v186
  %v759 = vunpack.c.l.b16 %v187
  %v760 = vunpack.c.l.b16 %v188
  %v761 = vunpack.c.l.b16 %v189
  %v762 = vunpack.c.l.b16 %v190
  %v763 = vunpack.c.l.b16 %v191
  %v764 = vunpack.c.l.b16 %v192
  %v765 = vunpack.c.l.b16 %v193
  %v766 = vunpack.c.l.b16 %v194
  %v767 = vunpack.c.l.b16 %v195
  %v768 = vunpack.c.l.b16 %v196
  %v769 = vunpack.c.l.b16 %v197
  %v770 = vunpack.c.l.b16 %v198
  %v771 = vunpack.c.l.b16 %v199
  %v772 = vunpack.c.l.b16 %v200
  %v773 = vunpack.c.l.b16 %v201
  %v774 = vunpack.c.l.b16 %v202
  %v775 = vunpack.c.l.b16 %v203
  %v776 = vunpack.c.l.b16 %v204
  %v777 = vunpack.c.l.b16 %v205
  %v778 = vunpack.c.l.b16 %v206
  %v779 = vunpack.c.l.b16 %v207
  %v780 = vunpack.c.l.b16 %v208
  %v781 = vunpack.c.l.b16 %v209
  %v782 = vunpack.c.l.b16 %v210
  %v783 = vunpack.c.l.b16 %v211
  %v784 = vunpack.c.l.b16 %v212
  %v785 = vunpack.c.l.b16 %v213
  %v786 = vunpack.c.l.b16 %v214
  %v787 = vunpack.c.l.b16 %v215
  %v788 = vunpack.c.l.b16 %v216
  %v789 = vunpack.c.l.b16 %v217
  %v790 = vunpack.c.l.b16 %v218
  %v791 = vunpack.c.l.b16 %v219
  %v792 = vunpack.c.l.b16 %v220
  %v793 = vunpack.c.l.b16 %v221
  %v794 = vunpack.c.l.b16 %v222
  %v795 = vunpack.c.l.b16 %v223
  %v796 = vunpack.c.l.b16 %v224
  %v797 = vunpack.c.l.b16 %v225
  %v798 = vunpack.c.l.b16 %v226
  %v799 = vunpack.c.l.b16 %v227
  %v800 = vunpack.c.l.b16 %v228
  %v801 = vunpack.c.l.b16 %v229
  %v802 = vunpack.c.l.b16 %v230
  %v803 = vunpack.c.l.b16 %v231
  %v804 = vunpack.c.l.b16 %v232
  %v805 = vunpack.c.l.b16 %v233
  %v806 = vunpack.c.l.b16 %v234
  %v807 = vunpack.c.l.b16 %v235
  %v808 = vunpack.c.l.b16 %v236
  %v809 = vunpack.c.l.b16 %v237
  %v810 = vunpack.c.l.b16 %v238
  %v811 = vunpack.c.l.b16 %v239
  %v812 = vunpack.c.l.b16 %v240
  %v813 = vunpack.c.l.b16 %v241
  %v814 = vunpack.c.l.b16 %v242
  %v815 = vunpack.c.l.b16 %v243
  %v816 = vunpack.c.l.b16 %v244
  %v817 = vunpack.c.l.b16 %v245
  %v818 = vunpack.c.l.b16 %v246
  %v819 = vunpack.c.l.b16 %v247
  %v820 = vunpack.c.l.b16 %v248
  %v821 = vunpack.c.l.b16 %v249
  %v822 = vunpack.c.l.b16 %v250
  %v823 = vunpack.c.l.b16 %v251
  %v824 = vunpack.c.l.b16 %v252
  %v825 = vunpack.c.l.b16 %v253
  %v826 = vunpack.c.l.b16 %v254
  %v827 = vunpack.c.l.b16 %v255
  %v828 = vunpack.c.l.b16 %v256
  %v829 = vunpack.c.l.b16 %v257
  %v830 = vunpack.c.l.b16 %v258
  %v831 = vunpack.c.l.b16 %v259
  %v832 = vunpack.c.l.b16 %v260
  %v833 = vunpack.c.l.b16 %v261
  %v834 = vunpack.c.l.b16 %v262
  %v835 = vunpack.c.l.b16 %v263
  %v836 = vunpack.c.l.b16 %v264
  %v837 = vunpack.c.l.b16 %v265
  %v838 = vunpack.c.l.b16 %v266
  %v839 = vunpack.c.l.b16 %v267
  %v840 = vunpack.c.l.b16 %v268
  %v841 = vunpack.c.l.b16 %v269
  %v842 = vunpack.c.l.b16 %v270
  %v843 = vunpack.c.l.b16 %v271
  %v844 = vunpack.c.l.b16 %v272
  %v845 = vunpack.c.l.b16 %v273
  %v846 = vunpack.c.l.b16 %v274
  %v847 = vunpack.c.l.b16 %v275
  %v848 = vunpack.c.l.b16 %v276
  %v849 = vunpack.c.l.b16 %v277
  %v850 = vunpack.c.l.b16 %v278
  %v851 = vunpack.c.l.b16 %v279
  %v852 = vunpack.c.l.b16 %v280
  %v853 = vunpack.c.l.b16 %v281
  %v854 = vunpack.c.l.b16 %v282
  %v855 = vunpack.c.l.b16 %v283
  %v856 = vunpack.c.l.b16 %v284
  %v857 = vunpack.c.l.b16 %v285
  %v858 = vunpack.c.l.b16 %v286
  %v859 = vunpack.c.l.b16 %v287
  %v860 = vunpack.c.l.b16 %v288
  %v861 = vunpack.c.l.b16 %v289
  %v862 = vunpack.c.l.b16 %v290
  %v863 = vunpack.c.l.b16 %v291
  %v864 = vunpack.c.l.b16 %v292
  %v865 = vunpack.c.l.b16 %v293
  %v866 = vunpack.c.l.b16 %v294
  %v867 = vunpack.c.l.b16 %v295
  %v868 = vunpack.c.l.b16 %v296
  %v869 = vunpack.c.l.b16 %v297
  %v870 = vunpack.c.l.b16 %v298
  %v871 = vunpack.c.l.b16 %v299
  %v872 = vunpack.c.l.b16 %v300
  %v873 = vunpack.c.l.b16 %v301
  %v874 = vunpack.c.l.b16 %v302
  %v875 = vunpack.c.l.b16 %v303
  %v876 = vunpack.c.l.b16 %v304
  %v877 = vunpack.c.l.b16 %v305
  %v878 = vunpack.c.l.b16 %v306
  %v879 = vunpack.c.l.b16 %v307
  %v880 = vunpack.c.l.b16 %v308
  %v881 = vunpack.c.l.b16 %v309
  %v882 = vunpack.c.l.b16 %v310
  %v883 = vunpack.c.l.b16 %v311
  %v884 = vunpack.c.l.b16 %v312
  %v885 = vunpack.c.l.b16 %v313
  %v886 = vunpack.c.l.b16 %v314
  %v887 = vunpack.c.l.b16 %v315
  %v888 = vunpack.c.l.b16 %v316
  %v889 = vunpack.c.l.b16 %v317
  %v890 = vunpack.c.l.b16 %v318
  %v891 = vunpack.c.l.b16 %v319
  %v892 = vunpack.c.l.b16 %v320
  %v893 = vunpack.c.l.b16 %v321
  %v894 = vunpack.c.l.b16 %v322
  %v895 = vunpack.c.l.b16 %v323
  %v896 = vpack.c.b16 %v641, %v640
  %v897 = vpack.c.b16 %v643, %v642
  %v898 = vpack.c.b16 %v645, %v644
  %v899 = vpack.c.b16 %v647, %v646
  %v900 = vpack.c.b16 %v649, %v648
  %v901 = vpack.c.b16 %v651, %v650
  %v902 = vpack.c.b16 %v653, %v652
  %v903 = vpack.c.b16 %v655, %v654
  %v904 = vpack.c.b16 %v657, %v656
  %v905 = vpack.c.b16 %v659, %v658
  %v906 = vpack.c.b16 %v661, %v660
  %v907 = vpack.c.b16 %v663, %v662
  %v908 = vpack.c.b16 %v665, %v664
  %v909 = vpack.c.b16 %v667, %v666
  %v910 = vpack.c.b16 %v669, %v668
  %v911 = vpack.c.b16 %v671, %v670
  %v912 = vpack.c.b16 %v673, %v672
  %v913 = vpack.c.b16 %v675, %v674
  %v914 = vpack.c.b16 %v677, %v676
  %v915 = vpack.c.b16 %v679, %v678
  %v916 = vpack.c.b16 %v681, %v680
  %v917 = vpack.c.b16 %v683, %v682
  %v918 = vpack.c.b16 %v685, %v684
  %v919 = vpack.c.b16 %v687, %v686
  %v920 = vpack.c.b16 %v689, %v688
  %v921 = vpack.c.b16 %v691, %v690
  %v922 = vpack.c.b16 %v693, %v692
  %v923 = vpack.c.b16 %v695, %v694
  %v924 = vpack.c.b16 %v697, %v696
  %v925 = vpack.c.b16 %v699, %v698
  %v926 = vpack.c.b16 %v701, %v700
  %v927 = vpack.c.b16 %v703, %v702
  %v928 = vpack.c.b16 %v705, %v704
  %v929 = vpack.c.b16 %v707, %v706
  %v930 = vpack.c.b16 %v709, %v708
  %v931 = vpack.c.b16 %v711, %v710
  %v932 = vpack.c.b16 %v713, %v712
  %v933 = vpack.c.b16 %v715, %v714
  %v934 = vpack.c.b16 %v717, %v716
  %v935 = vpack.c.b16 %v719, %v718
  %v936 = vpack.c.b16 %v721, %v720
  %v937 = vpack.c.b16 %v723, %v722
  %v938 = vpack.c.b16 %v725, %v724
  %v939 = vpack.c.b16 %v727, %v726
  %v940 = vpack.c.b16 %v729, %v728
  %v941 = vpack.c.b16 %v731, %v730
  %v942 = vpack.c.b16 %v733, %v732
  %v943 = vpack.c.b16 %v735, %v734
  %v944 = vpack.c.b16 %v737, %v736
  %v945 = vpack.c.b16 %v739, %v738
  %v946 = vpack.c.b16 %v741, %v740
  %v947 = vpack.c.b16 %v743, %v742
  %v948 = vpack.c.b16 %v745, %v744
  %v949 = vpack.c.b16 %v747, %v746
  %v950 = vpack.c.b16 %v749, %v748
  %v951 = vpack.c.b16 %v751, %v750
  %v952 = vpack.c.b16 %v753, %v752
  %v953 = vpack.c.b16 %v755, %v754
  %v954 = vpack.c.b16 %v757, %v756
  %v955 = vpack.c.b16 %v759, %v758
  %v956 = vpack.c.b16 %v761, %v760
  %v957 = vpack.c.b16 %v763, %v762
  %v958 = vpack.c.b16 %v765, %v764
  %v959 = vpack.c.b16 %v767, %v766
  %v960 = vpack.c.b16 %v769, %v768
  %v961 = vpack.c.b16 %v771, %v770
  %v962 = vpack.c.b16 %v773, %v772
  %v963 = vpack.c.b16 %v775, %v774
  %v964 = vpack.c.b16 %v777, %v776
  %v965 = vpack.c.b16 %v779, %v778
  %v966 = vpack.c.b16 %v781, %v780
  %v967 = vpack.c.b16 %v783, %v782
  %v968 = vpack.c.b16 %v785, %v784
  %v969 = vpack.c.b16 %v787, %v786
  %v970 = vpack.c.b16 %v789, %v788
  %v971 = vpack.c.b16 %v791, %v790
  %v972 = vpack.c.b16 %v793, %v792
  %v973 = vpack.c.b16 %v795, %v794
  %v974 = vpack.c.b16 %v797, %v796
  %v975 = vpack.c.b16 %v799, %v798
  %v976 = vpack.c.b16 %v801, %v800
  %v977 = vpack.c.b16 %v803, %v802
  %v978 = vpack.c.b16 %v805, %v804
  %v979 = vpack.c.b16 %v807, %v806
  %v980 = vpack.c.b16 %v809, %v808
  %v981 = vpack.c.b16 %v811, %v810
  %v982 = vpack.c.b16 %v813, %v812
  %v983 = vpack.c.b16 %v815, %v814
  %v984 = vpack.c.b16 %v817, %v816
  %v985 = vpack.c.b16 %v819, %v818
  %v986 = vpack.c.b16 %v821, %v820
  %v987 = vpack.c.b16 %v823, %v822
  %v988 = vpack.c.b16 %v825, %v824
  %v989 = vpack.c.b16 %v827, %v826
  %v990 = vpack.c.b16 %v829, %v828
  %v991 = vpack.c.b16 %v831, %v830
  %v992 = vpack.c.b16 %v833, %v832
  %v993 = vpack.c.b16 %v835, %v834
  %v994 = vpack.c.b16 %v837, %v836
  %v995 = vpack.c.b16 %v839, %v838
  %v996 = vpack.c.b16 %v841, %v840
  %v997 = vpack.c.b16 %v843, %v842
  %v998 = vpack.c.b16 %v845, %v844
  %v999 = vpack.c.b16 %v847, %v846
  %v1000 = vpack.c.b16 %v849, %v848
  %v1001 = vpack.c.b16 %v851, %v850
  %v1002 = vpack.c.b16 %v853, %v852
  %v1003 = vpack.c.b16 %v855, %v854
  %v1004 = vpack.c.b16 %v857, %v856
  %v1005 = vpack.c.b16 %v859, %v858
  %v1006 = vpack.c.b16 %v861, %v860
  %v1007 = vpack.c.b16 %v863, %v862
  %v1008 = vpack.c.b16 %v865, %v864
  %v1009 = vpack.c.b16 %v867, %v866
  %v1010 = vpack.c.b16 %v869, %v868
  %v1011 = vpack.c.b16 %v871, %v870
  %v1012 = vpack.c.b16 %v873, %v872
  %v1013 = vpack.c.b16 %v875, %v874
  %v1014 = vpack.c.b16 %v877, %v876
  %v1015 = vpack.c.b16 %v879, %v878
  %v1016 = vpack.c.b16 %v881, %v880
  %v1017 = vpack.c.b16 %v883, %v882
  %v1018 = vpack.c.b16 %v885, %v884
  %v1019 = vpack.c.b16 %v887, %v886
  %v1020 = vpack.c.b16 %v889, %v888
  %v1021 = vpack.c.b16 %v891, %v890
  %v1022 = vpack.c.b16 %v893, %v892
  %v1023 = vpack.c.b16 %v895, %v894
  %1152 = vmatpush.bf16.msra.mxu0 %v903
  %1153 = vmatpush.bf16.msra.mxu0 %v902
  %1154 = vmatpush.bf16.msra.mxu0 %v901
  %1155 = vmatpush.bf16.msra.mxu0 %v900
  %1156 = vmatpush.bf16.msra.mxu0 %v899
  %1157 = vmatpush.bf16.msra.mxu0 %v898
  %1158 = vmatpush.bf16.msra.mxu0 %v897
  %1159 = vmatpush.bf16.msra.mxu0 %v896
  %1160 = vmatmul.bf16.gmra.mxu0 %v352
  %v1161 = vpop.f32.mrf.mxu0
  %v1162 = vadd.f32 %v326, %v1161
  %v1163 = vpop.f32.mrf.mxu0
  %1164 = vdwg.mxu0
  %1165 = vmatpush.bf16.msra.mxu0 %v911
  %1166 = vmatpush.bf16.msra.mxu0 %v910
  %1167 = vmatpush.bf16.msra.mxu0 %v909
  %1168 = vmatpush.bf16.msra.mxu0 %v908
  %1169 = vmatpush.bf16.msra.mxu0 %v907
  %1170 = vmatpush.bf16.msra.mxu0 %v906
  %1171 = vmatpush.bf16.msra.mxu0 %v905
  %1172 = vmatpush.bf16.msra.mxu0 %v904
  %1173 = vmatmul.bf16.gmra.mxu0 %v353
  %v1174 = vpop.f32.mrf.mxu0
  %v1175 = vadd.f32 %v1162, %v1174
  %v1176 = vpop.f32.mrf.mxu0
  %1177 = vdwg.mxu0
  %1178 = vmatpush.bf16.msra.mxu0 %v919
  %1179 = vmatpush.bf16.msra.mxu0 %v918
  %1180 = vmatpush.bf16.msra.mxu0 %v917
  %1181 = vmatpush.bf16.msra.mxu0 %v916
  %1182 = vmatpush.bf16.msra.mxu0 %v915
  %1183 = vmatpush.bf16.msra.mxu0 %v914
  %1184 = vmatpush.bf16.msra.mxu0 %v913
  %1185 = vmatpush.bf16.msra.mxu0 %v912
  %1186 = vmatmul.bf16.gmra.mxu0 %v354
  %v1187 = vpop.f32.mrf.mxu0
  %v1188 = vadd.f32 %v1175, %v1187
  %v1189 = vpop.f32.mrf.mxu0
  %1190 = vdwg.mxu0
  %1191 = vmatpush.bf16.msra.mxu0 %v927
  %1192 = vmatpush.bf16.msra.mxu0 %v926
  %1193 = vmatpush.bf16.msra.mxu0 %v925
  %1194 = vmatpush.bf16.msra.mxu0 %v924
  %1195 = vmatpush.bf16.msra.mxu0 %v923
  %1196 = vmatpush.bf16.msra.mxu0 %v922
  %1197 = vmatpush.bf16.msra.mxu0 %v921
  %1198 = vmatpush.bf16.msra.mxu0 %v920
  %1199 = vmatmul.bf16.gmra.mxu0 %v355
  %v1200 = vpop.f32.mrf.mxu0
  %v1201 = vadd.f32 %v1188, %v1200
  %v1202 = vpop.f32.mrf.mxu0
  %1203 = vdwg.mxu0
  %1204 = vmatpush.bf16.msra.mxu0 %v935
  %1205 = vmatpush.bf16.msra.mxu0 %v934
  %1206 = vmatpush.bf16.msra.mxu0 %v933
  %1207 = vmatpush.bf16.msra.mxu0 %v932
  %1208 = vmatpush.bf16.msra.mxu0 %v931
  %1209 = vmatpush.bf16.msra.mxu0 %v930
  %1210 = vmatpush.bf16.msra.mxu0 %v929
  %1211 = vmatpush.bf16.msra.mxu0 %v928
  %1212 = vmatmul.bf16.gmra.mxu0 %v356
  %v1213 = vpop.f32.mrf.mxu0
  %v1214 = vadd.f32 %v1201, %v1213
  %v1215 = vpop.f32.mrf.mxu0
  %1216 = vdwg.mxu0
  %1217 = vmatpush.bf16.msra.mxu0 %v943
  %1218 = vmatpush.bf16.msra.mxu0 %v942
  %1219 = vmatpush.bf16.msra.mxu0 %v941
  %1220 = vmatpush.bf16.msra.mxu0 %v940
  %1221 = vmatpush.bf16.msra.mxu0 %v939
  %1222 = vmatpush.bf16.msra.mxu0 %v938
  %1223 = vmatpush.bf16.msra.mxu0 %v937
  %1224 = vmatpush.bf16.msra.mxu0 %v936
  %1225 = vmatmul.bf16.gmra.mxu0 %v357
  %v1226 = vpop.f32.mrf.mxu0
  %v1227 = vadd.f32 %v1214, %v1226
  %v1228 = vpop.f32.mrf.mxu0
  %1229 = vdwg.mxu0
  %1230 = vmatpush.bf16.msra.mxu0 %v951
  %1231 = vmatpush.bf16.msra.mxu0 %v950
  %1232 = vmatpush.bf16.msra.mxu0 %v949
  %1233 = vmatpush.bf16.msra.mxu0 %v948
  %1234 = vmatpush.bf16.msra.mxu0 %v947
  %1235 = vmatpush.bf16.msra.mxu0 %v946
  %1236 = vmatpush.bf16.msra.mxu0 %v945
  %1237 = vmatpush.bf16.msra.mxu0 %v944
  %1238 = vmatmul.bf16.gmra.mxu0 %v358
  %v1239 = vpop.f32.mrf.mxu0
  %v1240 = vadd.f32 %v1227, %v1239
  %v1241 = vpop.f32.mrf.mxu0
  %1242 = vdwg.mxu0
  %1243 = vmatpush.bf16.msra.mxu0 %v959
  %1244 = vmatpush.bf16.msra.mxu0 %v958
  %1245 = vmatpush.bf16.msra.mxu0 %v957
  %1246 = vmatpush.bf16.msra.mxu0 %v956
  %1247 = vmatpush.bf16.msra.mxu0 %v955
  %1248 = vmatpush.bf16.msra.mxu0 %v954
  %1249 = vmatpush.bf16.msra.mxu0 %v953
  %1250 = vmatpush.bf16.msra.mxu0 %v952
  %1251 = vmatmul.bf16.gmra.mxu0 %v359
  %v1252 = vpop.f32.mrf.mxu0
  %v1253 = vadd.f32 %v1240, %v1252
  %v1254 = vpop.f32.mrf.mxu0
  %1255 = vdwg.mxu0
  %1256 = vmatpush.bf16.msra.mxu0 %v967
  %1257 = vmatpush.bf16.msra.mxu0 %v966
  %1258 = vmatpush.bf16.msra.mxu0 %v965
  %1259 = vmatpush.bf16.msra.mxu0 %v964
  %1260 = vmatpush.bf16.msra.mxu0 %v963
  %1261 = vmatpush.bf16.msra.mxu0 %v962
  %1262 = vmatpush.bf16.msra.mxu0 %v961
  %1263 = vmatpush.bf16.msra.mxu0 %v960
  %1264 = vmatmul.bf16.gmra.mxu0 %v360
  %v1265 = vpop.f32.mrf.mxu0
  %v1266 = vadd.f32 %v1253, %v1265
  %v1267 = vpop.f32.mrf.mxu0
  %1268 = vdwg.mxu0
  %1269 = vmatpush.bf16.msra.mxu0 %v975
  %1270 = vmatpush.bf16.msra.mxu0 %v974
  %1271 = vmatpush.bf16.msra.mxu0 %v973
  %1272 = vmatpush.bf16.msra.mxu0 %v972
  %1273 = vmatpush.bf16.msra.mxu0 %v971
  %1274 = vmatpush.bf16.msra.mxu0 %v970
  %1275 = vmatpush.bf16.msra.mxu0 %v969
  %1276 = vmatpush.bf16.msra.mxu0 %v968
  %1277 = vmatmul.bf16.gmra.mxu0 %v361
  %v1278 = vpop.f32.mrf.mxu0
  %v1279 = vadd.f32 %v1266, %v1278
  %v1280 = vpop.f32.mrf.mxu0
  %1281 = vdwg.mxu0
  %1282 = vmatpush.bf16.msra.mxu0 %v983
  %1283 = vmatpush.bf16.msra.mxu0 %v982
  %1284 = vmatpush.bf16.msra.mxu0 %v981
  %1285 = vmatpush.bf16.msra.mxu0 %v980
  %1286 = vmatpush.bf16.msra.mxu0 %v979
  %1287 = vmatpush.bf16.msra.mxu0 %v978
  %1288 = vmatpush.bf16.msra.mxu0 %v977
  %1289 = vmatpush.bf16.msra.mxu0 %v976
  %1290 = vmatmul.bf16.gmra.mxu0 %v362
  %v1291 = vpop.f32.mrf.mxu0
  %v1292 = vadd.f32 %v1279, %v1291
  %v1293 = vpop.f32.mrf.mxu0
  %1294 = vdwg.mxu0
  %1295 = vmatpush.bf16.msra.mxu0 %v991
  %1296 = vmatpush.bf16.msra.mxu0 %v990
  %1297 = vmatpush.bf16.msra.mxu0 %v989
  %1298 = vmatpush.bf16.msra.mxu0 %v988
  %1299 = vmatpush.bf16.msra.mxu0 %v987
  %1300 = vmatpush.bf16.msra.mxu0 %v986
  %1301 = vmatpush.bf16.msra.mxu0 %v985
  %1302 = vmatpush.bf16.msra.mxu0 %v984
  %1303 = vmatmul.bf16.gmra.mxu0 %v363
  %v1304 = vpop.f32.mrf.mxu0
  %v1305 = vadd.f32 %v1292, %v1304
  %v1306 = vpop.f32.mrf.mxu0
  %1307 = vdwg.mxu0
  %1308 = vmatpush.bf16.msra.mxu0 %v999
  %1309 = vmatpush.bf16.msra.mxu0 %v998
  %1310 = vmatpush.bf16.msra.mxu0 %v997
  %1311 = vmatpush.bf16.msra.mxu0 %v996
  %1312 = vmatpush.bf16.msra.mxu0 %v995
  %1313 = vmatpush.bf16.msra.mxu0 %v994
  %1314 = vmatpush.bf16.msra.mxu0 %v993
  %1315 = vmatpush.bf16.msra.mxu0 %v992
  %1316 = vmatmul.bf16.gmra.mxu0 %v364
  %v1317 = vpop.f32.mrf.mxu0
  %v1318 = vadd.f32 %v1305, %v1317
  %v1319 = vpop.f32.mrf.mxu0
  %1320 = vdwg.mxu0
  %1321 = vmatpush.bf16.msra.mxu0 %v1007
  %1322 = vmatpush.bf16.msra.mxu0 %v1006
  %1323 = vmatpush.bf16.msra.mxu0 %v1005
  %1324 = vmatpush.bf16.msra.mxu0 %v1004
  %1325 = vmatpush.bf16.msra.mxu0 %v1003
  %1326 = vmatpush.bf16.msra.mxu0 %v1002
  %1327 = vmatpush.bf16.msra.mxu0 %v1001
  %1328 = vmatpush.bf16.msra.mxu0 %v1000
  %1329 = vmatmul.bf16.gmra.mxu0 %v365
  %v1330 = vpop.f32.mrf.mxu0
  %v1331 = vadd.f32 %v1318, %v1330
  %v1332 = vpop.f32.mrf.mxu0
  %1333 = vdwg.mxu0
  %1334 = vmatpush.bf16.msra.mxu0 %v1015
  %1335 = vmatpush.bf16.msra.mxu0 %v1014
  %1336 = vmatpush.bf16.msra.mxu0 %v1013
  %1337 = vmatpush.bf16.msra.mxu0 %v1012
  %1338 = vmatpush.bf16.msra.mxu0 %v1011
  %1339 = vmatpush.bf16.msra.mxu0 %v1010
  %1340 = vmatpush.bf16.msra.mxu0 %v1009
  %1341 = vmatpush.bf16.msra.mxu0 %v1008
  %1342 = vmatmul.bf16.gmra.mxu0 %v366
  %v1343 = vpop.f32.mrf.mxu0
  %v1344 = vadd.f32 %v1331, %v1343
  %v1345 = vpop.f32.mrf.mxu0
  %1346 = vdwg.mxu0
  %1347 = vmatpush.bf16.msra.mxu0 %v1023
  %1348 = vmatpush.bf16.msra.mxu0 %v1022
  %1349 = vmatpush.bf16.msra.mxu0 %v1021
  %1350 = vmatpush.bf16.msra.mxu0 %v1020
  %1351 = vmatpush.bf16.msra.mxu0 %v1019
  %1352 = vmatpush.bf16.msra.mxu0 %v1018
  %1353 = vmatpush.bf16.msra.mxu0 %v1017
  %1354 = vmatpush.bf16.msra.mxu0 %v1016
  %1355 = vmatmul.bf16.gmra.mxu0 %v367
  %v1356 = vpop.f32.mrf.mxu0
  %v1357 = vadd.f32 %v1344, %v1356
  %v1358 = vpop.f32.mrf.mxu0
  %1359 = vdwg.mxu0
  %v1360 = vmax.f32 %v1357, 0.0
  %v1361 = vpack.c.bf16 %v1360, %v1360
  %v1362 = vld [vmem:[%s3] sm:$0xf]
  %v1363 = vld [vmem:[%s3 + $0x4] sm:$0xf]
  %v1364 = vld [vmem:[%s3 + $0x8] sm:$0xf]
  %v1365 = vld [vmem:[%s3 + $0xc] sm:$0xf]
  %v1366 = vld [vmem:[%s3 + $0x10] sm:$0xf]
  %v1367 = vld [vmem:[%s3 + $0x14] sm:$0xf]
  %v1368 = vld [vmem:[%s3 + $0x18] sm:$0xf]
  %v1369 = vld [vmem:[%s3 + $0x1c] sm:$0xf]
  %v1370 = vld [vmem:[%s3 + $0x20] sm:$0xf]
  %v1371 = vld [vmem:[%s3 + $0x24] sm:$0xf]
  %v1372 = vld [vmem:[%s3 + $0x28] sm:$0xf]
  %v1373 = vld [vmem:[%s3 + $0x2c] sm:$0xf]
  %v1374 = vld [vmem:[%s3 + $0x30] sm:$0xf]
  %v1375 = vld [vmem:[%s3 + $0x34] sm:$0xf]
  %v1376 = vld [vmem:[%s3 + $0x38] sm:$0xf]
  %v1377 = vld [vmem:[%s3 + $0x3c] sm:$0xf]
  %v1378 = vld [vmem:[%s4] sm:$0x1]
  %v1380 = vperm.slane %v1378, 0
  %v1398 = vunpack.c.l.b16 %v1362
  %v1399 = vunpack.c.l.b16 %v1363
  %v1400 = vunpack.c.l.b16 %v1364
  %v1401 = vunpack.c.l.b16 %v1365
  %v1402 = vunpack.c.l.b16 %v1366
  %v1403 = vunpack.c.l.b16 %v1367
  %v1404 = vunpack.c.l.b16 %v1368
  %v1405 = vunpack.c.l.b16 %v1369
  %v1406 = vunpack.c.l.b16 %v1370
  %v1407 = vunpack.c.l.b16 %v1371
  %v1408 = vunpack.c.l.b16 %v1372
  %v1409 = vunpack.c.l.b16 %v1373
  %v1410 = vunpack.c.l.b16 %v1374
  %v1411 = vunpack.c.l.b16 %v1375
  %v1412 = vunpack.c.l.b16 %v1376
  %v1413 = vunpack.c.l.b16 %v1377
  %v1414 = vpack.c.b16 %v1399, %v1398
  %v1415 = vpack.c.b16 %v1401, %v1400
  %v1416 = vpack.c.b16 %v1403, %v1402
  %v1417 = vpack.c.b16 %v1405, %v1404
  %v1418 = vpack.c.b16 %v1407, %v1406
  %v1419 = vpack.c.b16 %v1409, %v1408
  %v1420 = vpack.c.b16 %v1411, %v1410
  %v1421 = vpack.c.b16 %v1413, %v1412
  %1430 = vmatpush.bf16.msra.mxu0 %v1421
  %1431 = vmatpush.bf16.msra.mxu0 %v1420
  %1432 = vmatpush.bf16.msra.mxu0 %v1419
  %1433 = vmatpush.bf16.msra.mxu0 %v1418
  %1434 = vmatpush.bf16.msra.mxu0 %v1417
  %1435 = vmatpush.bf16.msra.mxu0 %v1416
  %1436 = vmatpush.bf16.msra.mxu0 %v1415
  %1437 = vmatpush.bf16.msra.mxu0 %v1414
  %1438 = vmatmul.bf16.gmra.mxu0 %v1361
  %v1439 = vpop.f32.mrf.mxu0
  %v1440 = vadd.f32 %v1380, %v1439
  %v1441 = vpop.f32.mrf.mxu0
  %1442 = vdwg.mxu0
  %v1443 = vmax.f32 %v1440, 0.0
  %v1444 = vpack.c.bf16 %v1443, %v1443
  %v1445 = vld [vmem:[%s5] sm:$0xf]
  %v1446 = vld [vmem:[%s5 + $0x4] sm:$0xf]
  %v1447 = vld [vmem:[%s5 + $0x8] sm:$0xf]
  %v1448 = vld [vmem:[%s5 + $0xc] sm:$0xf]
  %v1449 = vld [vmem:[%s5 + $0x10] sm:$0xf]
  %v1450 = vld [vmem:[%s5 + $0x14] sm:$0xf]
  %v1451 = vld [vmem:[%s5 + $0x18] sm:$0xf]
  %v1452 = vld [vmem:[%s5 + $0x1c] sm:$0xf]
  %v1453 = vld [vmem:[%s5 + $0x20] sm:$0xf]
  %v1454 = vld [vmem:[%s5 + $0x24] sm:$0xf]
  %v1455 = vld [vmem:[%s5 + $0x28] sm:$0xf]
  %v1456 = vld [vmem:[%s5 + $0x2c] sm:$0xf]
  %v1457 = vld [vmem:[%s5 + $0x30] sm:$0xf]
  %v1458 = vld [vmem:[%s5 + $0x34] sm:$0xf]
  %v1459 = vld [vmem:[%s5 + $0x38] sm:$0xf]
  %v1460 = vld [vmem:[%s5 + $0x3c] sm:$0xf]
  %v1461 = vld [vmem:[%s6] sm:$0x1]
  %v1463 = vperm.slane %v1461, 0
  %v1481 = vunpack.c.l.b16 %v1445
  %v1482 = vunpack.c.l.b16 %v1446
  %v1483 = vunpack.c.l.b16 %v1447
  %v1484 = vunpack.c.l.b16 %v1448
  %v1485 = vunpack.c.l.b16 %v1449
  %v1486 = vunpack.c.l.b16 %v1450
  %v1487 = vunpack.c.l.b16 %v1451
  %v1488 = vunpack.c.l.b16 %v1452
  %v1489 = vunpack.c.l.b16 %v1453
  %v1490 = vunpack.c.l.b16 %v1454
  %v1491 = vunpack.c.l.b16 %v1455
  %v1492 = vunpack.c.l.b16 %v1456
  %v1493 = vunpack.c.l.b16 %v1457
  %v1494 = vunpack.c.l.b16 %v1458
  %v1495 = vunpack.c.l.b16 %v1459
  %v1496 = vunpack.c.l.b16 %v1460
  %v1497 = vpack.c.b16 %v1482, %v1481
  %v1498 = vpack.c.b16 %v1484, %v1483
  %v1499 = vpack.c.b16 %v1486, %v1485
  %v1500 = vpack.c.b16 %v1488, %v1487
  %v1501 = vpack.c.b16 %v1490, %v1489
  %v1502 = vpack.c.b16 %v1492, %v1491
  %v1503 = vpack.c.b16 %v1494, %v1493
  %v1504 = vpack.c.b16 %v1496, %v1495
  %1513 = vmatpush.bf16.msra.mxu0 %v1504
  %1514 = vmatpush.bf16.msra.mxu0 %v1503
  %1515 = vmatpush.bf16.msra.mxu0 %v1502
  %1516 = vmatpush.bf16.msra.mxu0 %v1501
  %1517 = vmatpush.bf16.msra.mxu0 %v1500
  %1518 = vmatpush.bf16.msra.mxu0 %v1499
  %1519 = vmatpush.bf16.msra.mxu0 %v1498
  %1520 = vmatpush.bf16.msra.mxu0 %v1497
  %1521 = vmatmul.bf16.gmra.mxu0 %v1444
  %v1522 = vpop.f32.mrf.mxu0
  %v1523 = vadd.f32 %v1463, %v1522
  %v1524 = vpop.f32.mrf.mxu0
  %1525 = vdwg.mxu0
  %v1526 = vmul.f32 %v1523, %v1523
  %1527 = vadd.xlane.f32.xlu0 %v1526
  %v1528 = vpop.xlane.xlu0 %1527
  %v1529 = vadd.f32 %v1528, 1e-12
  %v1530 = vrsqrt.pop %v1529
  %v1531 = vmul.f32 %v1530, %v1529
  %v1532 = vmul.f32 %v1531, %v1530
  %v1533 = vmul.f32 0.5, %v1532
  %v1534 = vsub.f32 1.5, %v1533
  %v1535 = vmul.f32 %v1530, %v1534
  %vm1536 = vweird.f32 %v1529
  %vm1537 = vweird.f32 %v1530
  %vm1538 = vmor %vm1536, %vm1537
  %v1539 = vsel %vm1538, %v1530, %v1535
  %v1540 = vmul.f32 %v1523, %v1539
  %v1541 = vld [vmem:[%s7] sm:$0xff]
  %v1542 = vld [vmem:[%s7 + $0x8] sm:$0xff]
  %v1543 = vld [vmem:[%s7 + $0x10] sm:$0xff]
  %v1544 = vld [vmem:[%s7 + $0x18] sm:$0xff]
  %v1545 = vld [vmem:[%s7 + $0x20] sm:$0xff]
  %v1546 = vld [vmem:[%s7 + $0x28] sm:$0xff]
  %v1547 = vld [vmem:[%s7 + $0x30] sm:$0xff]
  %v1548 = vld [vmem:[%s7 + $0x38] sm:$0xff]
  %v1549 = vtanh.pop %v1541
  %v1550 = vtanh.pop %v1542
  %v1551 = vtanh.pop %v1543
  %v1552 = vtanh.pop %v1544
  %v1553 = vtanh.pop %v1545
  %v1554 = vtanh.pop %v1546
  %v1555 = vtanh.pop %v1547
  %v1556 = vtanh.pop %v1548
  %v1557 = vpack.c.bf16 %v1550, %v1549
  %v1558 = vpack.c.bf16 %v1552, %v1551
  %v1559 = vpack.c.bf16 %v1554, %v1553
  %v1560 = vpack.c.bf16 %v1556, %v1555
  %v1561 = vld [vmem:[%s8] sm:$0xff]
  %v1562 = vld [vmem:[%s8 + $0x8] sm:$0xff]
  %v1563 = vld [vmem:[%s8 + $0x10] sm:$0xff]
  %v1564 = vld [vmem:[%s8 + $0x18] sm:$0xff]
  %v1565 = vld [vmem:[%s8 + $0x20] sm:$0xff]
  %v1566 = vld [vmem:[%s8 + $0x28] sm:$0xff]
  %v1567 = vld [vmem:[%s8 + $0x30] sm:$0xff]
  %v1568 = vld [vmem:[%s8 + $0x38] sm:$0xff]
  %v1569 = vld [vmem:[%s8 + $0x40] sm:$0xff]
  %v1570 = vld [vmem:[%s8 + $0x48] sm:$0xff]
  %v1571 = vld [vmem:[%s8 + $0x50] sm:$0xff]
  %v1572 = vld [vmem:[%s8 + $0x58] sm:$0xff]
  %v1573 = vld [vmem:[%s8 + $0x60] sm:$0xff]
  %v1574 = vld [vmem:[%s8 + $0x68] sm:$0xff]
  %v1575 = vld [vmem:[%s8 + $0x70] sm:$0xff]
  %v1576 = vld [vmem:[%s8 + $0x78] sm:$0xff]
  %v1577 = vld [vmem:[%s8 + $0x80] sm:$0xff]
  %v1578 = vld [vmem:[%s8 + $0x88] sm:$0xff]
  %v1579 = vld [vmem:[%s8 + $0x90] sm:$0xff]
  %v1580 = vld [vmem:[%s8 + $0x98] sm:$0xff]
  %v1581 = vld [vmem:[%s8 + $0xa0] sm:$0xff]
  %v1582 = vld [vmem:[%s8 + $0xa8] sm:$0xff]
  %v1583 = vld [vmem:[%s8 + $0xb0] sm:$0xff]
  %v1584 = vld [vmem:[%s8 + $0xb8] sm:$0xff]
  %v1585 = vld [vmem:[%s8 + $0xc0] sm:$0xff]
  %v1586 = vld [vmem:[%s8 + $0xc8] sm:$0xff]
  %v1587 = vld [vmem:[%s8 + $0xd0] sm:$0xff]
  %v1588 = vld [vmem:[%s8 + $0xd8] sm:$0xff]
  %v1589 = vld [vmem:[%s8 + $0xe0] sm:$0xff]
  %v1590 = vld [vmem:[%s8 + $0xe8] sm:$0xff]
  %v1591 = vld [vmem:[%s8 + $0xf0] sm:$0xff]
  %v1592 = vld [vmem:[%s8 + $0xf8] sm:$0xff]
  %v1593 = vld [vmem:[%s10] sm:$0xf]
  %v1595 = vperm.slane %v1593, 0
  %v1596 = vperm.slane %v1593, 1
  %v1597 = vperm.slane %v1593, 2
  %v1598 = vperm.slane %v1593, 3
  %v1635 = vunpack.c.l.b16 %v1561
  %v1636 = vunpack.c.h.b16 %v1561
  %v1637 = vunpack.c.l.b16 %v1562
  %v1638 = vunpack.c.h.b16 %v1562
  %v1639 = vunpack.c.l.b16 %v1563
  %v1640 = vunpack.c.h.b16 %v1563
  %v1641 = vunpack.c.l.b16 %v1564
  %v1642 = vunpack.c.h.b16 %v1564
  %v1643 = vunpack.c.l.b16 %v1565
  %v1644 = vunpack.c.h.b16 %v1565
  %v1645 = vunpack.c.l.b16 %v1566
  %v1646 = vunpack.c.h.b16 %v1566
  %v1647 = vunpack.c.l.b16 %v1567
  %v1648 = vunpack.c.h.b16 %v1567
  %v1649 = vunpack.c.l.b16 %v1568
  %v1650 = vunpack.c.h.b16 %v1568
  %v1651 = vunpack.c.l.b16 %v1569
  %v1652 = vunpack.c.h.b16 %v1569
  %v1653 = vunpack.c.l.b16 %v1570
  %v1654 = vunpack.c.h.b16 %v1570
  %v1655 = vunpack.c.l.b16 %v1571
  %v1656 = vunpack.c.h.b16 %v1571
  %v1657 = vunpack.c.l.b16 %v1572
  %v1658 = vunpack.c.h.b16 %v1572
  %v1659 = vunpack.c.l.b16 %v1573
  %v1660 = vunpack.c.h.b16 %v1573
  %v1661 = vunpack.c.l.b16 %v1574
  %v1662 = vunpack.c.h.b16 %v1574
  %v1663 = vunpack.c.l.b16 %v1575
  %v1664 = vunpack.c.h.b16 %v1575
  %v1665 = vunpack.c.l.b16 %v1576
  %v1666 = vunpack.c.h.b16 %v1576
  %v1667 = vunpack.c.l.b16 %v1577
  %v1668 = vunpack.c.h.b16 %v1577
  %v1669 = vunpack.c.l.b16 %v1578
  %v1670 = vunpack.c.h.b16 %v1578
  %v1671 = vunpack.c.l.b16 %v1579
  %v1672 = vunpack.c.h.b16 %v1579
  %v1673 = vunpack.c.l.b16 %v1580
  %v1674 = vunpack.c.h.b16 %v1580
  %v1675 = vunpack.c.l.b16 %v1581
  %v1676 = vunpack.c.h.b16 %v1581
  %v1677 = vunpack.c.l.b16 %v1582
  %v1678 = vunpack.c.h.b16 %v1582
  %v1679 = vunpack.c.l.b16 %v1583
  %v1680 = vunpack.c.h.b16 %v1583
  %v1681 = vunpack.c.l.b16 %v1584
  %v1682 = vunpack.c.h.b16 %v1584
  %v1683 = vunpack.c.l.b16 %v1585
  %v1684 = vunpack.c.h.b16 %v1585
  %v1685 = vunpack.c.l.b16 %v1586
  %v1686 = vunpack.c.h.b16 %v1586
  %v1687 = vunpack.c.l.b16 %v1587
  %v1688 = vunpack.c.h.b16 %v1587
  %v1689 = vunpack.c.l.b16 %v1588
  %v1690 = vunpack.c.h.b16 %v1588
  %v1691 = vunpack.c.l.b16 %v1589
  %v1692 = vunpack.c.h.b16 %v1589
  %v1693 = vunpack.c.l.b16 %v1590
  %v1694 = vunpack.c.h.b16 %v1590
  %v1695 = vunpack.c.l.b16 %v1591
  %v1696 = vunpack.c.h.b16 %v1591
  %v1697 = vunpack.c.l.b16 %v1592
  %v1698 = vunpack.c.h.b16 %v1592
  %v1699 = vpack.c.b16 %v1639, %v1635
  %v1700 = vpack.c.b16 %v1640, %v1636
  %v1701 = vpack.c.b16 %v1641, %v1637
  %v1702 = vpack.c.b16 %v1642, %v1638
  %v1703 = vpack.c.b16 %v1647, %v1643
  %v1704 = vpack.c.b16 %v1648, %v1644
  %v1705 = vpack.c.b16 %v1649, %v1645
  %v1706 = vpack.c.b16 %v1650, %v1646
  %v1707 = vpack.c.b16 %v1655, %v1651
  %v1708 = vpack.c.b16 %v1656, %v1652
  %v1709 = vpack.c.b16 %v1657, %v1653
  %v1710 = vpack.c.b16 %v1658, %v1654
  %v1711 = vpack.c.b16 %v1663, %v1659
  %v1712 = vpack.c.b16 %v1664, %v1660
  %v1713 = vpack.c.b16 %v1665, %v1661
  %v1714 = vpack.c.b16 %v1666, %v1662
  %v1715 = vpack.c.b16 %v1671, %v1667
  %v1716 = vpack.c.b16 %v1672, %v1668
  %v1717 = vpack.c.b16 %v1673, %v1669
  %v1718 = vpack.c.b16 %v1674, %v1670
  %v1719 = vpack.c.b16 %v1679, %v1675
  %v1720 = vpack.c.b16 %v1680, %v1676
  %v1721 = vpack.c.b16 %v1681, %v1677
  %v1722 = vpack.c.b16 %v1682, %v1678
  %v1723 = vpack.c.b16 %v1687, %v1683
  %v1724 = vpack.c.b16 %v1688, %v1684
  %v1725 = vpack.c.b16 %v1689, %v1685
  %v1726 = vpack.c.b16 %v1690, %v1686
  %v1727 = vpack.c.b16 %v1695, %v1691
  %v1728 = vpack.c.b16 %v1696, %v1692
  %v1729 = vpack.c.b16 %v1697, %v1693
  %v1730 = vpack.c.b16 %v1698, %v1694
  %1763 = vmatpush.bf16.msra.mxu0 %v1727
  %1764 = vmatpush.bf16.msra.mxu0 %v1723
  %1765 = vmatpush.bf16.msra.mxu0 %v1719
  %1766 = vmatpush.bf16.msra.mxu0 %v1715
  %1767 = vmatpush.bf16.msra.mxu0 %v1711
  %1768 = vmatpush.bf16.msra.mxu0 %v1707
  %1769 = vmatpush.bf16.msra.mxu0 %v1703
  %1770 = vmatpush.bf16.msra.mxu0 %v1699
  %1771 = vmatmul.bf16.gmra.mxu0 %v1557
  %v1772 = vpop.f32.mrf.mxu0
  %v1773 = vadd.f32 %v1595, %v1772
  %v1774 = vpop.f32.mrf.mxu0
  %v1775 = vadd.f32 %v1595, %v1774
  %1776 = vmatmul.bf16.gmra.mxu0 %v1558
  %v1777 = vpop.f32.mrf.mxu0
  %v1778 = vadd.f32 %v1595, %v1777
  %v1779 = vpop.f32.mrf.mxu0
  %v1780 = vadd.f32 %v1595, %v1779
  %1781 = vmatmul.bf16.gmra.mxu0 %v1559
  %v1782 = vpop.f32.mrf.mxu0
  %v1783 = vadd.f32 %v1595, %v1782
  %v1784 = vpop.f32.mrf.mxu0
  %v1785 = vadd.f32 %v1595, %v1784
  %1786 = vmatmul.bf16.gmra.mxu0 %v1560
  %v1787 = vpop.f32.mrf.mxu0
  %v1788 = vadd.f32 %v1595, %v1787
  %v1789 = vpop.f32.mrf.mxu0
  %v1790 = vadd.f32 %v1595, %v1789
  %1791 = vdwg.mxu0
  %1792 = vmatpush.bf16.msra.mxu0 %v1728
  %1793 = vmatpush.bf16.msra.mxu0 %v1724
  %1794 = vmatpush.bf16.msra.mxu0 %v1720
  %1795 = vmatpush.bf16.msra.mxu0 %v1716
  %1796 = vmatpush.bf16.msra.mxu0 %v1712
  %1797 = vmatpush.bf16.msra.mxu0 %v1708
  %1798 = vmatpush.bf16.msra.mxu0 %v1704
  %1799 = vmatpush.bf16.msra.mxu0 %v1700
  %1800 = vmatmul.bf16.gmra.mxu0 %v1557
  %v1801 = vpop.f32.mrf.mxu0
  %v1802 = vadd.f32 %v1596, %v1801
  %v1803 = vpop.f32.mrf.mxu0
  %v1804 = vadd.f32 %v1596, %v1803
  %1805 = vmatmul.bf16.gmra.mxu0 %v1558
  %v1806 = vpop.f32.mrf.mxu0
  %v1807 = vadd.f32 %v1596, %v1806
  %v1808 = vpop.f32.mrf.mxu0
  %v1809 = vadd.f32 %v1596, %v1808
  %1810 = vmatmul.bf16.gmra.mxu0 %v1559
  %v1811 = vpop.f32.mrf.mxu0
  %v1812 = vadd.f32 %v1596, %v1811
  %v1813 = vpop.f32.mrf.mxu0
  %v1814 = vadd.f32 %v1596, %v1813
  %1815 = vmatmul.bf16.gmra.mxu0 %v1560
  %v1816 = vpop.f32.mrf.mxu0
  %v1817 = vadd.f32 %v1596, %v1816
  %v1818 = vpop.f32.mrf.mxu0
  %v1819 = vadd.f32 %v1596, %v1818
  %1820 = vdwg.mxu0
  %1821 = vmatpush.bf16.msra.mxu0 %v1729
  %1822 = vmatpush.bf16.msra.mxu0 %v1725
  %1823 = vmatpush.bf16.msra.mxu0 %v1721
  %1824 = vmatpush.bf16.msra.mxu0 %v1717
  %1825 = vmatpush.bf16.msra.mxu0 %v1713
  %1826 = vmatpush.bf16.msra.mxu0 %v1709
  %1827 = vmatpush.bf16.msra.mxu0 %v1705
  %1828 = vmatpush.bf16.msra.mxu0 %v1701
  %1829 = vmatmul.bf16.gmra.mxu0 %v1557
  %v1830 = vpop.f32.mrf.mxu0
  %v1831 = vadd.f32 %v1597, %v1830
  %v1832 = vpop.f32.mrf.mxu0
  %v1833 = vadd.f32 %v1597, %v1832
  %1834 = vmatmul.bf16.gmra.mxu0 %v1558
  %v1835 = vpop.f32.mrf.mxu0
  %v1836 = vadd.f32 %v1597, %v1835
  %v1837 = vpop.f32.mrf.mxu0
  %v1838 = vadd.f32 %v1597, %v1837
  %1839 = vmatmul.bf16.gmra.mxu0 %v1559
  %v1840 = vpop.f32.mrf.mxu0
  %v1841 = vadd.f32 %v1597, %v1840
  %v1842 = vpop.f32.mrf.mxu0
  %v1843 = vadd.f32 %v1597, %v1842
  %1844 = vmatmul.bf16.gmra.mxu0 %v1560
  %v1845 = vpop.f32.mrf.mxu0
  %v1846 = vadd.f32 %v1597, %v1845
  %v1847 = vpop.f32.mrf.mxu0
  %v1848 = vadd.f32 %v1597, %v1847
  %1849 = vdwg.mxu0
  %1850 = vmatpush.bf16.msra.mxu0 %v1730
  %1851 = vmatpush.bf16.msra.mxu0 %v1726
  %1852 = vmatpush.bf16.msra.mxu0 %v1722
  %1853 = vmatpush.bf16.msra.mxu0 %v1718
  %1854 = vmatpush.bf16.msra.mxu0 %v1714
  %1855 = vmatpush.bf16.msra.mxu0 %v1710
  %1856 = vmatpush.bf16.msra.mxu0 %v1706
  %1857 = vmatpush.bf16.msra.mxu0 %v1702
  %1858 = vmatmul.bf16.gmra.mxu0 %v1557
  %v1859 = vpop.f32.mrf.mxu0
  %v1860 = vadd.f32 %v1598, %v1859
  %v1861 = vpop.f32.mrf.mxu0
  %v1862 = vadd.f32 %v1598, %v1861
  %1863 = vmatmul.bf16.gmra.mxu0 %v1558
  %v1864 = vpop.f32.mrf.mxu0
  %v1865 = vadd.f32 %v1598, %v1864
  %v1866 = vpop.f32.mrf.mxu0
  %v1867 = vadd.f32 %v1598, %v1866
  %1868 = vmatmul.bf16.gmra.mxu0 %v1559
  %v1869 = vpop.f32.mrf.mxu0
  %v1870 = vadd.f32 %v1598, %v1869
  %v1871 = vpop.f32.mrf.mxu0
  %v1872 = vadd.f32 %v1598, %v1871
  %1873 = vmatmul.bf16.gmra.mxu0 %v1560
  %v1874 = vpop.f32.mrf.mxu0
  %v1875 = vadd.f32 %v1598, %v1874
  %v1876 = vpop.f32.mrf.mxu0
  %v1877 = vadd.f32 %v1598, %v1876
  %1878 = vdwg.mxu0
  %1879 = vst [vmem:[#allocation2] sm:$0xff] %v1773
  %1880 = vst [vmem:[#allocation2 + $0x8] sm:$0xff] %v1802
  %1881 = vst [vmem:[#allocation2 + $0x10] sm:$0xff] %v1831
  %1882 = vst [vmem:[#allocation2 + $0x18] sm:$0xff] %v1860
  %1883 = vst [vmem:[#allocation2 + $0x20] sm:$0xff] %v1775
  %1884 = vst [vmem:[#allocation2 + $0x28] sm:$0xff] %v1804
  %1885 = vst [vmem:[#allocation2 + $0x30] sm:$0xff] %v1833
  %1886 = vst [vmem:[#allocation2 + $0x38] sm:$0xff] %v1862
  %1887 = vst [vmem:[#allocation2 + $0x40] sm:$0xff] %v1778
  %1888 = vst [vmem:[#allocation2 + $0x48] sm:$0xff] %v1807
  %1889 = vst [vmem:[#allocation2 + $0x50] sm:$0xff] %v1836
  %1890 = vst [vmem:[#allocation2 + $0x58] sm:$0xff] %v1865
  %1891 = vst [vmem:[#allocation2 + $0x60] sm:$0xff] %v1780
  %1892 = vst [vmem:[#allocation2 + $0x68] sm:$0xff] %v1809
  %1893 = vst [vmem:[#allocation2 + $0x70] sm:$0xff] %v1838
  %1894 = vst [vmem:[#allocation2 + $0x78] sm:$0xff] %v1867
  %1895 = vst [vmem:[#allocation2 + $0x80] sm:$0xff] %v1783
  %1896 = vst [vmem:[#allocation2 + $0x88] sm:$0xff] %v1812
  %1897 = vst [vmem:[#allocation2 + $0x90] sm:$0xff] %v1841
  %1898 = vst [vmem:[#allocation2 + $0x98] sm:$0xff] %v1870
  %1899 = vst [vmem:[#allocation2 + $0xa0] sm:$0xff] %v1785
  %1900 = vst [vmem:[#allocation2 + $0xa8] sm:$0xff] %v1814
  %1901 = vst [vmem:[#allocation2 + $0xb0] sm:$0xff] %v1843
  %1902 = vst [vmem:[#allocation2 + $0xb8] sm:$0xff] %v1872
  %1903 = vst [vmem:[#allocation2 + $0xc0] sm:$0xff] %v1788
  %1904 = vst [vmem:[#allocation2 + $0xc8] sm:$0xff] %v1817
  %1905 = vst [vmem:[#allocation2 + $0xd0] sm:$0xff] %v1846
  %1906 = vst [vmem:[#allocation2 + $0xd8] sm:$0xff] %v1875
  %1907 = vst [vmem:[#allocation2 + $0xe0] sm:$0xff] %v1790
  %1908 = vst [vmem:[#allocation2 + $0xe8] sm:$0xff] %v1819
  %1909 = vst [vmem:[#allocation2 + $0xf0] sm:$0xff] %v1848
  %1910 = vst [vmem:[#allocation2 + $0xf8] sm:$0xff] %v1877
  %v1911 = vld [vmem:[%s9] sm:$0xff]
  %v1912 = vld [vmem:[%s9 + $0x8] sm:$0xff]
  %v1913 = vld [vmem:[%s9 + $0x10] sm:$0xff]
  %v1914 = vld [vmem:[%s9 + $0x18] sm:$0xff]
  %v1915 = vld [vmem:[%s9 + $0x20] sm:$0xff]
  %v1916 = vld [vmem:[%s9 + $0x28] sm:$0xff]
  %v1917 = vld [vmem:[%s9 + $0x30] sm:$0xff]
  %v1918 = vld [vmem:[%s9 + $0x38] sm:$0xff]
  %v1919 = vld [vmem:[%s9 + $0x40] sm:$0xff]
  %v1920 = vld [vmem:[%s9 + $0x48] sm:$0xff]
  %v1921 = vld [vmem:[%s9 + $0x50] sm:$0xff]
  %v1922 = vld [vmem:[%s9 + $0x58] sm:$0xff]
  %v1923 = vld [vmem:[%s9 + $0x60] sm:$0xff]
  %v1924 = vld [vmem:[%s9 + $0x68] sm:$0xff]
  %v1925 = vld [vmem:[%s9 + $0x70] sm:$0xff]
  %v1926 = vld [vmem:[%s9 + $0x78] sm:$0xff]
  %v1927 = vld [vmem:[%s9 + $0x80] sm:$0xff]
  %v1928 = vld [vmem:[%s9 + $0x88] sm:$0xff]
  %v1929 = vld [vmem:[%s9 + $0x90] sm:$0xff]
  %v1930 = vld [vmem:[%s9 + $0x98] sm:$0xff]
  %v1931 = vld [vmem:[%s9 + $0xa0] sm:$0xff]
  %v1932 = vld [vmem:[%s9 + $0xa8] sm:$0xff]
  %v1933 = vld [vmem:[%s9 + $0xb0] sm:$0xff]
  %v1934 = vld [vmem:[%s9 + $0xb8] sm:$0xff]
  %v1935 = vld [vmem:[%s9 + $0xc0] sm:$0xff]
  %v1936 = vld [vmem:[%s9 + $0xc8] sm:$0xff]
  %v1937 = vld [vmem:[%s9 + $0xd0] sm:$0xff]
  %v1938 = vld [vmem:[%s9 + $0xd8] sm:$0xff]
  %v1939 = vld [vmem:[%s9 + $0xe0] sm:$0xff]
  %v1940 = vld [vmem:[%s9 + $0xe8] sm:$0xff]
  %v1941 = vld [vmem:[%s9 + $0xf0] sm:$0xff]
  %v1942 = vld [vmem:[%s9 + $0xf8] sm:$0xff]
  %v1943 = vld [vmem:[#allocation2] sm:$0xff]
  %v1944 = vld [vmem:[#allocation2 + $0x8] sm:$0xff]
  %v1945 = vld [vmem:[#allocation2 + $0x10] sm:$0xff]
  %v1946 = vld [vmem:[#allocation2 + $0x18] sm:$0xff]
  %v1979 = vunpack.c.l.b16 %v1911
  %v1980 = vunpack.c.h.b16 %v1911
  %v1981 = vunpack.c.l.b16 %v1912
  %v1982 = vunpack.c.h.b16 %v1912
  %v1983 = vunpack.c.l.b16 %v1913
  %v1984 = vunpack.c.h.b16 %v1913
  %v1985 = vunpack.c.l.b16 %v1914
  %v1986 = vunpack.c.h.b16 %v1914
  %v1987 = vunpack.c.l.b16 %v1915
  %v1988 = vunpack.c.h.b16 %v1915
  %v1989 = vunpack.c.l.b16 %v1916
  %v1990 = vunpack.c.h.b16 %v1916
  %v1991 = vunpack.c.l.b16 %v1917
  %v1992 = vunpack.c.h.b16 %v1917
  %v1993 = vunpack.c.l.b16 %v1918
  %v1994 = vunpack.c.h.b16 %v1918
  %v1995 = vunpack.c.l.b16 %v1919
  %v1996 = vunpack.c.h.b16 %v1919
  %v1997 = vunpack.c.l.b16 %v1920
  %v1998 = vunpack.c.h.b16 %v1920
  %v1999 = vunpack.c.l.b16 %v1921
  %v2000 = vunpack.c.h.b16 %v1921
  %v2001 = vunpack.c.l.b16 %v1922
  %v2002 = vunpack.c.h.b16 %v1922
  %v2003 = vunpack.c.l.b16 %v1923
  %v2004 = vunpack.c.h.b16 %v1923
  %v2005 = vunpack.c.l.b16 %v1924
  %v2006 = vunpack.c.h.b16 %v1924
  %v2007 = vunpack.c.l.b16 %v1925
  %v2008 = vunpack.c.h.b16 %v1925
  %v2009 = vunpack.c.l.b16 %v1926
  %v2010 = vunpack.c.h.b16 %v1926
  %v2011 = vunpack.c.l.b16 %v1927
  %v2012 = vunpack.c.h.b16 %v1927
  %v2013 = vunpack.c.l.b16 %v1928
  %v2014 = vunpack.c.h.b16 %v1928
  %v2015 = vunpack.c.l.b16 %v1929
  %v2016 = vunpack.c.h.b16 %v1929
  %v2017 = vunpack.c.l.b16 %v1930
  %v2018 = vunpack.c.h.b16 %v1930
  %v2019 = vunpack.c.l.b16 %v1931
  %v2020 = vunpack.c.h.b16 %v1931
  %v2021 = vunpack.c.l.b16 %v1932
  %v2022 = vunpack.c.h.b16 %v1932
  %v2023 = vunpack.c.l.b16 %v1933
  %v2024 = vunpack.c.h.b16 %v1933
  %v2025 = vunpack.c.l.b16 %v1934
  %v2026 = vunpack.c.h.b16 %v1934
  %v2027 = vunpack.c.l.b16 %v1935
  %v2028 = vunpack.c.h.b16 %v1935
  %v2029 = vunpack.c.l.b16 %v1936
  %v2030 = vunpack.c.h.b16 %v1936
  %v2031 = vunpack.c.l.b16 %v1937
  %v2032 = vunpack.c.h.b16 %v1937
  %v2033 = vunpack.c.l.b16 %v1938
  %v2034 = vunpack.c.h.b16 %v1938
  %v2035 = vunpack.c.l.b16 %v1939
  %v2036 = vunpack.c.h.b16 %v1939
  %v2037 = vunpack.c.l.b16 %v1940
  %v2038 = vunpack.c.h.b16 %v1940
  %v2039 = vunpack.c.l.b16 %v1941
  %v2040 = vunpack.c.h.b16 %v1941
  %v2041 = vunpack.c.l.b16 %v1942
  %v2042 = vunpack.c.h.b16 %v1942
  %v2043 = vpack.c.b16 %v1983, %v1979
  %v2044 = vpack.c.b16 %v1984, %v1980
  %v2045 = vpack.c.b16 %v1985, %v1981
  %v2046 = vpack.c.b16 %v1986, %v1982
  %v2047 = vpack.c.b16 %v1991, %v1987
  %v2048 = vpack.c.b16 %v1992, %v1988
  %v2049 = vpack.c.b16 %v1993, %v1989
  %v2050 = vpack.c.b16 %v1994, %v1990
  %v2051 = vpack.c.b16 %v1999, %v1995
  %v2052 = vpack.c.b16 %v2000, %v1996
  %v2053 = vpack.c.b16 %v2001, %v1997
  %v2054 = vpack.c.b16 %v2002, %v1998
  %v2055 = vpack.c.b16 %v2007, %v2003
  %v2056 = vpack.c.b16 %v2008, %v2004
  %v2057 = vpack.c.b16 %v2009, %v2005
  %v2058 = vpack.c.b16 %v2010, %v2006
  %v2059 = vpack.c.b16 %v2015, %v2011
  %v2060 = vpack.c.b16 %v2016, %v2012
  %v2061 = vpack.c.b16 %v2017, %v2013
  %v2062 = vpack.c.b16 %v2018, %v2014
  %v2063 = vpack.c.b16 %v2023, %v2019
  %v2064 = vpack.c.b16 %v2024, %v2020
  %v2065 = vpack.c.b16 %v2025, %v2021
  %v2066 = vpack.c.b16 %v2026, %v2022
  %v2067 = vpack.c.b16 %v2031, %v2027
  %v2068 = vpack.c.b16 %v2032, %v2028
  %v2069 = vpack.c.b16 %v2033, %v2029
  %v2070 = vpack.c.b16 %v2034, %v2030
  %v2071 = vpack.c.b16 %v2039, %v2035
  %v2072 = vpack.c.b16 %v2040, %v2036
  %v2073 = vpack.c.b16 %v2041, %v2037
  %v2074 = vpack.c.b16 %v2042, %v2038
  %2107 = vmatpush.bf16.msra.mxu0 %v2071
  %2108 = vmatpush.bf16.msra.mxu0 %v2067
  %2109 = vmatpush.bf16.msra.mxu0 %v2063
  %2110 = vmatpush.bf16.msra.mxu0 %v2059
  %2111 = vmatpush.bf16.msra.mxu0 %v2055
  %2112 = vmatpush.bf16.msra.mxu0 %v2051
  %2113 = vmatpush.bf16.msra.mxu0 %v2047
  %2114 = vmatpush.bf16.msra.mxu0 %v2043
  %2115 = vmatmul.bf16.gmra.mxu0 0
  %v2116 = vpop.f32.mrf.mxu0
  %v2117 = vadd.f32 0.0, %v2116
  %v2118 = vpop.f32.mrf.mxu0
  %2119 = vdwg.mxu0
  %2120 = vmatpush.bf16.msra.mxu0 %v2072
  %2121 = vmatpush.bf16.msra.mxu0 %v2068
  %2122 = vmatpush.bf16.msra.mxu0 %v2064
  %2123 = vmatpush.bf16.msra.mxu0 %v2060
  %2124 = vmatpush.bf16.msra.mxu0 %v2056
  %2125 = vmatpush.bf16.msra.mxu0 %v2052
  %2126 = vmatpush.bf16.msra.mxu0 %v2048
  %2127 = vmatpush.bf16.msra.mxu0 %v2044
  %2128 = vmatmul.bf16.gmra.mxu0 0
  %v2129 = vpop.f32.mrf.mxu0
  %v2130 = vadd.f32 0.0, %v2129
  %v2131 = vpop.f32.mrf.mxu0
  %2132 = vdwg.mxu0
  %2133 = vmatpush.bf16.msra.mxu0 %v2073
  %2134 = vmatpush.bf16.msra.mxu0 %v2069
  %2135 = vmatpush.bf16.msra.mxu0 %v2065
  %2136 = vmatpush.bf16.msra.mxu0 %v2061
  %2137 = vmatpush.bf16.msra.mxu0 %v2057
  %2138 = vmatpush.bf16.msra.mxu0 %v2053
  %2139 = vmatpush.bf16.msra.mxu0 %v2049
  %2140 = vmatpush.bf16.msra.mxu0 %v2045
  %2141 = vmatmul.bf16.gmra.mxu0 0
  %v2142 = vpop.f32.mrf.mxu0
  %v2143 = vadd.f32 0.0, %v2142
  %v2144 = vpop.f32.mrf.mxu0
  %2145 = vdwg.mxu0
  %2146 = vmatpush.bf16.msra.mxu0 %v2074
  %2147 = vmatpush.bf16.msra.mxu0 %v2070
  %2148 = vmatpush.bf16.msra.mxu0 %v2066
  %2149 = vmatpush.bf16.msra.mxu0 %v2062
  %2150 = vmatpush.bf16.msra.mxu0 %v2058
  %2151 = vmatpush.bf16.msra.mxu0 %v2054
  %2152 = vmatpush.bf16.msra.mxu0 %v2050
  %2153 = vmatpush.bf16.msra.mxu0 %v2046
  %2154 = vmatmul.bf16.gmra.mxu0 0
  %v2155 = vpop.f32.mrf.mxu0
  %v2156 = vadd.f32 0.0, %v2155
  %v2157 = vpop.f32.mrf.mxu0
  %2158 = vdwg.mxu0
  %v2159 = vadd.f32 %v1943, %v2117
  %v2160 = vadd.f32 %v1944, %v2130
  %v2161 = vadd.f32 %v1945, %v2143
  %v2162 = vadd.f32 %v1946, %v2156
  %v2163 = vxor.u32 %v2159, 2147483648
  %v2164 = vmul.f32 %v2163, 1.442695
  %v2165 = vpow.pop %v2164
  %v2166 = vadd.f32 %v2165, 1.0
  %v2167 = vrcp.pop %v2166
  %v2168 = vmul.f32 %v2166, %v2167
  %v2169 = vsub.f32 1.0, %v2168
  %v2170 = vmul.f32 %v2167, %v2169
  %v2171 = vadd.f32 %v2167, %v2170
  %vm2172 = vweird.f32 %v2166
  %vm2173 = vweird.f32 %v2167
  %vm2174 = vmor %vm2172, %vm2173
  %v2175 = vsel %vm2174, %v2167, %v2171
  %v2176 = vand.u32 2147483647, %v2166
  %vm2177 = vcmp.eq.f32.partialorder %v2176, 8.507059e+37
  %v2178 = vand.u32 %v2166, 2147483648
  %v2179 = vor.u32 1.1754944e-38, %v2178
  %v2180 = vsel %vm2177, %v2179, %v2175
  %v2181 = vmul.f32 1.0, %v2180
  %v2182 = vxor.u32 %v2160, 2147483648
  %v2183 = vmul.f32 %v2182, 1.442695
  %v2184 = vpow.pop %v2183
  %v2185 = vadd.f32 %v2184, 1.0
  %v2186 = vrcp.pop %v2185
  %v2187 = vmul.f32 %v2185, %v2186
  %v2188 = vsub.f32 1.0, %v2187
  %v2189 = vmul.f32 %v2186, %v2188
  %v2190 = vadd.f32 %v2186, %v2189
  %vm2191 = vweird.f32 %v2185
  %vm2192 = vweird.f32 %v2186
  %vm2193 = vmor %vm2191, %vm2192
  %v2194 = vsel %vm2193, %v2186, %v2190
  %v2195 = vand.u32 2147483647, %v2185
  %vm2196 = vcmp.eq.f32.partialorder %v2195, 8.507059e+37
  %v2197 = vand.u32 %v2185, 2147483648
  %v2198 = vor.u32 1.1754944e-38, %v2197
  %v2199 = vsel %vm2196, %v2198, %v2194
  %v2200 = vmul.f32 1.0, %v2199
  %v2201 = vtanh.pop %v2161
  %v2202 = vxor.u32 %v2162, 2147483648
  %v2203 = vmul.f32 %v2202, 1.442695
  %v2204 = vpow.pop %v2203
  %v2205 = vadd.f32 %v2204, 1.0
  %v2206 = vrcp.pop %v2205
  %v2207 = vmul.f32 %v2205, %v2206
  %v2208 = vsub.f32 1.0, %v2207
  %v2209 = vmul.f32 %v2206, %v2208
  %v2210 = vadd.f32 %v2206, %v2209
  %vm2211 = vweird.f32 %v2205
  %vm2212 = vweird.f32 %v2206
  %vm2213 = vmor %vm2211, %vm2212
  %v2214 = vsel %vm2213, %v2206, %v2210
  %v2215 = vand.u32 2147483647, %v2205
  %vm2216 = vcmp.eq.f32.partialorder %v2215, 8.507059e+37
  %v2217 = vand.u32 %v2205, 2147483648
  %v2218 = vor.u32 1.1754944e-38, %v2217
  %v2219 = vsel %vm2216, %v2218, %v2214
  %v2220 = vmul.f32 1.0, %v2219
  %v2221 = vmul.f32 %v2200, 0.0
  %v2222 = vmul.f32 %v2181, %v2201
  %v2223 = vadd.f32 %v2221, %v2222
  %v2224 = vtanh.pop %v2223
  %v2225 = vmul.f32 %v2220, %v2224
  %s2226 = scalar_lea.vmem [#allocation2], 32
  %v2227 = vld [vmem:[%s2226] sm:$0xff]
  %v2228 = vld [vmem:[%s2226 + $0x8] sm:$0xff]
  %v2229 = vld [vmem:[%s2226 + $0x10] sm:$0xff]
  %v2230 = vld [vmem:[%s2226 + $0x18] sm:$0xff]
  %v2231 = vpack.c.bf16 %v2225, %v2225
  %2232 = vmatpush.bf16.msra.mxu0 %v2071
  %2233 = vmatpush.bf16.msra.mxu0 %v2067
  %2234 = vmatpush.bf16.msra.mxu0 %v2063
  %2235 = vmatpush.bf16.msra.mxu0 %v2059
  %2236 = vmatpush.bf16.msra.mxu0 %v2055
  %2237 = vmatpush.bf16.msra.mxu0 %v2051
  %2238 = vmatpush.bf16.msra.mxu0 %v2047
  %2239 = vmatpush.bf16.msra.mxu0 %v2043
  %2240 = vmatmul.bf16.gmra.mxu0 %v2231
  %v2241 = vpop.f32.mrf.mxu0
  %v2242 = vadd.f32 0.0, %v2241
  %v2243 = vpop.f32.mrf.mxu0
  %2244 = vdwg.mxu0
  %2245 = vmatpush.bf16.msra.mxu0 %v2072
  %2246 = vmatpush.bf16.msra.mxu0 %v2068
  %2247 = vmatpush.bf16.msra.mxu0 %v2064
  %2248 = vmatpush.bf16.msra.mxu0 %v2060
  %2249 = vmatpush.bf16.msra.mxu0 %v2056
  %2250 = vmatpush.bf16.msra.mxu0 %v2052
  %2251 = vmatpush.bf16.msra.mxu0 %v2048
  %2252 = vmatpush.bf16.msra.mxu0 %v2044
  %2253 = vmatmul.bf16.gmra.mxu0 %v2231
  %v2254 = vpop.f32.mrf.mxu0
  %v2255 = vadd.f32 0.0, %v2254
  %v2256 = vpop.f32.mrf.mxu0
  %2257 = vdwg.mxu0
  %2258 = vmatpush.bf16.msra.mxu0 %v2073
  %2259 = vmatpush.bf16.msra.mxu0 %v2069
  %2260 = vmatpush.bf16.msra.mxu0 %v2065
  %2261 = vmatpush.bf16.msra.mxu0 %v2061
  %2262 = vmatpush.bf16.msra.mxu0 %v2057
  %2263 = vmatpush.bf16.msra.mxu0 %v2053
  %2264 = vmatpush.bf16.msra.mxu0 %v2049
  %2265 = vmatpush.bf16.msra.mxu0 %v2045
  %2266 = vmatmul.bf16.gmra.mxu0 %v2231
  %v2267 = vpop.f32.mrf.mxu0
  %v2268 = vadd.f32 0.0, %v2267
  %v2269 = vpop.f32.mrf.mxu0
  %2270 = vdwg.mxu0
  %2271 = vmatpush.bf16.msra.mxu0 %v2074
  %2272 = vmatpush.bf16.msra.mxu0 %v2070
  %2273 = vmatpush.bf16.msra.mxu0 %v2066
  %2274 = vmatpush.bf16.msra.mxu0 %v2062
  %2275 = vmatpush.bf16.msra.mxu0 %v2058
  %2276 = vmatpush.bf16.msra.mxu0 %v2054
  %2277 = vmatpush.bf16.msra.mxu0 %v2050
  %2278 = vmatpush.bf16.msra.mxu0 %v2046
  %2279 = vmatmul.bf16.gmra.mxu0 %v2231
  %v2280 = vpop.f32.mrf.mxu0
  %v2281 = vadd.f32 0.0, %v2280
  %v2282 = vpop.f32.mrf.mxu0
  %2283 = vdwg.mxu0
  %v2284 = vadd.f32 %v2227, %v2242
  %v2285 = vadd.f32 %v2228, %v2255
  %v2286 = vadd.f32 %v2229, %v2268
  %v2287 = vadd.f32 %v2230, %v2281
  %v2288 = vxor.u32 %v2284, 2147483648
  %v2289 = vmul.f32 %v2288, 1.442695
  %v2290 = vpow.pop %v2289
  %v2291 = vadd.f32 %v2290, 1.0
  %v2292 = vrcp.pop %v2291
  %v2293 = vmul.f32 %v2291, %v2292
  %v2294 = vsub.f32 1.0, %v2293
  %v2295 = vmul.f32 %v2292, %v2294
  %v2296 = vadd.f32 %v2292, %v2295
  %vm2297 = vweird.f32 %v2291
  %vm2298 = vweird.f32 %v2292
  %vm2299 = vmor %vm2297, %vm2298
  %v2300 = vsel %vm2299, %v2292, %v2296
  %v2301 = vand.u32 2147483647, %v2291
  %vm2302 = vcmp.eq.f32.partialorder %v2301, 8.507059e+37
  %v2303 = vand.u32 %v2291, 2147483648
  %v2304 = vor.u32 1.1754944e-38, %v2303
  %v2305 = vsel %vm2302, %v2304, %v2300
  %v2306 = vmul.f32 1.0, %v2305
  %v2307 = vxor.u32 %v2285, 2147483648
  %v2308 = vmul.f32 %v2307, 1.442695
  %v2309 = vpow.pop %v2308
  %v2310 = vadd.f32 %v2309, 1.0
  %v2311 = vrcp.pop %v2310
  %v2312 = vmul.f32 %v2310, %v2311
  %v2313 = vsub.f32 1.0, %v2312
  %v2314 = vmul.f32 %v2311, %v2313
  %v2315 = vadd.f32 %v2311, %v2314
  %vm2316 = vweird.f32 %v2310
  %vm2317 = vweird.f32 %v2311
  %vm2318 = vmor %vm2316, %vm2317
  %v2319 = vsel %vm2318, %v2311, %v2315
  %v2320 = vand.u32 2147483647, %v2310
  %vm2321 = vcmp.eq.f32.partialorder %v2320, 8.507059e+37
  %v2322 = vand.u32 %v2310, 2147483648
  %v2323 = vor.u32 1.1754944e-38, %v2322
  %v2324 = vsel %vm2321, %v2323, %v2319
  %v2325 = vmul.f32 1.0, %v2324
  %v2326 = vtanh.pop %v2286
  %v2327 = vxor.u32 %v2287, 2147483648
  %v2328 = vmul.f32 %v2327, 1.442695
  %v2329 = vpow.pop %v2328
  %v2330 = vadd.f32 %v2329, 1.0
  %v2331 = vrcp.pop %v2330
  %v2332 = vmul.f32 %v2330, %v2331
  %v2333 = vsub.f32 1.0, %v2332
  %v2334 = vmul.f32 %v2331, %v2333
  %v2335 = vadd.f32 %v2331, %v2334
  %vm2336 = vweird.f32 %v2330
  %vm2337 = vweird.f32 %v2331
  %vm2338 = vmor %vm2336, %vm2337
  %v2339 = vsel %vm2338, %v2331, %v2335
  %v2340 = vand.u32 2147483647, %v2330
  %vm2341 = vcmp.eq.f32.partialorder %v2340, 8.507059e+37
  %v2342 = vand.u32 %v2330, 2147483648
  %v2343 = vor.u32 1.1754944e-38, %v2342
  %v2344 = vsel %vm2341, %v2343, %v2339
  %v2345 = vmul.f32 1.0, %v2344
  %v2346 = vmul.f32 %v2325, %v2223
  %v2347 = vmul.f32 %v2306, %v2326
  %v2348 = vadd.f32 %v2346, %v2347
  %v2349 = vtanh.pop %v2348
  %v2350 = vmul.f32 %v2345, %v2349
  %s2351 = scalar_lea.vmem [#allocation2], 64
  %v2352 = vld [vmem:[%s2351] sm:$0xff]
  %v2353 = vld [vmem:[%s2351 + $0x8] sm:$0xff]
  %v2354 = vld [vmem:[%s2351 + $0x10] sm:$0xff]
  %v2355 = vld [vmem:[%s2351 + $0x18] sm:$0xff]
  %v2356 = vpack.c.bf16 %v2350, %v2350
  %2357 = vmatpush.bf16.msra.mxu0 %v2071
  %2358 = vmatpush.bf16.msra.mxu0 %v2067
  %2359 = vmatpush.bf16.msra.mxu0 %v2063
  %2360 = vmatpush.bf16.msra.mxu0 %v2059
  %2361 = vmatpush.bf16.msra.mxu0 %v2055
  %2362 = vmatpush.bf16.msra.mxu0 %v2051
  %2363 = vmatpush.bf16.msra.mxu0 %v2047
  %2364 = vmatpush.bf16.msra.mxu0 %v2043
  %2365 = vmatmul.bf16.gmra.mxu0 %v2356
  %v2366 = vpop.f32.mrf.mxu0
  %v2367 = vadd.f32 0.0, %v2366
  %v2368 = vpop.f32.mrf.mxu0
  %2369 = vdwg.mxu0
  %2370 = vmatpush.bf16.msra.mxu0 %v2072
  %2371 = vmatpush.bf16.msra.mxu0 %v2068
  %2372 = vmatpush.bf16.msra.mxu0 %v2064
  %2373 = vmatpush.bf16.msra.mxu0 %v2060
  %2374 = vmatpush.bf16.msra.mxu0 %v2056
  %2375 = vmatpush.bf16.msra.mxu0 %v2052
  %2376 = vmatpush.bf16.msra.mxu0 %v2048
  %2377 = vmatpush.bf16.msra.mxu0 %v2044
  %2378 = vmatmul.bf16.gmra.mxu0 %v2356
  %v2379 = vpop.f32.mrf.mxu0
  %v2380 = vadd.f32 0.0, %v2379
  %v2381 = vpop.f32.mrf.mxu0
  %2382 = vdwg.mxu0
  %2383 = vmatpush.bf16.msra.mxu0 %v2073
  %2384 = vmatpush.bf16.msra.mxu0 %v2069
  %2385 = vmatpush.bf16.msra.mxu0 %v2065
  %2386 = vmatpush.bf16.msra.mxu0 %v2061
  %2387 = vmatpush.bf16.msra.mxu0 %v2057
  %2388 = vmatpush.bf16.msra.mxu0 %v2053
  %2389 = vmatpush.bf16.msra.mxu0 %v2049
  %2390 = vmatpush.bf16.msra.mxu0 %v2045
  %2391 = vmatmul.bf16.gmra.mxu0 %v2356
  %v2392 = vpop.f32.mrf.mxu0
  %v2393 = vadd.f32 0.0, %v2392
  %v2394 = vpop.f32.mrf.mxu0
  %2395 = vdwg.mxu0
  %2396 = vmatpush.bf16.msra.mxu0 %v2074
  %2397 = vmatpush.bf16.msra.mxu0 %v2070
  %2398 = vmatpush.bf16.msra.mxu0 %v2066
  %2399 = vmatpush.bf16.msra.mxu0 %v2062
  %2400 = vmatpush.bf16.msra.mxu0 %v2058
  %2401 = vmatpush.bf16.msra.mxu0 %v2054
  %2402 = vmatpush.bf16.msra.mxu0 %v2050
  %2403 = vmatpush.bf16.msra.mxu0 %v2046
  %2404 = vmatmul.bf16.gmra.mxu0 %v2356
  %v2405 = vpop.f32.mrf.mxu0
  %v2406 = vadd.f32 0.0, %v2405
  %v2407 = vpop.f32.mrf.mxu0
  %2408 = vdwg.mxu0
  %v2409 = vadd.f32 %v2352, %v2367
  %v2410 = vadd.f32 %v2353, %v2380
  %v2411 = vadd.f32 %v2354, %v2393
  %v2412 = vadd.f32 %v2355, %v2406
  %v2413 = vxor.u32 %v2409, 2147483648
  %v2414 = vmul.f32 %v2413, 1.442695
  %v2415 = vpow.pop %v2414
  %v2416 = vadd.f32 %v2415, 1.0
  %v2417 = vrcp.pop %v2416
  %v2418 = vmul.f32 %v2416, %v2417
  %v2419 = vsub.f32 1.0, %v2418
  %v2420 = vmul.f32 %v2417, %v2419
  %v2421 = vadd.f32 %v2417, %v2420
  %vm2422 = vweird.f32 %v2416
  %vm2423 = vweird.f32 %v2417
  %vm2424 = vmor %vm2422, %vm2423
  %v2425 = vsel %vm2424, %v2417, %v2421
  %v2426 = vand.u32 2147483647, %v2416
  %vm2427 = vcmp.eq.f32.partialorder %v2426, 8.507059e+37
  %v2428 = vand.u32 %v2416, 2147483648
  %v2429 = vor.u32 1.1754944e-38, %v2428
  %v2430 = vsel %vm2427, %v2429, %v2425
  %v2431 = vmul.f32 1.0, %v2430
  %v2432 = vxor.u32 %v2410, 2147483648
  %v2433 = vmul.f32 %v2432, 1.442695
  %v2434 = vpow.pop %v2433
  %v2435 = vadd.f32 %v2434, 1.0
  %v2436 = vrcp.pop %v2435
  %v2437 = vmul.f32 %v2435, %v2436
  %v2438 = vsub.f32 1.0, %v2437
  %v2439 = vmul.f32 %v2436, %v2438
  %v2440 = vadd.f32 %v2436, %v2439
  %vm2441 = vweird.f32 %v2435
  %vm2442 = vweird.f32 %v2436
  %vm2443 = vmor %vm2441, %vm2442
  %v2444 = vsel %vm2443, %v2436, %v2440
  %v2445 = vand.u32 2147483647, %v2435
  %vm2446 = vcmp.eq.f32.partialorder %v2445, 8.507059e+37
  %v2447 = vand.u32 %v2435, 2147483648
  %v2448 = vor.u32 1.1754944e-38, %v2447
  %v2449 = vsel %vm2446, %v2448, %v2444
  %v2450 = vmul.f32 1.0, %v2449
  %v2451 = vtanh.pop %v2411
  %v2452 = vxor.u32 %v2412, 2147483648
  %v2453 = vmul.f32 %v2452, 1.442695
  %v2454 = vpow.pop %v2453
  %v2455 = vadd.f32 %v2454, 1.0
  %v2456 = vrcp.pop %v2455
  %v2457 = vmul.f32 %v2455, %v2456
  %v2458 = vsub.f32 1.0, %v2457
  %v2459 = vmul.f32 %v2456, %v2458
  %v2460 = vadd.f32 %v2456, %v2459
  %vm2461 = vweird.f32 %v2455
  %vm2462 = vweird.f32 %v2456
  %vm2463 = vmor %vm2461, %vm2462
  %v2464 = vsel %vm2463, %v2456, %v2460
  %v2465 = vand.u32 2147483647, %v2455
  %vm2466 = vcmp.eq.f32.partialorder %v2465, 8.507059e+37
  %v2467 = vand.u32 %v2455, 2147483648
  %v2468 = vor.u32 1.1754944e-38, %v2467
  %v2469 = vsel %vm2466, %v2468, %v2464
  %v2470 = vmul.f32 1.0, %v2469
  %v2471 = vmul.f32 %v2450, %v2348
  %v2472 = vmul.f32 %v2431, %v2451
  %v2473 = vadd.f32 %v2471, %v2472
  %v2474 = vtanh.pop %v2473
  %v2475 = vmul.f32 %v2470, %v2474
  %s2476 = scalar_lea.vmem [#allocation2], 96
  %v2477 = vld [vmem:[%s2476] sm:$0xff]
  %v2478 = vld [vmem:[%s2476 + $0x8] sm:$0xff]
  %v2479 = vld [vmem:[%s2476 + $0x10] sm:$0xff]
  %v2480 = vld [vmem:[%s2476 + $0x18] sm:$0xff]
  %v2481 = vpack.c.bf16 %v2475, %v2475
  %2482 = vmatpush.bf16.msra.mxu0 %v2071
  %2483 = vmatpush.bf16.msra.mxu0 %v2067
  %2484 = vmatpush.bf16.msra.mxu0 %v2063
  %2485 = vmatpush.bf16.msra.mxu0 %v2059
  %2486 = vmatpush.bf16.msra.mxu0 %v2055
  %2487 = vmatpush.bf16.msra.mxu0 %v2051
  %2488 = vmatpush.bf16.msra.mxu0 %v2047
  %2489 = vmatpush.bf16.msra.mxu0 %v2043
  %2490 = vmatmul.bf16.gmra.mxu0 %v2481
  %v2491 = vpop.f32.mrf.mxu0
  %v2492 = vadd.f32 0.0, %v2491
  %v2493 = vpop.f32.mrf.mxu0
  %2494 = vdwg.mxu0
  %2495 = vmatpush.bf16.msra.mxu0 %v2072
  %2496 = vmatpush.bf16.msra.mxu0 %v2068
  %2497 = vmatpush.bf16.msra.mxu0 %v2064
  %2498 = vmatpush.bf16.msra.mxu0 %v2060
  %2499 = vmatpush.bf16.msra.mxu0 %v2056
  %2500 = vmatpush.bf16.msra.mxu0 %v2052
  %2501 = vmatpush.bf16.msra.mxu0 %v2048
  %2502 = vmatpush.bf16.msra.mxu0 %v2044
  %2503 = vmatmul.bf16.gmra.mxu0 %v2481
  %v2504 = vpop.f32.mrf.mxu0
  %v2505 = vadd.f32 0.0, %v2504
  %v2506 = vpop.f32.mrf.mxu0
  %2507 = vdwg.mxu0
  %2508 = vmatpush.bf16.msra.mxu0 %v2073
  %2509 = vmatpush.bf16.msra.mxu0 %v2069
  %2510 = vmatpush.bf16.msra.mxu0 %v2065
  %2511 = vmatpush.bf16.msra.mxu0 %v2061
  %2512 = vmatpush.bf16.msra.mxu0 %v2057
  %2513 = vmatpush.bf16.msra.mxu0 %v2053
  %2514 = vmatpush.bf16.msra.mxu0 %v2049
  %2515 = vmatpush.bf16.msra.mxu0 %v2045
  %2516 = vmatmul.bf16.gmra.mxu0 %v2481
  %v2517 = vpop.f32.mrf.mxu0
  %v2518 = vadd.f32 0.0, %v2517
  %v2519 = vpop.f32.mrf.mxu0
  %2520 = vdwg.mxu0
  %2521 = vmatpush.bf16.msra.mxu0 %v2074
  %2522 = vmatpush.bf16.msra.mxu0 %v2070
  %2523 = vmatpush.bf16.msra.mxu0 %v2066
  %2524 = vmatpush.bf16.msra.mxu0 %v2062
  %2525 = vmatpush.bf16.msra.mxu0 %v2058
  %2526 = vmatpush.bf16.msra.mxu0 %v2054
  %2527 = vmatpush.bf16.msra.mxu0 %v2050
  %2528 = vmatpush.bf16.msra.mxu0 %v2046
  %2529 = vmatmul.bf16.gmra.mxu0 %v2481
  %v2530 = vpop.f32.mrf.mxu0
  %v2531 = vadd.f32 0.0, %v2530
  %v2532 = vpop.f32.mrf.mxu0
  %2533 = vdwg.mxu0
  %v2534 = vadd.f32 %v2477, %v2492
  %v2535 = vadd.f32 %v2478, %v2505
  %v2536 = vadd.f32 %v2479, %v2518
  %v2537 = vadd.f32 %v2480, %v2531
  %v2538 = vxor.u32 %v2534, 2147483648
  %v2539 = vmul.f32 %v2538, 1.442695
  %v2540 = vpow.pop %v2539
  %v2541 = vadd.f32 %v2540, 1.0
  %v2542 = vrcp.pop %v2541
  %v2543 = vmul.f32 %v2541, %v2542
  %v2544 = vsub.f32 1.0, %v2543
  %v2545 = vmul.f32 %v2542, %v2544
  %v2546 = vadd.f32 %v2542, %v2545
  %vm2547 = vweird.f32 %v2541
  %vm2548 = vweird.f32 %v2542
  %vm2549 = vmor %vm2547, %vm2548
  %v2550 = vsel %vm2549, %v2542, %v2546
  %v2551 = vand.u32 2147483647, %v2541
  %vm2552 = vcmp.eq.f32.partialorder %v2551, 8.507059e+37
  %v2553 = vand.u32 %v2541, 2147483648
  %v2554 = vor.u32 1.1754944e-38, %v2553
  %v2555 = vsel %vm2552, %v2554, %v2550
  %v2556 = vmul.f32 1.0, %v2555
  %v2557 = vxor.u32 %v2535, 2147483648
  %v2558 = vmul.f32 %v2557, 1.442695
  %v2559 = vpow.pop %v2558
  %v2560 = vadd.f32 %v2559, 1.0
  %v2561 = vrcp.pop %v2560
  %v2562 = vmul.f32 %v2560, %v2561
  %v2563 = vsub.f32 1.0, %v2562
  %v2564 = vmul.f32 %v2561, %v2563
  %v2565 = vadd.f32 %v2561, %v2564
  %vm2566 = vweird.f32 %v2560
  %vm2567 = vweird.f32 %v2561
  %vm2568 = vmor %vm2566, %vm2567
  %v2569 = vsel %vm2568, %v2561, %v2565
  %v2570 = vand.u32 2147483647, %v2560
  %vm2571 = vcmp.eq.f32.partialorder %v2570, 8.507059e+37
  %v2572 = vand.u32 %v2560, 2147483648
  %v2573 = vor.u32 1.1754944e-38, %v2572
  %v2574 = vsel %vm2571, %v2573, %v2569
  %v2575 = vmul.f32 1.0, %v2574
  %v2576 = vtanh.pop %v2536
  %v2577 = vxor.u32 %v2537, 2147483648
  %v2578 = vmul.f32 %v2577, 1.442695
  %v2579 = vpow.pop %v2578
  %v2580 = vadd.f32 %v2579, 1.0
  %v2581 = vrcp.pop %v2580
  %v2582 = vmul.f32 %v2580, %v2581
  %v2583 = vsub.f32 1.0, %v2582
  %v2584 = vmul.f32 %v2581, %v2583
  %v2585 = vadd.f32 %v2581, %v2584
  %vm2586 = vweird.f32 %v2580
  %vm2587 = vweird.f32 %v2581
  %vm2588 = vmor %vm2586, %vm2587
  %v2589 = vsel %vm2588, %v2581, %v2585
  %v2590 = vand.u32 2147483647, %v2580
  %vm2591 = vcmp.eq.f32.partialorder %v2590, 8.507059e+37
  %v2592 = vand.u32 %v2580, 2147483648
  %v2593 = vor.u32 1.1754944e-38, %v2592
  %v2594 = vsel %vm2591, %v2593, %v2589
  %v2595 = vmul.f32 1.0, %v2594
  %v2596 = vmul.f32 %v2575, %v2473
  %v2597 = vmul.f32 %v2556, %v2576
  %v2598 = vadd.f32 %v2596, %v2597
  %v2599 = vtanh.pop %v2598
  %v2600 = vmul.f32 %v2595, %v2599
  %s2601 = scalar_lea.vmem [#allocation2], 128
  %v2602 = vld [vmem:[%s2601] sm:$0xff]
  %v2603 = vld [vmem:[%s2601 + $0x8] sm:$0xff]
  %v2604 = vld [vmem:[%s2601 + $0x10] sm:$0xff]
  %v2605 = vld [vmem:[%s2601 + $0x18] sm:$0xff]
  %v2606 = vpack.c.bf16 %v2600, %v2600
  %2607 = vmatpush.bf16.msra.mxu0 %v2071
  %2608 = vmatpush.bf16.msra.mxu0 %v2067
  %2609 = vmatpush.bf16.msra.mxu0 %v2063
  %2610 = vmatpush.bf16.msra.mxu0 %v2059
  %2611 = vmatpush.bf16.msra.mxu0 %v2055
  %2612 = vmatpush.bf16.msra.mxu0 %v2051
  %2613 = vmatpush.bf16.msra.mxu0 %v2047
  %2614 = vmatpush.bf16.msra.mxu0 %v2043
  %2615 = vmatmul.bf16.gmra.mxu0 %v2606
  %v2616 = vpop.f32.mrf.mxu0
  %v2617 = vadd.f32 0.0, %v2616
  %v2618 = vpop.f32.mrf.mxu0
  %2619 = vdwg.mxu0
  %2620 = vmatpush.bf16.msra.mxu0 %v2072
  %2621 = vmatpush.bf16.msra.mxu0 %v2068
  %2622 = vmatpush.bf16.msra.mxu0 %v2064
  %2623 = vmatpush.bf16.msra.mxu0 %v2060
  %2624 = vmatpush.bf16.msra.mxu0 %v2056
  %2625 = vmatpush.bf16.msra.mxu0 %v2052
  %2626 = vmatpush.bf16.msra.mxu0 %v2048
  %2627 = vmatpush.bf16.msra.mxu0 %v2044
  %2628 = vmatmul.bf16.gmra.mxu0 %v2606
  %v2629 = vpop.f32.mrf.mxu0
  %v2630 = vadd.f32 0.0, %v2629
  %v2631 = vpop.f32.mrf.mxu0
  %2632 = vdwg.mxu0
  %2633 = vmatpush.bf16.msra.mxu0 %v2073
  %2634 = vmatpush.bf16.msra.mxu0 %v2069
  %2635 = vmatpush.bf16.msra.mxu0 %v2065
  %2636 = vmatpush.bf16.msra.mxu0 %v2061
  %2637 = vmatpush.bf16.msra.mxu0 %v2057
  %2638 = vmatpush.bf16.msra.mxu0 %v2053
  %2639 = vmatpush.bf16.msra.mxu0 %v2049
  %2640 = vmatpush.bf16.msra.mxu0 %v2045
  %2641 = vmatmul.bf16.gmra.mxu0 %v2606
  %v2642 = vpop.f32.mrf.mxu0
  %v2643 = vadd.f32 0.0, %v2642
  %v2644 = vpop.f32.mrf.mxu0
  %2645 = vdwg.mxu0
  %2646 = vmatpush.bf16.msra.mxu0 %v2074
  %2647 = vmatpush.bf16.msra.mxu0 %v2070
  %2648 = vmatpush.bf16.msra.mxu0 %v2066
  %2649 = vmatpush.bf16.msra.mxu0 %v2062
  %2650 = vmatpush.bf16.msra.mxu0 %v2058
  %2651 = vmatpush.bf16.msra.mxu0 %v2054
  %2652 = vmatpush.bf16.msra.mxu0 %v2050
  %2653 = vmatpush.bf16.msra.mxu0 %v2046
  %2654 = vmatmul.bf16.gmra.mxu0 %v2606
  %v2655 = vpop.f32.mrf.mxu0
  %v2656 = vadd.f32 0.0, %v2655
  %v2657 = vpop.f32.mrf.mxu0
  %2658 = vdwg.mxu0
  %v2659 = vadd.f32 %v2602, %v2617
  %v2660 = vadd.f32 %v2603, %v2630
  %v2661 = vadd.f32 %v2604, %v2643
  %v2662 = vadd.f32 %v2605, %v2656
  %v2663 = vxor.u32 %v2659, 2147483648
  %v2664 = vmul.f32 %v2663, 1.442695
  %v2665 = vpow.pop %v2664
  %v2666 = vadd.f32 %v2665, 1.0
  %v2667 = vrcp.pop %v2666
  %v2668 = vmul.f32 %v2666, %v2667
  %v2669 = vsub.f32 1.0, %v2668
  %v2670 = vmul.f32 %v2667, %v2669
  %v2671 = vadd.f32 %v2667, %v2670
  %vm2672 = vweird.f32 %v2666
  %vm2673 = vweird.f32 %v2667
  %vm2674 = vmor %vm2672, %vm2673
  %v2675 = vsel %vm2674, %v2667, %v2671
  %v2676 = vand.u32 2147483647, %v2666
  %vm2677 = vcmp.eq.f32.partialorder %v2676, 8.507059e+37
  %v2678 = vand.u32 %v2666, 2147483648
  %v2679 = vor.u32 1.1754944e-38, %v2678
  %v2680 = vsel %vm2677, %v2679, %v2675
  %v2681 = vmul.f32 1.0, %v2680
  %v2682 = vxor.u32 %v2660, 2147483648
  %v2683 = vmul.f32 %v2682, 1.442695
  %v2684 = vpow.pop %v2683
  %v2685 = vadd.f32 %v2684, 1.0
  %v2686 = vrcp.pop %v2685
  %v2687 = vmul.f32 %v2685, %v2686
  %v2688 = vsub.f32 1.0, %v2687
  %v2689 = vmul.f32 %v2686, %v2688
  %v2690 = vadd.f32 %v2686, %v2689
  %vm2691 = vweird.f32 %v2685
  %vm2692 = vweird.f32 %v2686
  %vm2693 = vmor %vm2691, %vm2692
  %v2694 = vsel %vm2693, %v2686, %v2690
  %v2695 = vand.u32 2147483647, %v2685
  %vm2696 = vcmp.eq.f32.partialorder %v2695, 8.507059e+37
  %v2697 = vand.u32 %v2685, 2147483648
  %v2698 = vor.u32 1.1754944e-38, %v2697
  %v2699 = vsel %vm2696, %v2698, %v2694
  %v2700 = vmul.f32 1.0, %v2699
  %v2701 = vtanh.pop %v2661
  %v2702 = vxor.u32 %v2662, 2147483648
  %v2703 = vmul.f32 %v2702, 1.442695
  %v2704 = vpow.pop %v2703
  %v2705 = vadd.f32 %v2704, 1.0
  %v2706 = vrcp.pop %v2705
  %v2707 = vmul.f32 %v2705, %v2706
  %v2708 = vsub.f32 1.0, %v2707
  %v2709 = vmul.f32 %v2706, %v2708
  %v2710 = vadd.f32 %v2706, %v2709
  %vm2711 = vweird.f32 %v2705
  %vm2712 = vweird.f32 %v2706
  %vm2713 = vmor %vm2711, %vm2712
  %v2714 = vsel %vm2713, %v2706, %v2710
  %v2715 = vand.u32 2147483647, %v2705
  %vm2716 = vcmp.eq.f32.partialorder %v2715, 8.507059e+37
  %v2717 = vand.u32 %v2705, 2147483648
  %v2718 = vor.u32 1.1754944e-38, %v2717
  %v2719 = vsel %vm2716, %v2718, %v2714
  %v2720 = vmul.f32 1.0, %v2719
  %v2721 = vmul.f32 %v2700, %v2598
  %v2722 = vmul.f32 %v2681, %v2701
  %v2723 = vadd.f32 %v2721, %v2722
  %v2724 = vtanh.pop %v2723
  %v2725 = vmul.f32 %v2720, %v2724
  %s2726 = scalar_lea.vmem [#allocation2], 160
  %v2727 = vld [vmem:[%s2726] sm:$0xff]
  %v2728 = vld [vmem:[%s2726 + $0x8] sm:$0xff]
  %v2729 = vld [vmem:[%s2726 + $0x10] sm:$0xff]
  %v2730 = vld [vmem:[%s2726 + $0x18] sm:$0xff]
  %v2731 = vpack.c.bf16 %v2725, %v2725
  %2732 = vmatpush.bf16.msra.mxu0 %v2071
  %2733 = vmatpush.bf16.msra.mxu0 %v2067
  %2734 = vmatpush.bf16.msra.mxu0 %v2063
  %2735 = vmatpush.bf16.msra.mxu0 %v2059
  %2736 = vmatpush.bf16.msra.mxu0 %v2055
  %2737 = vmatpush.bf16.msra.mxu0 %v2051
  %2738 = vmatpush.bf16.msra.mxu0 %v2047
  %2739 = vmatpush.bf16.msra.mxu0 %v2043
  %2740 = vmatmul.bf16.gmra.mxu0 %v2731
  %v2741 = vpop.f32.mrf.mxu0
  %v2742 = vadd.f32 0.0, %v2741
  %v2743 = vpop.f32.mrf.mxu0
  %2744 = vdwg.mxu0
  %2745 = vmatpush.bf16.msra.mxu0 %v2072
  %2746 = vmatpush.bf16.msra.mxu0 %v2068
  %2747 = vmatpush.bf16.msra.mxu0 %v2064
  %2748 = vmatpush.bf16.msra.mxu0 %v2060
  %2749 = vmatpush.bf16.msra.mxu0 %v2056
  %2750 = vmatpush.bf16.msra.mxu0 %v2052
  %2751 = vmatpush.bf16.msra.mxu0 %v2048
  %2752 = vmatpush.bf16.msra.mxu0 %v2044
  %2753 = vmatmul.bf16.gmra.mxu0 %v2731
  %v2754 = vpop.f32.mrf.mxu0
  %v2755 = vadd.f32 0.0, %v2754
  %v2756 = vpop.f32.mrf.mxu0
  %2757 = vdwg.mxu0
  %2758 = vmatpush.bf16.msra.mxu0 %v2073
  %2759 = vmatpush.bf16.msra.mxu0 %v2069
  %2760 = vmatpush.bf16.msra.mxu0 %v2065
  %2761 = vmatpush.bf16.msra.mxu0 %v2061
  %2762 = vmatpush.bf16.msra.mxu0 %v2057
  %2763 = vmatpush.bf16.msra.mxu0 %v2053
  %2764 = vmatpush.bf16.msra.mxu0 %v2049
  %2765 = vmatpush.bf16.msra.mxu0 %v2045
  %2766 = vmatmul.bf16.gmra.mxu0 %v2731
  %v2767 = vpop.f32.mrf.mxu0
  %v2768 = vadd.f32 0.0, %v2767
  %v2769 = vpop.f32.mrf.mxu0
  %2770 = vdwg.mxu0
  %2771 = vmatpush.bf16.msra.mxu0 %v2074
  %2772 = vmatpush.bf16.msra.mxu0 %v2070
  %2773 = vmatpush.bf16.msra.mxu0 %v2066
  %2774 = vmatpush.bf16.msra.mxu0 %v2062
  %2775 = vmatpush.bf16.msra.mxu0 %v2058
  %2776 = vmatpush.bf16.msra.mxu0 %v2054
  %2777 = vmatpush.bf16.msra.mxu0 %v2050
  %2778 = vmatpush.bf16.msra.mxu0 %v2046
  %2779 = vmatmul.bf16.gmra.mxu0 %v2731
  %v2780 = vpop.f32.mrf.mxu0
  %v2781 = vadd.f32 0.0, %v2780
  %v2782 = vpop.f32.mrf.mxu0
  %2783 = vdwg.mxu0
  %v2784 = vadd.f32 %v2727, %v2742
  %v2785 = vadd.f32 %v2728, %v2755
  %v2786 = vadd.f32 %v2729, %v2768
  %v2787 = vadd.f32 %v2730, %v2781
  %v2788 = vxor.u32 %v2784, 2147483648
  %v2789 = vmul.f32 %v2788, 1.442695
  %v2790 = vpow.pop %v2789
  %v2791 = vadd.f32 %v2790, 1.0
  %v2792 = vrcp.pop %v2791
  %v2793 = vmul.f32 %v2791, %v2792
  %v2794 = vsub.f32 1.0, %v2793
  %v2795 = vmul.f32 %v2792, %v2794
  %v2796 = vadd.f32 %v2792, %v2795
  %vm2797 = vweird.f32 %v2791
  %vm2798 = vweird.f32 %v2792
  %vm2799 = vmor %vm2797, %vm2798
  %v2800 = vsel %vm2799, %v2792, %v2796
  %v2801 = vand.u32 2147483647, %v2791
  %vm2802 = vcmp.eq.f32.partialorder %v2801, 8.507059e+37
  %v2803 = vand.u32 %v2791, 2147483648
  %v2804 = vor.u32 1.1754944e-38, %v2803
  %v2805 = vsel %vm2802, %v2804, %v2800
  %v2806 = vmul.f32 1.0, %v2805
  %v2807 = vxor.u32 %v2785, 2147483648
  %v2808 = vmul.f32 %v2807, 1.442695
  %v2809 = vpow.pop %v2808
  %v2810 = vadd.f32 %v2809, 1.0
  %v2811 = vrcp.pop %v2810
  %v2812 = vmul.f32 %v2810, %v2811
  %v2813 = vsub.f32 1.0, %v2812
  %v2814 = vmul.f32 %v2811, %v2813
  %v2815 = vadd.f32 %v2811, %v2814
  %vm2816 = vweird.f32 %v2810
  %vm2817 = vweird.f32 %v2811
  %vm2818 = vmor %vm2816, %vm2817
  %v2819 = vsel %vm2818, %v2811, %v2815
  %v2820 = vand.u32 2147483647, %v2810
  %vm2821 = vcmp.eq.f32.partialorder %v2820, 8.507059e+37
  %v2822 = vand.u32 %v2810, 2147483648
  %v2823 = vor.u32 1.1754944e-38, %v2822
  %v2824 = vsel %vm2821, %v2823, %v2819
  %v2825 = vmul.f32 1.0, %v2824
  %v2826 = vtanh.pop %v2786
  %v2827 = vxor.u32 %v2787, 2147483648
  %v2828 = vmul.f32 %v2827, 1.442695
  %v2829 = vpow.pop %v2828
  %v2830 = vadd.f32 %v2829, 1.0
  %v2831 = vrcp.pop %v2830
  %v2832 = vmul.f32 %v2830, %v2831
  %v2833 = vsub.f32 1.0, %v2832
  %v2834 = vmul.f32 %v2831, %v2833
  %v2835 = vadd.f32 %v2831, %v2834
  %vm2836 = vweird.f32 %v2830
  %vm2837 = vweird.f32 %v2831
  %vm2838 = vmor %vm2836, %vm2837
  %v2839 = vsel %vm2838, %v2831, %v2835
  %v2840 = vand.u32 2147483647, %v2830
  %vm2841 = vcmp.eq.f32.partialorder %v2840, 8.507059e+37
  %v2842 = vand.u32 %v2830, 2147483648
  %v2843 = vor.u32 1.1754944e-38, %v2842
  %v2844 = vsel %vm2841, %v2843, %v2839
  %v2845 = vmul.f32 1.0, %v2844
  %v2846 = vmul.f32 %v2825, %v2723
  %v2847 = vmul.f32 %v2806, %v2826
  %v2848 = vadd.f32 %v2846, %v2847
  %v2849 = vtanh.pop %v2848
  %v2850 = vmul.f32 %v2845, %v2849
  %s2851 = scalar_lea.vmem [#allocation2], 192
  %v2852 = vld [vmem:[%s2851] sm:$0xff]
  %v2853 = vld [vmem:[%s2851 + $0x8] sm:$0xff]
  %v2854 = vld [vmem:[%s2851 + $0x10] sm:$0xff]
  %v2855 = vld [vmem:[%s2851 + $0x18] sm:$0xff]
  %v2856 = vpack.c.bf16 %v2850, %v2850
  %2857 = vmatpush.bf16.msra.mxu0 %v2071
  %2858 = vmatpush.bf16.msra.mxu0 %v2067
  %2859 = vmatpush.bf16.msra.mxu0 %v2063
  %2860 = vmatpush.bf16.msra.mxu0 %v2059
  %2861 = vmatpush.bf16.msra.mxu0 %v2055
  %2862 = vmatpush.bf16.msra.mxu0 %v2051
  %2863 = vmatpush.bf16.msra.mxu0 %v2047
  %2864 = vmatpush.bf16.msra.mxu0 %v2043
  %2865 = vmatmul.bf16.gmra.mxu0 %v2856
  %v2866 = vpop.f32.mrf.mxu0
  %v2867 = vadd.f32 0.0, %v2866
  %v2868 = vpop.f32.mrf.mxu0
  %2869 = vdwg.mxu0
  %2870 = vmatpush.bf16.msra.mxu0 %v2072
  %2871 = vmatpush.bf16.msra.mxu0 %v2068
  %2872 = vmatpush.bf16.msra.mxu0 %v2064
  %2873 = vmatpush.bf16.msra.mxu0 %v2060
  %2874 = vmatpush.bf16.msra.mxu0 %v2056
  %2875 = vmatpush.bf16.msra.mxu0 %v2052
  %2876 = vmatpush.bf16.msra.mxu0 %v2048
  %2877 = vmatpush.bf16.msra.mxu0 %v2044
  %2878 = vmatmul.bf16.gmra.mxu0 %v2856
  %v2879 = vpop.f32.mrf.mxu0
  %v2880 = vadd.f32 0.0, %v2879
  %v2881 = vpop.f32.mrf.mxu0
  %2882 = vdwg.mxu0
  %2883 = vmatpush.bf16.msra.mxu0 %v2073
  %2884 = vmatpush.bf16.msra.mxu0 %v2069
  %2885 = vmatpush.bf16.msra.mxu0 %v2065
  %2886 = vmatpush.bf16.msra.mxu0 %v2061
  %2887 = vmatpush.bf16.msra.mxu0 %v2057
  %2888 = vmatpush.bf16.msra.mxu0 %v2053
  %2889 = vmatpush.bf16.msra.mxu0 %v2049
  %2890 = vmatpush.bf16.msra.mxu0 %v2045
  %2891 = vmatmul.bf16.gmra.mxu0 %v2856
  %v2892 = vpop.f32.mrf.mxu0
  %v2893 = vadd.f32 0.0, %v2892
  %v2894 = vpop.f32.mrf.mxu0
  %2895 = vdwg.mxu0
  %2896 = vmatpush.bf16.msra.mxu0 %v2074
  %2897 = vmatpush.bf16.msra.mxu0 %v2070
  %2898 = vmatpush.bf16.msra.mxu0 %v2066
  %2899 = vmatpush.bf16.msra.mxu0 %v2062
  %2900 = vmatpush.bf16.msra.mxu0 %v2058
  %2901 = vmatpush.bf16.msra.mxu0 %v2054
  %2902 = vmatpush.bf16.msra.mxu0 %v2050
  %2903 = vmatpush.bf16.msra.mxu0 %v2046
  %2904 = vmatmul.bf16.gmra.mxu0 %v2856
  %v2905 = vpop.f32.mrf.mxu0
  %v2906 = vadd.f32 0.0, %v2905
  %v2907 = vpop.f32.mrf.mxu0
  %2908 = vdwg.mxu0
  %v2909 = vadd.f32 %v2852, %v2867
  %v2910 = vadd.f32 %v2853, %v2880
  %v2911 = vadd.f32 %v2854, %v2893
  %v2912 = vadd.f32 %v2855, %v2906
  %v2913 = vxor.u32 %v2909, 2147483648
  %v2914 = vmul.f32 %v2913, 1.442695
  %v2915 = vpow.pop %v2914
  %v2916 = vadd.f32 %v2915, 1.0
  %v2917 = vrcp.pop %v2916
  %v2918 = vmul.f32 %v2916, %v2917
  %v2919 = vsub.f32 1.0, %v2918
  %v2920 = vmul.f32 %v2917, %v2919
  %v2921 = vadd.f32 %v2917, %v2920
  %vm2922 = vweird.f32 %v2916
  %vm2923 = vweird.f32 %v2917
  %vm2924 = vmor %vm2922, %vm2923
  %v2925 = vsel %vm2924, %v2917, %v2921
  %v2926 = vand.u32 2147483647, %v2916
  %vm2927 = vcmp.eq.f32.partialorder %v2926, 8.507059e+37
  %v2928 = vand.u32 %v2916, 2147483648
  %v2929 = vor.u32 1.1754944e-38, %v2928
  %v2930 = vsel %vm2927, %v2929, %v2925
  %v2931 = vmul.f32 1.0, %v2930
  %v2932 = vxor.u32 %v2910, 2147483648
  %v2933 = vmul.f32 %v2932, 1.442695
  %v2934 = vpow.pop %v2933
  %v2935 = vadd.f32 %v2934, 1.0
  %v2936 = vrcp.pop %v2935
  %v2937 = vmul.f32 %v2935, %v2936
  %v2938 = vsub.f32 1.0, %v2937
  %v2939 = vmul.f32 %v2936, %v2938
  %v2940 = vadd.f32 %v2936, %v2939
  %vm2941 = vweird.f32 %v2935
  %vm2942 = vweird.f32 %v2936
  %vm2943 = vmor %vm2941, %vm2942
  %v2944 = vsel %vm2943, %v2936, %v2940
  %v2945 = vand.u32 2147483647, %v2935
  %vm2946 = vcmp.eq.f32.partialorder %v2945, 8.507059e+37
  %v2947 = vand.u32 %v2935, 2147483648
  %v2948 = vor.u32 1.1754944e-38, %v2947
  %v2949 = vsel %vm2946, %v2948, %v2944
  %v2950 = vmul.f32 1.0, %v2949
  %v2951 = vtanh.pop %v2911
  %v2952 = vxor.u32 %v2912, 2147483648
  %v2953 = vmul.f32 %v2952, 1.442695
  %v2954 = vpow.pop %v2953
  %v2955 = vadd.f32 %v2954, 1.0
  %v2956 = vrcp.pop %v2955
  %v2957 = vmul.f32 %v2955, %v2956
  %v2958 = vsub.f32 1.0, %v2957
  %v2959 = vmul.f32 %v2956, %v2958
  %v2960 = vadd.f32 %v2956, %v2959
  %vm2961 = vweird.f32 %v2955
  %vm2962 = vweird.f32 %v2956
  %vm2963 = vmor %vm2961, %vm2962
  %v2964 = vsel %vm2963, %v2956, %v2960
  %v2965 = vand.u32 2147483647, %v2955
  %vm2966 = vcmp.eq.f32.partialorder %v2965, 8.507059e+37
  %v2967 = vand.u32 %v2955, 2147483648
  %v2968 = vor.u32 1.1754944e-38, %v2967
  %v2969 = vsel %vm2966, %v2968, %v2964
  %v2970 = vmul.f32 1.0, %v2969
  %v2971 = vmul.f32 %v2950, %v2848
  %v2972 = vmul.f32 %v2931, %v2951
  %v2973 = vadd.f32 %v2971, %v2972
  %v2974 = vtanh.pop %v2973
  %v2975 = vmul.f32 %v2970, %v2974
  %s2976 = scalar_lea.vmem [#allocation2], 224
  %v2977 = vld [vmem:[%s2976] sm:$0xff]
  %v2978 = vld [vmem:[%s2976 + $0x8] sm:$0xff]
  %v2979 = vld [vmem:[%s2976 + $0x10] sm:$0xff]
  %v2980 = vld [vmem:[%s2976 + $0x18] sm:$0xff]
  %v2981 = vpack.c.bf16 %v2975, %v2975
  %2982 = vmatpush.bf16.msra.mxu0 %v2071
  %2983 = vmatpush.bf16.msra.mxu0 %v2067
  %2984 = vmatpush.bf16.msra.mxu0 %v2063
  %2985 = vmatpush.bf16.msra.mxu0 %v2059
  %2986 = vmatpush.bf16.msra.mxu0 %v2055
  %2987 = vmatpush.bf16.msra.mxu0 %v2051
  %2988 = vmatpush.bf16.msra.mxu0 %v2047
  %2989 = vmatpush.bf16.msra.mxu0 %v2043
  %2990 = vmatmul.bf16.gmra.mxu0 %v2981
  %v2991 = vpop.f32.mrf.mxu0
  %v2992 = vadd.f32 0.0, %v2991
  %v2993 = vpop.f32.mrf.mxu0
  %2994 = vdwg.mxu0
  %2995 = vmatpush.bf16.msra.mxu0 %v2072
  %2996 = vmatpush.bf16.msra.mxu0 %v2068
  %2997 = vmatpush.bf16.msra.mxu0 %v2064
  %2998 = vmatpush.bf16.msra.mxu0 %v2060
  %2999 = vmatpush.bf16.msra.mxu0 %v2056
  %3000 = vmatpush.bf16.msra.mxu0 %v2052
  %3001 = vmatpush.bf16.msra.mxu0 %v2048
  %3002 = vmatpush.bf16.msra.mxu0 %v2044
  %3003 = vmatmul.bf16.gmra.mxu0 %v2981
  %v3004 = vpop.f32.mrf.mxu0
  %v3005 = vadd.f32 0.0, %v3004
  %v3006 = vpop.f32.mrf.mxu0
  %3007 = vdwg.mxu0
  %3008 = vmatpush.bf16.msra.mxu0 %v2073
  %3009 = vmatpush.bf16.msra.mxu0 %v2069
  %3010 = vmatpush.bf16.msra.mxu0 %v2065
  %3011 = vmatpush.bf16.msra.mxu0 %v2061
  %3012 = vmatpush.bf16.msra.mxu0 %v2057
  %3013 = vmatpush.bf16.msra.mxu0 %v2053
  %3014 = vmatpush.bf16.msra.mxu0 %v2049
  %3015 = vmatpush.bf16.msra.mxu0 %v2045
  %3016 = vmatmul.bf16.gmra.mxu0 %v2981
  %v3017 = vpop.f32.mrf.mxu0
  %v3018 = vadd.f32 0.0, %v3017
  %v3019 = vpop.f32.mrf.mxu0
  %3020 = vdwg.mxu0
  %3021 = vmatpush.bf16.msra.mxu0 %v2074
  %3022 = vmatpush.bf16.msra.mxu0 %v2070
  %3023 = vmatpush.bf16.msra.mxu0 %v2066
  %3024 = vmatpush.bf16.msra.mxu0 %v2062
  %3025 = vmatpush.bf16.msra.mxu0 %v2058
  %3026 = vmatpush.bf16.msra.mxu0 %v2054
  %3027 = vmatpush.bf16.msra.mxu0 %v2050
  %3028 = vmatpush.bf16.msra.mxu0 %v2046
  %3029 = vmatmul.bf16.gmra.mxu0 %v2981
  %v3030 = vpop.f32.mrf.mxu0
  %v3031 = vadd.f32 0.0, %v3030
  %v3032 = vpop.f32.mrf.mxu0
  %3033 = vdwg.mxu0
  %v3034 = vadd.f32 %v2977, %v2992
  %v3035 = vadd.f32 %v2978, %v3005
  %v3036 = vadd.f32 %v2979, %v3018
  %v3037 = vadd.f32 %v2980, %v3031
  %v3038 = vxor.u32 %v3034, 2147483648
  %v3039 = vmul.f32 %v3038, 1.442695
  %v3040 = vpow.pop %v3039
  %v3041 = vadd.f32 %v3040, 1.0
  %v3042 = vrcp.pop %v3041
  %v3043 = vmul.f32 %v3041, %v3042
  %v3044 = vsub.f32 1.0, %v3043
  %v3045 = vmul.f32 %v3042, %v3044
  %v3046 = vadd.f32 %v3042, %v3045
  %vm3047 = vweird.f32 %v3041
  %vm3048 = vweird.f32 %v3042
  %vm3049 = vmor %vm3047, %vm3048
  %v3050 = vsel %vm3049, %v3042, %v3046
  %v3051 = vand.u32 2147483647, %v3041
  %vm3052 = vcmp.eq.f32.partialorder %v3051, 8.507059e+37
  %v3053 = vand.u32 %v3041, 2147483648
  %v3054 = vor.u32 1.1754944e-38, %v3053
  %v3055 = vsel %vm3052, %v3054, %v3050
  %v3056 = vmul.f32 1.0, %v3055
  %v3057 = vxor.u32 %v3035, 2147483648
  %v3058 = vmul.f32 %v3057, 1.442695
  %v3059 = vpow.pop %v3058
  %v3060 = vadd.f32 %v3059, 1.0
  %v3061 = vrcp.pop %v3060
  %v3062 = vmul.f32 %v3060, %v3061
  %v3063 = vsub.f32 1.0, %v3062
  %v3064 = vmul.f32 %v3061, %v3063
  %v3065 = vadd.f32 %v3061, %v3064
  %vm3066 = vweird.f32 %v3060
  %vm3067 = vweird.f32 %v3061
  %vm3068 = vmor %vm3066, %vm3067
  %v3069 = vsel %vm3068, %v3061, %v3065
  %v3070 = vand.u32 2147483647, %v3060
  %vm3071 = vcmp.eq.f32.partialorder %v3070, 8.507059e+37
  %v3072 = vand.u32 %v3060, 2147483648
  %v3073 = vor.u32 1.1754944e-38, %v3072
  %v3074 = vsel %vm3071, %v3073, %v3069
  %v3075 = vmul.f32 1.0, %v3074
  %v3076 = vtanh.pop %v3036
  %v3077 = vxor.u32 %v3037, 2147483648
  %v3078 = vmul.f32 %v3077, 1.442695
  %v3079 = vpow.pop %v3078
  %v3080 = vadd.f32 %v3079, 1.0
  %v3081 = vrcp.pop %v3080
  %v3082 = vmul.f32 %v3080, %v3081
  %v3083 = vsub.f32 1.0, %v3082
  %v3084 = vmul.f32 %v3081, %v3083
  %v3085 = vadd.f32 %v3081, %v3084
  %vm3086 = vweird.f32 %v3080
  %vm3087 = vweird.f32 %v3081
  %vm3088 = vmor %vm3086, %vm3087
  %v3089 = vsel %vm3088, %v3081, %v3085
  %v3090 = vand.u32 2147483647, %v3080
  %vm3091 = vcmp.eq.f32.partialorder %v3090, 8.507059e+37
  %v3092 = vand.u32 %v3080, 2147483648
  %v3093 = vor.u32 1.1754944e-38, %v3092
  %v3094 = vsel %vm3091, %v3093, %v3089
  %v3095 = vmul.f32 1.0, %v3094
  %v3096 = vmul.f32 %v3075, %v2973
  %v3097 = vmul.f32 %v3056, %v3076
  %v3098 = vadd.f32 %v3096, %v3097
  %v3099 = vtanh.pop %v3098
  %v3100 = vmul.f32 %v3095, %v3099
  %v3101 = vtanh.pop %v3100
  %v3102 = vpack.c.bf16 %v3101, %v3101
  %v3103 = vld [vmem:[%s11] sm:$0xf]
  %v3104 = vld [vmem:[%s11 + $0x4] sm:$0xf]
  %v3105 = vld [vmem:[%s11 + $0x8] sm:$0xf]
  %v3106 = vld [vmem:[%s11 + $0xc] sm:$0xf]
  %v3107 = vld [vmem:[%s11 + $0x10] sm:$0xf]
  %v3108 = vld [vmem:[%s11 + $0x14] sm:$0xf]
  %v3109 = vld [vmem:[%s11 + $0x18] sm:$0xf]
  %v3110 = vld [vmem:[%s11 + $0x1c] sm:$0xf]
  %v3111 = vld [vmem:[%s11 + $0x20] sm:$0xf]
  %v3112 = vld [vmem:[%s11 + $0x24] sm:$0xf]
  %v3113 = vld [vmem:[%s11 + $0x28] sm:$0xf]
  %v3114 = vld [vmem:[%s11 + $0x2c] sm:$0xf]
  %v3115 = vld [vmem:[%s11 + $0x30] sm:$0xf]
  %v3116 = vld [vmem:[%s11 + $0x34] sm:$0xf]
  %v3117 = vld [vmem:[%s11 + $0x38] sm:$0xf]
  %v3118 = vld [vmem:[%s11 + $0x3c] sm:$0xf]
  %v3119 = vpack.c.bf16 %v3099, %v3099
  %v3120 = vld [vmem:[%s12] sm:$0xf]
  %v3121 = vld [vmem:[%s12 + $0x4] sm:$0xf]
  %v3122 = vld [vmem:[%s12 + $0x8] sm:$0xf]
  %v3123 = vld [vmem:[%s12 + $0xc] sm:$0xf]
  %v3124 = vld [vmem:[%s12 + $0x10] sm:$0xf]
  %v3125 = vld [vmem:[%s12 + $0x14] sm:$0xf]
  %v3126 = vld [vmem:[%s12 + $0x18] sm:$0xf]
  %v3127 = vld [vmem:[%s12 + $0x1c] sm:$0xf]
  %v3128 = vld [vmem:[%s12 + $0x20] sm:$0xf]
  %v3129 = vld [vmem:[%s12 + $0x24] sm:$0xf]
  %v3130 = vld [vmem:[%s12 + $0x28] sm:$0xf]
  %v3131 = vld [vmem:[%s12 + $0x2c] sm:$0xf]
  %v3132 = vld [vmem:[%s12 + $0x30] sm:$0xf]
  %v3133 = vld [vmem:[%s12 + $0x34] sm:$0xf]
  %v3134 = vld [vmem:[%s12 + $0x38] sm:$0xf]
  %v3135 = vld [vmem:[%s12 + $0x3c] sm:$0xf]
  %v3152 = vunpack.c.l.b16 %v3120
  %v3153 = vunpack.c.l.b16 %v3121
  %v3154 = vunpack.c.l.b16 %v3122
  %v3155 = vunpack.c.l.b16 %v3123
  %v3156 = vunpack.c.l.b16 %v3124
  %v3157 = vunpack.c.l.b16 %v3125
  %v3158 = vunpack.c.l.b16 %v3126
  %v3159 = vunpack.c.l.b16 %v3127
  %v3160 = vunpack.c.l.b16 %v3128
  %v3161 = vunpack.c.l.b16 %v3129
  %v3162 = vunpack.c.l.b16 %v3130
  %v3163 = vunpack.c.l.b16 %v3131
  %v3164 = vunpack.c.l.b16 %v3132
  %v3165 = vunpack.c.l.b16 %v3133
  %v3166 = vunpack.c.l.b16 %v3134
  %v3167 = vunpack.c.l.b16 %v3135
  %v3168 = vpack.c.b16 %v3153, %v3152
  %v3169 = vpack.c.b16 %v3155, %v3154
  %v3170 = vpack.c.b16 %v3157, %v3156
  %v3171 = vpack.c.b16 %v3159, %v3158
  %v3172 = vpack.c.b16 %v3161, %v3160
  %v3173 = vpack.c.b16 %v3163, %v3162
  %v3174 = vpack.c.b16 %v3165, %v3164
  %v3175 = vpack.c.b16 %v3167, %v3166
  %3184 = vmatpush.bf16.msra.mxu0 %v3175
  %3185 = vmatpush.bf16.msra.mxu0 %v3174
  %3186 = vmatpush.bf16.msra.mxu0 %v3173
  %3187 = vmatpush.bf16.msra.mxu0 %v3172
  %3188 = vmatpush.bf16.msra.mxu0 %v3171
  %3189 = vmatpush.bf16.msra.mxu0 %v3170
  %3190 = vmatpush.bf16.msra.mxu0 %v3169
  %3191 = vmatpush.bf16.msra.mxu0 %v3168
  %3192 = vmatmul.bf16.gmra.mxu0 %v3119
  %v3193 = vpop.f32.mrf.mxu0
  %v3194 = vadd.f32 0.0, %v3193
  %v3195 = vpop.f32.mrf.mxu0
  %3196 = vdwg.mxu0
  %v3213 = vunpack.c.l.b16 %v3103
  %v3214 = vunpack.c.l.b16 %v3104
  %v3215 = vunpack.c.l.b16 %v3105
  %v3216 = vunpack.c.l.b16 %v3106
  %v3217 = vunpack.c.l.b16 %v3107
  %v3218 = vunpack.c.l.b16 %v3108
  %v3219 = vunpack.c.l.b16 %v3109
  %v3220 = vunpack.c.l.b16 %v3110
  %v3221 = vunpack.c.l.b16 %v3111
  %v3222 = vunpack.c.l.b16 %v3112
  %v3223 = vunpack.c.l.b16 %v3113
  %v3224 = vunpack.c.l.b16 %v3114
  %v3225 = vunpack.c.l.b16 %v3115
  %v3226 = vunpack.c.l.b16 %v3116
  %v3227 = vunpack.c.l.b16 %v3117
  %v3228 = vunpack.c.l.b16 %v3118
  %v3229 = vpack.c.b16 %v3214, %v3213
  %v3230 = vpack.c.b16 %v3216, %v3215
  %v3231 = vpack.c.b16 %v3218, %v3217
  %v3232 = vpack.c.b16 %v3220, %v3219
  %v3233 = vpack.c.b16 %v3222, %v3221
  %v3234 = vpack.c.b16 %v3224, %v3223
  %v3235 = vpack.c.b16 %v3226, %v3225
  %v3236 = vpack.c.b16 %v3228, %v3227
  %3245 = vmatpush.bf16.msra.mxu0 %v3236
  %3246 = vmatpush.bf16.msra.mxu0 %v3235
  %3247 = vmatpush.bf16.msra.mxu0 %v3234
  %3248 = vmatpush.bf16.msra.mxu0 %v3233
  %3249 = vmatpush.bf16.msra.mxu0 %v3232
  %3250 = vmatpush.bf16.msra.mxu0 %v3231
  %3251 = vmatpush.bf16.msra.mxu0 %v3230
  %3252 = vmatpush.bf16.msra.mxu0 %v3229
  %3253 = vmatmul.bf16.gmra.mxu0 %v3102
  %v3254 = vpop.f32.mrf.mxu0
  %v3255 = vadd.f32 %v3194, %v3254
  %v3256 = vpop.f32.mrf.mxu0
  %3257 = vdwg.mxu0
  %v3258 = vld [vmem:[%s13] sm:$0x1]
  %v3260 = vperm.slane %v3258, 0
  %v3262 = vadd.f32 %v3255, %v3260
  %v3263 = vmul.f32 %v1540, %v3262
  %v3264 = vtanh.pop %v3263
  %v3265 = vpack.c.bf16 %v3264, %v3264
  %v3266 = vld [vmem:[%s14] sm:$0xf]
  %v3267 = vld [vmem:[%s14 + $0x4] sm:$0xf]
  %v3268 = vld [vmem:[%s14 + $0x8] sm:$0xf]
  %v3269 = vld [vmem:[%s14 + $0xc] sm:$0xf]
  %v3270 = vld [vmem:[%s14 + $0x10] sm:$0xf]
  %v3271 = vld [vmem:[%s14 + $0x14] sm:$0xf]
  %v3272 = vld [vmem:[%s14 + $0x18] sm:$0xf]
  %v3273 = vld [vmem:[%s14 + $0x1c] sm:$0xf]
  %v3274 = vld [vmem:[%s14 + $0x20] sm:$0xf]
  %v3275 = vld [vmem:[%s14 + $0x24] sm:$0xf]
  %v3276 = vld [vmem:[%s14 + $0x28] sm:$0xf]
  %v3277 = vld [vmem:[%s14 + $0x2c] sm:$0xf]
  %v3278 = vld [vmem:[%s14 + $0x30] sm:$0xf]
  %v3279 = vld [vmem:[%s14 + $0x34] sm:$0xf]
  %v3280 = vld [vmem:[%s14 + $0x38] sm:$0xf]
  %v3281 = vld [vmem:[%s14 + $0x3c] sm:$0xf]
  %v3282 = vld [vmem:[%s15] sm:$0x1]
  %v3284 = vperm.slane %v3282, 0
  %v3302 = vunpack.c.l.b16 %v3266
  %v3303 = vunpack.c.l.b16 %v3267
  %v3304 = vunpack.c.l.b16 %v3268
  %v3305 = vunpack.c.l.b16 %v3269
  %v3306 = vunpack.c.l.b16 %v3270
  %v3307 = vunpack.c.l.b16 %v3271
  %v3308 = vunpack.c.l.b16 %v3272
  %v3309 = vunpack.c.l.b16 %v3273
  %v3310 = vunpack.c.l.b16 %v3274
  %v3311 = vunpack.c.l.b16 %v3275
  %v3312 = vunpack.c.l.b16 %v3276
  %v3313 = vunpack.c.l.b16 %v3277
  %v3314 = vunpack.c.l.b16 %v3278
  %v3315 = vunpack.c.l.b16 %v3279
  %v3316 = vunpack.c.l.b16 %v3280
  %v3317 = vunpack.c.l.b16 %v3281
  %v3318 = vpack.c.b16 %v3303, %v3302
  %v3319 = vpack.c.b16 %v3305, %v3304
  %v3320 = vpack.c.b16 %v3307, %v3306
  %v3321 = vpack.c.b16 %v3309, %v3308
  %v3322 = vpack.c.b16 %v3311, %v3310
  %v3323 = vpack.c.b16 %v3313, %v3312
  %v3324 = vpack.c.b16 %v3315, %v3314
  %v3325 = vpack.c.b16 %v3317, %v3316
  %3334 = vmatpush.bf16.msra.mxu0 %v3325
  %3335 = vmatpush.bf16.msra.mxu0 %v3324
  %3336 = vmatpush.bf16.msra.mxu0 %v3323
  %3337 = vmatpush.bf16.msra.mxu0 %v3322
  %3338 = vmatpush.bf16.msra.mxu0 %v3321
  %3339 = vmatpush.bf16.msra.mxu0 %v3320
  %3340 = vmatpush.bf16.msra.mxu0 %v3319
  %3341 = vmatpush.bf16.msra.mxu0 %v3318
  %3342 = vmatmul.bf16.gmra.mxu0 %v3265
  %v3343 = vpop.f32.mrf.mxu0
  %v3344 = vadd.f32 %v3284, %v3343
  %v3345 = vpop.f32.mrf.mxu0
  %3346 = vdwg.mxu0
  %v3347 = vtanh.pop %v3344
  %v3348 = vpack.c.bf16 %v3347, %v3347
  %v3349 = vld [vmem:[%s16] sm:$0xf]
  %v3350 = vld [vmem:[%s16 + $0x4] sm:$0xf]
  %v3351 = vld [vmem:[%s16 + $0x8] sm:$0xf]
  %v3352 = vld [vmem:[%s16 + $0xc] sm:$0xf]
  %v3353 = vld [vmem:[%s16 + $0x10] sm:$0xf]
  %v3354 = vld [vmem:[%s16 + $0x14] sm:$0xf]
  %v3355 = vld [vmem:[%s16 + $0x18] sm:$0xf]
  %v3356 = vld [vmem:[%s16 + $0x1c] sm:$0xf]
  %v3357 = vld [vmem:[%s16 + $0x20] sm:$0xf]
  %v3358 = vld [vmem:[%s16 + $0x24] sm:$0xf]
  %v3359 = vld [vmem:[%s16 + $0x28] sm:$0xf]
  %v3360 = vld [vmem:[%s16 + $0x2c] sm:$0xf]
  %v3361 = vld [vmem:[%s16 + $0x30] sm:$0xf]
  %v3362 = vld [vmem:[%s16 + $0x34] sm:$0xf]
  %v3363 = vld [vmem:[%s16 + $0x38] sm:$0xf]
  %v3364 = vld [vmem:[%s16 + $0x3c] sm:$0xf]
  %v3365 = vld [vmem:[%s17] sm:$0x1]
  %v3367 = vperm.slane %v3365, 0
  %v3385 = vunpack.c.l.b16 %v3349
  %v3386 = vunpack.c.l.b16 %v3350
  %v3387 = vunpack.c.l.b16 %v3351
  %v3388 = vunpack.c.l.b16 %v3352
  %v3389 = vunpack.c.l.b16 %v3353
  %v3390 = vunpack.c.l.b16 %v3354
  %v3391 = vunpack.c.l.b16 %v3355
  %v3392 = vunpack.c.l.b16 %v3356
  %v3393 = vunpack.c.l.b16 %v3357
  %v3394 = vunpack.c.l.b16 %v3358
  %v3395 = vunpack.c.l.b16 %v3359
  %v3396 = vunpack.c.l.b16 %v3360
  %v3397 = vunpack.c.l.b16 %v3361
  %v3398 = vunpack.c.l.b16 %v3362
  %v3399 = vunpack.c.l.b16 %v3363
  %v3400 = vunpack.c.l.b16 %v3364
  %v3401 = vpack.c.b16 %v3386, %v3385
  %v3402 = vpack.c.b16 %v3388, %v3387
  %v3403 = vpack.c.b16 %v3390, %v3389
  %v3404 = vpack.c.b16 %v3392, %v3391
  %v3405 = vpack.c.b16 %v3394, %v3393
  %v3406 = vpack.c.b16 %v3396, %v3395
  %v3407 = vpack.c.b16 %v3398, %v3397
  %v3408 = vpack.c.b16 %v3400, %v3399
  %3417 = vmatpush.bf16.msra.mxu0 %v3408
  %3418 = vmatpush.bf16.msra.mxu0 %v3407
  %3419 = vmatpush.bf16.msra.mxu0 %v3406
  %3420 = vmatpush.bf16.msra.mxu0 %v3405
  %3421 = vmatpush.bf16.msra.mxu0 %v3404
  %3422 = vmatpush.bf16.msra.mxu0 %v3403
  %3423 = vmatpush.bf16.msra.mxu0 %v3402
  %3424 = vmatpush.bf16.msra.mxu0 %v3401
  %3425 = vmatmul.bf16.gmra.mxu0 %v3348
  %v3426 = vpop.f32.mrf.mxu0
  %v3427 = vadd.f32 %v3367, %v3426
  %v3428 = vpop.f32.mrf.mxu0
  %3429 = vdwg.mxu0
  %3430 = vst [vmem:[%s18] sm:$0xff] %v3427
  // Predicated region
  $region74: #{vqa_forward.5} parent=0 // pred_check
    _
  $region75: #{vqa_forward.5} parent=0 // pred_check_branch
    %3432 = sbr.rel (0) target = $region77
  $region76: #{vqa_forward.5} parent=0 // pred_region
    _
  $region77: #{vqa_forward.5} parent=0 // pred_fallthru
    _
  // Predicated region
  $region78: #{vqa_forward.5} parent=0 // pred_check
    _
  $region79: #{vqa_forward.5} parent=0 // pred_check_branch
    %3434 = sbr.rel (0) target = $region81
  $region80: #{vqa_forward.5} parent=0 // pred_region
    _
  $region81: #{vqa_forward.5} parent=0 // pred_fallthru
    _

</llo_original>
